<compile_context>
chip_gen: v7x
topology: tpu7x:2x2x1
jax: 0.10.0
libtpu: 0.0.40
codegen_flags: <defaults>
</compile_context>

<pallas_src>
import jax
import jax.numpy as jnp
from jax import lax
from jax.experimental import pallas as pl
from jax.experimental.pallas import tpu as pltpu

N_CLASS = 5
ROI_SIZE = 7                       # must be 7: Conv2d(256,1024,k=7,s=7) collapses 7x7 -> 1x1
C_IN = 256
HIDDEN = 1024
K = C_IN * ROI_SIZE * ROI_SIZE     # 12544
TK = 1792                          # 12544 / 1792 = 7 grid steps, 1792 = 14 * 128
OUT_PAD = 128                      # fused lane-padded head width (>= 5 * n_class)
MAX_SINGLE_TILE = 512              # if R fits here, stream W1 exactly once
MULTI_TILE = 256                   # M tile when R > MAX_SINGLE_TILE


# ----------------------------- Pallas kernel ---------------------------------
def head_kernel(x_ref, w1_ref, b1_ref, w2_ref, b2_ref, wh_ref, bh_ref,
                out_ref, acc_ref):
    k = pl.program_id(1)

    @pl.when(k == 0)
    def _():
        acc_ref[...] = jnp.zeros_like(acc_ref)

    # conv1 (7x7, stride 7, pad 0) on a 7x7 tile == big matmul over K, tiled by TK.
    # bf16 x bf16 operands, f32 accumulation on the MXU.
    acc_ref[...] += jnp.dot(x_ref[...], w1_ref[...],
                            preferred_element_type=jnp.float32)

    @pl.when(k == pl.num_programs(1) - 1)
    def _():
        h1 = jnp.maximum(acc_ref[...] + b1_ref[...], 0.0)                  # ReLU(conv1)
        h2 = jnp.dot(h1.astype(jnp.bfloat16), w2_ref[...],                 # conv2 1x1
                     preferred_element_type=jnp.float32)
        h2 = jnp.maximum(h2 + b2_ref[...], 0.0)                            # ReLU(conv2)
        # mean(3).mean(2) over a 1x1 spatial map is the identity -> h2 == fc7
        # fused cls_loc / score head: single [1024, 128] matmul, lane-dense store
        out = jnp.dot(h2.astype(jnp.bfloat16), wh_ref[...],
                      preferred_element_type=jnp.float32) + bh_ref[...]
        out_ref[...] = out.astype(out_ref.dtype)


def head_call(xp, w1, b1, w2, b2, wh, bh, m_tile):
    m_pad = xp.shape[0]
    m_tiles = m_pad // m_tile
    kt = K // TK
    out = pl.pallas_call(
        head_kernel,
        out_shape=jax.ShapeDtypeStruct((m_pad, OUT_PAD), jnp.float32),
        grid_spec=pltpu.PrefetchScalarGridSpec(
            num_scalar_prefetch=0,
            grid=(m_tiles, kt),                                   # reduction axis last
            in_specs=[
                pl.BlockSpec((m_tile, TK), lambda m, k: (m, k)),      # x tile (bf16)
                pl.BlockSpec((TK, HIDDEN), lambda m, k: (k, 0)),      # W1 tile (bf16)
                pl.BlockSpec((1, HIDDEN), lambda m, k: (0, 0)),       # b1 (f32)
                pl.BlockSpec((HIDDEN, HIDDEN), lambda m, k: (0, 0)),  # W2 (bf16, resident)
                pl.BlockSpec((1, HIDDEN), lambda m, k: (0, 0)),       # b2 (f32)
                pl.BlockSpec((HIDDEN, OUT_PAD), lambda m, k: (0, 0)), # fused W_head (bf16)
                pl.BlockSpec((1, OUT_PAD), lambda m, k: (0, 0)),      # fused b_head (f32)
            ],
            out_specs=pl.BlockSpec((m_tile, OUT_PAD), lambda m, k: (m, 0)),
            scratch_shapes=[pltpu.VMEM((m_tile, HIDDEN), jnp.float32)],
        ),
        compiler_params=pltpu.CompilerParams(
            dimension_semantics=("parallel", "arbitrary"),   # M tiles split across TCs
            vmem_limit_bytes=48 * 1024 * 1024),              # above small scoped defaults
    )(xp, w1, b1, w2, b2, wh, bh)
    return out


# --------------------------- Pyramid RoI pooling (JAX glue) -------------------
def _roi_pool_single(feat, x1, y1, x2, y2, scale, roi_size):
    # feat: [C, H, W]; legacy (quantized, max) RoIPool semantics.
    C, H, W = feat.shape
    rsw = jnp.round(x1 * scale)
    rsh = jnp.round(y1 * scale)
    rew = jnp.round(x2 * scale)
    reh = jnp.round(y2 * scale)
    roi_w = jnp.maximum(rew - rsw + 1.0, 1.0)
    roi_h = jnp.maximum(reh - rsh + 1.0, 1.0)
    bw = roi_w / roi_size
    bh = roi_h / roi_size
    p = jnp.arange(roi_size, dtype=jnp.float32)
    hstart = jnp.clip(jnp.floor(p * bh) + rsh, 0.0, float(H))
    hend = jnp.clip(jnp.ceil((p + 1.0) * bh) + rsh, 0.0, float(H))
    wstart = jnp.clip(jnp.floor(p * bw) + rsw, 0.0, float(W))
    wend = jnp.clip(jnp.ceil((p + 1.0) * bw) + rsw, 0.0, float(W))
    hi = jnp.arange(H, dtype=jnp.float32)
    wi = jnp.arange(W, dtype=jnp.float32)
    hmask = (hi[None, :] >= hstart[:, None]) & (hi[None, :] < hend[:, None])  # [rs, H]
    wmask = (wi[None, :] >= wstart[:, None]) & (wi[None, :] < wend[:, None])  # [rs, W]
    NEG = jnp.float32(-3.0e38)
    # masked max over W -> [C, H, rs_w]
    fw = jnp.max(jnp.where(wmask[None, None, :, :], feat[:, :, None, :], NEG), axis=-1)
    # masked max over H -> [C, rs_h, rs_w]
    fwt = jnp.transpose(fw, (0, 2, 1))                                       # [C, rs_w, H]
    fhw = jnp.max(jnp.where(hmask[None, :, None, :], fwt[:, None, :, :], NEG), axis=-1)
    empty = (~jnp.any(hmask, axis=1))[:, None] | (~jnp.any(wmask, axis=1))[None, :]
    return jnp.where(empty[None, :, :], 0.0, fhw)


def pyramid_roi_feat(features, rois, roi_indices, img_size, roi_size=ROI_SIZE):
    # TODO(synk): vmap(lax.switch) computes pooling on all 4 FPN levels and selects;
    #             grouping RoIs by level needs dynamic shapes and stays a known perf gap.
    rois = rois.astype(jnp.float32)
    h = rois[:, 2] - rois[:, 0] + 1.0
    w = rois[:, 3] - rois[:, 1] + 1.0
    # Matches the PyTorch reference: natural log, clamp to [2, 5].
    roi_level = jnp.round(jnp.log(jnp.sqrt(h * w) / 224.0) + 4.0)
    roi_level = jnp.clip(roi_level, 2.0, 5.0)
    level_idx = (roi_level - 2.0).astype(jnp.int32)
    # (idx, y1, x1, y2, x2) -> RoIPool gets (x1, y1, x2, y2)
    x1, y1, x2, y2 = rois[:, 1], rois[:, 0], rois[:, 3], rois[:, 2]
    bidx = roi_indices.astype(jnp.int32)

    def pool_one(b, xx1, yy1, xx2, yy2, lvl):
        branches = []
        for i in range(4):
            feat_i = features[i]
            scale_i = feat_i.shape[2] / float(img_size[0])

            def br(_, feat_i=feat_i, scale_i=scale_i):
                return _roi_pool_single(feat_i[b], xx1, yy1, xx2, yy2, scale_i, roi_size)

            branches.append(br)
        return lax.switch(lvl, branches, 0)

    return jax.vmap(pool_one)(bidx, x1, y1, x2, y2, level_idx)   # [R, 256, 7, 7]


# ----------------------------- parameters -------------------------------------
def init_params(key, n_class):
    assert 5 * n_class <= OUT_PAD, "fused head must fit in one 128-lane slab"
    ks = jax.random.split(key, 4)
    # top: Conv2d(256,1024,7,7) ; Conv2d(1024,1024,1,1)  (deterministic synthetic init)
    w_conv1 = jax.random.normal(ks[0], (HIDDEN, C_IN, ROI_SIZE, ROI_SIZE), jnp.float32) * 0.01
    b_conv1 = jnp.zeros((HIDDEN,), jnp.float32)
    w_conv2 = jax.random.normal(ks[1], (HIDDEN, HIDDEN, 1, 1), jnp.float32) * 0.01
    b_conv2 = jnp.zeros((HIDDEN,), jnp.float32)
    # cls_loc: Linear(1024, n_class*4), normal_init std=0.001, bias zero
    w_loc = jax.random.normal(ks[2], (n_class * 4, HIDDEN), jnp.float32) * 0.001
    b_loc = jnp.zeros((n_class * 4,), jnp.float32)
    # score: Linear(1024, n_class), normal_init std=0.01, bias zero
    w_sc = jax.random.normal(ks[3], (n_class, HIDDEN), jnp.float32) * 0.01
    b_sc = jnp.zeros((n_class,), jnp.float32)

    # repack into kernel layout: weights bf16 (streamed), biases f32 (VPU math)
    w1 = w_conv1.reshape(HIDDEN, K).T.astype(jnp.bfloat16)       # [K, 1024]
    b1 = b_conv1.reshape(1, HIDDEN)
    w2 = w_conv2.reshape(HIDDEN, HIDDEN).T.astype(jnp.bfloat16)  # [1024, 1024]
    b2 = b_conv2.reshape(1, HIDDEN)

    # fused head: cols [0:4n) = cls_loc, cols [4n:5n) = score
    n_loc = n_class * 4
    wh = jnp.zeros((HIDDEN, OUT_PAD), jnp.float32)
    wh = wh.at[:, :n_loc].set(w_loc.T).at[:, n_loc:n_loc + n_class].set(w_sc.T)
    bh = jnp.zeros((1, OUT_PAD), jnp.float32)
    bh = bh.at[0, :n_loc].set(b_loc).at[0, n_loc:n_loc + n_class].set(b_sc)

    return dict(w1=w1, b1=b1, w2=w2, b2=b2,
                wh=wh.astype(jnp.bfloat16), bh=bh)


# ----------------------------- forward -----------------------------------------
def mbnet_roi_head_forward(params, n_class, features, rois, roi_indices, img_size):
    pooled = pyramid_roi_feat(features, rois, roi_indices, img_size)   # [R, 256, 7, 7]
    R = pooled.shape[0]
    x = pooled.reshape(R, K)                                           # NCHW flatten

    # Choose M tiling: single tile (one W1 stream) when all RoIs fit, else 256-row tiles.
    if R <= MAX_SINGLE_TILE:
        m_tile = max(8, -(-R // 8) * 8)        # sublane-aligned
        m_pad = m_tile
    else:
        m_tile = MULTI_TILE
        m_pad = -(-R // m_tile) * m_tile

    xp = jnp.zeros((m_pad, K), jnp.bfloat16).at[:R].set(x.astype(jnp.bfloat16))
    out = head_call(xp, params["w1"], params["b1"], params["w2"], params["b2"],
                    params["wh"], params["bh"], m_tile)
    n_loc = n_class * 4
    return out[:R, :n_loc], out[:R, n_loc:n_loc + n_class]


if __name__ == "__main__":
    key = jax.random.PRNGKey(0)
    kf = jax.random.split(key, 10)

    B = 2
    R = 6
    img_size = (64, 64)
    # FPN levels P2..P5 (NCHW), strides 4/8/16/32
    features = [
        jax.random.normal(kf[i], (B, C_IN, img_size[0] // s, img_size[1] // s), jnp.float32)
        for i, s in enumerate((4, 8, 16, 32))
    ]
    # deterministic rois in (y1, x1, y2, x2) image coordinates
    y1 = jax.random.uniform(kf[4], (R,), minval=0.0, maxval=30.0)
    x1 = jax.random.uniform(kf[5], (R,), minval=0.0, maxval=30.0)
    hh = jax.random.uniform(kf[6], (R,), minval=8.0, maxval=33.0)
    ww = jax.random.uniform(kf[7], (R,), minval=8.0, maxval=33.0)
    rois = jnp.stack([y1, x1,
                      jnp.minimum(y1 + hh, img_size[0] - 1.0),
                      jnp.minimum(x1 + ww, img_size[1] - 1.0)], axis=1)
    roi_indices = jnp.array([0, 1, 0, 1, 0, 1], dtype=jnp.int32)

    params = init_params(kf[8], N_CLASS)

    roi_cls_locs, roi_scores = mbnet_roi_head_forward(
        params, N_CLASS, features, rois, roi_indices, img_size)
    jax.block_until_ready((roi_cls_locs, roi_scores))

    assert roi_cls_locs.shape == (R, N_CLASS * 4)
    assert roi_scores.shape == (R, N_CLASS)
    assert jnp.all(jnp.isfinite(roi_cls_locs)) and jnp.all(jnp.isfinite(roi_scores))
    print("KERNEL_OK")
</pallas_src>

<mosaic_0001>
module attributes {stable_mosaic.version = 11 : i64} {
  func.func @head_kernel(%arg0: i32, %arg1: i32, %arg2: memref<8x1792xbf16, #tpu.memory_space<vmem>>, %arg3: memref<1792x1024xbf16, #tpu.memory_space<vmem>>, %arg4: memref<1x1024xf32, #tpu.memory_space<vmem>>, %arg5: memref<1024x1024xbf16, #tpu.memory_space<vmem>>, %arg6: memref<1x1024xf32, #tpu.memory_space<vmem>>, %arg7: memref<1024x128xbf16, #tpu.memory_space<vmem>>, %arg8: memref<1x128xf32, #tpu.memory_space<vmem>>, %arg9: memref<8x128xf32, #tpu.memory_space<vmem>>, %arg10: memref<8x1024xf32, #tpu.memory_space<vmem>>) attributes {dimension_semantics = [#tpu.dimension_semantics<parallel>, #tpu.dimension_semantics<arbitrary>], iteration_bounds = array<i64: 1, 7>, scalar_prefetch = 0 : i64, scratch_operands = 1 : i64, tpu.core_type = #tpu.core_type<tc>, window_params = [{transform_indices = @transform_0, window_bounds = array<i64: 8, 1792>}, {transform_indices = @transform_1, window_bounds = array<i64: 1792, 1024>}, {pipeline_mode = #tpu.pipeline_mode<synchronous>, transform_indices = @transform_2, window_bounds = array<i64: 1, 1024>}, {pipeline_mode = #tpu.pipeline_mode<synchronous>, transform_indices = @transform_3, window_bounds = array<i64: 1024, 1024>}, {pipeline_mode = #tpu.pipeline_mode<synchronous>, transform_indices = @transform_4, window_bounds = array<i64: 1, 1024>}, {pipeline_mode = #tpu.pipeline_mode<synchronous>, transform_indices = @transform_5, window_bounds = array<i64: 1024, 128>}, {pipeline_mode = #tpu.pipeline_mode<synchronous>, transform_indices = @transform_6, window_bounds = array<i64: 1, 128>}, {transform_indices = @transform_7, window_bounds = array<i64: 8, 128>}]} {
    %c0_i32 = arith.constant 0 : i32
    %0 = arith.cmpi eq, %arg1, %c0_i32 : i32
    %1 = arith.extui %0 : i1 to i32
    %c0_i32_0 = arith.constant 0 : i32
    %2 = arith.cmpi ne, %1, %c0_i32_0 : i32
    scf.if %2 {
      %cst_9 = arith.constant 0.000000e+00 : f32
      %12 = vector.broadcast %cst_9 : f32 to vector<8x1024xf32>
      %c0_10 = arith.constant 0 : index
      %c0_11 = arith.constant 0 : index
      %13 = vector.load %arg10[%c0_10, %c0_11] : memref<8x1024xf32, #tpu.memory_space<vmem>>, vector<8x1024xf32>
      tpu.vector_store %arg10[%c0_10, %c0_11], %12 {strides = array<i32>} : memref<8x1024xf32, #tpu.memory_space<vmem>>, vector<8x1024xf32>,
    } else {
    }
    %c0 = arith.constant 0 : index
    %c0_1 = arith.constant 0 : index
    %3 = vector.load %arg10[%c0, %c0_1] : memref<8x1024xf32, #tpu.memory_space<vmem>>, vector<8x1024xf32>
    %c0_2 = arith.constant 0 : index
    %c0_3 = arith.constant 0 : index
    %4 = vector.load %arg2[%c0_2, %c0_3] : memref<8x1792xbf16, #tpu.memory_space<vmem>>, vector<8x1792xbf16>
    %c0_4 = arith.constant 0 : index
    %c0_5 = arith.constant 0 : index
    %5 = vector.load %arg3[%c0_4, %c0_5] : memref<1792x1024xbf16, #tpu.memory_space<vmem>>, vector<1792x1024xbf16>
    %cst = arith.constant dense<0.000000e+00> : vector<8x1024xf32>
    %6 = tpu.matmul %4, %5, %cst {dimension_numbers = #tpu.dot_dimension_numbers<[1], [0], [0], [1], [0, 0, 1, 1], [], []>} : vector<8x1792xbf16>, vector<1792x1024xbf16>, vector<8x1024xf32> -> vector<8x1024xf32>
    %7 = arith.addf %3, %6 : vector<8x1024xf32>
    %c0_6 = arith.constant 0 : index
    %c0_7 = arith.constant 0 : index
    %8 = vector.load %arg10[%c0_6, %c0_7] : memref<8x1024xf32, #tpu.memory_space<vmem>>, vector<8x1024xf32>
    tpu.vector_store %arg10[%c0_6, %c0_7], %7 {strides = array<i32>} : memref<8x1024xf32, #tpu.memory_space<vmem>>, vector<8x1024xf32>,
    %c6_i32 = arith.constant 6 : i32
    %9 = arith.cmpi eq, %arg1, %c6_i32 : i32
    %10 = arith.extui %9 : i1 to i32
    %c0_i32_8 = arith.constant 0 : i32
    %11 = arith.cmpi ne, %10, %c0_i32_8 : i32
    scf.if %11 {
      %c0_9 = arith.constant 0 : index
      %c0_10 = arith.constant 0 : index
      %12 = vector.load %arg10[%c0_9, %c0_10] : memref<8x1024xf32, #tpu.memory_space<vmem>>, vector<8x1024xf32>
      %c0_11 = arith.constant 0 : index
      %c0_12 = arith.constant 0 : index
      %13 = vector.load %arg4[%c0_11, %c0_12] : memref<1x1024xf32, #tpu.memory_space<vmem>>, vector<1x1024xf32>
      %14 = vector.broadcast %13 : vector<1x1024xf32> to vector<8x1024xf32>
      %15 = arith.addf %12, %14 : vector<8x1024xf32>
      %cst_13 = arith.constant 0.000000e+00 : f32
      %16 = vector.broadcast %cst_13 : f32 to vector<8x1024xf32>
      %17 = arith.maximumf %15, %16 : vector<8x1024xf32>
      %18 = arith.truncf %17 : vector<8x1024xf32> to vector<8x1024xbf16>
      %c0_14 = arith.constant 0 : index
      %c0_15 = arith.constant 0 : index
      %19 = vector.load %arg5[%c0_14, %c0_15] : memref<1024x1024xbf16, #tpu.memory_space<vmem>>, vector<1024x1024xbf16>
      %cst_16 = arith.constant dense<0.000000e+00> : vector<8x1024xf32>
      %20 = tpu.matmul %18, %19, %cst_16 {dimension_numbers = #tpu.dot_dimension_numbers<[1], [0], [0], [1], [0, 0, 1, 1], [], []>} : vector<8x1024xbf16>, vector<1024x1024xbf16>, vector<8x1024xf32> -> vector<8x1024xf32>
      %c0_17 = arith.constant 0 : index
      %c0_18 = arith.constant 0 : index
      %21 = vector.load %arg6[%c0_17, %c0_18] : memref<1x1024xf32, #tpu.memory_space<vmem>>, vector<1x1024xf32>
      %22 = vector.broadcast %21 : vector<1x1024xf32> to vector<8x1024xf32>
      %23 = arith.addf %20, %22 : vector<8x1024xf32>
      %cst_19 = arith.constant 0.000000e+00 : f32
      %24 = vector.broadcast %cst_19 : f32 to vector<8x1024xf32>
      %25 = arith.maximumf %23, %24 : vector<8x1024xf32>
      %26 = arith.truncf %25 : vector<8x1024xf32> to vector<8x1024xbf16>
      %c0_20 = arith.constant 0 : index
      %c0_21 = arith.constant 0 : index
      %27 = vector.load %arg7[%c0_20, %c0_21] : memref<1024x128xbf16, #tpu.memory_space<vmem>>, vector<1024x128xbf16>
      %cst_22 = arith.constant dense<0.000000e+00> : vector<8x128xf32>
      %28 = tpu.matmul %26, %27, %cst_22 {dimension_numbers = #tpu.dot_dimension_numbers<[1], [0], [0], [1], [0, 0, 1, 1], [], []>} : vector<8x1024xbf16>, vector<1024x128xbf16>, vector<8x128xf32> -> vector<8x128xf32>
      %c0_23 = arith.constant 0 : index
      %c0_24 = arith.constant 0 : index
      %29 = vector.load %arg8[%c0_23, %c0_24] : memref<1x128xf32, #tpu.memory_space<vmem>>, vector<1x128xf32>
      %30 = vector.broadcast %29 : vector<1x128xf32> to vector<8x128xf32>
      %31 = arith.addf %28, %30 : vector<8x128xf32>
      %c0_25 = arith.constant 0 : index
      %c0_26 = arith.constant 0 : index
      %32 = vector.load %arg9[%c0_25, %c0_26] : memref<8x128xf32, #tpu.memory_space<vmem>>, vector<8x128xf32>
      tpu.vector_store %arg9[%c0_25, %c0_26], %31 {strides = array<i32>} : memref<8x128xf32, #tpu.memory_space<vmem>>, vector<8x128xf32>,
    } else {
    }
    return
  }
  func.func @transform_0(%arg0: i32, %arg1: i32) -> (i32, i32) {
    %c0_i32 = arith.constant 0 : i32
    return %arg0, %arg1 : i32, i32
  }
  func.func @transform_1(%arg0: i32, %arg1: i32) -> (i32, i32) {
    %c0_i32 = arith.constant 0 : i32
    %c0_i32_0 = arith.constant 0 : i32
    return %arg1, %c0_i32 : i32, i32
  }
  func.func @transform_2(%arg0: i32, %arg1: i32) -> (i32, i32) {
    %c0_i32 = arith.constant 0 : i32
    %c0_i32_0 = arith.constant 0 : i32
    %c0_i32_1 = arith.constant 0 : i32
    return %c0_i32, %c0_i32_0 : i32, i32
  }
  func.func @transform_3(%arg0: i32, %arg1: i32) -> (i32, i32) {
    %c0_i32 = arith.constant 0 : i32
    %c0_i32_0 = arith.constant 0 : i32
    %c0_i32_1 = arith.constant 0 : i32
    return %c0_i32, %c0_i32_0 : i32, i32
  }
  func.func @transform_4(%arg0: i32, %arg1: i32) -> (i32, i32) {
    %c0_i32 = arith.constant 0 : i32
    %c0_i32_0 = arith.constant 0 : i32
    %c0_i32_1 = arith.constant 0 : i32
    return %c0_i32, %c0_i32_0 : i32, i32
  }
  func.func @transform_5(%arg0: i32, %arg1: i32) -> (i32, i32) {
    %c0_i32 = arith.constant 0 : i32
    %c0_i32_0 = arith.constant 0 : i32
    %c0_i32_1 = arith.constant 0 : i32
    return %c0_i32, %c0_i32_0 : i32, i32
  }
  func.func @transform_6(%arg0: i32, %arg1: i32) -> (i32, i32) {
    %c0_i32 = arith.constant 0 : i32
    %c0_i32_0 = arith.constant 0 : i32
    %c0_i32_1 = arith.constant 0 : i32
    return %c0_i32, %c0_i32_0 : i32, i32
  }
  func.func @transform_7(%arg0: i32, %arg1: i32) -> (i32, i32) {
    %c0_i32 = arith.constant 0 : i32
    %c0_i32_0 = arith.constant 0 : i32
    return %arg0, %c0_i32 : i32, i32
  }
}

</mosaic_0001>

<llo_original>
// kernel: tpu_custom_call.1
$region0: #{tpu_custom_call.1}
  #allocation0 [shape = 'u32[]', space=smem, size = 0x4, offset = 0x4, fixed_abs, tag = 'smem constant byte address 0x4 - core index']
  #allocation1 [shape = 'u32[144,128]{1,0:T(1,128)}', space=vmem, size = 0x12000, scoped, tag = 'internal scratch']
  #allocation2 [shape = 'f32[8,1024]{1,0:T(8,128)}', space=vmem, size = 0x8000, scoped, tag = 'scratch operand']
  %s0 = inlined_call_operand.hbm [shape: bf16[8,12544], index: 0, kind: input, shape index: {}]
  %s1 = inlined_call_operand.hbm [shape: bf16[12544,1024], index: 1, kind: input, shape index: {}]
  %s2 = inlined_call_operand.hbm [shape: f32[1,1024], index: 2, kind: input, shape index: {}]
  %s3 = inlined_call_operand.hbm [shape: bf16[1024,1024], index: 3, kind: input, shape index: {}]
  %s4 = inlined_call_operand.hbm [shape: f32[1,1024], index: 4, kind: input, shape index: {}]
  %s5 = inlined_call_operand.hbm [shape: bf16[1024,128], index: 5, kind: input, shape index: {}]
  %s6 = inlined_call_operand.hbm [shape: f32[1,128], index: 6, kind: input, shape index: {}]
  %s7 = inlined_call_operand.hbm [shape: f32[8,128], index: 7, kind: output, shape index: {}]
  %s8 = sld [smem:[#allocation0]]
  $region97: #{tpu_custom_call.1} parent=0
    _
  %s10 = ssub.s32 1, %s8
  %s11 = scalar_select 0, %s10, %s8
  $region1: #{tpu_custom_call.1} parent=0
    #allocation3 [shape = 'u8[57344]{0}', space=vmem, size = 0xe000, scoped, tag = 'input window, operand 0']
    #allocation4 [shape = 's32[2]{0}', space=sflag, size = 0x8, scoped, tag = 'scoped memory for tpu_custom_call.1']
    #allocation5 [shape = 's32[2]{0}', space=sflag, size = 0x8, scoped, tag = 'scoped memory for tpu_custom_call.1']
    #allocation6 [shape = 'u8[7340032]{0}', space=vmem, size = 0x700000, scoped, tag = 'input window, operand 1']
    #allocation7 [shape = 's32[2]{0}', space=sflag, size = 0x8, scoped, tag = 'scoped memory for tpu_custom_call.1']
    #allocation8 [shape = 'u8[4096]{0}', space=vmem, size = 0x1000, scoped, tag = 'input window, operand 2, single buffered']
    #allocation9 [shape = 'u8[2097152]{0}', space=vmem, size = 0x200000, scoped, tag = 'input window, operand 3, single buffered']
    #allocation10 [shape = 's32[1]{0}', space=sflag, size = 0x4, scoped, tag = 'scoped memory for tpu_custom_call.1']
    #allocation11 [shape = 'u8[4096]{0}', space=vmem, size = 0x1000, scoped, tag = 'input window, operand 4, single buffered']
    #allocation12 [shape = 'u8[262144]{0}', space=vmem, size = 0x40000, scoped, tag = 'input window, operand 5, single buffered']
    #allocation13 [shape = 's32[1]{0}', space=sflag, size = 0x4, scoped, tag = 'scoped memory for tpu_custom_call.1']
    #allocation14 [shape = 'u8[512]{0}', space=vmem, size = 0x400, scoped, tag = 'input window, operand 6, single buffered']
    #allocation15 [shape = 'u8[4096]{0}', space=vmem, size = 0x1000, scoped, tag = 'output window, operand 0, single buffered']
    %12 = vsyncpa [#allocation4], 0
    %s13 = scalar_lea.sflag [#allocation4], 1
    %14 = vsyncpa %s13, 0
    %15 = vsyncpa [#allocation7], 0
    %s16 = scalar_lea.sflag [#allocation7], 1
    %17 = vsyncpa %s16, 0
    %18 = vsyncpa [#allocation10], 0
    %19 = vsyncpa [#allocation13], 0
    %20 = vsyncpa [#allocation5], 0
    loop: start=0, step=1, limit=9
    $region2: #{tpu_custom_call.1} parent=1 // loop_pre_header
      _
    $region3: #{tpu_custom_call.1} parent=1 // loop_header
      %s22 = sphi 0, %s26
      %p23 = scmp.ge.s32.totalorder %s22, 9
      %s29 = sphi 0, %s41
      %s30 = sphi 0, %s37
      %s31 = sphi 0, %s29
      %s32 = sphi 0, %s30
      %s33 = sphi 0, %s31
      %s34 = sphi 0, %s32
      %s46 = sphi 0, %s48
      %s49 = sphi 0, %s46
      %s50 = sphi 0, %s49
      %s66 = sphi 0, %s50
      %s72 = sphi 0, %s74
      %s75 = sphi 0, %s72
      %s76 = sphi 0, %s75
      %s92 = sphi 0, %s76
      %s96 = sphi 0, %s96
      %s98 = sphi 0, %s96
      %s99 = sphi 0, %s98
      %s113 = sphi 0, %s99
      %s117 = sphi 0, %s117
      %s119 = sphi 0, %s117
      %s120 = sphi 0, %s119
      %s134 = sphi 0, %s120
      %s138 = sphi 0, %s138
      %s140 = sphi 0, %s138
      %s141 = sphi 0, %s140
      %s155 = sphi 0, %s141
      %s159 = sphi 0, %s159
      %s161 = sphi 0, %s159
      %s162 = sphi 0, %s161
      %s176 = sphi 0, %s162
      %s180 = sphi 0, %s180
      %s182 = sphi 0, %s180
      %s183 = sphi 0, %s182
      %s197 = sphi 0, %s183
      %s203 = sphi 0, %s205
      %s206 = sphi 0, %s203
      %s207 = sphi 0, %s206
      %s223 = sphi 0, %s207
    $region4: #{tpu_custom_call.1} parent=1 // loop_header_branch
      %25 = sbr.rel (%p23) target = $region8
    $region5: #{tpu_custom_call.1} parent=1 // loop_body
      %s27 = ssub.s32 %s22, 1
      %s28 = ssub.s32 %s22, 2
      %s35 = sadd.s32 1, %s30
      %p36 = scmp.ge.s32.totalorder %s35, 7
      %s37 = scalar_select %p36, 0, %s35
      %s38 = sadd.s32 1, %s29
      %s39 = scalar_select %p36, %s38, %s29
      %p40 = scmp.ge.s32.totalorder %s39, 1
      %s41 = scalar_select %p40, 0, %s39
      %s42 = ssub.s32 %s29, %s41
      %s43 = ssub.s32 %s30, %s37
      %s44 = sor.u32 %s42, %s43
      %p45 = scmp.eq.s32.totalorder %s44, 0
      %s47 = sadd.s32 %s46, 1
      %s48 = scalar_select %p45, %s46, %s47
      %p51 = pneg %p45
      %p52 = scmp.eq.s32.totalorder %s22, 6
      %p53 = por %p51, %p52
      %p54 = scmp.ne.s32.totalorder %s46, %s49
      %p55 = scmp.eq.s32.totalorder %s22, 0
      %p56 = por %p54, %p55
      %p57 = scmp.ne.s32.totalorder %s46, %s49
      %p58 = scmp.eq.s32.totalorder %s27, 6
      %p59 = por %p57, %p58
      %p60 = scmp.ne.s32.totalorder %s49, %s50
      %p61 = scmp.eq.s32.totalorder %s27, 0
      %p62 = por %p60, %p61
      %p63 = scmp.ne.s32.totalorder %s49, %s50
      %p64 = scmp.eq.s32.totalorder %s28, 6
      %p65 = por %p63, %p64
      %p67 = scmp.ne.s32.totalorder %s50, %s66
      %p68 = scmp.eq.s32.totalorder %s28, 0
      %p69 = por %p67, %p68
      %s70 = ssub.s32 %s30, %s37
      %p71 = scmp.eq.s32.totalorder %s70, 0
      %s73 = sadd.s32 %s72, 1
      %s74 = scalar_select %p71, %s72, %s73
      %p77 = pneg %p71
      %p78 = scmp.eq.s32.totalorder %s22, 6
      %p79 = por %p77, %p78
      %p80 = scmp.ne.s32.totalorder %s72, %s75
      %p81 = scmp.eq.s32.totalorder %s22, 0
      %p82 = por %p80, %p81
      %p83 = scmp.ne.s32.totalorder %s72, %s75
      %p84 = scmp.eq.s32.totalorder %s27, 6
      %p85 = por %p83, %p84
      %p86 = scmp.ne.s32.totalorder %s75, %s76
      %p87 = scmp.eq.s32.totalorder %s27, 0
      %p88 = por %p86, %p87
      %p89 = scmp.ne.s32.totalorder %s75, %s76
      %p90 = scmp.eq.s32.totalorder %s28, 6
      %p91 = por %p89, %p90
      %p93 = scmp.ne.s32.totalorder %s76, %s92
      %p94 = scmp.eq.s32.totalorder %s28, 0
      %p95 = por %p93, %p94
      %s97 = sadd.s32 %s96, 1
      %p100 = scmp.eq.s32.totalorder %s22, 6
      %p101 = scmp.ne.s32.totalorder %s96, %s98
      %p102 = scmp.eq.s32.totalorder %s22, 0
      %p103 = por %p101, %p102
      %p104 = scmp.ne.s32.totalorder %s96, %s98
      %p105 = scmp.eq.s32.totalorder %s27, 6
      %p106 = por %p104, %p105
      %p107 = scmp.ne.s32.totalorder %s98, %s99
      %p108 = scmp.eq.s32.totalorder %s27, 0
      %p109 = por %p107, %p108
      %p110 = scmp.ne.s32.totalorder %s98, %s99
      %p111 = scmp.eq.s32.totalorder %s28, 6
      %p112 = por %p110, %p111
      %p114 = scmp.ne.s32.totalorder %s99, %s113
      %p115 = scmp.eq.s32.totalorder %s28, 0
      %p116 = por %p114, %p115
      %s118 = sadd.s32 %s117, 1
      %p121 = scmp.eq.s32.totalorder %s22, 6
      %p122 = scmp.ne.s32.totalorder %s117, %s119
      %p123 = scmp.eq.s32.totalorder %s22, 0
      %p124 = por %p122, %p123
      %p125 = scmp.ne.s32.totalorder %s117, %s119
      %p126 = scmp.eq.s32.totalorder %s27, 6
      %p127 = por %p125, %p126
      %p128 = scmp.ne.s32.totalorder %s119, %s120
      %p129 = scmp.eq.s32.totalorder %s27, 0
      %p130 = por %p128, %p129
      %p131 = scmp.ne.s32.totalorder %s119, %s120
      %p132 = scmp.eq.s32.totalorder %s28, 6
      %p133 = por %p131, %p132
      %p135 = scmp.ne.s32.totalorder %s120, %s134
      %p136 = scmp.eq.s32.totalorder %s28, 0
      %p137 = por %p135, %p136
      %s139 = sadd.s32 %s138, 1
      %p142 = scmp.eq.s32.totalorder %s22, 6
      %p143 = scmp.ne.s32.totalorder %s138, %s140
      %p144 = scmp.eq.s32.totalorder %s22, 0
      %p145 = por %p143, %p144
      %p146 = scmp.ne.s32.totalorder %s138, %s140
      %p147 = scmp.eq.s32.totalorder %s27, 6
      %p148 = por %p146, %p147
      %p149 = scmp.ne.s32.totalorder %s140, %s141
      %p150 = scmp.eq.s32.totalorder %s27, 0
      %p151 = por %p149, %p150
      %p152 = scmp.ne.s32.totalorder %s140, %s141
      %p153 = scmp.eq.s32.totalorder %s28, 6
      %p154 = por %p152, %p153
      %p156 = scmp.ne.s32.totalorder %s141, %s155
      %p157 = scmp.eq.s32.totalorder %s28, 0
      %p158 = por %p156, %p157
      %s160 = sadd.s32 %s159, 1
      %p163 = scmp.eq.s32.totalorder %s22, 6
      %p164 = scmp.ne.s32.totalorder %s159, %s161
      %p165 = scmp.eq.s32.totalorder %s22, 0
      %p166 = por %p164, %p165
      %p167 = scmp.ne.s32.totalorder %s159, %s161
      %p168 = scmp.eq.s32.totalorder %s27, 6
      %p169 = por %p167, %p168
      %p170 = scmp.ne.s32.totalorder %s161, %s162
      %p171 = scmp.eq.s32.totalorder %s27, 0
      %p172 = por %p170, %p171
      %p173 = scmp.ne.s32.totalorder %s161, %s162
      %p174 = scmp.eq.s32.totalorder %s28, 6
      %p175 = por %p173, %p174
      %p177 = scmp.ne.s32.totalorder %s162, %s176
      %p178 = scmp.eq.s32.totalorder %s28, 0
      %p179 = por %p177, %p178
      %s181 = sadd.s32 %s180, 1
      %p184 = scmp.eq.s32.totalorder %s22, 6
      %p185 = scmp.ne.s32.totalorder %s180, %s182
      %p186 = scmp.eq.s32.totalorder %s22, 0
      %p187 = por %p185, %p186
      %p188 = scmp.ne.s32.totalorder %s180, %s182
      %p189 = scmp.eq.s32.totalorder %s27, 6
      %p190 = por %p188, %p189
      %p191 = scmp.ne.s32.totalorder %s182, %s183
      %p192 = scmp.eq.s32.totalorder %s27, 0
      %p193 = por %p191, %p192
      %p194 = scmp.ne.s32.totalorder %s182, %s183
      %p195 = scmp.eq.s32.totalorder %s28, 6
      %p196 = por %p194, %p195
      %p198 = scmp.ne.s32.totalorder %s183, %s197
      %p199 = scmp.eq.s32.totalorder %s28, 0
      %p200 = por %p198, %p199
      %s201 = ssub.s32 %s29, %s41
      %p202 = scmp.eq.s32.totalorder %s201, 0
      %s204 = sadd.s32 %s203, 1
      %s205 = scalar_select %p202, %s203, %s204
      %p208 = pneg %p202
      %p209 = scmp.eq.s32.totalorder %s22, 6
      %p210 = por %p208, %p209
      %p211 = scmp.ne.s32.totalorder %s203, %s206
      %p212 = scmp.eq.s32.totalorder %s22, 0
      %p213 = por %p211, %p212
      %p214 = scmp.ne.s32.totalorder %s203, %s206
      %p215 = scmp.eq.s32.totalorder %s27, 6
      %p216 = por %p214, %p215
      %p217 = scmp.ne.s32.totalorder %s206, %s207
      %p218 = scmp.eq.s32.totalorder %s27, 0
      %p219 = por %p217, %p218
      %p220 = scmp.ne.s32.totalorder %s206, %s207
      %p221 = scmp.eq.s32.totalorder %s28, 6
      %p222 = por %p220, %p221
      %p224 = scmp.ne.s32.totalorder %s207, %s223
      %p225 = scmp.eq.s32.totalorder %s28, 0
      %p226 = por %p224, %p225
      %p227 = scmp.le.s32.totalorder 1, %s22
      %p228 = scmp.lt.s32.totalorder %s22, 8
      %p229 = pnand %p227, %p228
      %p230 = pneg %p229
      // Predicated region
      $region9: #{tpu_custom_call.1} parent=5 // pred_check
        _
      $region10: #{tpu_custom_call.1} parent=5 // pred_check_branch
        %232 = sbr.rel (%p229) target = $region12
      $region11: #{tpu_custom_call.1} parent=5 // pred_region
        %s233 = ssub.s32 %s22, 1
        // Predicated region
        $region13: #{tpu_custom_call.1} parent=11 // pred_check
          %p234 = pneg %p109
        $region14: #{tpu_custom_call.1} parent=11 // pred_check_branch
          %236 = sbr.rel (%p234) target = $region16
        $region15: #{tpu_custom_call.1} parent=11 // pred_region
          %s238 = ssub.s32 128, 128
          %239 = vsyncadd [#allocation7], %s238
          %s241 = sshll.u32 [#allocation8], 4
          %s242 = int_to_ptr.vmem [resolvable:$true] %s241
          %244 = dma.hbm_to_vmem [thread:$0]  %s2, 128, %s242, [#allocation7]
        $region16: #{tpu_custom_call.1} parent=11 // pred_fallthru
          _
        // Predicated region
        $region17: #{tpu_custom_call.1} parent=11 // pred_check
          %p245 = pneg %p130
        $region18: #{tpu_custom_call.1} parent=11 // pred_check_branch
          %247 = sbr.rel (%p245) target = $region20
        $region19: #{tpu_custom_call.1} parent=11 // pred_region
          %s249 = ssub.s32 65536, 65536
          %250 = vsyncadd [#allocation10], %s249
          %s251 = sshll.u32 [#allocation9], 4
          %s252 = int_to_ptr.vmem [resolvable:$true] %s251
          %257 = dma.hbm_to_vmem [thread:$0]  %s3, 65536, %s252, [#allocation10], 512, 512, 32
        $region20: #{tpu_custom_call.1} parent=11 // pred_fallthru
          _
        // Predicated region
        $region21: #{tpu_custom_call.1} parent=11 // pred_check
          %p258 = pneg %p151
        $region22: #{tpu_custom_call.1} parent=11 // pred_check_branch
          %260 = sbr.rel (%p258) target = $region24
        $region23: #{tpu_custom_call.1} parent=11 // pred_region
          %s262 = ssub.s32 128, 128
          %263 = vsyncadd [#allocation10], %s262
          %s265 = sshll.u32 [#allocation11], 4
          %s266 = int_to_ptr.vmem [resolvable:$true] %s265
          %268 = dma.hbm_to_vmem [thread:$0]  %s4, 128, %s266, [#allocation10]
        $region24: #{tpu_custom_call.1} parent=11 // pred_fallthru
          _
        // Predicated region
        $region25: #{tpu_custom_call.1} parent=11 // pred_check
          %p269 = pneg %p172
        $region26: #{tpu_custom_call.1} parent=11 // pred_check_branch
          %271 = sbr.rel (%p269) target = $region28
        $region27: #{tpu_custom_call.1} parent=11 // pred_region
          %s273 = ssub.s32 8192, 8192
          %274 = vsyncadd [#allocation13], %s273
          %s275 = sshll.u32 [#allocation12], 4
          %s276 = int_to_ptr.vmem [resolvable:$true] %s275
          %281 = dma.hbm_to_vmem [thread:$0]  %s5, 8192, %s276, [#allocation13], 64, 64, 4
        $region28: #{tpu_custom_call.1} parent=11 // pred_fallthru
          _
        // Predicated region
        $region29: #{tpu_custom_call.1} parent=11 // pred_check
          %p282 = pneg %p193
        $region30: #{tpu_custom_call.1} parent=11 // pred_check_branch
          %284 = sbr.rel (%p282) target = $region32
        $region31: #{tpu_custom_call.1} parent=11 // pred_region
          %s286 = ssub.s32 16, 16
          %287 = vsyncadd [#allocation13], %s286
          %s289 = sshll.u32 [#allocation14], 4
          %s290 = int_to_ptr.vmem [resolvable:$true] %s289
          %292 = dma.hbm_to_vmem [thread:$0]  %s6, 16, %s290, [#allocation13]
        $region32: #{tpu_custom_call.1} parent=11 // pred_fallthru
          _
      $region12: #{tpu_custom_call.1} parent=5 // pred_fallthru
        _
      %p293 = scmp.lt.s32.totalorder %s22, 7
      // Predicated region
      $region33: #{tpu_custom_call.1} parent=5 // pred_check
        %p294 = pneg %p293
      $region34: #{tpu_custom_call.1} parent=5 // pred_check_branch
        %296 = sbr.rel (%p294) target = $region36
      $region35: #{tpu_custom_call.1} parent=5 // pred_region
        // Predicated region
        $region37: #{tpu_custom_call.1} parent=35 // pred_check
          %p297 = pneg %p56
        $region38: #{tpu_custom_call.1} parent=35 // pred_check_branch
          %299 = sbr.rel (%p297) target = $region40
        $region39: #{tpu_custom_call.1} parent=35 // pred_region
          %s300 = sand.u32 %s46, 1
          %s301 = scalar_lea.sflag [#allocation4], %s300
          %s302 = sand.u32 %s46, 1
          %s303 = smul.addr %s302, 56
          %s304 = scalar_lea.vmem [#allocation3], %s303
          %s305 = smul.u32 14, %s30
          %s307 = ssub.s32 896, 896
          %308 = vsyncadd %s301, %s307
          %s309 = smul.addr %s29, 98
          %s310 = sadd.s32 %s305, %s309
          %s311 = smul.addr %s310, 64
          %s312 = scalar_lea.hbm %s0, %s311
          %s314 = sshll.u32 %s304, 4
          %s315 = int_to_ptr.vmem [resolvable:$true] %s314
          %317 = dma.hbm_to_vmem [thread:$0]  %s312, 896, %s315, %s301
        $region40: #{tpu_custom_call.1} parent=35 // pred_fallthru
          _
        // Predicated region
        $region41: #{tpu_custom_call.1} parent=35 // pred_check
          %p318 = pneg %p82
        $region42: #{tpu_custom_call.1} parent=35 // pred_check_branch
          %320 = sbr.rel (%p318) target = $region44
        $region43: #{tpu_custom_call.1} parent=35 // pred_region
          %s321 = sand.u32 %s22, 1
          %s322 = scalar_lea.sflag [#allocation7], %s321
          %s323 = sand.u32 %s72, 1
          %s324 = smul.addr %s323, 7168
          %s325 = scalar_lea.vmem [#allocation6], %s324
          %s326 = smul.u32 224, %s30
          %s328 = ssub.s32 114688, 114688
          %329 = vsyncadd %s322, %s328
          %s330 = smul.addr %s326, 8
          %s331 = smul.addr %s330, 64
          %s332 = scalar_lea.hbm %s1, %s331
          %s333 = sshll.u32 %s325, 4
          %s334 = int_to_ptr.vmem [resolvable:$true] %s333
          %339 = dma.hbm_to_vmem [thread:$0]  %s332, 114688, %s334, %s322, 512, 512, 32
        $region44: #{tpu_custom_call.1} parent=35 // pred_fallthru
          _
      $region36: #{tpu_custom_call.1} parent=5 // pred_fallthru
        _
      %p340 = scmp.le.s32.totalorder 1, %s22
      %p341 = scmp.lt.s32.totalorder %s22, 8
      %p342 = pnand %p340, %p341
      %p343 = pneg %p342
      // Predicated region
      $region45: #{tpu_custom_call.1} parent=5 // pred_check
        _
      $region46: #{tpu_custom_call.1} parent=5 // pred_check_branch
        %345 = sbr.rel (%p342) target = $region48
      $region47: #{tpu_custom_call.1} parent=5 // pred_region
        %s346 = ssub.s32 %s22, 1
        %s347 = sand.u32 %s49, 1
        %s348 = scalar_lea.sflag [#allocation4], %s347
        %s349 = sand.u32 %s49, 1
        %s350 = smul.addr %s349, 56
        %s351 = scalar_lea.vmem [#allocation3], %s350
        // Predicated region
        $region49: #{tpu_custom_call.1} parent=47 // pred_check
          %p352 = pneg %p62
        $region50: #{tpu_custom_call.1} parent=47 // pred_check_branch
          %354 = sbr.rel (%p352) target = $region52
        $region51: #{tpu_custom_call.1} parent=47 // pred_region
          %355 = dma.done %s348, 896
        $region52: #{tpu_custom_call.1} parent=47 // pred_fallthru
          _
        %s356 = sand.u32 %s27, 1
        %s357 = scalar_lea.sflag [#allocation7], %s356
        %s358 = sand.u32 %s75, 1
        %s359 = smul.addr %s358, 7168
        %s360 = scalar_lea.vmem [#allocation6], %s359
        // Predicated region
        $region53: #{tpu_custom_call.1} parent=47 // pred_check
          %p361 = pneg %p88
        $region54: #{tpu_custom_call.1} parent=47 // pred_check_branch
          %363 = sbr.rel (%p361) target = $region56
        $region55: #{tpu_custom_call.1} parent=47 // pred_region
          %364 = dma.done %s357, 114688
        $region56: #{tpu_custom_call.1} parent=47 // pred_fallthru
          _
        // Predicated region
        $region57: #{tpu_custom_call.1} parent=47 // pred_check
          %p365 = pneg %p109
        $region58: #{tpu_custom_call.1} parent=47 // pred_check_branch
          %367 = sbr.rel (%p365) target = $region60
        $region59: #{tpu_custom_call.1} parent=47 // pred_region
          %368 = dma.done [#allocation7], 128
        $region60: #{tpu_custom_call.1} parent=47 // pred_fallthru
          _
        // Predicated region
        $region61: #{tpu_custom_call.1} parent=47 // pred_check
          %p369 = pneg %p130
        $region62: #{tpu_custom_call.1} parent=47 // pred_check_branch
          %371 = sbr.rel (%p369) target = $region64
        $region63: #{tpu_custom_call.1} parent=47 // pred_region
          %372 = dma.done [#allocation10], 65536
        $region64: #{tpu_custom_call.1} parent=47 // pred_fallthru
          _
        // Predicated region
        $region65: #{tpu_custom_call.1} parent=47 // pred_check
          %p373 = pneg %p151
        $region66: #{tpu_custom_call.1} parent=47 // pred_check_branch
          %375 = sbr.rel (%p373) target = $region68
        $region67: #{tpu_custom_call.1} parent=47 // pred_region
          %376 = dma.done [#allocation10], 128
        $region68: #{tpu_custom_call.1} parent=47 // pred_fallthru
          _
        // Predicated region
        $region69: #{tpu_custom_call.1} parent=47 // pred_check
          %p377 = pneg %p172
        $region70: #{tpu_custom_call.1} parent=47 // pred_check_branch
          %379 = sbr.rel (%p377) target = $region72
        $region71: #{tpu_custom_call.1} parent=47 // pred_region
          %380 = dma.done [#allocation13], 8192
        $region72: #{tpu_custom_call.1} parent=47 // pred_fallthru
          _
        // Predicated region
        $region73: #{tpu_custom_call.1} parent=47 // pred_check
          %p381 = pneg %p193
        $region74: #{tpu_custom_call.1} parent=47 // pred_check_branch
          %383 = sbr.rel (%p381) target = $region76
        $region75: #{tpu_custom_call.1} parent=47 // pred_region
          %384 = dma.done [#allocation13], 16
        $region76: #{tpu_custom_call.1} parent=47 // pred_fallthru
          _
        %s385 = sand.u32 %s49, 1
        %s386 = scalar_lea.sflag [#allocation4], %s385
        %s387 = sand.u32 %s49, 1
        %s388 = smul.addr %s387, 56
        %s389 = scalar_lea.vmem [#allocation3], %s388
        %p390 = pneg %p62
        %p391 = pneg %p59
        %s392 = sand.u32 %s27, 1
        %s393 = scalar_lea.sflag [#allocation7], %s392
        %s394 = sand.u32 %s75, 1
        %s395 = smul.addr %s394, 7168
        %s396 = scalar_lea.vmem [#allocation6], %s395
        %p397 = pneg %p88
        %p398 = pneg %p85
        %p399 = pneg %p109
        %p400 = pneg %p106
        %p401 = pneg %p130
        %p402 = pneg %p127
        %p403 = pneg %p151
        %p404 = pneg %p148
        %p405 = pneg %p172
        %p406 = pneg %p169
        %p407 = pneg %p193
        %p408 = pneg %p190
        %p409 = pneg %p219
        %p410 = pneg %p216
        %s411 = smul.u32 14, %s32
        %s412 = smul.u32 224, %s32
        %p414 = scmp.eq.s32.totalorder %s32, 0
        // Predicated region
        $region77: #{tpu_custom_call.1} parent=47 // pred_check
          %p415 = pneg %p414
        $region78: #{tpu_custom_call.1} parent=47 // pred_check_branch
          %417 = sbr.rel (%p415) target = $region80
        $region79: #{tpu_custom_call.1} parent=47 // pred_region
          %418 = vst [vmem:[#allocation2] sm:$0xff] 0.0
          %419 = vst [vmem:[#allocation2 + $0x8] sm:$0xff] 0.0
          %420 = vst [vmem:[#allocation2 + $0x10] sm:$0xff] 0.0
          %421 = vst [vmem:[#allocation2 + $0x18] sm:$0xff] 0.0
          %422 = vst [vmem:[#allocation2 + $0x20] sm:$0xff] 0.0
          %423 = vst [vmem:[#allocation2 + $0x28] sm:$0xff] 0.0
          %424 = vst [vmem:[#allocation2 + $0x30] sm:$0xff] 0.0
          %425 = vst [vmem:[#allocation2 + $0x38] sm:$0xff] 0.0
        $region80: #{tpu_custom_call.1} parent=47 // pred_fallthru
          _
        %v426 = vld [vmem:[#allocation2] sm:$0xff]
        %v427 = vld [vmem:[#allocation2 + $0x8] sm:$0xff]
        %v428 = vld [vmem:[#allocation2 + $0x10] sm:$0xff]
        %v429 = vld [vmem:[#allocation2 + $0x18] sm:$0xff]
        %v430 = vld [vmem:[#allocation2 + $0x20] sm:$0xff]
        %v431 = vld [vmem:[#allocation2 + $0x28] sm:$0xff]
        %v432 = vld [vmem:[#allocation2 + $0x30] sm:$0xff]
        %v433 = vld [vmem:[#allocation2 + $0x38] sm:$0xff]
        %v434 = vld [vmem:[%s351] sm:$0xff]
        %v435 = vld [vmem:[%s351 + $0x8] sm:$0xff]
        %v436 = vld [vmem:[%s351 + $0x10] sm:$0xff]
        %v437 = vld [vmem:[%s351 + $0x18] sm:$0xff]
        %v438 = vld [vmem:[%s351 + $0x20] sm:$0xff]
        %v439 = vld [vmem:[%s351 + $0x28] sm:$0xff]
        %v440 = vld [vmem:[%s351 + $0x30] sm:$0xff]
        %v441 = vld [vmem:[%s360] sm:$0xff]
        %v442 = vld [vmem:[%s360 + $0x8] sm:$0xff]
        %v443 = vld [vmem:[%s360 + $0x10] sm:$0xff]
        %v444 = vld [vmem:[%s360 + $0x18] sm:$0xff]
        %v445 = vld [vmem:[%s360 + $0x20] sm:$0xff]
        %v446 = vld [vmem:[%s360 + $0x28] sm:$0xff]
        %v447 = vld [vmem:[%s360 + $0x30] sm:$0xff]
        %v448 = vld [vmem:[%s360 + $0x38] sm:$0xff]
        %v449 = vld [vmem:[%s360 + $0x40] sm:$0xff]
        %v450 = vld [vmem:[%s360 + $0x48] sm:$0xff]
        %v451 = vld [vmem:[%s360 + $0x50] sm:$0xff]
        %v452 = vld [vmem:[%s360 + $0x58] sm:$0xff]
        %v453 = vld [vmem:[%s360 + $0x60] sm:$0xff]
        %v454 = vld [vmem:[%s360 + $0x68] sm:$0xff]
        %v455 = vld [vmem:[%s360 + $0x70] sm:$0xff]
        %v456 = vld [vmem:[%s360 + $0x78] sm:$0xff]
        %v457 = vld [vmem:[%s360 + $0x80] sm:$0xff]
        %v458 = vld [vmem:[%s360 + $0x88] sm:$0xff]
        %v459 = vld [vmem:[%s360 + $0x90] sm:$0xff]
        %v460 = vld [vmem:[%s360 + $0x98] sm:$0xff]
        %v461 = vld [vmem:[%s360 + $0xa0] sm:$0xff]
        %v462 = vld [vmem:[%s360 + $0xa8] sm:$0xff]
        %v463 = vld [vmem:[%s360 + $0xb0] sm:$0xff]
        %v464 = vld [vmem:[%s360 + $0xb8] sm:$0xff]
        %v465 = vld [vmem:[%s360 + $0xc0] sm:$0xff]
        %v466 = vld [vmem:[%s360 + $0xc8] sm:$0xff]
        %v467 = vld [vmem:[%s360 + $0xd0] sm:$0xff]
        %v468 = vld [vmem:[%s360 + $0xd8] sm:$0xff]
        %v469 = vld [vmem:[%s360 + $0xe0] sm:$0xff]
        %v470 = vld [vmem:[%s360 + $0xe8] sm:$0xff]
        %v471 = vld [vmem:[%s360 + $0xf0] sm:$0xff]
        %v472 = vld [vmem:[%s360 + $0xf8] sm:$0xff]
        %v473 = vld [vmem:[%s360 + $0x100] sm:$0xff]
        %v474 = vld [vmem:[%s360 + $0x108] sm:$0xff]
        %v475 = vld [vmem:[%s360 + $0x110] sm:$0xff]
        %v476 = vld [vmem:[%s360 + $0x118] sm:$0xff]
        %v477 = vld [vmem:[%s360 + $0x120] sm:$0xff]
        %v478 = vld [vmem:[%s360 + $0x128] sm:$0xff]
        %v479 = vld [vmem:[%s360 + $0x130] sm:$0xff]
        %v480 = vld [vmem:[%s360 + $0x138] sm:$0xff]
        %v481 = vld [vmem:[%s360 + $0x140] sm:$0xff]
        %v482 = vld [vmem:[%s360 + $0x148] sm:$0xff]
        %v483 = vld [vmem:[%s360 + $0x150] sm:$0xff]
        %v484 = vld [vmem:[%s360 + $0x158] sm:$0xff]
        %v485 = vld [vmem:[%s360 + $0x160] sm:$0xff]
        %v486 = vld [vmem:[%s360 + $0x168] sm:$0xff]
        %v487 = vld [vmem:[%s360 + $0x170] sm:$0xff]
        %v488 = vld [vmem:[%s360 + $0x178] sm:$0xff]
        %v489 = vld [vmem:[%s360 + $0x180] sm:$0xff]
        %v490 = vld [vmem:[%s360 + $0x188] sm:$0xff]
        %v491 = vld [vmem:[%s360 + $0x190] sm:$0xff]
        %v492 = vld [vmem:[%s360 + $0x198] sm:$0xff]
        %v493 = vld [vmem:[%s360 + $0x1a0] sm:$0xff]
        %v494 = vld [vmem:[%s360 + $0x1a8] sm:$0xff]
        %v495 = vld [vmem:[%s360 + $0x1b0] sm:$0xff]
        %v496 = vld [vmem:[%s360 + $0x1b8] sm:$0xff]
        %v497 = vld [vmem:[%s360 + $0x1c0] sm:$0xff]
        %v498 = vld [vmem:[%s360 + $0x1c8] sm:$0xff]
        %v499 = vld [vmem:[%s360 + $0x1d0] sm:$0xff]
        %v500 = vld [vmem:[%s360 + $0x1d8] sm:$0xff]
        %v501 = vld [vmem:[%s360 + $0x1e0] sm:$0xff]
        %v502 = vld [vmem:[%s360 + $0x1e8] sm:$0xff]
        %v503 = vld [vmem:[%s360 + $0x1f0] sm:$0xff]
        %v504 = vld [vmem:[%s360 + $0x1f8] sm:$0xff]
        %v505 = vld [vmem:[%s360 + $0x200] sm:$0xff]
        %v506 = vld [vmem:[%s360 + $0x208] sm:$0xff]
        %v507 = vld [vmem:[%s360 + $0x210] sm:$0xff]
        %v508 = vld [vmem:[%s360 + $0x218] sm:$0xff]
        %v509 = vld [vmem:[%s360 + $0x220] sm:$0xff]
        %v510 = vld [vmem:[%s360 + $0x228] sm:$0xff]
        %v511 = vld [vmem:[%s360 + $0x230] sm:$0xff]
        %v512 = vld [vmem:[%s360 + $0x238] sm:$0xff]
        %v513 = vld [vmem:[%s360 + $0x240] sm:$0xff]
        %v514 = vld [vmem:[%s360 + $0x248] sm:$0xff]
        %v515 = vld [vmem:[%s360 + $0x250] sm:$0xff]
        %v516 = vld [vmem:[%s360 + $0x258] sm:$0xff]
        %v517 = vld [vmem:[%s360 + $0x260] sm:$0xff]
        %v518 = vld [vmem:[%s360 + $0x268] sm:$0xff]
        %v519 = vld [vmem:[%s360 + $0x270] sm:$0xff]
        %v520 = vld [vmem:[%s360 + $0x278] sm:$0xff]
        %v521 = vld [vmem:[%s360 + $0x280] sm:$0xff]
        %v522 = vld [vmem:[%s360 + $0x288] sm:$0xff]
        %v523 = vld [vmem:[%s360 + $0x290] sm:$0xff]
        %v524 = vld [vmem:[%s360 + $0x298] sm:$0xff]
        %v525 = vld [vmem:[%s360 + $0x2a0] sm:$0xff]
        %v526 = vld [vmem:[%s360 + $0x2a8] sm:$0xff]
        %v527 = vld [vmem:[%s360 + $0x2b0] sm:$0xff]
        %v528 = vld [vmem:[%s360 + $0x2b8] sm:$0xff]
        %v529 = vld [vmem:[%s360 + $0x2c0] sm:$0xff]
        %v530 = vld [vmem:[%s360 + $0x2c8] sm:$0xff]
        %v531 = vld [vmem:[%s360 + $0x2d0] sm:$0xff]
        %v532 = vld [vmem:[%s360 + $0x2d8] sm:$0xff]
        %v533 = vld [vmem:[%s360 + $0x2e0] sm:$0xff]
        %v534 = vld [vmem:[%s360 + $0x2e8] sm:$0xff]
        %v535 = vld [vmem:[%s360 + $0x2f0] sm:$0xff]
        %v536 = vld [vmem:[%s360 + $0x2f8] sm:$0xff]
        %v537 = vld [vmem:[%s360 + $0x300] sm:$0xff]
        %v538 = vld [vmem:[%s360 + $0x308] sm:$0xff]
        %v539 = vld [vmem:[%s360 + $0x310] sm:$0xff]
        %v540 = vld [vmem:[%s360 + $0x318] sm:$0xff]
        %v541 = vld [vmem:[%s360 + $0x320] sm:$0xff]
        %v542 = vld [vmem:[%s360 + $0x328] sm:$0xff]
        %v543 = vld [vmem:[%s360 + $0x330] sm:$0xff]
        %v544 = vld [vmem:[%s360 + $0x338] sm:$0xff]
        %v545 = vld [vmem:[%s360 + $0x340] sm:$0xff]
        %v546 = vld [vmem:[%s360 + $0x348] sm:$0xff]
        %v547 = vld [vmem:[%s360 + $0x350] sm:$0xff]
        %v548 = vld [vmem:[%s360 + $0x358] sm:$0xff]
        %v549 = vld [vmem:[%s360 + $0x360] sm:$0xff]
        %v550 = vld [vmem:[%s360 + $0x368] sm:$0xff]
        %v551 = vld [vmem:[%s360 + $0x370] sm:$0xff]
        %v552 = vld [vmem:[%s360 + $0x378] sm:$0xff]
        %v553 = vld [vmem:[%s360 + $0x380] sm:$0xff]
        %v554 = vld [vmem:[%s360 + $0x388] sm:$0xff]
        %v555 = vld [vmem:[%s360 + $0x390] sm:$0xff]
        %v556 = vld [vmem:[%s360 + $0x398] sm:$0xff]
        %v557 = vld [vmem:[%s360 + $0x3a0] sm:$0xff]
        %v558 = vld [vmem:[%s360 + $0x3a8] sm:$0xff]
        %v559 = vld [vmem:[%s360 + $0x3b0] sm:$0xff]
        %v560 = vld [vmem:[%s360 + $0x3b8] sm:$0xff]
        %v561 = vld [vmem:[%s360 + $0x3c0] sm:$0xff]
        %v562 = vld [vmem:[%s360 + $0x3c8] sm:$0xff]
        %v563 = vld [vmem:[%s360 + $0x3d0] sm:$0xff]
        %v564 = vld [vmem:[%s360 + $0x3d8] sm:$0xff]
        %v565 = vld [vmem:[%s360 + $0x3e0] sm:$0xff]
        %v566 = vld [vmem:[%s360 + $0x3e8] sm:$0xff]
        %v567 = vld [vmem:[%s360 + $0x3f0] sm:$0xff]
        %v568 = vld [vmem:[%s360 + $0x3f8] sm:$0xff]
        %v569 = vld [vmem:[%s360 + $0x400] sm:$0xff]
        %v570 = vld [vmem:[%s360 + $0x408] sm:$0xff]
        %v571 = vld [vmem:[%s360 + $0x410] sm:$0xff]
        %v572 = vld [vmem:[%s360 + $0x418] sm:$0xff]
        %v573 = vld [vmem:[%s360 + $0x420] sm:$0xff]
        %v574 = vld [vmem:[%s360 + $0x428] sm:$0xff]
        %v575 = vld [vmem:[%s360 + $0x430] sm:$0xff]
        %v576 = vld [vmem:[%s360 + $0x438] sm:$0xff]
        %v577 = vld [vmem:[%s360 + $0x440] sm:$0xff]
        %v578 = vld [vmem:[%s360 + $0x448] sm:$0xff]
        %v579 = vld [vmem:[%s360 + $0x450] sm:$0xff]
        %v580 = vld [vmem:[%s360 + $0x458] sm:$0xff]
        %v581 = vld [vmem:[%s360 + $0x460] sm:$0xff]
        %v582 = vld [vmem:[%s360 + $0x468] sm:$0xff]
        %v583 = vld [vmem:[%s360 + $0x470] sm:$0xff]
        %v584 = vld [vmem:[%s360 + $0x478] sm:$0xff]
        %v585 = vld [vmem:[%s360 + $0x480] sm:$0xff]
        %v586 = vld [vmem:[%s360 + $0x488] sm:$0xff]
        %v587 = vld [vmem:[%s360 + $0x490] sm:$0xff]
        %v588 = vld [vmem:[%s360 + $0x498] sm:$0xff]
        %v589 = vld [vmem:[%s360 + $0x4a0] sm:$0xff]
        %v590 = vld [vmem:[%s360 + $0x4a8] sm:$0xff]
        %v591 = vld [vmem:[%s360 + $0x4b0] sm:$0xff]
        %v592 = vld [vmem:[%s360 + $0x4b8] sm:$0xff]
        %v593 = vld [vmem:[%s360 + $0x4c0] sm:$0xff]
        %v594 = vld [vmem:[%s360 + $0x4c8] sm:$0xff]
        %v595 = vld [vmem:[%s360 + $0x4d0] sm:$0xff]
        %v596 = vld [vmem:[%s360 + $0x4d8] sm:$0xff]
        %v597 = vld [vmem:[%s360 + $0x4e0] sm:$0xff]
        %v598 = vld [vmem:[%s360 + $0x4e8] sm:$0xff]
        %v599 = vld [vmem:[%s360 + $0x4f0] sm:$0xff]
        %v600 = vld [vmem:[%s360 + $0x4f8] sm:$0xff]
        %v601 = vld [vmem:[%s360 + $0x500] sm:$0xff]
        %v602 = vld [vmem:[%s360 + $0x508] sm:$0xff]
        %v603 = vld [vmem:[%s360 + $0x510] sm:$0xff]
        %v604 = vld [vmem:[%s360 + $0x518] sm:$0xff]
        %v605 = vld [vmem:[%s360 + $0x520] sm:$0xff]
        %v606 = vld [vmem:[%s360 + $0x528] sm:$0xff]
        %v607 = vld [vmem:[%s360 + $0x530] sm:$0xff]
        %v608 = vld [vmem:[%s360 + $0x538] sm:$0xff]
        %v609 = vld [vmem:[%s360 + $0x540] sm:$0xff]
        %v610 = vld [vmem:[%s360 + $0x548] sm:$0xff]
        %v611 = vld [vmem:[%s360 + $0x550] sm:$0xff]
        %v612 = vld [vmem:[%s360 + $0x558] sm:$0xff]
        %v613 = vld [vmem:[%s360 + $0x560] sm:$0xff]
        %v614 = vld [vmem:[%s360 + $0x568] sm:$0xff]
        %v615 = vld [vmem:[%s360 + $0x570] sm:$0xff]
        %v616 = vld [vmem:[%s360 + $0x578] sm:$0xff]
        %v617 = vld [vmem:[%s360 + $0x580] sm:$0xff]
        %v618 = vld [vmem:[%s360 + $0x588] sm:$0xff]
        %v619 = vld [vmem:[%s360 + $0x590] sm:$0xff]
        %v620 = vld [vmem:[%s360 + $0x598] sm:$0xff]
        %v621 = vld [vmem:[%s360 + $0x5a0] sm:$0xff]
        %v622 = vld [vmem:[%s360 + $0x5a8] sm:$0xff]
        %v623 = vld [vmem:[%s360 + $0x5b0] sm:$0xff]
        %v624 = vld [vmem:[%s360 + $0x5b8] sm:$0xff]
        %v625 = vld [vmem:[%s360 + $0x5c0] sm:$0xff]
        %v626 = vld [vmem:[%s360 + $0x5c8] sm:$0xff]
        %v627 = vld [vmem:[%s360 + $0x5d0] sm:$0xff]
        %v628 = vld [vmem:[%s360 + $0x5d8] sm:$0xff]
        %v629 = vld [vmem:[%s360 + $0x5e0] sm:$0xff]
        %v630 = vld [vmem:[%s360 + $0x5e8] sm:$0xff]
        %v631 = vld [vmem:[%s360 + $0x5f0] sm:$0xff]
        %v632 = vld [vmem:[%s360 + $0x5f8] sm:$0xff]
        %v633 = vld [vmem:[%s360 + $0x600] sm:$0xff]
        %v634 = vld [vmem:[%s360 + $0x608] sm:$0xff]
        %v635 = vld [vmem:[%s360 + $0x610] sm:$0xff]
        %v636 = vld [vmem:[%s360 + $0x618] sm:$0xff]
        %v637 = vld [vmem:[%s360 + $0x620] sm:$0xff]
        %v638 = vld [vmem:[%s360 + $0x628] sm:$0xff]
        %v639 = vld [vmem:[%s360 + $0x630] sm:$0xff]
        %v640 = vld [vmem:[%s360 + $0x638] sm:$0xff]
        %v641 = vld [vmem:[%s360 + $0x640] sm:$0xff]
        %v642 = vld [vmem:[%s360 + $0x648] sm:$0xff]
        %v643 = vld [vmem:[%s360 + $0x650] sm:$0xff]
        %v644 = vld [vmem:[%s360 + $0x658] sm:$0xff]
        %v645 = vld [vmem:[%s360 + $0x660] sm:$0xff]
        %v646 = vld [vmem:[%s360 + $0x668] sm:$0xff]
        %v647 = vld [vmem:[%s360 + $0x670] sm:$0xff]
        %v648 = vld [vmem:[%s360 + $0x678] sm:$0xff]
        %v649 = vld [vmem:[%s360 + $0x680] sm:$0xff]
        %v650 = vld [vmem:[%s360 + $0x688] sm:$0xff]
        %v651 = vld [vmem:[%s360 + $0x690] sm:$0xff]
        %v652 = vld [vmem:[%s360 + $0x698] sm:$0xff]
        %v653 = vld [vmem:[%s360 + $0x6a0] sm:$0xff]
        %v654 = vld [vmem:[%s360 + $0x6a8] sm:$0xff]
        %v655 = vld [vmem:[%s360 + $0x6b0] sm:$0xff]
        %v656 = vld [vmem:[%s360 + $0x6b8] sm:$0xff]
        %v657 = vld [vmem:[%s360 + $0x6c0] sm:$0xff]
        %v658 = vld [vmem:[%s360 + $0x6c8] sm:$0xff]
        %v659 = vld [vmem:[%s360 + $0x6d0] sm:$0xff]
        %v660 = vld [vmem:[%s360 + $0x6d8] sm:$0xff]
        %v661 = vld [vmem:[%s360 + $0x6e0] sm:$0xff]
        %v662 = vld [vmem:[%s360 + $0x6e8] sm:$0xff]
        %v663 = vld [vmem:[%s360 + $0x6f0] sm:$0xff]
        %v664 = vld [vmem:[%s360 + $0x6f8] sm:$0xff]
        %v665 = vld [vmem:[%s360 + $0x700] sm:$0xff]
        %v666 = vld [vmem:[%s360 + $0x708] sm:$0xff]
        %v667 = vld [vmem:[%s360 + $0x710] sm:$0xff]
        %v668 = vld [vmem:[%s360 + $0x718] sm:$0xff]
        %v669 = vld [vmem:[%s360 + $0x720] sm:$0xff]
        %v670 = vld [vmem:[%s360 + $0x728] sm:$0xff]
        %v671 = vld [vmem:[%s360 + $0x730] sm:$0xff]
        %v672 = vld [vmem:[%s360 + $0x738] sm:$0xff]
        %v673 = vld [vmem:[%s360 + $0x740] sm:$0xff]
        %v674 = vld [vmem:[%s360 + $0x748] sm:$0xff]
        %v675 = vld [vmem:[%s360 + $0x750] sm:$0xff]
        %v676 = vld [vmem:[%s360 + $0x758] sm:$0xff]
        %v677 = vld [vmem:[%s360 + $0x760] sm:$0xff]
        %v678 = vld [vmem:[%s360 + $0x768] sm:$0xff]
        %v679 = vld [vmem:[%s360 + $0x770] sm:$0xff]
        %v680 = vld [vmem:[%s360 + $0x778] sm:$0xff]
        %v681 = vld [vmem:[%s360 + $0x780] sm:$0xff]
        %v682 = vld [vmem:[%s360 + $0x788] sm:$0xff]
        %v683 = vld [vmem:[%s360 + $0x790] sm:$0xff]
        %v684 = vld [vmem:[%s360 + $0x798] sm:$0xff]
        %v685 = vld [vmem:[%s360 + $0x7a0] sm:$0xff]
        %v686 = vld [vmem:[%s360 + $0x7a8] sm:$0xff]
        %v687 = vld [vmem:[%s360 + $0x7b0] sm:$0xff]
        %v688 = vld [vmem:[%s360 + $0x7b8] sm:$0xff]
        %v689 = vld [vmem:[%s360 + $0x7c0] sm:$0xff]
        %v690 = vld [vmem:[%s360 + $0x7c8] sm:$0xff]
        %v691 = vld [vmem:[%s360 + $0x7d0] sm:$0xff]
        %v692 = vld [vmem:[%s360 + $0x7d8] sm:$0xff]
        %v693 = vld [vmem:[%s360 + $0x7e0] sm:$0xff]
        %v694 = vld [vmem:[%s360 + $0x7e8] sm:$0xff]
        %v695 = vld [vmem:[%s360 + $0x7f0] sm:$0xff]
        %v696 = vld [vmem:[%s360 + $0x7f8] sm:$0xff]
        %v697 = vld [vmem:[%s360 + $0x800] sm:$0xff]
        %v698 = vld [vmem:[%s360 + $0x808] sm:$0xff]
        %v699 = vld [vmem:[%s360 + $0x810] sm:$0xff]
        %v700 = vld [vmem:[%s360 + $0x818] sm:$0xff]
        %v701 = vld [vmem:[%s360 + $0x820] sm:$0xff]
        %v702 = vld [vmem:[%s360 + $0x828] sm:$0xff]
        %v703 = vld [vmem:[%s360 + $0x830] sm:$0xff]
        %v704 = vld [vmem:[%s360 + $0x838] sm:$0xff]
        %v705 = vld [vmem:[%s360 + $0x840] sm:$0xff]
        %v706 = vld [vmem:[%s360 + $0x848] sm:$0xff]
        %v707 = vld [vmem:[%s360 + $0x850] sm:$0xff]
        %v708 = vld [vmem:[%s360 + $0x858] sm:$0xff]
        %v709 = vld [vmem:[%s360 + $0x860] sm:$0xff]
        %v710 = vld [vmem:[%s360 + $0x868] sm:$0xff]
        %v711 = vld [vmem:[%s360 + $0x870] sm:$0xff]
        %v712 = vld [vmem:[%s360 + $0x878] sm:$0xff]
        %v713 = vld [vmem:[%s360 + $0x880] sm:$0xff]
        %v714 = vld [vmem:[%s360 + $0x888] sm:$0xff]
        %v715 = vld [vmem:[%s360 + $0x890] sm:$0xff]
        %v716 = vld [vmem:[%s360 + $0x898] sm:$0xff]
        %v717 = vld [vmem:[%s360 + $0x8a0] sm:$0xff]
        %v718 = vld [vmem:[%s360 + $0x8a8] sm:$0xff]
        %v719 = vld [vmem:[%s360 + $0x8b0] sm:$0xff]
        %v720 = vld [vmem:[%s360 + $0x8b8] sm:$0xff]
        %v721 = vld [vmem:[%s360 + $0x8c0] sm:$0xff]
        %v722 = vld [vmem:[%s360 + $0x8c8] sm:$0xff]
        %v723 = vld [vmem:[%s360 + $0x8d0] sm:$0xff]
        %v724 = vld [vmem:[%s360 + $0x8d8] sm:$0xff]
        %v725 = vld [vmem:[%s360 + $0x8e0] sm:$0xff]
        %v726 = vld [vmem:[%s360 + $0x8e8] sm:$0xff]
        %v727 = vld [vmem:[%s360 + $0x8f0] sm:$0xff]
        %v728 = vld [vmem:[%s360 + $0x8f8] sm:$0xff]
        %v729 = vld [vmem:[%s360 + $0x900] sm:$0xff]
        %v730 = vld [vmem:[%s360 + $0x908] sm:$0xff]
        %v731 = vld [vmem:[%s360 + $0x910] sm:$0xff]
        %v732 = vld [vmem:[%s360 + $0x918] sm:$0xff]
        %v733 = vld [vmem:[%s360 + $0x920] sm:$0xff]
        %v734 = vld [vmem:[%s360 + $0x928] sm:$0xff]
        %v735 = vld [vmem:[%s360 + $0x930] sm:$0xff]
        %v736 = vld [vmem:[%s360 + $0x938] sm:$0xff]
        %v737 = vld [vmem:[%s360 + $0x940] sm:$0xff]
        %v738 = vld [vmem:[%s360 + $0x948] sm:$0xff]
        %v739 = vld [vmem:[%s360 + $0x950] sm:$0xff]
        %v740 = vld [vmem:[%s360 + $0x958] sm:$0xff]
        %v741 = vld [vmem:[%s360 + $0x960] sm:$0xff]
        %v742 = vld [vmem:[%s360 + $0x968] sm:$0xff]
        %v743 = vld [vmem:[%s360 + $0x970] sm:$0xff]
        %v744 = vld [vmem:[%s360 + $0x978] sm:$0xff]
        %v745 = vld [vmem:[%s360 + $0x980] sm:$0xff]
        %v746 = vld [vmem:[%s360 + $0x988] sm:$0xff]
        %v747 = vld [vmem:[%s360 + $0x990] sm:$0xff]
        %v748 = vld [vmem:[%s360 + $0x998] sm:$0xff]
        %v749 = vld [vmem:[%s360 + $0x9a0] sm:$0xff]
        %v750 = vld [vmem:[%s360 + $0x9a8] sm:$0xff]
        %v751 = vld [vmem:[%s360 + $0x9b0] sm:$0xff]
        %v752 = vld [vmem:[%s360 + $0x9b8] sm:$0xff]
        %v753 = vld [vmem:[%s360 + $0x9c0] sm:$0xff]
        %v754 = vld [vmem:[%s360 + $0x9c8] sm:$0xff]
        %v755 = vld [vmem:[%s360 + $0x9d0] sm:$0xff]
        %v756 = vld [vmem:[%s360 + $0x9d8] sm:$0xff]
        %v757 = vld [vmem:[%s360 + $0x9e0] sm:$0xff]
        %v758 = vld [vmem:[%s360 + $0x9e8] sm:$0xff]
        %v759 = vld [vmem:[%s360 + $0x9f0] sm:$0xff]
        %v760 = vld [vmem:[%s360 + $0x9f8] sm:$0xff]
        %v761 = vld [vmem:[%s360 + $0xa00] sm:$0xff]
        %v762 = vld [vmem:[%s360 + $0xa08] sm:$0xff]
        %v763 = vld [vmem:[%s360 + $0xa10] sm:$0xff]
        %v764 = vld [vmem:[%s360 + $0xa18] sm:$0xff]
        %v765 = vld [vmem:[%s360 + $0xa20] sm:$0xff]
        %v766 = vld [vmem:[%s360 + $0xa28] sm:$0xff]
        %v767 = vld [vmem:[%s360 + $0xa30] sm:$0xff]
        %v768 = vld [vmem:[%s360 + $0xa38] sm:$0xff]
        %v769 = vld [vmem:[%s360 + $0xa40] sm:$0xff]
        %v770 = vld [vmem:[%s360 + $0xa48] sm:$0xff]
        %v771 = vld [vmem:[%s360 + $0xa50] sm:$0xff]
        %v772 = vld [vmem:[%s360 + $0xa58] sm:$0xff]
        %v773 = vld [vmem:[%s360 + $0xa60] sm:$0xff]
        %v774 = vld [vmem:[%s360 + $0xa68] sm:$0xff]
        %v775 = vld [vmem:[%s360 + $0xa70] sm:$0xff]
        %v776 = vld [vmem:[%s360 + $0xa78] sm:$0xff]
        %v777 = vld [vmem:[%s360 + $0xa80] sm:$0xff]
        %v778 = vld [vmem:[%s360 + $0xa88] sm:$0xff]
        %v779 = vld [vmem:[%s360 + $0xa90] sm:$0xff]
        %v780 = vld [vmem:[%s360 + $0xa98] sm:$0xff]
        %v781 = vld [vmem:[%s360 + $0xaa0] sm:$0xff]
        %v782 = vld [vmem:[%s360 + $0xaa8] sm:$0xff]
        %v783 = vld [vmem:[%s360 + $0xab0] sm:$0xff]
        %v784 = vld [vmem:[%s360 + $0xab8] sm:$0xff]
        %v785 = vld [vmem:[%s360 + $0xac0] sm:$0xff]
        %v786 = vld [vmem:[%s360 + $0xac8] sm:$0xff]
        %v787 = vld [vmem:[%s360 + $0xad0] sm:$0xff]
        %v788 = vld [vmem:[%s360 + $0xad8] sm:$0xff]
        %v789 = vld [vmem:[%s360 + $0xae0] sm:$0xff]
        %v790 = vld [vmem:[%s360 + $0xae8] sm:$0xff]
        %v791 = vld [vmem:[%s360 + $0xaf0] sm:$0xff]
        %v792 = vld [vmem:[%s360 + $0xaf8] sm:$0xff]
        %v793 = vld [vmem:[%s360 + $0xb00] sm:$0xff]
        %v794 = vld [vmem:[%s360 + $0xb08] sm:$0xff]
        %v795 = vld [vmem:[%s360 + $0xb10] sm:$0xff]
        %v796 = vld [vmem:[%s360 + $0xb18] sm:$0xff]
        %v797 = vld [vmem:[%s360 + $0xb20] sm:$0xff]
        %v798 = vld [vmem:[%s360 + $0xb28] sm:$0xff]
        %v799 = vld [vmem:[%s360 + $0xb30] sm:$0xff]
        %v800 = vld [vmem:[%s360 + $0xb38] sm:$0xff]
        %v801 = vld [vmem:[%s360 + $0xb40] sm:$0xff]
        %v802 = vld [vmem:[%s360 + $0xb48] sm:$0xff]
        %v803 = vld [vmem:[%s360 + $0xb50] sm:$0xff]
        %v804 = vld [vmem:[%s360 + $0xb58] sm:$0xff]
        %v805 = vld [vmem:[%s360 + $0xb60] sm:$0xff]
        %v806 = vld [vmem:[%s360 + $0xb68] sm:$0xff]
        %v807 = vld [vmem:[%s360 + $0xb70] sm:$0xff]
        %v808 = vld [vmem:[%s360 + $0xb78] sm:$0xff]
        %v809 = vld [vmem:[%s360 + $0xb80] sm:$0xff]
        %v810 = vld [vmem:[%s360 + $0xb88] sm:$0xff]
        %v811 = vld [vmem:[%s360 + $0xb90] sm:$0xff]
        %v812 = vld [vmem:[%s360 + $0xb98] sm:$0xff]
        %v813 = vld [vmem:[%s360 + $0xba0] sm:$0xff]
        %v814 = vld [vmem:[%s360 + $0xba8] sm:$0xff]
        %v815 = vld [vmem:[%s360 + $0xbb0] sm:$0xff]
        %v816 = vld [vmem:[%s360 + $0xbb8] sm:$0xff]
        %v817 = vld [vmem:[%s360 + $0xbc0] sm:$0xff]
        %v818 = vld [vmem:[%s360 + $0xbc8] sm:$0xff]
        %v819 = vld [vmem:[%s360 + $0xbd0] sm:$0xff]
        %v820 = vld [vmem:[%s360 + $0xbd8] sm:$0xff]
        %v821 = vld [vmem:[%s360 + $0xbe0] sm:$0xff]
        %v822 = vld [vmem:[%s360 + $0xbe8] sm:$0xff]
        %v823 = vld [vmem:[%s360 + $0xbf0] sm:$0xff]
        %v824 = vld [vmem:[%s360 + $0xbf8] sm:$0xff]
        %v825 = vld [vmem:[%s360 + $0xc00] sm:$0xff]
        %v826 = vld [vmem:[%s360 + $0xc08] sm:$0xff]
        %v827 = vld [vmem:[%s360 + $0xc10] sm:$0xff]
        %v828 = vld [vmem:[%s360 + $0xc18] sm:$0xff]
        %v829 = vld [vmem:[%s360 + $0xc20] sm:$0xff]
        %v830 = vld [vmem:[%s360 + $0xc28] sm:$0xff]
        %v831 = vld [vmem:[%s360 + $0xc30] sm:$0xff]
        %v832 = vld [vmem:[%s360 + $0xc38] sm:$0xff]
        %v833 = vld [vmem:[%s360 + $0xc40] sm:$0xff]
        %v834 = vld [vmem:[%s360 + $0xc48] sm:$0xff]
        %v835 = vld [vmem:[%s360 + $0xc50] sm:$0xff]
        %v836 = vld [vmem:[%s360 + $0xc58] sm:$0xff]
        %v837 = vld [vmem:[%s360 + $0xc60] sm:$0xff]
        %v838 = vld [vmem:[%s360 + $0xc68] sm:$0xff]
        %v839 = vld [vmem:[%s360 + $0xc70] sm:$0xff]
        %v840 = vld [vmem:[%s360 + $0xc78] sm:$0xff]
        %v841 = vld [vmem:[%s360 + $0xc80] sm:$0xff]
        %v842 = vld [vmem:[%s360 + $0xc88] sm:$0xff]
        %v843 = vld [vmem:[%s360 + $0xc90] sm:$0xff]
        %v844 = vld [vmem:[%s360 + $0xc98] sm:$0xff]
        %v845 = vld [vmem:[%s360 + $0xca0] sm:$0xff]
        %v846 = vld [vmem:[%s360 + $0xca8] sm:$0xff]
        %v847 = vld [vmem:[%s360 + $0xcb0] sm:$0xff]
        %v848 = vld [vmem:[%s360 + $0xcb8] sm:$0xff]
        %v849 = vld [vmem:[%s360 + $0xcc0] sm:$0xff]
        %v850 = vld [vmem:[%s360 + $0xcc8] sm:$0xff]
        %v851 = vld [vmem:[%s360 + $0xcd0] sm:$0xff]
        %v852 = vld [vmem:[%s360 + $0xcd8] sm:$0xff]
        %v853 = vld [vmem:[%s360 + $0xce0] sm:$0xff]
        %v854 = vld [vmem:[%s360 + $0xce8] sm:$0xff]
        %v855 = vld [vmem:[%s360 + $0xcf0] sm:$0xff]
        %v856 = vld [vmem:[%s360 + $0xcf8] sm:$0xff]
        %v857 = vld [vmem:[%s360 + $0xd00] sm:$0xff]
        %v858 = vld [vmem:[%s360 + $0xd08] sm:$0xff]
        %v859 = vld [vmem:[%s360 + $0xd10] sm:$0xff]
        %v860 = vld [vmem:[%s360 + $0xd18] sm:$0xff]
        %v861 = vld [vmem:[%s360 + $0xd20] sm:$0xff]
        %v862 = vld [vmem:[%s360 + $0xd28] sm:$0xff]
        %v863 = vld [vmem:[%s360 + $0xd30] sm:$0xff]
        %v864 = vld [vmem:[%s360 + $0xd38] sm:$0xff]
        %v865 = vld [vmem:[%s360 + $0xd40] sm:$0xff]
        %v866 = vld [vmem:[%s360 + $0xd48] sm:$0xff]
        %v867 = vld [vmem:[%s360 + $0xd50] sm:$0xff]
        %v868 = vld [vmem:[%s360 + $0xd58] sm:$0xff]
        %v869 = vld [vmem:[%s360 + $0xd60] sm:$0xff]
        %v870 = vld [vmem:[%s360 + $0xd68] sm:$0xff]
        %v871 = vld [vmem:[%s360 + $0xd70] sm:$0xff]
        %v872 = vld [vmem:[%s360 + $0xd78] sm:$0xff]
        %v873 = vld [vmem:[%s360 + $0xd80] sm:$0xff]
        %v874 = vld [vmem:[%s360 + $0xd88] sm:$0xff]
        %v875 = vld [vmem:[%s360 + $0xd90] sm:$0xff]
        %v876 = vld [vmem:[%s360 + $0xd98] sm:$0xff]
        %v877 = vld [vmem:[%s360 + $0xda0] sm:$0xff]
        %v878 = vld [vmem:[%s360 + $0xda8] sm:$0xff]
        %v879 = vld [vmem:[%s360 + $0xdb0] sm:$0xff]
        %v880 = vld [vmem:[%s360 + $0xdb8] sm:$0xff]
        %v881 = vld [vmem:[%s360 + $0xdc0] sm:$0xff]
        %v882 = vld [vmem:[%s360 + $0xdc8] sm:$0xff]
        %v883 = vld [vmem:[%s360 + $0xdd0] sm:$0xff]
        %v884 = vld [vmem:[%s360 + $0xdd8] sm:$0xff]
        %v885 = vld [vmem:[%s360 + $0xde0] sm:$0xff]
        %v886 = vld [vmem:[%s360 + $0xde8] sm:$0xff]
        %v887 = vld [vmem:[%s360 + $0xdf0] sm:$0xff]
        %v888 = vld [vmem:[%s360 + $0xdf8] sm:$0xff]
        %v889 = vld [vmem:[%s360 + $0xe00] sm:$0xff]
        %v890 = vld [vmem:[%s360 + $0xe08] sm:$0xff]
        %v891 = vld [vmem:[%s360 + $0xe10] sm:$0xff]
        %v892 = vld [vmem:[%s360 + $0xe18] sm:$0xff]
        %v893 = vld [vmem:[%s360 + $0xe20] sm:$0xff]
        %v894 = vld [vmem:[%s360 + $0xe28] sm:$0xff]
        %v895 = vld [vmem:[%s360 + $0xe30] sm:$0xff]
        %v896 = vld [vmem:[%s360 + $0xe38] sm:$0xff]
        %v897 = vld [vmem:[%s360 + $0xe40] sm:$0xff]
        %v898 = vld [vmem:[%s360 + $0xe48] sm:$0xff]
        %v899 = vld [vmem:[%s360 + $0xe50] sm:$0xff]
        %v900 = vld [vmem:[%s360 + $0xe58] sm:$0xff]
        %v901 = vld [vmem:[%s360 + $0xe60] sm:$0xff]
        %v902 = vld [vmem:[%s360 + $0xe68] sm:$0xff]
        %v903 = vld [vmem:[%s360 + $0xe70] sm:$0xff]
        %v904 = vld [vmem:[%s360 + $0xe78] sm:$0xff]
        %v905 = vld [vmem:[%s360 + $0xe80] sm:$0xff]
        %v906 = vld [vmem:[%s360 + $0xe88] sm:$0xff]
        %v907 = vld [vmem:[%s360 + $0xe90] sm:$0xff]
        %v908 = vld [vmem:[%s360 + $0xe98] sm:$0xff]
        %v909 = vld [vmem:[%s360 + $0xea0] sm:$0xff]
        %v910 = vld [vmem:[%s360 + $0xea8] sm:$0xff]
        %v911 = vld [vmem:[%s360 + $0xeb0] sm:$0xff]
        %v912 = vld [vmem:[%s360 + $0xeb8] sm:$0xff]
        %v913 = vld [vmem:[%s360 + $0xec0] sm:$0xff]
        %v914 = vld [vmem:[%s360 + $0xec8] sm:$0xff]
        %v915 = vld [vmem:[%s360 + $0xed0] sm:$0xff]
        %v916 = vld [vmem:[%s360 + $0xed8] sm:$0xff]
        %v917 = vld [vmem:[%s360 + $0xee0] sm:$0xff]
        %v918 = vld [vmem:[%s360 + $0xee8] sm:$0xff]
        %v919 = vld [vmem:[%s360 + $0xef0] sm:$0xff]
        %v920 = vld [vmem:[%s360 + $0xef8] sm:$0xff]
        %v921 = vld [vmem:[%s360 + $0xf00] sm:$0xff]
        %v922 = vld [vmem:[%s360 + $0xf08] sm:$0xff]
        %v923 = vld [vmem:[%s360 + $0xf10] sm:$0xff]
        %v924 = vld [vmem:[%s360 + $0xf18] sm:$0xff]
        %v925 = vld [vmem:[%s360 + $0xf20] sm:$0xff]
        %v926 = vld [vmem:[%s360 + $0xf28] sm:$0xff]
        %v927 = vld [vmem:[%s360 + $0xf30] sm:$0xff]
        %v928 = vld [vmem:[%s360 + $0xf38] sm:$0xff]
        %v929 = vld [vmem:[%s360 + $0xf40] sm:$0xff]
        %v930 = vld [vmem:[%s360 + $0xf48] sm:$0xff]
        %v931 = vld [vmem:[%s360 + $0xf50] sm:$0xff]
        %v932 = vld [vmem:[%s360 + $0xf58] sm:$0xff]
        %v933 = vld [vmem:[%s360 + $0xf60] sm:$0xff]
        %v934 = vld [vmem:[%s360 + $0xf68] sm:$0xff]
        %v935 = vld [vmem:[%s360 + $0xf70] sm:$0xff]
        %v936 = vld [vmem:[%s360 + $0xf78] sm:$0xff]
        %v937 = vld [vmem:[%s360 + $0xf80] sm:$0xff]
        %v938 = vld [vmem:[%s360 + $0xf88] sm:$0xff]
        %v939 = vld [vmem:[%s360 + $0xf90] sm:$0xff]
        %v940 = vld [vmem:[%s360 + $0xf98] sm:$0xff]
        %v941 = vld [vmem:[%s360 + $0xfa0] sm:$0xff]
        %v942 = vld [vmem:[%s360 + $0xfa8] sm:$0xff]
        %v943 = vld [vmem:[%s360 + $0xfb0] sm:$0xff]
        %v944 = vld [vmem:[%s360 + $0xfb8] sm:$0xff]
        %v945 = vld [vmem:[%s360 + $0xfc0] sm:$0xff]
        %v946 = vld [vmem:[%s360 + $0xfc8] sm:$0xff]
        %v947 = vld [vmem:[%s360 + $0xfd0] sm:$0xff]
        %v948 = vld [vmem:[%s360 + $0xfd8] sm:$0xff]
        %v949 = vld [vmem:[%s360 + $0xfe0] sm:$0xff]
        %v950 = vld [vmem:[%s360 + $0xfe8] sm:$0xff]
        %v951 = vld [vmem:[%s360 + $0xff0] sm:$0xff]
        %v952 = vld [vmem:[%s360 + $0xff8] sm:$0xff]
        %v953 = vld [vmem:[%s360 + $0x1000] sm:$0xff]
        %v954 = vld [vmem:[%s360 + $0x1008] sm:$0xff]
        %v955 = vld [vmem:[%s360 + $0x1010] sm:$0xff]
        %v956 = vld [vmem:[%s360 + $0x1018] sm:$0xff]
        %v957 = vld [vmem:[%s360 + $0x1020] sm:$0xff]
        %v958 = vld [vmem:[%s360 + $0x1028] sm:$0xff]
        %v959 = vld [vmem:[%s360 + $0x1030] sm:$0xff]
        %v960 = vld [vmem:[%s360 + $0x1038] sm:$0xff]
        %v961 = vld [vmem:[%s360 + $0x1040] sm:$0xff]
        %v962 = vld [vmem:[%s360 + $0x1048] sm:$0xff]
        %v963 = vld [vmem:[%s360 + $0x1050] sm:$0xff]
        %v964 = vld [vmem:[%s360 + $0x1058] sm:$0xff]
        %v965 = vld [vmem:[%s360 + $0x1060] sm:$0xff]
        %v966 = vld [vmem:[%s360 + $0x1068] sm:$0xff]
        %v967 = vld [vmem:[%s360 + $0x1070] sm:$0xff]
        %v968 = vld [vmem:[%s360 + $0x1078] sm:$0xff]
        %v969 = vld [vmem:[%s360 + $0x1080] sm:$0xff]
        %v970 = vld [vmem:[%s360 + $0x1088] sm:$0xff]
        %v971 = vld [vmem:[%s360 + $0x1090] sm:$0xff]
        %v972 = vld [vmem:[%s360 + $0x1098] sm:$0xff]
        %v973 = vld [vmem:[%s360 + $0x10a0] sm:$0xff]
        %v974 = vld [vmem:[%s360 + $0x10a8] sm:$0xff]
        %v975 = vld [vmem:[%s360 + $0x10b0] sm:$0xff]
        %v976 = vld [vmem:[%s360 + $0x10b8] sm:$0xff]
        %v977 = vld [vmem:[%s360 + $0x10c0] sm:$0xff]
        %v978 = vld [vmem:[%s360 + $0x10c8] sm:$0xff]
        %v979 = vld [vmem:[%s360 + $0x10d0] sm:$0xff]
        %v980 = vld [vmem:[%s360 + $0x10d8] sm:$0xff]
        %v981 = vld [vmem:[%s360 + $0x10e0] sm:$0xff]
        %v982 = vld [vmem:[%s360 + $0x10e8] sm:$0xff]
        %v983 = vld [vmem:[%s360 + $0x10f0] sm:$0xff]
        %v984 = vld [vmem:[%s360 + $0x10f8] sm:$0xff]
        %v985 = vld [vmem:[%s360 + $0x1100] sm:$0xff]
        %v986 = vld [vmem:[%s360 + $0x1108] sm:$0xff]
        %v987 = vld [vmem:[%s360 + $0x1110] sm:$0xff]
        %v988 = vld [vmem:[%s360 + $0x1118] sm:$0xff]
        %v989 = vld [vmem:[%s360 + $0x1120] sm:$0xff]
        %v990 = vld [vmem:[%s360 + $0x1128] sm:$0xff]
        %v991 = vld [vmem:[%s360 + $0x1130] sm:$0xff]
        %v992 = vld [vmem:[%s360 + $0x1138] sm:$0xff]
        %v993 = vld [vmem:[%s360 + $0x1140] sm:$0xff]
        %v994 = vld [vmem:[%s360 + $0x1148] sm:$0xff]
        %v995 = vld [vmem:[%s360 + $0x1150] sm:$0xff]
        %v996 = vld [vmem:[%s360 + $0x1158] sm:$0xff]
        %v997 = vld [vmem:[%s360 + $0x1160] sm:$0xff]
        %v998 = vld [vmem:[%s360 + $0x1168] sm:$0xff]
        %v999 = vld [vmem:[%s360 + $0x1170] sm:$0xff]
        %v1000 = vld [vmem:[%s360 + $0x1178] sm:$0xff]
        %v1001 = vld [vmem:[%s360 + $0x1180] sm:$0xff]
        %v1002 = vld [vmem:[%s360 + $0x1188] sm:$0xff]
        %v1003 = vld [vmem:[%s360 + $0x1190] sm:$0xff]
        %v1004 = vld [vmem:[%s360 + $0x1198] sm:$0xff]
        %v1005 = vld [vmem:[%s360 + $0x11a0] sm:$0xff]
        %v1006 = vld [vmem:[%s360 + $0x11a8] sm:$0xff]
        %v1007 = vld [vmem:[%s360 + $0x11b0] sm:$0xff]
        %v1008 = vld [vmem:[%s360 + $0x11b8] sm:$0xff]
        %v1009 = vld [vmem:[%s360 + $0x11c0] sm:$0xff]
        %v1010 = vld [vmem:[%s360 + $0x11c8] sm:$0xff]
        %v1011 = vld [vmem:[%s360 + $0x11d0] sm:$0xff]
        %v1012 = vld [vmem:[%s360 + $0x11d8] sm:$0xff]
        %v1013 = vld [vmem:[%s360 + $0x11e0] sm:$0xff]
        %v1014 = vld [vmem:[%s360 + $0x11e8] sm:$0xff]
        %v1015 = vld [vmem:[%s360 + $0x11f0] sm:$0xff]
        %v1016 = vld [vmem:[%s360 + $0x11f8] sm:$0xff]
        %v1017 = vld [vmem:[%s360 + $0x1200] sm:$0xff]
        %v1018 = vld [vmem:[%s360 + $0x1208] sm:$0xff]
        %v1019 = vld [vmem:[%s360 + $0x1210] sm:$0xff]
        %v1020 = vld [vmem:[%s360 + $0x1218] sm:$0xff]
        %v1021 = vld [vmem:[%s360 + $0x1220] sm:$0xff]
        %v1022 = vld [vmem:[%s360 + $0x1228] sm:$0xff]
        %v1023 = vld [vmem:[%s360 + $0x1230] sm:$0xff]
        %v1024 = vld [vmem:[%s360 + $0x1238] sm:$0xff]
        %v1025 = vld [vmem:[%s360 + $0x1240] sm:$0xff]
        %v1026 = vld [vmem:[%s360 + $0x1248] sm:$0xff]
        %v1027 = vld [vmem:[%s360 + $0x1250] sm:$0xff]
        %v1028 = vld [vmem:[%s360 + $0x1258] sm:$0xff]
        %v1029 = vld [vmem:[%s360 + $0x1260] sm:$0xff]
        %v1030 = vld [vmem:[%s360 + $0x1268] sm:$0xff]
        %v1031 = vld [vmem:[%s360 + $0x1270] sm:$0xff]
        %v1032 = vld [vmem:[%s360 + $0x1278] sm:$0xff]
        %v1033 = vld [vmem:[%s360 + $0x1280] sm:$0xff]
        %v1034 = vld [vmem:[%s360 + $0x1288] sm:$0xff]
        %v1035 = vld [vmem:[%s360 + $0x1290] sm:$0xff]
        %v1036 = vld [vmem:[%s360 + $0x1298] sm:$0xff]
        %v1037 = vld [vmem:[%s360 + $0x12a0] sm:$0xff]
        %v1038 = vld [vmem:[%s360 + $0x12a8] sm:$0xff]
        %v1039 = vld [vmem:[%s360 + $0x12b0] sm:$0xff]
        %v1040 = vld [vmem:[%s360 + $0x12b8] sm:$0xff]
        %v1041 = vld [vmem:[%s360 + $0x12c0] sm:$0xff]
        %v1042 = vld [vmem:[%s360 + $0x12c8] sm:$0xff]
        %v1043 = vld [vmem:[%s360 + $0x12d0] sm:$0xff]
        %v1044 = vld [vmem:[%s360 + $0x12d8] sm:$0xff]
        %v1045 = vld [vmem:[%s360 + $0x12e0] sm:$0xff]
        %v1046 = vld [vmem:[%s360 + $0x12e8] sm:$0xff]
        %v1047 = vld [vmem:[%s360 + $0x12f0] sm:$0xff]
        %v1048 = vld [vmem:[%s360 + $0x12f8] sm:$0xff]
        %v1049 = vld [vmem:[%s360 + $0x1300] sm:$0xff]
        %v1050 = vld [vmem:[%s360 + $0x1308] sm:$0xff]
        %v1051 = vld [vmem:[%s360 + $0x1310] sm:$0xff]
        %v1052 = vld [vmem:[%s360 + $0x1318] sm:$0xff]
        %v1053 = vld [vmem:[%s360 + $0x1320] sm:$0xff]
        %v1054 = vld [vmem:[%s360 + $0x1328] sm:$0xff]
        %v1055 = vld [vmem:[%s360 + $0x1330] sm:$0xff]
        %v1056 = vld [vmem:[%s360 + $0x1338] sm:$0xff]
        %v1057 = vld [vmem:[%s360 + $0x1340] sm:$0xff]
        %v1058 = vld [vmem:[%s360 + $0x1348] sm:$0xff]
        %v1059 = vld [vmem:[%s360 + $0x1350] sm:$0xff]
        %v1060 = vld [vmem:[%s360 + $0x1358] sm:$0xff]
        %v1061 = vld [vmem:[%s360 + $0x1360] sm:$0xff]
        %v1062 = vld [vmem:[%s360 + $0x1368] sm:$0xff]
        %v1063 = vld [vmem:[%s360 + $0x1370] sm:$0xff]
        %v1064 = vld [vmem:[%s360 + $0x1378] sm:$0xff]
        %v1065 = vld [vmem:[%s360 + $0x1380] sm:$0xff]
        %v1066 = vld [vmem:[%s360 + $0x1388] sm:$0xff]
        %v1067 = vld [vmem:[%s360 + $0x1390] sm:$0xff]
        %v1068 = vld [vmem:[%s360 + $0x1398] sm:$0xff]
        %v1069 = vld [vmem:[%s360 + $0x13a0] sm:$0xff]
        %v1070 = vld [vmem:[%s360 + $0x13a8] sm:$0xff]
        %v1071 = vld [vmem:[%s360 + $0x13b0] sm:$0xff]
        %v1072 = vld [vmem:[%s360 + $0x13b8] sm:$0xff]
        %v1073 = vld [vmem:[%s360 + $0x13c0] sm:$0xff]
        %v1074 = vld [vmem:[%s360 + $0x13c8] sm:$0xff]
        %v1075 = vld [vmem:[%s360 + $0x13d0] sm:$0xff]
        %v1076 = vld [vmem:[%s360 + $0x13d8] sm:$0xff]
        %v1077 = vld [vmem:[%s360 + $0x13e0] sm:$0xff]
        %v1078 = vld [vmem:[%s360 + $0x13e8] sm:$0xff]
        %v1079 = vld [vmem:[%s360 + $0x13f0] sm:$0xff]
        %v1080 = vld [vmem:[%s360 + $0x13f8] sm:$0xff]
        %v1081 = vld [vmem:[%s360 + $0x1400] sm:$0xff]
        %v1082 = vld [vmem:[%s360 + $0x1408] sm:$0xff]
        %v1083 = vld [vmem:[%s360 + $0x1410] sm:$0xff]
        %v1084 = vld [vmem:[%s360 + $0x1418] sm:$0xff]
        %v1085 = vld [vmem:[%s360 + $0x1420] sm:$0xff]
        %v1086 = vld [vmem:[%s360 + $0x1428] sm:$0xff]
        %v1087 = vld [vmem:[%s360 + $0x1430] sm:$0xff]
        %v1088 = vld [vmem:[%s360 + $0x1438] sm:$0xff]
        %v1089 = vld [vmem:[%s360 + $0x1440] sm:$0xff]
        %v1090 = vld [vmem:[%s360 + $0x1448] sm:$0xff]
        %v1091 = vld [vmem:[%s360 + $0x1450] sm:$0xff]
        %v1092 = vld [vmem:[%s360 + $0x1458] sm:$0xff]
        %v1093 = vld [vmem:[%s360 + $0x1460] sm:$0xff]
        %v1094 = vld [vmem:[%s360 + $0x1468] sm:$0xff]
        %v1095 = vld [vmem:[%s360 + $0x1470] sm:$0xff]
        %v1096 = vld [vmem:[%s360 + $0x1478] sm:$0xff]
        %v1097 = vld [vmem:[%s360 + $0x1480] sm:$0xff]
        %v1098 = vld [vmem:[%s360 + $0x1488] sm:$0xff]
        %v1099 = vld [vmem:[%s360 + $0x1490] sm:$0xff]
        %v1100 = vld [vmem:[%s360 + $0x1498] sm:$0xff]
        %v1101 = vld [vmem:[%s360 + $0x14a0] sm:$0xff]
        %v1102 = vld [vmem:[%s360 + $0x14a8] sm:$0xff]
        %v1103 = vld [vmem:[%s360 + $0x14b0] sm:$0xff]
        %v1104 = vld [vmem:[%s360 + $0x14b8] sm:$0xff]
        %v1105 = vld [vmem:[%s360 + $0x14c0] sm:$0xff]
        %v1106 = vld [vmem:[%s360 + $0x14c8] sm:$0xff]
        %v1107 = vld [vmem:[%s360 + $0x14d0] sm:$0xff]
        %v1108 = vld [vmem:[%s360 + $0x14d8] sm:$0xff]
        %v1109 = vld [vmem:[%s360 + $0x14e0] sm:$0xff]
        %v1110 = vld [vmem:[%s360 + $0x14e8] sm:$0xff]
        %v1111 = vld [vmem:[%s360 + $0x14f0] sm:$0xff]
        %v1112 = vld [vmem:[%s360 + $0x14f8] sm:$0xff]
        %v1113 = vld [vmem:[%s360 + $0x1500] sm:$0xff]
        %v1114 = vld [vmem:[%s360 + $0x1508] sm:$0xff]
        %v1115 = vld [vmem:[%s360 + $0x1510] sm:$0xff]
        %v1116 = vld [vmem:[%s360 + $0x1518] sm:$0xff]
        %v1117 = vld [vmem:[%s360 + $0x1520] sm:$0xff]
        %v1118 = vld [vmem:[%s360 + $0x1528] sm:$0xff]
        %v1119 = vld [vmem:[%s360 + $0x1530] sm:$0xff]
        %v1120 = vld [vmem:[%s360 + $0x1538] sm:$0xff]
        %v1121 = vld [vmem:[%s360 + $0x1540] sm:$0xff]
        %v1122 = vld [vmem:[%s360 + $0x1548] sm:$0xff]
        %v1123 = vld [vmem:[%s360 + $0x1550] sm:$0xff]
        %v1124 = vld [vmem:[%s360 + $0x1558] sm:$0xff]
        %v1125 = vld [vmem:[%s360 + $0x1560] sm:$0xff]
        %v1126 = vld [vmem:[%s360 + $0x1568] sm:$0xff]
        %v1127 = vld [vmem:[%s360 + $0x1570] sm:$0xff]
        %v1128 = vld [vmem:[%s360 + $0x1578] sm:$0xff]
        %v1129 = vld [vmem:[%s360 + $0x1580] sm:$0xff]
        %v1130 = vld [vmem:[%s360 + $0x1588] sm:$0xff]
        %v1131 = vld [vmem:[%s360 + $0x1590] sm:$0xff]
        %v1132 = vld [vmem:[%s360 + $0x1598] sm:$0xff]
        %v1133 = vld [vmem:[%s360 + $0x15a0] sm:$0xff]
        %v1134 = vld [vmem:[%s360 + $0x15a8] sm:$0xff]
        %v1135 = vld [vmem:[%s360 + $0x15b0] sm:$0xff]
        %v1136 = vld [vmem:[%s360 + $0x15b8] sm:$0xff]
        %v1137 = vld [vmem:[%s360 + $0x15c0] sm:$0xff]
        %v1138 = vld [vmem:[%s360 + $0x15c8] sm:$0xff]
        %v1139 = vld [vmem:[%s360 + $0x15d0] sm:$0xff]
        %v1140 = vld [vmem:[%s360 + $0x15d8] sm:$0xff]
        %v1141 = vld [vmem:[%s360 + $0x15e0] sm:$0xff]
        %v1142 = vld [vmem:[%s360 + $0x15e8] sm:$0xff]
        %v1143 = vld [vmem:[%s360 + $0x15f0] sm:$0xff]
        %v1144 = vld [vmem:[%s360 + $0x15f8] sm:$0xff]
        %v1145 = vld [vmem:[%s360 + $0x1600] sm:$0xff]
        %v1146 = vld [vmem:[%s360 + $0x1608] sm:$0xff]
        %v1147 = vld [vmem:[%s360 + $0x1610] sm:$0xff]
        %v1148 = vld [vmem:[%s360 + $0x1618] sm:$0xff]
        %v1149 = vld [vmem:[%s360 + $0x1620] sm:$0xff]
        %v1150 = vld [vmem:[%s360 + $0x1628] sm:$0xff]
        %v1151 = vld [vmem:[%s360 + $0x1630] sm:$0xff]
        %v1152 = vld [vmem:[%s360 + $0x1638] sm:$0xff]
        %v1153 = vld [vmem:[%s360 + $0x1640] sm:$0xff]
        %v1154 = vld [vmem:[%s360 + $0x1648] sm:$0xff]
        %v1155 = vld [vmem:[%s360 + $0x1650] sm:$0xff]
        %v1156 = vld [vmem:[%s360 + $0x1658] sm:$0xff]
        %v1157 = vld [vmem:[%s360 + $0x1660] sm:$0xff]
        %v1158 = vld [vmem:[%s360 + $0x1668] sm:$0xff]
        %v1159 = vld [vmem:[%s360 + $0x1670] sm:$0xff]
        %v1160 = vld [vmem:[%s360 + $0x1678] sm:$0xff]
        %v1161 = vld [vmem:[%s360 + $0x1680] sm:$0xff]
        %v1162 = vld [vmem:[%s360 + $0x1688] sm:$0xff]
        %v1163 = vld [vmem:[%s360 + $0x1690] sm:$0xff]
        %v1164 = vld [vmem:[%s360 + $0x1698] sm:$0xff]
        %v1165 = vld [vmem:[%s360 + $0x16a0] sm:$0xff]
        %v1166 = vld [vmem:[%s360 + $0x16a8] sm:$0xff]
        %v1167 = vld [vmem:[%s360 + $0x16b0] sm:$0xff]
        %v1168 = vld [vmem:[%s360 + $0x16b8] sm:$0xff]
        %v1169 = vld [vmem:[%s360 + $0x16c0] sm:$0xff]
        %v1170 = vld [vmem:[%s360 + $0x16c8] sm:$0xff]
        %v1171 = vld [vmem:[%s360 + $0x16d0] sm:$0xff]
        %v1172 = vld [vmem:[%s360 + $0x16d8] sm:$0xff]
        %v1173 = vld [vmem:[%s360 + $0x16e0] sm:$0xff]
        %v1174 = vld [vmem:[%s360 + $0x16e8] sm:$0xff]
        %v1175 = vld [vmem:[%s360 + $0x16f0] sm:$0xff]
        %v1176 = vld [vmem:[%s360 + $0x16f8] sm:$0xff]
        %v1177 = vld [vmem:[%s360 + $0x1700] sm:$0xff]
        %v1178 = vld [vmem:[%s360 + $0x1708] sm:$0xff]
        %v1179 = vld [vmem:[%s360 + $0x1710] sm:$0xff]
        %v1180 = vld [vmem:[%s360 + $0x1718] sm:$0xff]
        %v1181 = vld [vmem:[%s360 + $0x1720] sm:$0xff]
        %v1182 = vld [vmem:[%s360 + $0x1728] sm:$0xff]
        %v1183 = vld [vmem:[%s360 + $0x1730] sm:$0xff]
        %v1184 = vld [vmem:[%s360 + $0x1738] sm:$0xff]
        %v1185 = vld [vmem:[%s360 + $0x1740] sm:$0xff]
        %v1186 = vld [vmem:[%s360 + $0x1748] sm:$0xff]
        %v1187 = vld [vmem:[%s360 + $0x1750] sm:$0xff]
        %v1188 = vld [vmem:[%s360 + $0x1758] sm:$0xff]
        %v1189 = vld [vmem:[%s360 + $0x1760] sm:$0xff]
        %v1190 = vld [vmem:[%s360 + $0x1768] sm:$0xff]
        %v1191 = vld [vmem:[%s360 + $0x1770] sm:$0xff]
        %v1192 = vld [vmem:[%s360 + $0x1778] sm:$0xff]
        %v1193 = vld [vmem:[%s360 + $0x1780] sm:$0xff]
        %v1194 = vld [vmem:[%s360 + $0x1788] sm:$0xff]
        %v1195 = vld [vmem:[%s360 + $0x1790] sm:$0xff]
        %v1196 = vld [vmem:[%s360 + $0x1798] sm:$0xff]
        %v1197 = vld [vmem:[%s360 + $0x17a0] sm:$0xff]
        %v1198 = vld [vmem:[%s360 + $0x17a8] sm:$0xff]
        %v1199 = vld [vmem:[%s360 + $0x17b0] sm:$0xff]
        %v1200 = vld [vmem:[%s360 + $0x17b8] sm:$0xff]
        %v1201 = vld [vmem:[%s360 + $0x17c0] sm:$0xff]
        %v1202 = vld [vmem:[%s360 + $0x17c8] sm:$0xff]
        %v1203 = vld [vmem:[%s360 + $0x17d0] sm:$0xff]
        %v1204 = vld [vmem:[%s360 + $0x17d8] sm:$0xff]
        %v1205 = vld [vmem:[%s360 + $0x17e0] sm:$0xff]
        %v1206 = vld [vmem:[%s360 + $0x17e8] sm:$0xff]
        %v1207 = vld [vmem:[%s360 + $0x17f0] sm:$0xff]
        %v1208 = vld [vmem:[%s360 + $0x17f8] sm:$0xff]
        %v1209 = vld [vmem:[%s360 + $0x1800] sm:$0xff]
        %v1210 = vld [vmem:[%s360 + $0x1808] sm:$0xff]
        %v1211 = vld [vmem:[%s360 + $0x1810] sm:$0xff]
        %v1212 = vld [vmem:[%s360 + $0x1818] sm:$0xff]
        %v1213 = vld [vmem:[%s360 + $0x1820] sm:$0xff]
        %v1214 = vld [vmem:[%s360 + $0x1828] sm:$0xff]
        %v1215 = vld [vmem:[%s360 + $0x1830] sm:$0xff]
        %v1216 = vld [vmem:[%s360 + $0x1838] sm:$0xff]
        %v1217 = vld [vmem:[%s360 + $0x1840] sm:$0xff]
        %v1218 = vld [vmem:[%s360 + $0x1848] sm:$0xff]
        %v1219 = vld [vmem:[%s360 + $0x1850] sm:$0xff]
        %v1220 = vld [vmem:[%s360 + $0x1858] sm:$0xff]
        %v1221 = vld [vmem:[%s360 + $0x1860] sm:$0xff]
        %v1222 = vld [vmem:[%s360 + $0x1868] sm:$0xff]
        %v1223 = vld [vmem:[%s360 + $0x1870] sm:$0xff]
        %v1224 = vld [vmem:[%s360 + $0x1878] sm:$0xff]
        %v1225 = vld [vmem:[%s360 + $0x1880] sm:$0xff]
        %v1226 = vld [vmem:[%s360 + $0x1888] sm:$0xff]
        %v1227 = vld [vmem:[%s360 + $0x1890] sm:$0xff]
        %v1228 = vld [vmem:[%s360 + $0x1898] sm:$0xff]
        %v1229 = vld [vmem:[%s360 + $0x18a0] sm:$0xff]
        %v1230 = vld [vmem:[%s360 + $0x18a8] sm:$0xff]
        %v1231 = vld [vmem:[%s360 + $0x18b0] sm:$0xff]
        %v1232 = vld [vmem:[%s360 + $0x18b8] sm:$0xff]
        %v1233 = vld [vmem:[%s360 + $0x18c0] sm:$0xff]
        %v1234 = vld [vmem:[%s360 + $0x18c8] sm:$0xff]
        %v1235 = vld [vmem:[%s360 + $0x18d0] sm:$0xff]
        %v1236 = vld [vmem:[%s360 + $0x18d8] sm:$0xff]
        %v1237 = vld [vmem:[%s360 + $0x18e0] sm:$0xff]
        %v1238 = vld [vmem:[%s360 + $0x18e8] sm:$0xff]
        %v1239 = vld [vmem:[%s360 + $0x18f0] sm:$0xff]
        %v1240 = vld [vmem:[%s360 + $0x18f8] sm:$0xff]
        %v1241 = vld [vmem:[%s360 + $0x1900] sm:$0xff]
        %v1242 = vld [vmem:[%s360 + $0x1908] sm:$0xff]
        %v1243 = vld [vmem:[%s360 + $0x1910] sm:$0xff]
        %v1244 = vld [vmem:[%s360 + $0x1918] sm:$0xff]
        %v1245 = vld [vmem:[%s360 + $0x1920] sm:$0xff]
        %v1246 = vld [vmem:[%s360 + $0x1928] sm:$0xff]
        %v1247 = vld [vmem:[%s360 + $0x1930] sm:$0xff]
        %v1248 = vld [vmem:[%s360 + $0x1938] sm:$0xff]
        %v1249 = vld [vmem:[%s360 + $0x1940] sm:$0xff]
        %v1250 = vld [vmem:[%s360 + $0x1948] sm:$0xff]
        %v1251 = vld [vmem:[%s360 + $0x1950] sm:$0xff]
        %v1252 = vld [vmem:[%s360 + $0x1958] sm:$0xff]
        %v1253 = vld [vmem:[%s360 + $0x1960] sm:$0xff]
        %v1254 = vld [vmem:[%s360 + $0x1968] sm:$0xff]
        %v1255 = vld [vmem:[%s360 + $0x1970] sm:$0xff]
        %v1256 = vld [vmem:[%s360 + $0x1978] sm:$0xff]
        %v1257 = vld [vmem:[%s360 + $0x1980] sm:$0xff]
        %v1258 = vld [vmem:[%s360 + $0x1988] sm:$0xff]
        %v1259 = vld [vmem:[%s360 + $0x1990] sm:$0xff]
        %v1260 = vld [vmem:[%s360 + $0x1998] sm:$0xff]
        %v1261 = vld [vmem:[%s360 + $0x19a0] sm:$0xff]
        %v1262 = vld [vmem:[%s360 + $0x19a8] sm:$0xff]
        %v1263 = vld [vmem:[%s360 + $0x19b0] sm:$0xff]
        %v1264 = vld [vmem:[%s360 + $0x19b8] sm:$0xff]
        %v1265 = vld [vmem:[%s360 + $0x19c0] sm:$0xff]
        %v1266 = vld [vmem:[%s360 + $0x19c8] sm:$0xff]
        %v1267 = vld [vmem:[%s360 + $0x19d0] sm:$0xff]
        %v1268 = vld [vmem:[%s360 + $0x19d8] sm:$0xff]
        %v1269 = vld [vmem:[%s360 + $0x19e0] sm:$0xff]
        %v1270 = vld [vmem:[%s360 + $0x19e8] sm:$0xff]
        %v1271 = vld [vmem:[%s360 + $0x19f0] sm:$0xff]
        %v1272 = vld [vmem:[%s360 + $0x19f8] sm:$0xff]
        %v1273 = vld [vmem:[%s360 + $0x1a00] sm:$0xff]
        %v1274 = vld [vmem:[%s360 + $0x1a08] sm:$0xff]
        %v1275 = vld [vmem:[%s360 + $0x1a10] sm:$0xff]
        %v1276 = vld [vmem:[%s360 + $0x1a18] sm:$0xff]
        %v1277 = vld [vmem:[%s360 + $0x1a20] sm:$0xff]
        %v1278 = vld [vmem:[%s360 + $0x1a28] sm:$0xff]
        %v1279 = vld [vmem:[%s360 + $0x1a30] sm:$0xff]
        %v1280 = vld [vmem:[%s360 + $0x1a38] sm:$0xff]
        %v1281 = vld [vmem:[%s360 + $0x1a40] sm:$0xff]
        %v1282 = vld [vmem:[%s360 + $0x1a48] sm:$0xff]
        %v1283 = vld [vmem:[%s360 + $0x1a50] sm:$0xff]
        %v1284 = vld [vmem:[%s360 + $0x1a58] sm:$0xff]
        %v1285 = vld [vmem:[%s360 + $0x1a60] sm:$0xff]
        %v1286 = vld [vmem:[%s360 + $0x1a68] sm:$0xff]
        %v1287 = vld [vmem:[%s360 + $0x1a70] sm:$0xff]
        %v1288 = vld [vmem:[%s360 + $0x1a78] sm:$0xff]
        %v1289 = vld [vmem:[%s360 + $0x1a80] sm:$0xff]
        %v1290 = vld [vmem:[%s360 + $0x1a88] sm:$0xff]
        %v1291 = vld [vmem:[%s360 + $0x1a90] sm:$0xff]
        %v1292 = vld [vmem:[%s360 + $0x1a98] sm:$0xff]
        %v1293 = vld [vmem:[%s360 + $0x1aa0] sm:$0xff]
        %v1294 = vld [vmem:[%s360 + $0x1aa8] sm:$0xff]
        %v1295 = vld [vmem:[%s360 + $0x1ab0] sm:$0xff]
        %v1296 = vld [vmem:[%s360 + $0x1ab8] sm:$0xff]
        %v1297 = vld [vmem:[%s360 + $0x1ac0] sm:$0xff]
        %v1298 = vld [vmem:[%s360 + $0x1ac8] sm:$0xff]
        %v1299 = vld [vmem:[%s360 + $0x1ad0] sm:$0xff]
        %v1300 = vld [vmem:[%s360 + $0x1ad8] sm:$0xff]
        %v1301 = vld [vmem:[%s360 + $0x1ae0] sm:$0xff]
        %v1302 = vld [vmem:[%s360 + $0x1ae8] sm:$0xff]
        %v1303 = vld [vmem:[%s360 + $0x1af0] sm:$0xff]
        %v1304 = vld [vmem:[%s360 + $0x1af8] sm:$0xff]
        %v1305 = vld [vmem:[%s360 + $0x1b00] sm:$0xff]
        %v1306 = vld [vmem:[%s360 + $0x1b08] sm:$0xff]
        %v1307 = vld [vmem:[%s360 + $0x1b10] sm:$0xff]
        %v1308 = vld [vmem:[%s360 + $0x1b18] sm:$0xff]
        %v1309 = vld [vmem:[%s360 + $0x1b20] sm:$0xff]
        %v1310 = vld [vmem:[%s360 + $0x1b28] sm:$0xff]
        %v1311 = vld [vmem:[%s360 + $0x1b30] sm:$0xff]
        %v1312 = vld [vmem:[%s360 + $0x1b38] sm:$0xff]
        %v1313 = vld [vmem:[%s360 + $0x1b40] sm:$0xff]
        %v1314 = vld [vmem:[%s360 + $0x1b48] sm:$0xff]
        %v1315 = vld [vmem:[%s360 + $0x1b50] sm:$0xff]
        %v1316 = vld [vmem:[%s360 + $0x1b58] sm:$0xff]
        %v1317 = vld [vmem:[%s360 + $0x1b60] sm:$0xff]
        %v1318 = vld [vmem:[%s360 + $0x1b68] sm:$0xff]
        %v1319 = vld [vmem:[%s360 + $0x1b70] sm:$0xff]
        %v1320 = vld [vmem:[%s360 + $0x1b78] sm:$0xff]
        %v1321 = vld [vmem:[%s360 + $0x1b80] sm:$0xff]
        %v1322 = vld [vmem:[%s360 + $0x1b88] sm:$0xff]
        %v1323 = vld [vmem:[%s360 + $0x1b90] sm:$0xff]
        %v1324 = vld [vmem:[%s360 + $0x1b98] sm:$0xff]
        %v1325 = vld [vmem:[%s360 + $0x1ba0] sm:$0xff]
        %v1326 = vld [vmem:[%s360 + $0x1ba8] sm:$0xff]
        %v1327 = vld [vmem:[%s360 + $0x1bb0] sm:$0xff]
        %v1328 = vld [vmem:[%s360 + $0x1bb8] sm:$0xff]
        %v1329 = vld [vmem:[%s360 + $0x1bc0] sm:$0xff]
        %v1330 = vld [vmem:[%s360 + $0x1bc8] sm:$0xff]
        %v1331 = vld [vmem:[%s360 + $0x1bd0] sm:$0xff]
        %v1332 = vld [vmem:[%s360 + $0x1bd8] sm:$0xff]
        %v1333 = vld [vmem:[%s360 + $0x1be0] sm:$0xff]
        %v1334 = vld [vmem:[%s360 + $0x1be8] sm:$0xff]
        %v1335 = vld [vmem:[%s360 + $0x1bf0] sm:$0xff]
        %v1336 = vld [vmem:[%s360 + $0x1bf8] sm:$0xff]
        %v1344 = vunpack.c.l.b16 %v434
        %v1345 = vunpack.c.h.b16 %v434
        %v1346 = vunpack.c.l.b16 %v435
        %v1347 = vunpack.c.h.b16 %v435
        %v1348 = vunpack.c.l.b16 %v436
        %v1349 = vunpack.c.h.b16 %v436
        %v1350 = vunpack.c.l.b16 %v437
        %v1351 = vunpack.c.h.b16 %v437
        %v1352 = vunpack.c.l.b16 %v438
        %v1353 = vunpack.c.h.b16 %v438
        %v1354 = vunpack.c.l.b16 %v439
        %v1355 = vunpack.c.h.b16 %v439
        %v1356 = vunpack.c.l.b16 %v440
        %v1357 = vunpack.c.h.b16 %v440
        %v1358 = vpack.c.b16 %v1344, %v1344
        %v1359 = vpack.c.b16 %v1345, %v1345
        %v1360 = vpack.c.b16 %v1346, %v1346
        %v1361 = vpack.c.b16 %v1347, %v1347
        %v1362 = vpack.c.b16 %v1348, %v1348
        %v1363 = vpack.c.b16 %v1349, %v1349
        %v1364 = vpack.c.b16 %v1350, %v1350
        %v1365 = vpack.c.b16 %v1351, %v1351
        %v1366 = vpack.c.b16 %v1352, %v1352
        %v1367 = vpack.c.b16 %v1353, %v1353
        %v1368 = vpack.c.b16 %v1354, %v1354
        %v1369 = vpack.c.b16 %v1355, %v1355
        %v1370 = vpack.c.b16 %v1356, %v1356
        %v1371 = vpack.c.b16 %v1357, %v1357
        %v2282 = vunpack.c.l.b16 %v441
        %v2283 = vunpack.c.h.b16 %v441
        %v2284 = vunpack.c.l.b16 %v442
        %v2285 = vunpack.c.h.b16 %v442
        %v2286 = vunpack.c.l.b16 %v443
        %v2287 = vunpack.c.h.b16 %v443
        %v2288 = vunpack.c.l.b16 %v444
        %v2289 = vunpack.c.h.b16 %v444
        %v2290 = vunpack.c.l.b16 %v445
        %v2291 = vunpack.c.h.b16 %v445
        %v2292 = vunpack.c.l.b16 %v446
        %v2293 = vunpack.c.h.b16 %v446
        %v2294 = vunpack.c.l.b16 %v447
        %v2295 = vunpack.c.h.b16 %v447
        %v2296 = vunpack.c.l.b16 %v448
        %v2297 = vunpack.c.h.b16 %v448
        %v2298 = vunpack.c.l.b16 %v449
        %v2299 = vunpack.c.h.b16 %v449
        %v2300 = vunpack.c.l.b16 %v450
        %v2301 = vunpack.c.h.b16 %v450
        %v2302 = vunpack.c.l.b16 %v451
        %v2303 = vunpack.c.h.b16 %v451
        %v2304 = vunpack.c.l.b16 %v452
        %v2305 = vunpack.c.h.b16 %v452
        %v2306 = vunpack.c.l.b16 %v453
        %v2307 = vunpack.c.h.b16 %v453
        %v2308 = vunpack.c.l.b16 %v454
        %v2309 = vunpack.c.h.b16 %v454
        %v2310 = vunpack.c.l.b16 %v455
        %v2311 = vunpack.c.h.b16 %v455
        %v2312 = vunpack.c.l.b16 %v456
        %v2313 = vunpack.c.h.b16 %v456
        %v2314 = vunpack.c.l.b16 %v457
        %v2315 = vunpack.c.h.b16 %v457
        %v2316 = vunpack.c.l.b16 %v458
        %v2317 = vunpack.c.h.b16 %v458
        %v2318 = vunpack.c.l.b16 %v459
        %v2319 = vunpack.c.h.b16 %v459
        %v2320 = vunpack.c.l.b16 %v460
        %v2321 = vunpack.c.h.b16 %v460
        %v2322 = vunpack.c.l.b16 %v461
        %v2323 = vunpack.c.h.b16 %v461
        %v2324 = vunpack.c.l.b16 %v462
        %v2325 = vunpack.c.h.b16 %v462
        %v2326 = vunpack.c.l.b16 %v463
        %v2327 = vunpack.c.h.b16 %v463
        %v2328 = vunpack.c.l.b16 %v464
        %v2329 = vunpack.c.h.b16 %v464
        %v2330 = vunpack.c.l.b16 %v465
        %v2331 = vunpack.c.h.b16 %v465
        %v2332 = vunpack.c.l.b16 %v466
        %v2333 = vunpack.c.h.b16 %v466
        %v2334 = vunpack.c.l.b16 %v467
        %v2335 = vunpack.c.h.b16 %v467
        %v2336 = vunpack.c.l.b16 %v468
        %v2337 = vunpack.c.h.b16 %v468
        %v2338 = vunpack.c.l.b16 %v469
        %v2339 = vunpack.c.h.b16 %v469
        %v2340 = vunpack.c.l.b16 %v470
        %v2341 = vunpack.c.h.b16 %v470
        %v2342 = vunpack.c.l.b16 %v471
        %v2343 = vunpack.c.h.b16 %v471
        %v2344 = vunpack.c.l.b16 %v472
        %v2345 = vunpack.c.h.b16 %v472
        %v2346 = vunpack.c.l.b16 %v473
        %v2347 = vunpack.c.h.b16 %v473
        %v2348 = vunpack.c.l.b16 %v474
        %v2349 = vunpack.c.h.b16 %v474
        %v2350 = vunpack.c.l.b16 %v475
        %v2351 = vunpack.c.h.b16 %v475
        %v2352 = vunpack.c.l.b16 %v476
        %v2353 = vunpack.c.h.b16 %v476
        %v2354 = vunpack.c.l.b16 %v477
        %v2355 = vunpack.c.h.b16 %v477
        %v2356 = vunpack.c.l.b16 %v478
        %v2357 = vunpack.c.h.b16 %v478
        %v2358 = vunpack.c.l.b16 %v479
        %v2359 = vunpack.c.h.b16 %v479
        %v2360 = vunpack.c.l.b16 %v480
        %v2361 = vunpack.c.h.b16 %v480
        %v2362 = vunpack.c.l.b16 %v481
        %v2363 = vunpack.c.h.b16 %v481
        %v2364 = vunpack.c.l.b16 %v482
        %v2365 = vunpack.c.h.b16 %v482
        %v2366 = vunpack.c.l.b16 %v483
        %v2367 = vunpack.c.h.b16 %v483
        %v2368 = vunpack.c.l.b16 %v484
        %v2369 = vunpack.c.h.b16 %v484
        %v2370 = vunpack.c.l.b16 %v485
        %v2371 = vunpack.c.h.b16 %v485
        %v2372 = vunpack.c.l.b16 %v486
        %v2373 = vunpack.c.h.b16 %v486
        %v2374 = vunpack.c.l.b16 %v487
        %v2375 = vunpack.c.h.b16 %v487
        %v2376 = vunpack.c.l.b16 %v488
        %v2377 = vunpack.c.h.b16 %v488
        %v2378 = vunpack.c.l.b16 %v489
        %v2379 = vunpack.c.h.b16 %v489
        %v2380 = vunpack.c.l.b16 %v490
        %v2381 = vunpack.c.h.b16 %v490
        %v2382 = vunpack.c.l.b16 %v491
        %v2383 = vunpack.c.h.b16 %v491
        %v2384 = vunpack.c.l.b16 %v492
        %v2385 = vunpack.c.h.b16 %v492
        %v2386 = vunpack.c.l.b16 %v493
        %v2387 = vunpack.c.h.b16 %v493
        %v2388 = vunpack.c.l.b16 %v494
        %v2389 = vunpack.c.h.b16 %v494
        %v2390 = vunpack.c.l.b16 %v495
        %v2391 = vunpack.c.h.b16 %v495
        %v2392 = vunpack.c.l.b16 %v496
        %v2393 = vunpack.c.h.b16 %v496
        %v2394 = vunpack.c.l.b16 %v497
        %v2395 = vunpack.c.h.b16 %v497
        %v2396 = vunpack.c.l.b16 %v498
        %v2397 = vunpack.c.h.b16 %v498
        %v2398 = vunpack.c.l.b16 %v499
        %v2399 = vunpack.c.h.b16 %v499
        %v2400 = vunpack.c.l.b16 %v500
        %v2401 = vunpack.c.h.b16 %v500
        %v2402 = vunpack.c.l.b16 %v501
        %v2403 = vunpack.c.h.b16 %v501
        %v2404 = vunpack.c.l.b16 %v502
        %v2405 = vunpack.c.h.b16 %v502
        %v2406 = vunpack.c.l.b16 %v503
        %v2407 = vunpack.c.h.b16 %v503
        %v2408 = vunpack.c.l.b16 %v504
        %v2409 = vunpack.c.h.b16 %v504
        %v2410 = vunpack.c.l.b16 %v505
        %v2411 = vunpack.c.h.b16 %v505
        %v2412 = vunpack.c.l.b16 %v506
        %v2413 = vunpack.c.h.b16 %v506
        %v2414 = vunpack.c.l.b16 %v507
        %v2415 = vunpack.c.h.b16 %v507
        %v2416 = vunpack.c.l.b16 %v508
        %v2417 = vunpack.c.h.b16 %v508
        %v2418 = vunpack.c.l.b16 %v509
        %v2419 = vunpack.c.h.b16 %v509
        %v2420 = vunpack.c.l.b16 %v510
        %v2421 = vunpack.c.h.b16 %v510
        %v2422 = vunpack.c.l.b16 %v511
        %v2423 = vunpack.c.h.b16 %v511
        %v2424 = vunpack.c.l.b16 %v512
        %v2425 = vunpack.c.h.b16 %v512
        %v2426 = vunpack.c.l.b16 %v513
        %v2427 = vunpack.c.h.b16 %v513
        %v2428 = vunpack.c.l.b16 %v514
        %v2429 = vunpack.c.h.b16 %v514
        %v2430 = vunpack.c.l.b16 %v515
        %v2431 = vunpack.c.h.b16 %v515
        %v2432 = vunpack.c.l.b16 %v516
        %v2433 = vunpack.c.h.b16 %v516
        %v2434 = vunpack.c.l.b16 %v517
        %v2435 = vunpack.c.h.b16 %v517
        %v2436 = vunpack.c.l.b16 %v518
        %v2437 = vunpack.c.h.b16 %v518
        %v2438 = vunpack.c.l.b16 %v519
        %v2439 = vunpack.c.h.b16 %v519
        %v2440 = vunpack.c.l.b16 %v520
        %v2441 = vunpack.c.h.b16 %v520
        %v2442 = vunpack.c.l.b16 %v521
        %v2443 = vunpack.c.h.b16 %v521
        %v2444 = vunpack.c.l.b16 %v522
        %v2445 = vunpack.c.h.b16 %v522
        %v2446 = vunpack.c.l.b16 %v523
        %v2447 = vunpack.c.h.b16 %v523
        %v2448 = vunpack.c.l.b16 %v524
        %v2449 = vunpack.c.h.b16 %v524
        %v2450 = vunpack.c.l.b16 %v525
        %v2451 = vunpack.c.h.b16 %v525
        %v2452 = vunpack.c.l.b16 %v526
        %v2453 = vunpack.c.h.b16 %v526
        %v2454 = vunpack.c.l.b16 %v527
        %v2455 = vunpack.c.h.b16 %v527
        %v2456 = vunpack.c.l.b16 %v528
        %v2457 = vunpack.c.h.b16 %v528
        %v2458 = vunpack.c.l.b16 %v529
        %v2459 = vunpack.c.h.b16 %v529
        %v2460 = vunpack.c.l.b16 %v530
        %v2461 = vunpack.c.h.b16 %v530
        %v2462 = vunpack.c.l.b16 %v531
        %v2463 = vunpack.c.h.b16 %v531
        %v2464 = vunpack.c.l.b16 %v532
        %v2465 = vunpack.c.h.b16 %v532
        %v2466 = vunpack.c.l.b16 %v533
        %v2467 = vunpack.c.h.b16 %v533
        %v2468 = vunpack.c.l.b16 %v534
        %v2469 = vunpack.c.h.b16 %v534
        %v2470 = vunpack.c.l.b16 %v535
        %v2471 = vunpack.c.h.b16 %v535
        %v2472 = vunpack.c.l.b16 %v536
        %v2473 = vunpack.c.h.b16 %v536
        %v2474 = vunpack.c.l.b16 %v537
        %v2475 = vunpack.c.h.b16 %v537
        %v2476 = vunpack.c.l.b16 %v538
        %v2477 = vunpack.c.h.b16 %v538
        %v2478 = vunpack.c.l.b16 %v539
        %v2479 = vunpack.c.h.b16 %v539
        %v2480 = vunpack.c.l.b16 %v540
        %v2481 = vunpack.c.h.b16 %v540
        %v2482 = vunpack.c.l.b16 %v541
        %v2483 = vunpack.c.h.b16 %v541
        %v2484 = vunpack.c.l.b16 %v542
        %v2485 = vunpack.c.h.b16 %v542
        %v2486 = vunpack.c.l.b16 %v543
        %v2487 = vunpack.c.h.b16 %v543
        %v2488 = vunpack.c.l.b16 %v544
        %v2489 = vunpack.c.h.b16 %v544
        %v2490 = vunpack.c.l.b16 %v545
        %v2491 = vunpack.c.h.b16 %v545
        %v2492 = vunpack.c.l.b16 %v546
        %v2493 = vunpack.c.h.b16 %v546
        %v2494 = vunpack.c.l.b16 %v547
        %v2495 = vunpack.c.h.b16 %v547
        %v2496 = vunpack.c.l.b16 %v548
        %v2497 = vunpack.c.h.b16 %v548
        %v2498 = vunpack.c.l.b16 %v549
        %v2499 = vunpack.c.h.b16 %v549
        %v2500 = vunpack.c.l.b16 %v550
        %v2501 = vunpack.c.h.b16 %v550
        %v2502 = vunpack.c.l.b16 %v551
        %v2503 = vunpack.c.h.b16 %v551
        %v2504 = vunpack.c.l.b16 %v552
        %v2505 = vunpack.c.h.b16 %v552
        %v2506 = vunpack.c.l.b16 %v553
        %v2507 = vunpack.c.h.b16 %v553
        %v2508 = vunpack.c.l.b16 %v554
        %v2509 = vunpack.c.h.b16 %v554
        %v2510 = vunpack.c.l.b16 %v555
        %v2511 = vunpack.c.h.b16 %v555
        %v2512 = vunpack.c.l.b16 %v556
        %v2513 = vunpack.c.h.b16 %v556
        %v2514 = vunpack.c.l.b16 %v557
        %v2515 = vunpack.c.h.b16 %v557
        %v2516 = vunpack.c.l.b16 %v558
        %v2517 = vunpack.c.h.b16 %v558
        %v2518 = vunpack.c.l.b16 %v559
        %v2519 = vunpack.c.h.b16 %v559
        %v2520 = vunpack.c.l.b16 %v560
        %v2521 = vunpack.c.h.b16 %v560
        %v2522 = vunpack.c.l.b16 %v561
        %v2523 = vunpack.c.h.b16 %v561
        %v2524 = vunpack.c.l.b16 %v562
        %v2525 = vunpack.c.h.b16 %v562
        %v2526 = vunpack.c.l.b16 %v563
        %v2527 = vunpack.c.h.b16 %v563
        %v2528 = vunpack.c.l.b16 %v564
        %v2529 = vunpack.c.h.b16 %v564
        %v2530 = vunpack.c.l.b16 %v565
        %v2531 = vunpack.c.h.b16 %v565
        %v2532 = vunpack.c.l.b16 %v566
        %v2533 = vunpack.c.h.b16 %v566
        %v2534 = vunpack.c.l.b16 %v567
        %v2535 = vunpack.c.h.b16 %v567
        %v2536 = vunpack.c.l.b16 %v568
        %v2537 = vunpack.c.h.b16 %v568
        %v2538 = vunpack.c.l.b16 %v569
        %v2539 = vunpack.c.h.b16 %v569
        %v2540 = vunpack.c.l.b16 %v570
        %v2541 = vunpack.c.h.b16 %v570
        %v2542 = vunpack.c.l.b16 %v571
        %v2543 = vunpack.c.h.b16 %v571
        %v2544 = vunpack.c.l.b16 %v572
        %v2545 = vunpack.c.h.b16 %v572
        %v2546 = vunpack.c.l.b16 %v573
        %v2547 = vunpack.c.h.b16 %v573
        %v2548 = vunpack.c.l.b16 %v574
        %v2549 = vunpack.c.h.b16 %v574
        %v2550 = vunpack.c.l.b16 %v575
        %v2551 = vunpack.c.h.b16 %v575
        %v2552 = vunpack.c.l.b16 %v576
        %v2553 = vunpack.c.h.b16 %v576
        %v2554 = vunpack.c.l.b16 %v577
        %v2555 = vunpack.c.h.b16 %v577
        %v2556 = vunpack.c.l.b16 %v578
        %v2557 = vunpack.c.h.b16 %v578
        %v2558 = vunpack.c.l.b16 %v579
        %v2559 = vunpack.c.h.b16 %v579
        %v2560 = vunpack.c.l.b16 %v580
        %v2561 = vunpack.c.h.b16 %v580
        %v2562 = vunpack.c.l.b16 %v581
        %v2563 = vunpack.c.h.b16 %v581
        %v2564 = vunpack.c.l.b16 %v582
        %v2565 = vunpack.c.h.b16 %v582
        %v2566 = vunpack.c.l.b16 %v583
        %v2567 = vunpack.c.h.b16 %v583
        %v2568 = vunpack.c.l.b16 %v584
        %v2569 = vunpack.c.h.b16 %v584
        %v2570 = vunpack.c.l.b16 %v585
        %v2571 = vunpack.c.h.b16 %v585
        %v2572 = vunpack.c.l.b16 %v586
        %v2573 = vunpack.c.h.b16 %v586
        %v2574 = vunpack.c.l.b16 %v587
        %v2575 = vunpack.c.h.b16 %v587
        %v2576 = vunpack.c.l.b16 %v588
        %v2577 = vunpack.c.h.b16 %v588
        %v2578 = vunpack.c.l.b16 %v589
        %v2579 = vunpack.c.h.b16 %v589
        %v2580 = vunpack.c.l.b16 %v590
        %v2581 = vunpack.c.h.b16 %v590
        %v2582 = vunpack.c.l.b16 %v591
        %v2583 = vunpack.c.h.b16 %v591
        %v2584 = vunpack.c.l.b16 %v592
        %v2585 = vunpack.c.h.b16 %v592
        %v2586 = vunpack.c.l.b16 %v593
        %v2587 = vunpack.c.h.b16 %v593
        %v2588 = vunpack.c.l.b16 %v594
        %v2589 = vunpack.c.h.b16 %v594
        %v2590 = vunpack.c.l.b16 %v595
        %v2591 = vunpack.c.h.b16 %v595
        %v2592 = vunpack.c.l.b16 %v596
        %v2593 = vunpack.c.h.b16 %v596
        %v2594 = vunpack.c.l.b16 %v597
        %v2595 = vunpack.c.h.b16 %v597
        %v2596 = vunpack.c.l.b16 %v598
        %v2597 = vunpack.c.h.b16 %v598
        %v2598 = vunpack.c.l.b16 %v599
        %v2599 = vunpack.c.h.b16 %v599
        %v2600 = vunpack.c.l.b16 %v600
        %v2601 = vunpack.c.h.b16 %v600
        %v2602 = vunpack.c.l.b16 %v601
        %v2603 = vunpack.c.h.b16 %v601
        %v2604 = vunpack.c.l.b16 %v602
        %v2605 = vunpack.c.h.b16 %v602
        %v2606 = vunpack.c.l.b16 %v603
        %v2607 = vunpack.c.h.b16 %v603
        %v2608 = vunpack.c.l.b16 %v604
        %v2609 = vunpack.c.h.b16 %v604
        %v2610 = vunpack.c.l.b16 %v605
        %v2611 = vunpack.c.h.b16 %v605
        %v2612 = vunpack.c.l.b16 %v606
        %v2613 = vunpack.c.h.b16 %v606
        %v2614 = vunpack.c.l.b16 %v607
        %v2615 = vunpack.c.h.b16 %v607
        %v2616 = vunpack.c.l.b16 %v608
        %v2617 = vunpack.c.h.b16 %v608
        %v2618 = vunpack.c.l.b16 %v609
        %v2619 = vunpack.c.h.b16 %v609
        %v2620 = vunpack.c.l.b16 %v610
        %v2621 = vunpack.c.h.b16 %v610
        %v2622 = vunpack.c.l.b16 %v611
        %v2623 = vunpack.c.h.b16 %v611
        %v2624 = vunpack.c.l.b16 %v612
        %v2625 = vunpack.c.h.b16 %v612
        %v2626 = vunpack.c.l.b16 %v613
        %v2627 = vunpack.c.h.b16 %v613
        %v2628 = vunpack.c.l.b16 %v614
        %v2629 = vunpack.c.h.b16 %v614
        %v2630 = vunpack.c.l.b16 %v615
        %v2631 = vunpack.c.h.b16 %v615
        %v2632 = vunpack.c.l.b16 %v616
        %v2633 = vunpack.c.h.b16 %v616
        %v2634 = vunpack.c.l.b16 %v617
        %v2635 = vunpack.c.h.b16 %v617
        %v2636 = vunpack.c.l.b16 %v618
        %v2637 = vunpack.c.h.b16 %v618
        %v2638 = vunpack.c.l.b16 %v619
        %v2639 = vunpack.c.h.b16 %v619
        %v2640 = vunpack.c.l.b16 %v620
        %v2641 = vunpack.c.h.b16 %v620
        %v2642 = vunpack.c.l.b16 %v621
        %v2643 = vunpack.c.h.b16 %v621
        %v2644 = vunpack.c.l.b16 %v622
        %v2645 = vunpack.c.h.b16 %v622
        %v2646 = vunpack.c.l.b16 %v623
        %v2647 = vunpack.c.h.b16 %v623
        %v2648 = vunpack.c.l.b16 %v624
        %v2649 = vunpack.c.h.b16 %v624
        %v2650 = vunpack.c.l.b16 %v625
        %v2651 = vunpack.c.h.b16 %v625
        %v2652 = vunpack.c.l.b16 %v626
        %v2653 = vunpack.c.h.b16 %v626
        %v2654 = vunpack.c.l.b16 %v627
        %v2655 = vunpack.c.h.b16 %v627
        %v2656 = vunpack.c.l.b16 %v628
        %v2657 = vunpack.c.h.b16 %v628
        %v2658 = vunpack.c.l.b16 %v629
        %v2659 = vunpack.c.h.b16 %v629
        %v2660 = vunpack.c.l.b16 %v630
        %v2661 = vunpack.c.h.b16 %v630
        %v2662 = vunpack.c.l.b16 %v631
        %v2663 = vunpack.c.h.b16 %v631
        %v2664 = vunpack.c.l.b16 %v632
        %v2665 = vunpack.c.h.b16 %v632
        %v2666 = vunpack.c.l.b16 %v633
        %v2667 = vunpack.c.h.b16 %v633
        %v2668 = vunpack.c.l.b16 %v634
        %v2669 = vunpack.c.h.b16 %v634
        %v2670 = vunpack.c.l.b16 %v635
        %v2671 = vunpack.c.h.b16 %v635
        %v2672 = vunpack.c.l.b16 %v636
        %v2673 = vunpack.c.h.b16 %v636
        %v2674 = vunpack.c.l.b16 %v637
        %v2675 = vunpack.c.h.b16 %v637
        %v2676 = vunpack.c.l.b16 %v638
        %v2677 = vunpack.c.h.b16 %v638
        %v2678 = vunpack.c.l.b16 %v639
        %v2679 = vunpack.c.h.b16 %v639
        %v2680 = vunpack.c.l.b16 %v640
        %v2681 = vunpack.c.h.b16 %v640
        %v2682 = vunpack.c.l.b16 %v641
        %v2683 = vunpack.c.h.b16 %v641
        %v2684 = vunpack.c.l.b16 %v642
        %v2685 = vunpack.c.h.b16 %v642
        %v2686 = vunpack.c.l.b16 %v643
        %v2687 = vunpack.c.h.b16 %v643
        %v2688 = vunpack.c.l.b16 %v644
        %v2689 = vunpack.c.h.b16 %v644
        %v2690 = vunpack.c.l.b16 %v645
        %v2691 = vunpack.c.h.b16 %v645
        %v2692 = vunpack.c.l.b16 %v646
        %v2693 = vunpack.c.h.b16 %v646
        %v2694 = vunpack.c.l.b16 %v647
        %v2695 = vunpack.c.h.b16 %v647
        %v2696 = vunpack.c.l.b16 %v648
        %v2697 = vunpack.c.h.b16 %v648
        %v2698 = vunpack.c.l.b16 %v649
        %v2699 = vunpack.c.h.b16 %v649
        %v2700 = vunpack.c.l.b16 %v650
        %v2701 = vunpack.c.h.b16 %v650
        %v2702 = vunpack.c.l.b16 %v651
        %v2703 = vunpack.c.h.b16 %v651
        %v2704 = vunpack.c.l.b16 %v652
        %v2705 = vunpack.c.h.b16 %v652
        %v2706 = vunpack.c.l.b16 %v653
        %v2707 = vunpack.c.h.b16 %v653
        %v2708 = vunpack.c.l.b16 %v654
        %v2709 = vunpack.c.h.b16 %v654
        %v2710 = vunpack.c.l.b16 %v655
        %v2711 = vunpack.c.h.b16 %v655
        %v2712 = vunpack.c.l.b16 %v656
        %v2713 = vunpack.c.h.b16 %v656
        %v2714 = vunpack.c.l.b16 %v657
        %v2715 = vunpack.c.h.b16 %v657
        %v2716 = vunpack.c.l.b16 %v658
        %v2717 = vunpack.c.h.b16 %v658
        %v2718 = vunpack.c.l.b16 %v659
        %v2719 = vunpack.c.h.b16 %v659
        %v2720 = vunpack.c.l.b16 %v660
        %v2721 = vunpack.c.h.b16 %v660
        %v2722 = vunpack.c.l.b16 %v661
        %v2723 = vunpack.c.h.b16 %v661
        %v2724 = vunpack.c.l.b16 %v662
        %v2725 = vunpack.c.h.b16 %v662
        %v2726 = vunpack.c.l.b16 %v663
        %v2727 = vunpack.c.h.b16 %v663
        %v2728 = vunpack.c.l.b16 %v664
        %v2729 = vunpack.c.h.b16 %v664
        %v2730 = vunpack.c.l.b16 %v665
        %v2731 = vunpack.c.h.b16 %v665
        %v2732 = vunpack.c.l.b16 %v666
        %v2733 = vunpack.c.h.b16 %v666
        %v2734 = vunpack.c.l.b16 %v667
        %v2735 = vunpack.c.h.b16 %v667
        %v2736 = vunpack.c.l.b16 %v668
        %v2737 = vunpack.c.h.b16 %v668
        %v2738 = vunpack.c.l.b16 %v669
        %v2739 = vunpack.c.h.b16 %v669
        %v2740 = vunpack.c.l.b16 %v670
        %v2741 = vunpack.c.h.b16 %v670
        %v2742 = vunpack.c.l.b16 %v671
        %v2743 = vunpack.c.h.b16 %v671
        %v2744 = vunpack.c.l.b16 %v672
        %v2745 = vunpack.c.h.b16 %v672
        %v2746 = vunpack.c.l.b16 %v673
        %v2747 = vunpack.c.h.b16 %v673
        %v2748 = vunpack.c.l.b16 %v674
        %v2749 = vunpack.c.h.b16 %v674
        %v2750 = vunpack.c.l.b16 %v675
        %v2751 = vunpack.c.h.b16 %v675
        %v2752 = vunpack.c.l.b16 %v676
        %v2753 = vunpack.c.h.b16 %v676
        %v2754 = vunpack.c.l.b16 %v677
        %v2755 = vunpack.c.h.b16 %v677
        %v2756 = vunpack.c.l.b16 %v678
        %v2757 = vunpack.c.h.b16 %v678
        %v2758 = vunpack.c.l.b16 %v679
        %v2759 = vunpack.c.h.b16 %v679
        %v2760 = vunpack.c.l.b16 %v680
        %v2761 = vunpack.c.h.b16 %v680
        %v2762 = vunpack.c.l.b16 %v681
        %v2763 = vunpack.c.h.b16 %v681
        %v2764 = vunpack.c.l.b16 %v682
        %v2765 = vunpack.c.h.b16 %v682
        %v2766 = vunpack.c.l.b16 %v683
        %v2767 = vunpack.c.h.b16 %v683
        %v2768 = vunpack.c.l.b16 %v684
        %v2769 = vunpack.c.h.b16 %v684
        %v2770 = vunpack.c.l.b16 %v685
        %v2771 = vunpack.c.h.b16 %v685
        %v2772 = vunpack.c.l.b16 %v686
        %v2773 = vunpack.c.h.b16 %v686
        %v2774 = vunpack.c.l.b16 %v687
        %v2775 = vunpack.c.h.b16 %v687
        %v2776 = vunpack.c.l.b16 %v688
        %v2777 = vunpack.c.h.b16 %v688
        %v2778 = vunpack.c.l.b16 %v689
        %v2779 = vunpack.c.h.b16 %v689
        %v2780 = vunpack.c.l.b16 %v690
        %v2781 = vunpack.c.h.b16 %v690
        %v2782 = vunpack.c.l.b16 %v691
        %v2783 = vunpack.c.h.b16 %v691
        %v2784 = vunpack.c.l.b16 %v692
        %v2785 = vunpack.c.h.b16 %v692
        %v2786 = vunpack.c.l.b16 %v693
        %v2787 = vunpack.c.h.b16 %v693
        %v2788 = vunpack.c.l.b16 %v694
        %v2789 = vunpack.c.h.b16 %v694
        %v2790 = vunpack.c.l.b16 %v695
        %v2791 = vunpack.c.h.b16 %v695
        %v2792 = vunpack.c.l.b16 %v696
        %v2793 = vunpack.c.h.b16 %v696
        %v2794 = vunpack.c.l.b16 %v697
        %v2795 = vunpack.c.h.b16 %v697
        %v2796 = vunpack.c.l.b16 %v698
        %v2797 = vunpack.c.h.b16 %v698
        %v2798 = vunpack.c.l.b16 %v699
        %v2799 = vunpack.c.h.b16 %v699
        %v2800 = vunpack.c.l.b16 %v700
        %v2801 = vunpack.c.h.b16 %v700
        %v2802 = vunpack.c.l.b16 %v701
        %v2803 = vunpack.c.h.b16 %v701
        %v2804 = vunpack.c.l.b16 %v702
        %v2805 = vunpack.c.h.b16 %v702
        %v2806 = vunpack.c.l.b16 %v703
        %v2807 = vunpack.c.h.b16 %v703
        %v2808 = vunpack.c.l.b16 %v704
        %v2809 = vunpack.c.h.b16 %v704
        %v2810 = vunpack.c.l.b16 %v705
        %v2811 = vunpack.c.h.b16 %v705
        %v2812 = vunpack.c.l.b16 %v706
        %v2813 = vunpack.c.h.b16 %v706
        %v2814 = vunpack.c.l.b16 %v707
        %v2815 = vunpack.c.h.b16 %v707
        %v2816 = vunpack.c.l.b16 %v708
        %v2817 = vunpack.c.h.b16 %v708
        %v2818 = vunpack.c.l.b16 %v709
        %v2819 = vunpack.c.h.b16 %v709
        %v2820 = vunpack.c.l.b16 %v710
        %v2821 = vunpack.c.h.b16 %v710
        %v2822 = vunpack.c.l.b16 %v711
        %v2823 = vunpack.c.h.b16 %v711
        %v2824 = vunpack.c.l.b16 %v712
        %v2825 = vunpack.c.h.b16 %v712
        %v2826 = vunpack.c.l.b16 %v713
        %v2827 = vunpack.c.h.b16 %v713
        %v2828 = vunpack.c.l.b16 %v714
        %v2829 = vunpack.c.h.b16 %v714
        %v2830 = vunpack.c.l.b16 %v715
        %v2831 = vunpack.c.h.b16 %v715
        %v2832 = vunpack.c.l.b16 %v716
        %v2833 = vunpack.c.h.b16 %v716
        %v2834 = vunpack.c.l.b16 %v717
        %v2835 = vunpack.c.h.b16 %v717
        %v2836 = vunpack.c.l.b16 %v718
        %v2837 = vunpack.c.h.b16 %v718
        %v2838 = vunpack.c.l.b16 %v719
        %v2839 = vunpack.c.h.b16 %v719
        %v2840 = vunpack.c.l.b16 %v720
        %v2841 = vunpack.c.h.b16 %v720
        %v2842 = vunpack.c.l.b16 %v721
        %v2843 = vunpack.c.h.b16 %v721
        %v2844 = vunpack.c.l.b16 %v722
        %v2845 = vunpack.c.h.b16 %v722
        %v2846 = vunpack.c.l.b16 %v723
        %v2847 = vunpack.c.h.b16 %v723
        %v2848 = vunpack.c.l.b16 %v724
        %v2849 = vunpack.c.h.b16 %v724
        %v2850 = vunpack.c.l.b16 %v725
        %v2851 = vunpack.c.h.b16 %v725
        %v2852 = vunpack.c.l.b16 %v726
        %v2853 = vunpack.c.h.b16 %v726
        %v2854 = vunpack.c.l.b16 %v727
        %v2855 = vunpack.c.h.b16 %v727
        %v2856 = vunpack.c.l.b16 %v728
        %v2857 = vunpack.c.h.b16 %v728
        %v2858 = vunpack.c.l.b16 %v729
        %v2859 = vunpack.c.h.b16 %v729
        %v2860 = vunpack.c.l.b16 %v730
        %v2861 = vunpack.c.h.b16 %v730
        %v2862 = vunpack.c.l.b16 %v731
        %v2863 = vunpack.c.h.b16 %v731
        %v2864 = vunpack.c.l.b16 %v732
        %v2865 = vunpack.c.h.b16 %v732
        %v2866 = vunpack.c.l.b16 %v733
        %v2867 = vunpack.c.h.b16 %v733
        %v2868 = vunpack.c.l.b16 %v734
        %v2869 = vunpack.c.h.b16 %v734
        %v2870 = vunpack.c.l.b16 %v735
        %v2871 = vunpack.c.h.b16 %v735
        %v2872 = vunpack.c.l.b16 %v736
        %v2873 = vunpack.c.h.b16 %v736
        %v2874 = vunpack.c.l.b16 %v737
        %v2875 = vunpack.c.h.b16 %v737
        %v2876 = vunpack.c.l.b16 %v738
        %v2877 = vunpack.c.h.b16 %v738
        %v2878 = vunpack.c.l.b16 %v739
        %v2879 = vunpack.c.h.b16 %v739
        %v2880 = vunpack.c.l.b16 %v740
        %v2881 = vunpack.c.h.b16 %v740
        %v2882 = vunpack.c.l.b16 %v741
        %v2883 = vunpack.c.h.b16 %v741
        %v2884 = vunpack.c.l.b16 %v742
        %v2885 = vunpack.c.h.b16 %v742
        %v2886 = vunpack.c.l.b16 %v743
        %v2887 = vunpack.c.h.b16 %v743
        %v2888 = vunpack.c.l.b16 %v744
        %v2889 = vunpack.c.h.b16 %v744
        %v2890 = vunpack.c.l.b16 %v745
        %v2891 = vunpack.c.h.b16 %v745
        %v2892 = vunpack.c.l.b16 %v746
        %v2893 = vunpack.c.h.b16 %v746
        %v2894 = vunpack.c.l.b16 %v747
        %v2895 = vunpack.c.h.b16 %v747
        %v2896 = vunpack.c.l.b16 %v748
        %v2897 = vunpack.c.h.b16 %v748
        %v2898 = vunpack.c.l.b16 %v749
        %v2899 = vunpack.c.h.b16 %v749
        %v2900 = vunpack.c.l.b16 %v750
        %v2901 = vunpack.c.h.b16 %v750
        %v2902 = vunpack.c.l.b16 %v751
        %v2903 = vunpack.c.h.b16 %v751
        %v2904 = vunpack.c.l.b16 %v752
        %v2905 = vunpack.c.h.b16 %v752
        %v2906 = vunpack.c.l.b16 %v753
        %v2907 = vunpack.c.h.b16 %v753
        %v2908 = vunpack.c.l.b16 %v754
        %v2909 = vunpack.c.h.b16 %v754
        %v2910 = vunpack.c.l.b16 %v755
        %v2911 = vunpack.c.h.b16 %v755
        %v2912 = vunpack.c.l.b16 %v756
        %v2913 = vunpack.c.h.b16 %v756
        %v2914 = vunpack.c.l.b16 %v757
        %v2915 = vunpack.c.h.b16 %v757
        %v2916 = vunpack.c.l.b16 %v758
        %v2917 = vunpack.c.h.b16 %v758
        %v2918 = vunpack.c.l.b16 %v759
        %v2919 = vunpack.c.h.b16 %v759
        %v2920 = vunpack.c.l.b16 %v760
        %v2921 = vunpack.c.h.b16 %v760
        %v2922 = vunpack.c.l.b16 %v761
        %v2923 = vunpack.c.h.b16 %v761
        %v2924 = vunpack.c.l.b16 %v762
        %v2925 = vunpack.c.h.b16 %v762
        %v2926 = vunpack.c.l.b16 %v763
        %v2927 = vunpack.c.h.b16 %v763
        %v2928 = vunpack.c.l.b16 %v764
        %v2929 = vunpack.c.h.b16 %v764
        %v2930 = vunpack.c.l.b16 %v765
        %v2931 = vunpack.c.h.b16 %v765
        %v2932 = vunpack.c.l.b16 %v766
        %v2933 = vunpack.c.h.b16 %v766
        %v2934 = vunpack.c.l.b16 %v767
        %v2935 = vunpack.c.h.b16 %v767
        %v2936 = vunpack.c.l.b16 %v768
        %v2937 = vunpack.c.h.b16 %v768
        %v2938 = vunpack.c.l.b16 %v769
        %v2939 = vunpack.c.h.b16 %v769
        %v2940 = vunpack.c.l.b16 %v770
        %v2941 = vunpack.c.h.b16 %v770
        %v2942 = vunpack.c.l.b16 %v771
        %v2943 = vunpack.c.h.b16 %v771
        %v2944 = vunpack.c.l.b16 %v772
        %v2945 = vunpack.c.h.b16 %v772
        %v2946 = vunpack.c.l.b16 %v773
        %v2947 = vunpack.c.h.b16 %v773
        %v2948 = vunpack.c.l.b16 %v774
        %v2949 = vunpack.c.h.b16 %v774
        %v2950 = vunpack.c.l.b16 %v775
        %v2951 = vunpack.c.h.b16 %v775
        %v2952 = vunpack.c.l.b16 %v776
        %v2953 = vunpack.c.h.b16 %v776
        %v2954 = vunpack.c.l.b16 %v777
        %v2955 = vunpack.c.h.b16 %v777
        %v2956 = vunpack.c.l.b16 %v778
        %v2957 = vunpack.c.h.b16 %v778
        %v2958 = vunpack.c.l.b16 %v779
        %v2959 = vunpack.c.h.b16 %v779
        %v2960 = vunpack.c.l.b16 %v780
        %v2961 = vunpack.c.h.b16 %v780
        %v2962 = vunpack.c.l.b16 %v781
        %v2963 = vunpack.c.h.b16 %v781
        %v2964 = vunpack.c.l.b16 %v782
        %v2965 = vunpack.c.h.b16 %v782
        %v2966 = vunpack.c.l.b16 %v783
        %v2967 = vunpack.c.h.b16 %v783
        %v2968 = vunpack.c.l.b16 %v784
        %v2969 = vunpack.c.h.b16 %v784
        %v2970 = vunpack.c.l.b16 %v785
        %v2971 = vunpack.c.h.b16 %v785
        %v2972 = vunpack.c.l.b16 %v786
        %v2973 = vunpack.c.h.b16 %v786
        %v2974 = vunpack.c.l.b16 %v787
        %v2975 = vunpack.c.h.b16 %v787
        %v2976 = vunpack.c.l.b16 %v788
        %v2977 = vunpack.c.h.b16 %v788
        %v2978 = vunpack.c.l.b16 %v789
        %v2979 = vunpack.c.h.b16 %v789
        %v2980 = vunpack.c.l.b16 %v790
        %v2981 = vunpack.c.h.b16 %v790
        %v2982 = vunpack.c.l.b16 %v791
        %v2983 = vunpack.c.h.b16 %v791
        %v2984 = vunpack.c.l.b16 %v792
        %v2985 = vunpack.c.h.b16 %v792
        %v2986 = vunpack.c.l.b16 %v793
        %v2987 = vunpack.c.h.b16 %v793
        %v2988 = vunpack.c.l.b16 %v794
        %v2989 = vunpack.c.h.b16 %v794
        %v2990 = vunpack.c.l.b16 %v795
        %v2991 = vunpack.c.h.b16 %v795
        %v2992 = vunpack.c.l.b16 %v796
        %v2993 = vunpack.c.h.b16 %v796
        %v2994 = vunpack.c.l.b16 %v797
        %v2995 = vunpack.c.h.b16 %v797
        %v2996 = vunpack.c.l.b16 %v798
        %v2997 = vunpack.c.h.b16 %v798
        %v2998 = vunpack.c.l.b16 %v799
        %v2999 = vunpack.c.h.b16 %v799
        %v3000 = vunpack.c.l.b16 %v800
        %v3001 = vunpack.c.h.b16 %v800
        %v3002 = vunpack.c.l.b16 %v801
        %v3003 = vunpack.c.h.b16 %v801
        %v3004 = vunpack.c.l.b16 %v802
        %v3005 = vunpack.c.h.b16 %v802
        %v3006 = vunpack.c.l.b16 %v803
        %v3007 = vunpack.c.h.b16 %v803
        %v3008 = vunpack.c.l.b16 %v804
        %v3009 = vunpack.c.h.b16 %v804
        %v3010 = vunpack.c.l.b16 %v805
        %v3011 = vunpack.c.h.b16 %v805
        %v3012 = vunpack.c.l.b16 %v806
        %v3013 = vunpack.c.h.b16 %v806
        %v3014 = vunpack.c.l.b16 %v807
        %v3015 = vunpack.c.h.b16 %v807
        %v3016 = vunpack.c.l.b16 %v808
        %v3017 = vunpack.c.h.b16 %v808
        %v3018 = vunpack.c.l.b16 %v809
        %v3019 = vunpack.c.h.b16 %v809
        %v3020 = vunpack.c.l.b16 %v810
        %v3021 = vunpack.c.h.b16 %v810
        %v3022 = vunpack.c.l.b16 %v811
        %v3023 = vunpack.c.h.b16 %v811
        %v3024 = vunpack.c.l.b16 %v812
        %v3025 = vunpack.c.h.b16 %v812
        %v3026 = vunpack.c.l.b16 %v813
        %v3027 = vunpack.c.h.b16 %v813
        %v3028 = vunpack.c.l.b16 %v814
        %v3029 = vunpack.c.h.b16 %v814
        %v3030 = vunpack.c.l.b16 %v815
        %v3031 = vunpack.c.h.b16 %v815
        %v3032 = vunpack.c.l.b16 %v816
        %v3033 = vunpack.c.h.b16 %v816
        %v3034 = vunpack.c.l.b16 %v817
        %v3035 = vunpack.c.h.b16 %v817
        %v3036 = vunpack.c.l.b16 %v818
        %v3037 = vunpack.c.h.b16 %v818
        %v3038 = vunpack.c.l.b16 %v819
        %v3039 = vunpack.c.h.b16 %v819
        %v3040 = vunpack.c.l.b16 %v820
        %v3041 = vunpack.c.h.b16 %v820
        %v3042 = vunpack.c.l.b16 %v821
        %v3043 = vunpack.c.h.b16 %v821
        %v3044 = vunpack.c.l.b16 %v822
        %v3045 = vunpack.c.h.b16 %v822
        %v3046 = vunpack.c.l.b16 %v823
        %v3047 = vunpack.c.h.b16 %v823
        %v3048 = vunpack.c.l.b16 %v824
        %v3049 = vunpack.c.h.b16 %v824
        %v3050 = vunpack.c.l.b16 %v825
        %v3051 = vunpack.c.h.b16 %v825
        %v3052 = vunpack.c.l.b16 %v826
        %v3053 = vunpack.c.h.b16 %v826
        %v3054 = vunpack.c.l.b16 %v827
        %v3055 = vunpack.c.h.b16 %v827
        %v3056 = vunpack.c.l.b16 %v828
        %v3057 = vunpack.c.h.b16 %v828
        %v3058 = vunpack.c.l.b16 %v829
        %v3059 = vunpack.c.h.b16 %v829
        %v3060 = vunpack.c.l.b16 %v830
        %v3061 = vunpack.c.h.b16 %v830
        %v3062 = vunpack.c.l.b16 %v831
        %v3063 = vunpack.c.h.b16 %v831
        %v3064 = vunpack.c.l.b16 %v832
        %v3065 = vunpack.c.h.b16 %v832
        %v3066 = vunpack.c.l.b16 %v833
        %v3067 = vunpack.c.h.b16 %v833
        %v3068 = vunpack.c.l.b16 %v834
        %v3069 = vunpack.c.h.b16 %v834
        %v3070 = vunpack.c.l.b16 %v835
        %v3071 = vunpack.c.h.b16 %v835
        %v3072 = vunpack.c.l.b16 %v836
        %v3073 = vunpack.c.h.b16 %v836
        %v3074 = vunpack.c.l.b16 %v837
        %v3075 = vunpack.c.h.b16 %v837
        %v3076 = vunpack.c.l.b16 %v838
        %v3077 = vunpack.c.h.b16 %v838
        %v3078 = vunpack.c.l.b16 %v839
        %v3079 = vunpack.c.h.b16 %v839
        %v3080 = vunpack.c.l.b16 %v840
        %v3081 = vunpack.c.h.b16 %v840
        %v3082 = vunpack.c.l.b16 %v841
        %v3083 = vunpack.c.h.b16 %v841
        %v3084 = vunpack.c.l.b16 %v842
        %v3085 = vunpack.c.h.b16 %v842
        %v3086 = vunpack.c.l.b16 %v843
        %v3087 = vunpack.c.h.b16 %v843
        %v3088 = vunpack.c.l.b16 %v844
        %v3089 = vunpack.c.h.b16 %v844
        %v3090 = vunpack.c.l.b16 %v845
        %v3091 = vunpack.c.h.b16 %v845
        %v3092 = vunpack.c.l.b16 %v846
        %v3093 = vunpack.c.h.b16 %v846
        %v3094 = vunpack.c.l.b16 %v847
        %v3095 = vunpack.c.h.b16 %v847
        %v3096 = vunpack.c.l.b16 %v848
        %v3097 = vunpack.c.h.b16 %v848
        %v3098 = vunpack.c.l.b16 %v849
        %v3099 = vunpack.c.h.b16 %v849
        %v3100 = vunpack.c.l.b16 %v850
        %v3101 = vunpack.c.h.b16 %v850
        %v3102 = vunpack.c.l.b16 %v851
        %v3103 = vunpack.c.h.b16 %v851
        %v3104 = vunpack.c.l.b16 %v852
        %v3105 = vunpack.c.h.b16 %v852
        %v3106 = vunpack.c.l.b16 %v853
        %v3107 = vunpack.c.h.b16 %v853
        %v3108 = vunpack.c.l.b16 %v854
        %v3109 = vunpack.c.h.b16 %v854
        %v3110 = vunpack.c.l.b16 %v855
        %v3111 = vunpack.c.h.b16 %v855
        %v3112 = vunpack.c.l.b16 %v856
        %v3113 = vunpack.c.h.b16 %v856
        %v3114 = vunpack.c.l.b16 %v857
        %v3115 = vunpack.c.h.b16 %v857
        %v3116 = vunpack.c.l.b16 %v858
        %v3117 = vunpack.c.h.b16 %v858
        %v3118 = vunpack.c.l.b16 %v859
        %v3119 = vunpack.c.h.b16 %v859
        %v3120 = vunpack.c.l.b16 %v860
        %v3121 = vunpack.c.h.b16 %v860
        %v3122 = vunpack.c.l.b16 %v861
        %v3123 = vunpack.c.h.b16 %v861
        %v3124 = vunpack.c.l.b16 %v862
        %v3125 = vunpack.c.h.b16 %v862
        %v3126 = vunpack.c.l.b16 %v863
        %v3127 = vunpack.c.h.b16 %v863
        %v3128 = vunpack.c.l.b16 %v864
        %v3129 = vunpack.c.h.b16 %v864
        %v3130 = vunpack.c.l.b16 %v865
        %v3131 = vunpack.c.h.b16 %v865
        %v3132 = vunpack.c.l.b16 %v866
        %v3133 = vunpack.c.h.b16 %v866
        %v3134 = vunpack.c.l.b16 %v867
        %v3135 = vunpack.c.h.b16 %v867
        %v3136 = vunpack.c.l.b16 %v868
        %v3137 = vunpack.c.h.b16 %v868
        %v3138 = vunpack.c.l.b16 %v869
        %v3139 = vunpack.c.h.b16 %v869
        %v3140 = vunpack.c.l.b16 %v870
        %v3141 = vunpack.c.h.b16 %v870
        %v3142 = vunpack.c.l.b16 %v871
        %v3143 = vunpack.c.h.b16 %v871
        %v3144 = vunpack.c.l.b16 %v872
        %v3145 = vunpack.c.h.b16 %v872
        %v3146 = vunpack.c.l.b16 %v873
        %v3147 = vunpack.c.h.b16 %v873
        %v3148 = vunpack.c.l.b16 %v874
        %v3149 = vunpack.c.h.b16 %v874
        %v3150 = vunpack.c.l.b16 %v875
        %v3151 = vunpack.c.h.b16 %v875
        %v3152 = vunpack.c.l.b16 %v876
        %v3153 = vunpack.c.h.b16 %v876
        %v3154 = vunpack.c.l.b16 %v877
        %v3155 = vunpack.c.h.b16 %v877
        %v3156 = vunpack.c.l.b16 %v878
        %v3157 = vunpack.c.h.b16 %v878
        %v3158 = vunpack.c.l.b16 %v879
        %v3159 = vunpack.c.h.b16 %v879
        %v3160 = vunpack.c.l.b16 %v880
        %v3161 = vunpack.c.h.b16 %v880
        %v3162 = vunpack.c.l.b16 %v881
        %v3163 = vunpack.c.h.b16 %v881
        %v3164 = vunpack.c.l.b16 %v882
        %v3165 = vunpack.c.h.b16 %v882
        %v3166 = vunpack.c.l.b16 %v883
        %v3167 = vunpack.c.h.b16 %v883
        %v3168 = vunpack.c.l.b16 %v884
        %v3169 = vunpack.c.h.b16 %v884
        %v3170 = vunpack.c.l.b16 %v885
        %v3171 = vunpack.c.h.b16 %v885
        %v3172 = vunpack.c.l.b16 %v886
        %v3173 = vunpack.c.h.b16 %v886
        %v3174 = vunpack.c.l.b16 %v887
        %v3175 = vunpack.c.h.b16 %v887
        %v3176 = vunpack.c.l.b16 %v888
        %v3177 = vunpack.c.h.b16 %v888
        %v3178 = vunpack.c.l.b16 %v889
        %v3179 = vunpack.c.h.b16 %v889
        %v3180 = vunpack.c.l.b16 %v890
        %v3181 = vunpack.c.h.b16 %v890
        %v3182 = vunpack.c.l.b16 %v891
        %v3183 = vunpack.c.h.b16 %v891
        %v3184 = vunpack.c.l.b16 %v892
        %v3185 = vunpack.c.h.b16 %v892
        %v3186 = vunpack.c.l.b16 %v893
        %v3187 = vunpack.c.h.b16 %v893
        %v3188 = vunpack.c.l.b16 %v894
        %v3189 = vunpack.c.h.b16 %v894
        %v3190 = vunpack.c.l.b16 %v895
        %v3191 = vunpack.c.h.b16 %v895
        %v3192 = vunpack.c.l.b16 %v896
        %v3193 = vunpack.c.h.b16 %v896
        %v3194 = vunpack.c.l.b16 %v897
        %v3195 = vunpack.c.h.b16 %v897
        %v3196 = vunpack.c.l.b16 %v898
        %v3197 = vunpack.c.h.b16 %v898
        %v3198 = vunpack.c.l.b16 %v899
        %v3199 = vunpack.c.h.b16 %v899
        %v3200 = vunpack.c.l.b16 %v900
        %v3201 = vunpack.c.h.b16 %v900
        %v3202 = vunpack.c.l.b16 %v901
        %v3203 = vunpack.c.h.b16 %v901
        %v3204 = vunpack.c.l.b16 %v902
        %v3205 = vunpack.c.h.b16 %v902
        %v3206 = vunpack.c.l.b16 %v903
        %v3207 = vunpack.c.h.b16 %v903
        %v3208 = vunpack.c.l.b16 %v904
        %v3209 = vunpack.c.h.b16 %v904
        %v3210 = vunpack.c.l.b16 %v905
        %v3211 = vunpack.c.h.b16 %v905
        %v3212 = vunpack.c.l.b16 %v906
        %v3213 = vunpack.c.h.b16 %v906
        %v3214 = vunpack.c.l.b16 %v907
        %v3215 = vunpack.c.h.b16 %v907
        %v3216 = vunpack.c.l.b16 %v908
        %v3217 = vunpack.c.h.b16 %v908
        %v3218 = vunpack.c.l.b16 %v909
        %v3219 = vunpack.c.h.b16 %v909
        %v3220 = vunpack.c.l.b16 %v910
        %v3221 = vunpack.c.h.b16 %v910
        %v3222 = vunpack.c.l.b16 %v911
        %v3223 = vunpack.c.h.b16 %v911
        %v3224 = vunpack.c.l.b16 %v912
        %v3225 = vunpack.c.h.b16 %v912
        %v3226 = vunpack.c.l.b16 %v913
        %v3227 = vunpack.c.h.b16 %v913
        %v3228 = vunpack.c.l.b16 %v914
        %v3229 = vunpack.c.h.b16 %v914
        %v3230 = vunpack.c.l.b16 %v915
        %v3231 = vunpack.c.h.b16 %v915
        %v3232 = vunpack.c.l.b16 %v916
        %v3233 = vunpack.c.h.b16 %v916
        %v3234 = vunpack.c.l.b16 %v917
        %v3235 = vunpack.c.h.b16 %v917
        %v3236 = vunpack.c.l.b16 %v918
        %v3237 = vunpack.c.h.b16 %v918
        %v3238 = vunpack.c.l.b16 %v919
        %v3239 = vunpack.c.h.b16 %v919
        %v3240 = vunpack.c.l.b16 %v920
        %v3241 = vunpack.c.h.b16 %v920
        %v3242 = vunpack.c.l.b16 %v921
        %v3243 = vunpack.c.h.b16 %v921
        %v3244 = vunpack.c.l.b16 %v922
        %v3245 = vunpack.c.h.b16 %v922
        %v3246 = vunpack.c.l.b16 %v923
        %v3247 = vunpack.c.h.b16 %v923
        %v3248 = vunpack.c.l.b16 %v924
        %v3249 = vunpack.c.h.b16 %v924
        %v3250 = vunpack.c.l.b16 %v925
        %v3251 = vunpack.c.h.b16 %v925
        %v3252 = vunpack.c.l.b16 %v926
        %v3253 = vunpack.c.h.b16 %v926
        %v3254 = vunpack.c.l.b16 %v927
        %v3255 = vunpack.c.h.b16 %v927
        %v3256 = vunpack.c.l.b16 %v928
        %v3257 = vunpack.c.h.b16 %v928
        %v3258 = vunpack.c.l.b16 %v929
        %v3259 = vunpack.c.h.b16 %v929
        %v3260 = vunpack.c.l.b16 %v930
        %v3261 = vunpack.c.h.b16 %v930
        %v3262 = vunpack.c.l.b16 %v931
        %v3263 = vunpack.c.h.b16 %v931
        %v3264 = vunpack.c.l.b16 %v932
        %v3265 = vunpack.c.h.b16 %v932
        %v3266 = vunpack.c.l.b16 %v933
        %v3267 = vunpack.c.h.b16 %v933
        %v3268 = vunpack.c.l.b16 %v934
        %v3269 = vunpack.c.h.b16 %v934
        %v3270 = vunpack.c.l.b16 %v935
        %v3271 = vunpack.c.h.b16 %v935
        %v3272 = vunpack.c.l.b16 %v936
        %v3273 = vunpack.c.h.b16 %v936
        %v3274 = vunpack.c.l.b16 %v937
        %v3275 = vunpack.c.h.b16 %v937
        %v3276 = vunpack.c.l.b16 %v938
        %v3277 = vunpack.c.h.b16 %v938
        %v3278 = vunpack.c.l.b16 %v939
        %v3279 = vunpack.c.h.b16 %v939
        %v3280 = vunpack.c.l.b16 %v940
        %v3281 = vunpack.c.h.b16 %v940
        %v3282 = vunpack.c.l.b16 %v941
        %v3283 = vunpack.c.h.b16 %v941
        %v3284 = vunpack.c.l.b16 %v942
        %v3285 = vunpack.c.h.b16 %v942
        %v3286 = vunpack.c.l.b16 %v943
        %v3287 = vunpack.c.h.b16 %v943
        %v3288 = vunpack.c.l.b16 %v944
        %v3289 = vunpack.c.h.b16 %v944
        %v3290 = vunpack.c.l.b16 %v945
        %v3291 = vunpack.c.h.b16 %v945
        %v3292 = vunpack.c.l.b16 %v946
        %v3293 = vunpack.c.h.b16 %v946
        %v3294 = vunpack.c.l.b16 %v947
        %v3295 = vunpack.c.h.b16 %v947
        %v3296 = vunpack.c.l.b16 %v948
        %v3297 = vunpack.c.h.b16 %v948
        %v3298 = vunpack.c.l.b16 %v949
        %v3299 = vunpack.c.h.b16 %v949
        %v3300 = vunpack.c.l.b16 %v950
        %v3301 = vunpack.c.h.b16 %v950
        %v3302 = vunpack.c.l.b16 %v951
        %v3303 = vunpack.c.h.b16 %v951
        %v3304 = vunpack.c.l.b16 %v952
        %v3305 = vunpack.c.h.b16 %v952
        %v3306 = vunpack.c.l.b16 %v953
        %v3307 = vunpack.c.h.b16 %v953
        %v3308 = vunpack.c.l.b16 %v954
        %v3309 = vunpack.c.h.b16 %v954
        %v3310 = vunpack.c.l.b16 %v955
        %v3311 = vunpack.c.h.b16 %v955
        %v3312 = vunpack.c.l.b16 %v956
        %v3313 = vunpack.c.h.b16 %v956
        %v3314 = vunpack.c.l.b16 %v957
        %v3315 = vunpack.c.h.b16 %v957
        %v3316 = vunpack.c.l.b16 %v958
        %v3317 = vunpack.c.h.b16 %v958
        %v3318 = vunpack.c.l.b16 %v959
        %v3319 = vunpack.c.h.b16 %v959
        %v3320 = vunpack.c.l.b16 %v960
        %v3321 = vunpack.c.h.b16 %v960
        %v3322 = vunpack.c.l.b16 %v961
        %v3323 = vunpack.c.h.b16 %v961
        %v3324 = vunpack.c.l.b16 %v962
        %v3325 = vunpack.c.h.b16 %v962
        %v3326 = vunpack.c.l.b16 %v963
        %v3327 = vunpack.c.h.b16 %v963
        %v3328 = vunpack.c.l.b16 %v964
        %v3329 = vunpack.c.h.b16 %v964
        %v3330 = vunpack.c.l.b16 %v965
        %v3331 = vunpack.c.h.b16 %v965
        %v3332 = vunpack.c.l.b16 %v966
        %v3333 = vunpack.c.h.b16 %v966
        %v3334 = vunpack.c.l.b16 %v967
        %v3335 = vunpack.c.h.b16 %v967
        %v3336 = vunpack.c.l.b16 %v968
        %v3337 = vunpack.c.h.b16 %v968
        %v3338 = vunpack.c.l.b16 %v969
        %v3339 = vunpack.c.h.b16 %v969
        %v3340 = vunpack.c.l.b16 %v970
        %v3341 = vunpack.c.h.b16 %v970
        %v3342 = vunpack.c.l.b16 %v971
        %v3343 = vunpack.c.h.b16 %v971
        %v3344 = vunpack.c.l.b16 %v972
        %v3345 = vunpack.c.h.b16 %v972
        %v3346 = vunpack.c.l.b16 %v973
        %v3347 = vunpack.c.h.b16 %v973
        %v3348 = vunpack.c.l.b16 %v974
        %v3349 = vunpack.c.h.b16 %v974
        %v3350 = vunpack.c.l.b16 %v975
        %v3351 = vunpack.c.h.b16 %v975
        %v3352 = vunpack.c.l.b16 %v976
        %v3353 = vunpack.c.h.b16 %v976
        %v3354 = vunpack.c.l.b16 %v977
        %v3355 = vunpack.c.h.b16 %v977
        %v3356 = vunpack.c.l.b16 %v978
        %v3357 = vunpack.c.h.b16 %v978
        %v3358 = vunpack.c.l.b16 %v979
        %v3359 = vunpack.c.h.b16 %v979
        %v3360 = vunpack.c.l.b16 %v980
        %v3361 = vunpack.c.h.b16 %v980
        %v3362 = vunpack.c.l.b16 %v981
        %v3363 = vunpack.c.h.b16 %v981
        %v3364 = vunpack.c.l.b16 %v982
        %v3365 = vunpack.c.h.b16 %v982
        %v3366 = vunpack.c.l.b16 %v983
        %v3367 = vunpack.c.h.b16 %v983
        %v3368 = vunpack.c.l.b16 %v984
        %v3369 = vunpack.c.h.b16 %v984
        %v3370 = vunpack.c.l.b16 %v985
        %v3371 = vunpack.c.h.b16 %v985
        %v3372 = vunpack.c.l.b16 %v986
        %v3373 = vunpack.c.h.b16 %v986
        %v3374 = vunpack.c.l.b16 %v987
        %v3375 = vunpack.c.h.b16 %v987
        %v3376 = vunpack.c.l.b16 %v988
        %v3377 = vunpack.c.h.b16 %v988
        %v3378 = vunpack.c.l.b16 %v989
        %v3379 = vunpack.c.h.b16 %v989
        %v3380 = vunpack.c.l.b16 %v990
        %v3381 = vunpack.c.h.b16 %v990
        %v3382 = vunpack.c.l.b16 %v991
        %v3383 = vunpack.c.h.b16 %v991
        %v3384 = vunpack.c.l.b16 %v992
        %v3385 = vunpack.c.h.b16 %v992
        %v3386 = vunpack.c.l.b16 %v993
        %v3387 = vunpack.c.h.b16 %v993
        %v3388 = vunpack.c.l.b16 %v994
        %v3389 = vunpack.c.h.b16 %v994
        %v3390 = vunpack.c.l.b16 %v995
        %v3391 = vunpack.c.h.b16 %v995
        %v3392 = vunpack.c.l.b16 %v996
        %v3393 = vunpack.c.h.b16 %v996
        %v3394 = vunpack.c.l.b16 %v997
        %v3395 = vunpack.c.h.b16 %v997
        %v3396 = vunpack.c.l.b16 %v998
        %v3397 = vunpack.c.h.b16 %v998
        %v3398 = vunpack.c.l.b16 %v999
        %v3399 = vunpack.c.h.b16 %v999
        %v3400 = vunpack.c.l.b16 %v1000
        %v3401 = vunpack.c.h.b16 %v1000
        %v3402 = vunpack.c.l.b16 %v1001
        %v3403 = vunpack.c.h.b16 %v1001
        %v3404 = vunpack.c.l.b16 %v1002
        %v3405 = vunpack.c.h.b16 %v1002
        %v3406 = vunpack.c.l.b16 %v1003
        %v3407 = vunpack.c.h.b16 %v1003
        %v3408 = vunpack.c.l.b16 %v1004
        %v3409 = vunpack.c.h.b16 %v1004
        %v3410 = vunpack.c.l.b16 %v1005
        %v3411 = vunpack.c.h.b16 %v1005
        %v3412 = vunpack.c.l.b16 %v1006
        %v3413 = vunpack.c.h.b16 %v1006
        %v3414 = vunpack.c.l.b16 %v1007
        %v3415 = vunpack.c.h.b16 %v1007
        %v3416 = vunpack.c.l.b16 %v1008
        %v3417 = vunpack.c.h.b16 %v1008
        %v3418 = vunpack.c.l.b16 %v1009
        %v3419 = vunpack.c.h.b16 %v1009
        %v3420 = vunpack.c.l.b16 %v1010
        %v3421 = vunpack.c.h.b16 %v1010
        %v3422 = vunpack.c.l.b16 %v1011
        %v3423 = vunpack.c.h.b16 %v1011
        %v3424 = vunpack.c.l.b16 %v1012
        %v3425 = vunpack.c.h.b16 %v1012
        %v3426 = vunpack.c.l.b16 %v1013
        %v3427 = vunpack.c.h.b16 %v1013
        %v3428 = vunpack.c.l.b16 %v1014
        %v3429 = vunpack.c.h.b16 %v1014
        %v3430 = vunpack.c.l.b16 %v1015
        %v3431 = vunpack.c.h.b16 %v1015
        %v3432 = vunpack.c.l.b16 %v1016
        %v3433 = vunpack.c.h.b16 %v1016
        %v3434 = vunpack.c.l.b16 %v1017
        %v3435 = vunpack.c.h.b16 %v1017
        %v3436 = vunpack.c.l.b16 %v1018
        %v3437 = vunpack.c.h.b16 %v1018
        %v3438 = vunpack.c.l.b16 %v1019
        %v3439 = vunpack.c.h.b16 %v1019
        %v3440 = vunpack.c.l.b16 %v1020
        %v3441 = vunpack.c.h.b16 %v1020
        %v3442 = vunpack.c.l.b16 %v1021
        %v3443 = vunpack.c.h.b16 %v1021
        %v3444 = vunpack.c.l.b16 %v1022
        %v3445 = vunpack.c.h.b16 %v1022
        %v3446 = vunpack.c.l.b16 %v1023
        %v3447 = vunpack.c.h.b16 %v1023
        %v3448 = vunpack.c.l.b16 %v1024
        %v3449 = vunpack.c.h.b16 %v1024
        %v3450 = vunpack.c.l.b16 %v1025
        %v3451 = vunpack.c.h.b16 %v1025
        %v3452 = vunpack.c.l.b16 %v1026
        %v3453 = vunpack.c.h.b16 %v1026
        %v3454 = vunpack.c.l.b16 %v1027
        %v3455 = vunpack.c.h.b16 %v1027
        %v3456 = vunpack.c.l.b16 %v1028
        %v3457 = vunpack.c.h.b16 %v1028
        %v3458 = vunpack.c.l.b16 %v1029
        %v3459 = vunpack.c.h.b16 %v1029
        %v3460 = vunpack.c.l.b16 %v1030
        %v3461 = vunpack.c.h.b16 %v1030
        %v3462 = vunpack.c.l.b16 %v1031
        %v3463 = vunpack.c.h.b16 %v1031
        %v3464 = vunpack.c.l.b16 %v1032
        %v3465 = vunpack.c.h.b16 %v1032
        %v3466 = vunpack.c.l.b16 %v1033
        %v3467 = vunpack.c.h.b16 %v1033
        %v3468 = vunpack.c.l.b16 %v1034
        %v3469 = vunpack.c.h.b16 %v1034
        %v3470 = vunpack.c.l.b16 %v1035
        %v3471 = vunpack.c.h.b16 %v1035
        %v3472 = vunpack.c.l.b16 %v1036
        %v3473 = vunpack.c.h.b16 %v1036
        %v3474 = vunpack.c.l.b16 %v1037
        %v3475 = vunpack.c.h.b16 %v1037
        %v3476 = vunpack.c.l.b16 %v1038
        %v3477 = vunpack.c.h.b16 %v1038
        %v3478 = vunpack.c.l.b16 %v1039
        %v3479 = vunpack.c.h.b16 %v1039
        %v3480 = vunpack.c.l.b16 %v1040
        %v3481 = vunpack.c.h.b16 %v1040
        %v3482 = vunpack.c.l.b16 %v1041
        %v3483 = vunpack.c.h.b16 %v1041
        %v3484 = vunpack.c.l.b16 %v1042
        %v3485 = vunpack.c.h.b16 %v1042
        %v3486 = vunpack.c.l.b16 %v1043
        %v3487 = vunpack.c.h.b16 %v1043
        %v3488 = vunpack.c.l.b16 %v1044
        %v3489 = vunpack.c.h.b16 %v1044
        %v3490 = vunpack.c.l.b16 %v1045
        %v3491 = vunpack.c.h.b16 %v1045
        %v3492 = vunpack.c.l.b16 %v1046
        %v3493 = vunpack.c.h.b16 %v1046
        %v3494 = vunpack.c.l.b16 %v1047
        %v3495 = vunpack.c.h.b16 %v1047
        %v3496 = vunpack.c.l.b16 %v1048
        %v3497 = vunpack.c.h.b16 %v1048
        %v3498 = vunpack.c.l.b16 %v1049
        %v3499 = vunpack.c.h.b16 %v1049
        %v3500 = vunpack.c.l.b16 %v1050
        %v3501 = vunpack.c.h.b16 %v1050
        %v3502 = vunpack.c.l.b16 %v1051
        %v3503 = vunpack.c.h.b16 %v1051
        %v3504 = vunpack.c.l.b16 %v1052
        %v3505 = vunpack.c.h.b16 %v1052
        %v3506 = vunpack.c.l.b16 %v1053
        %v3507 = vunpack.c.h.b16 %v1053
        %v3508 = vunpack.c.l.b16 %v1054
        %v3509 = vunpack.c.h.b16 %v1054
        %v3510 = vunpack.c.l.b16 %v1055
        %v3511 = vunpack.c.h.b16 %v1055
        %v3512 = vunpack.c.l.b16 %v1056
        %v3513 = vunpack.c.h.b16 %v1056
        %v3514 = vunpack.c.l.b16 %v1057
        %v3515 = vunpack.c.h.b16 %v1057
        %v3516 = vunpack.c.l.b16 %v1058
        %v3517 = vunpack.c.h.b16 %v1058
        %v3518 = vunpack.c.l.b16 %v1059
        %v3519 = vunpack.c.h.b16 %v1059
        %v3520 = vunpack.c.l.b16 %v1060
        %v3521 = vunpack.c.h.b16 %v1060
        %v3522 = vunpack.c.l.b16 %v1061
        %v3523 = vunpack.c.h.b16 %v1061
        %v3524 = vunpack.c.l.b16 %v1062
        %v3525 = vunpack.c.h.b16 %v1062
        %v3526 = vunpack.c.l.b16 %v1063
        %v3527 = vunpack.c.h.b16 %v1063
        %v3528 = vunpack.c.l.b16 %v1064
        %v3529 = vunpack.c.h.b16 %v1064
        %v3530 = vunpack.c.l.b16 %v1065
        %v3531 = vunpack.c.h.b16 %v1065
        %v3532 = vunpack.c.l.b16 %v1066
        %v3533 = vunpack.c.h.b16 %v1066
        %v3534 = vunpack.c.l.b16 %v1067
        %v3535 = vunpack.c.h.b16 %v1067
        %v3536 = vunpack.c.l.b16 %v1068
        %v3537 = vunpack.c.h.b16 %v1068
        %v3538 = vunpack.c.l.b16 %v1069
        %v3539 = vunpack.c.h.b16 %v1069
        %v3540 = vunpack.c.l.b16 %v1070
        %v3541 = vunpack.c.h.b16 %v1070
        %v3542 = vunpack.c.l.b16 %v1071
        %v3543 = vunpack.c.h.b16 %v1071
        %v3544 = vunpack.c.l.b16 %v1072
        %v3545 = vunpack.c.h.b16 %v1072
        %v3546 = vunpack.c.l.b16 %v1073
        %v3547 = vunpack.c.h.b16 %v1073
        %v3548 = vunpack.c.l.b16 %v1074
        %v3549 = vunpack.c.h.b16 %v1074
        %v3550 = vunpack.c.l.b16 %v1075
        %v3551 = vunpack.c.h.b16 %v1075
        %v3552 = vunpack.c.l.b16 %v1076
        %v3553 = vunpack.c.h.b16 %v1076
        %v3554 = vunpack.c.l.b16 %v1077
        %v3555 = vunpack.c.h.b16 %v1077
        %v3556 = vunpack.c.l.b16 %v1078
        %v3557 = vunpack.c.h.b16 %v1078
        %v3558 = vunpack.c.l.b16 %v1079
        %v3559 = vunpack.c.h.b16 %v1079
        %v3560 = vunpack.c.l.b16 %v1080
        %v3561 = vunpack.c.h.b16 %v1080
        %v3562 = vunpack.c.l.b16 %v1081
        %v3563 = vunpack.c.h.b16 %v1081
        %v3564 = vunpack.c.l.b16 %v1082
        %v3565 = vunpack.c.h.b16 %v1082
        %v3566 = vunpack.c.l.b16 %v1083
        %v3567 = vunpack.c.h.b16 %v1083
        %v3568 = vunpack.c.l.b16 %v1084
        %v3569 = vunpack.c.h.b16 %v1084
        %v3570 = vunpack.c.l.b16 %v1085
        %v3571 = vunpack.c.h.b16 %v1085
        %v3572 = vunpack.c.l.b16 %v1086
        %v3573 = vunpack.c.h.b16 %v1086
        %v3574 = vunpack.c.l.b16 %v1087
        %v3575 = vunpack.c.h.b16 %v1087
        %v3576 = vunpack.c.l.b16 %v1088
        %v3577 = vunpack.c.h.b16 %v1088
        %v3578 = vunpack.c.l.b16 %v1089
        %v3579 = vunpack.c.h.b16 %v1089
        %v3580 = vunpack.c.l.b16 %v1090
        %v3581 = vunpack.c.h.b16 %v1090
        %v3582 = vunpack.c.l.b16 %v1091
        %v3583 = vunpack.c.h.b16 %v1091
        %v3584 = vunpack.c.l.b16 %v1092
        %v3585 = vunpack.c.h.b16 %v1092
        %v3586 = vunpack.c.l.b16 %v1093
        %v3587 = vunpack.c.h.b16 %v1093
        %v3588 = vunpack.c.l.b16 %v1094
        %v3589 = vunpack.c.h.b16 %v1094
        %v3590 = vunpack.c.l.b16 %v1095
        %v3591 = vunpack.c.h.b16 %v1095
        %v3592 = vunpack.c.l.b16 %v1096
        %v3593 = vunpack.c.h.b16 %v1096
        %v3594 = vunpack.c.l.b16 %v1097
        %v3595 = vunpack.c.h.b16 %v1097
        %v3596 = vunpack.c.l.b16 %v1098
        %v3597 = vunpack.c.h.b16 %v1098
        %v3598 = vunpack.c.l.b16 %v1099
        %v3599 = vunpack.c.h.b16 %v1099
        %v3600 = vunpack.c.l.b16 %v1100
        %v3601 = vunpack.c.h.b16 %v1100
        %v3602 = vunpack.c.l.b16 %v1101
        %v3603 = vunpack.c.h.b16 %v1101
        %v3604 = vunpack.c.l.b16 %v1102
        %v3605 = vunpack.c.h.b16 %v1102
        %v3606 = vunpack.c.l.b16 %v1103
        %v3607 = vunpack.c.h.b16 %v1103
        %v3608 = vunpack.c.l.b16 %v1104
        %v3609 = vunpack.c.h.b16 %v1104
        %v3610 = vunpack.c.l.b16 %v1105
        %v3611 = vunpack.c.h.b16 %v1105
        %v3612 = vunpack.c.l.b16 %v1106
        %v3613 = vunpack.c.h.b16 %v1106
        %v3614 = vunpack.c.l.b16 %v1107
        %v3615 = vunpack.c.h.b16 %v1107
        %v3616 = vunpack.c.l.b16 %v1108
        %v3617 = vunpack.c.h.b16 %v1108
        %v3618 = vunpack.c.l.b16 %v1109
        %v3619 = vunpack.c.h.b16 %v1109
        %v3620 = vunpack.c.l.b16 %v1110
        %v3621 = vunpack.c.h.b16 %v1110
        %v3622 = vunpack.c.l.b16 %v1111
        %v3623 = vunpack.c.h.b16 %v1111
        %v3624 = vunpack.c.l.b16 %v1112
        %v3625 = vunpack.c.h.b16 %v1112
        %v3626 = vunpack.c.l.b16 %v1113
        %v3627 = vunpack.c.h.b16 %v1113
        %v3628 = vunpack.c.l.b16 %v1114
        %v3629 = vunpack.c.h.b16 %v1114
        %v3630 = vunpack.c.l.b16 %v1115
        %v3631 = vunpack.c.h.b16 %v1115
        %v3632 = vunpack.c.l.b16 %v1116
        %v3633 = vunpack.c.h.b16 %v1116
        %v3634 = vunpack.c.l.b16 %v1117
        %v3635 = vunpack.c.h.b16 %v1117
        %v3636 = vunpack.c.l.b16 %v1118
        %v3637 = vunpack.c.h.b16 %v1118
        %v3638 = vunpack.c.l.b16 %v1119
        %v3639 = vunpack.c.h.b16 %v1119
        %v3640 = vunpack.c.l.b16 %v1120
        %v3641 = vunpack.c.h.b16 %v1120
        %v3642 = vunpack.c.l.b16 %v1121
        %v3643 = vunpack.c.h.b16 %v1121
        %v3644 = vunpack.c.l.b16 %v1122
        %v3645 = vunpack.c.h.b16 %v1122
        %v3646 = vunpack.c.l.b16 %v1123
        %v3647 = vunpack.c.h.b16 %v1123
        %v3648 = vunpack.c.l.b16 %v1124
        %v3649 = vunpack.c.h.b16 %v1124
        %v3650 = vunpack.c.l.b16 %v1125
        %v3651 = vunpack.c.h.b16 %v1125
        %v3652 = vunpack.c.l.b16 %v1126
        %v3653 = vunpack.c.h.b16 %v1126
        %v3654 = vunpack.c.l.b16 %v1127
        %v3655 = vunpack.c.h.b16 %v1127
        %v3656 = vunpack.c.l.b16 %v1128
        %v3657 = vunpack.c.h.b16 %v1128
        %v3658 = vunpack.c.l.b16 %v1129
        %v3659 = vunpack.c.h.b16 %v1129
        %v3660 = vunpack.c.l.b16 %v1130
        %v3661 = vunpack.c.h.b16 %v1130
        %v3662 = vunpack.c.l.b16 %v1131
        %v3663 = vunpack.c.h.b16 %v1131
        %v3664 = vunpack.c.l.b16 %v1132
        %v3665 = vunpack.c.h.b16 %v1132
        %v3666 = vunpack.c.l.b16 %v1133
        %v3667 = vunpack.c.h.b16 %v1133
        %v3668 = vunpack.c.l.b16 %v1134
        %v3669 = vunpack.c.h.b16 %v1134
        %v3670 = vunpack.c.l.b16 %v1135
        %v3671 = vunpack.c.h.b16 %v1135
        %v3672 = vunpack.c.l.b16 %v1136
        %v3673 = vunpack.c.h.b16 %v1136
        %v3674 = vunpack.c.l.b16 %v1137
        %v3675 = vunpack.c.h.b16 %v1137
        %v3676 = vunpack.c.l.b16 %v1138
        %v3677 = vunpack.c.h.b16 %v1138
        %v3678 = vunpack.c.l.b16 %v1139
        %v3679 = vunpack.c.h.b16 %v1139
        %v3680 = vunpack.c.l.b16 %v1140
        %v3681 = vunpack.c.h.b16 %v1140
        %v3682 = vunpack.c.l.b16 %v1141
        %v3683 = vunpack.c.h.b16 %v1141
        %v3684 = vunpack.c.l.b16 %v1142
        %v3685 = vunpack.c.h.b16 %v1142
        %v3686 = vunpack.c.l.b16 %v1143
        %v3687 = vunpack.c.h.b16 %v1143
        %v3688 = vunpack.c.l.b16 %v1144
        %v3689 = vunpack.c.h.b16 %v1144
        %v3690 = vunpack.c.l.b16 %v1145
        %v3691 = vunpack.c.h.b16 %v1145
        %v3692 = vunpack.c.l.b16 %v1146
        %v3693 = vunpack.c.h.b16 %v1146
        %v3694 = vunpack.c.l.b16 %v1147
        %v3695 = vunpack.c.h.b16 %v1147
        %v3696 = vunpack.c.l.b16 %v1148
        %v3697 = vunpack.c.h.b16 %v1148
        %v3698 = vunpack.c.l.b16 %v1149
        %v3699 = vunpack.c.h.b16 %v1149
        %v3700 = vunpack.c.l.b16 %v1150
        %v3701 = vunpack.c.h.b16 %v1150
        %v3702 = vunpack.c.l.b16 %v1151
        %v3703 = vunpack.c.h.b16 %v1151
        %v3704 = vunpack.c.l.b16 %v1152
        %v3705 = vunpack.c.h.b16 %v1152
        %v3706 = vunpack.c.l.b16 %v1153
        %v3707 = vunpack.c.h.b16 %v1153
        %v3708 = vunpack.c.l.b16 %v1154
        %v3709 = vunpack.c.h.b16 %v1154
        %v3710 = vunpack.c.l.b16 %v1155
        %v3711 = vunpack.c.h.b16 %v1155
        %v3712 = vunpack.c.l.b16 %v1156
        %v3713 = vunpack.c.h.b16 %v1156
        %v3714 = vunpack.c.l.b16 %v1157
        %v3715 = vunpack.c.h.b16 %v1157
        %v3716 = vunpack.c.l.b16 %v1158
        %v3717 = vunpack.c.h.b16 %v1158
        %v3718 = vunpack.c.l.b16 %v1159
        %v3719 = vunpack.c.h.b16 %v1159
        %v3720 = vunpack.c.l.b16 %v1160
        %v3721 = vunpack.c.h.b16 %v1160
        %v3722 = vunpack.c.l.b16 %v1161
        %v3723 = vunpack.c.h.b16 %v1161
        %v3724 = vunpack.c.l.b16 %v1162
        %v3725 = vunpack.c.h.b16 %v1162
        %v3726 = vunpack.c.l.b16 %v1163
        %v3727 = vunpack.c.h.b16 %v1163
        %v3728 = vunpack.c.l.b16 %v1164
        %v3729 = vunpack.c.h.b16 %v1164
        %v3730 = vunpack.c.l.b16 %v1165
        %v3731 = vunpack.c.h.b16 %v1165
        %v3732 = vunpack.c.l.b16 %v1166
        %v3733 = vunpack.c.h.b16 %v1166
        %v3734 = vunpack.c.l.b16 %v1167
        %v3735 = vunpack.c.h.b16 %v1167
        %v3736 = vunpack.c.l.b16 %v1168
        %v3737 = vunpack.c.h.b16 %v1168
        %v3738 = vunpack.c.l.b16 %v1169
        %v3739 = vunpack.c.h.b16 %v1169
        %v3740 = vunpack.c.l.b16 %v1170
        %v3741 = vunpack.c.h.b16 %v1170
        %v3742 = vunpack.c.l.b16 %v1171
        %v3743 = vunpack.c.h.b16 %v1171
        %v3744 = vunpack.c.l.b16 %v1172
        %v3745 = vunpack.c.h.b16 %v1172
        %v3746 = vunpack.c.l.b16 %v1173
        %v3747 = vunpack.c.h.b16 %v1173
        %v3748 = vunpack.c.l.b16 %v1174
        %v3749 = vunpack.c.h.b16 %v1174
        %v3750 = vunpack.c.l.b16 %v1175
        %v3751 = vunpack.c.h.b16 %v1175
        %v3752 = vunpack.c.l.b16 %v1176
        %v3753 = vunpack.c.h.b16 %v1176
        %v3754 = vunpack.c.l.b16 %v1177
        %v3755 = vunpack.c.h.b16 %v1177
        %v3756 = vunpack.c.l.b16 %v1178
        %v3757 = vunpack.c.h.b16 %v1178
        %v3758 = vunpack.c.l.b16 %v1179
        %v3759 = vunpack.c.h.b16 %v1179
        %v3760 = vunpack.c.l.b16 %v1180
        %v3761 = vunpack.c.h.b16 %v1180
        %v3762 = vunpack.c.l.b16 %v1181
        %v3763 = vunpack.c.h.b16 %v1181
        %v3764 = vunpack.c.l.b16 %v1182
        %v3765 = vunpack.c.h.b16 %v1182
        %v3766 = vunpack.c.l.b16 %v1183
        %v3767 = vunpack.c.h.b16 %v1183
        %v3768 = vunpack.c.l.b16 %v1184
        %v3769 = vunpack.c.h.b16 %v1184
        %v3770 = vunpack.c.l.b16 %v1185
        %v3771 = vunpack.c.h.b16 %v1185
        %v3772 = vunpack.c.l.b16 %v1186
        %v3773 = vunpack.c.h.b16 %v1186
        %v3774 = vunpack.c.l.b16 %v1187
        %v3775 = vunpack.c.h.b16 %v1187
        %v3776 = vunpack.c.l.b16 %v1188
        %v3777 = vunpack.c.h.b16 %v1188
        %v3778 = vunpack.c.l.b16 %v1189
        %v3779 = vunpack.c.h.b16 %v1189
        %v3780 = vunpack.c.l.b16 %v1190
        %v3781 = vunpack.c.h.b16 %v1190
        %v3782 = vunpack.c.l.b16 %v1191
        %v3783 = vunpack.c.h.b16 %v1191
        %v3784 = vunpack.c.l.b16 %v1192
        %v3785 = vunpack.c.h.b16 %v1192
        %v3786 = vunpack.c.l.b16 %v1193
        %v3787 = vunpack.c.h.b16 %v1193
        %v3788 = vunpack.c.l.b16 %v1194
        %v3789 = vunpack.c.h.b16 %v1194
        %v3790 = vunpack.c.l.b16 %v1195
        %v3791 = vunpack.c.h.b16 %v1195
        %v3792 = vunpack.c.l.b16 %v1196
        %v3793 = vunpack.c.h.b16 %v1196
        %v3794 = vunpack.c.l.b16 %v1197
        %v3795 = vunpack.c.h.b16 %v1197
        %v3796 = vunpack.c.l.b16 %v1198
        %v3797 = vunpack.c.h.b16 %v1198
        %v3798 = vunpack.c.l.b16 %v1199
        %v3799 = vunpack.c.h.b16 %v1199
        %v3800 = vunpack.c.l.b16 %v1200
        %v3801 = vunpack.c.h.b16 %v1200
        %v3802 = vunpack.c.l.b16 %v1201
        %v3803 = vunpack.c.h.b16 %v1201
        %v3804 = vunpack.c.l.b16 %v1202
        %v3805 = vunpack.c.h.b16 %v1202
        %v3806 = vunpack.c.l.b16 %v1203
        %v3807 = vunpack.c.h.b16 %v1203
        %v3808 = vunpack.c.l.b16 %v1204
        %v3809 = vunpack.c.h.b16 %v1204
        %v3810 = vunpack.c.l.b16 %v1205
        %v3811 = vunpack.c.h.b16 %v1205
        %v3812 = vunpack.c.l.b16 %v1206
        %v3813 = vunpack.c.h.b16 %v1206
        %v3814 = vunpack.c.l.b16 %v1207
        %v3815 = vunpack.c.h.b16 %v1207
        %v3816 = vunpack.c.l.b16 %v1208
        %v3817 = vunpack.c.h.b16 %v1208
        %v3818 = vunpack.c.l.b16 %v1209
        %v3819 = vunpack.c.h.b16 %v1209
        %v3820 = vunpack.c.l.b16 %v1210
        %v3821 = vunpack.c.h.b16 %v1210
        %v3822 = vunpack.c.l.b16 %v1211
        %v3823 = vunpack.c.h.b16 %v1211
        %v3824 = vunpack.c.l.b16 %v1212
        %v3825 = vunpack.c.h.b16 %v1212
        %v3826 = vunpack.c.l.b16 %v1213
        %v3827 = vunpack.c.h.b16 %v1213
        %v3828 = vunpack.c.l.b16 %v1214
        %v3829 = vunpack.c.h.b16 %v1214
        %v3830 = vunpack.c.l.b16 %v1215
        %v3831 = vunpack.c.h.b16 %v1215
        %v3832 = vunpack.c.l.b16 %v1216
        %v3833 = vunpack.c.h.b16 %v1216
        %v3834 = vunpack.c.l.b16 %v1217
        %v3835 = vunpack.c.h.b16 %v1217
        %v3836 = vunpack.c.l.b16 %v1218
        %v3837 = vunpack.c.h.b16 %v1218
        %v3838 = vunpack.c.l.b16 %v1219
        %v3839 = vunpack.c.h.b16 %v1219
        %v3840 = vunpack.c.l.b16 %v1220
        %v3841 = vunpack.c.h.b16 %v1220
        %v3842 = vunpack.c.l.b16 %v1221
        %v3843 = vunpack.c.h.b16 %v1221
        %v3844 = vunpack.c.l.b16 %v1222
        %v3845 = vunpack.c.h.b16 %v1222
        %v3846 = vunpack.c.l.b16 %v1223
        %v3847 = vunpack.c.h.b16 %v1223
        %v3848 = vunpack.c.l.b16 %v1224
        %v3849 = vunpack.c.h.b16 %v1224
        %v3850 = vunpack.c.l.b16 %v1225
        %v3851 = vunpack.c.h.b16 %v1225
        %v3852 = vunpack.c.l.b16 %v1226
        %v3853 = vunpack.c.h.b16 %v1226
        %v3854 = vunpack.c.l.b16 %v1227
        %v3855 = vunpack.c.h.b16 %v1227
        %v3856 = vunpack.c.l.b16 %v1228
        %v3857 = vunpack.c.h.b16 %v1228
        %v3858 = vunpack.c.l.b16 %v1229
        %v3859 = vunpack.c.h.b16 %v1229
        %v3860 = vunpack.c.l.b16 %v1230
        %v3861 = vunpack.c.h.b16 %v1230
        %v3862 = vunpack.c.l.b16 %v1231
        %v3863 = vunpack.c.h.b16 %v1231
        %v3864 = vunpack.c.l.b16 %v1232
        %v3865 = vunpack.c.h.b16 %v1232
        %v3866 = vunpack.c.l.b16 %v1233
        %v3867 = vunpack.c.h.b16 %v1233
        %v3868 = vunpack.c.l.b16 %v1234
        %v3869 = vunpack.c.h.b16 %v1234
        %v3870 = vunpack.c.l.b16 %v1235
        %v3871 = vunpack.c.h.b16 %v1235
        %v3872 = vunpack.c.l.b16 %v1236
        %v3873 = vunpack.c.h.b16 %v1236
        %v3874 = vunpack.c.l.b16 %v1237
        %v3875 = vunpack.c.h.b16 %v1237
        %v3876 = vunpack.c.l.b16 %v1238
        %v3877 = vunpack.c.h.b16 %v1238
        %v3878 = vunpack.c.l.b16 %v1239
        %v3879 = vunpack.c.h.b16 %v1239
        %v3880 = vunpack.c.l.b16 %v1240
        %v3881 = vunpack.c.h.b16 %v1240
        %v3882 = vunpack.c.l.b16 %v1241
        %v3883 = vunpack.c.h.b16 %v1241
        %v3884 = vunpack.c.l.b16 %v1242
        %v3885 = vunpack.c.h.b16 %v1242
        %v3886 = vunpack.c.l.b16 %v1243
        %v3887 = vunpack.c.h.b16 %v1243
        %v3888 = vunpack.c.l.b16 %v1244
        %v3889 = vunpack.c.h.b16 %v1244
        %v3890 = vunpack.c.l.b16 %v1245
        %v3891 = vunpack.c.h.b16 %v1245
        %v3892 = vunpack.c.l.b16 %v1246
        %v3893 = vunpack.c.h.b16 %v1246
        %v3894 = vunpack.c.l.b16 %v1247
        %v3895 = vunpack.c.h.b16 %v1247
        %v3896 = vunpack.c.l.b16 %v1248
        %v3897 = vunpack.c.h.b16 %v1248
        %v3898 = vunpack.c.l.b16 %v1249
        %v3899 = vunpack.c.h.b16 %v1249
        %v3900 = vunpack.c.l.b16 %v1250
        %v3901 = vunpack.c.h.b16 %v1250
        %v3902 = vunpack.c.l.b16 %v1251
        %v3903 = vunpack.c.h.b16 %v1251
        %v3904 = vunpack.c.l.b16 %v1252
        %v3905 = vunpack.c.h.b16 %v1252
        %v3906 = vunpack.c.l.b16 %v1253
        %v3907 = vunpack.c.h.b16 %v1253
        %v3908 = vunpack.c.l.b16 %v1254
        %v3909 = vunpack.c.h.b16 %v1254
        %v3910 = vunpack.c.l.b16 %v1255
        %v3911 = vunpack.c.h.b16 %v1255
        %v3912 = vunpack.c.l.b16 %v1256
        %v3913 = vunpack.c.h.b16 %v1256
        %v3914 = vunpack.c.l.b16 %v1257
        %v3915 = vunpack.c.h.b16 %v1257
        %v3916 = vunpack.c.l.b16 %v1258
        %v3917 = vunpack.c.h.b16 %v1258
        %v3918 = vunpack.c.l.b16 %v1259
        %v3919 = vunpack.c.h.b16 %v1259
        %v3920 = vunpack.c.l.b16 %v1260
        %v3921 = vunpack.c.h.b16 %v1260
        %v3922 = vunpack.c.l.b16 %v1261
        %v3923 = vunpack.c.h.b16 %v1261
        %v3924 = vunpack.c.l.b16 %v1262
        %v3925 = vunpack.c.h.b16 %v1262
        %v3926 = vunpack.c.l.b16 %v1263
        %v3927 = vunpack.c.h.b16 %v1263
        %v3928 = vunpack.c.l.b16 %v1264
        %v3929 = vunpack.c.h.b16 %v1264
        %v3930 = vunpack.c.l.b16 %v1265
        %v3931 = vunpack.c.h.b16 %v1265
        %v3932 = vunpack.c.l.b16 %v1266
        %v3933 = vunpack.c.h.b16 %v1266
        %v3934 = vunpack.c.l.b16 %v1267
        %v3935 = vunpack.c.h.b16 %v1267
        %v3936 = vunpack.c.l.b16 %v1268
        %v3937 = vunpack.c.h.b16 %v1268
        %v3938 = vunpack.c.l.b16 %v1269
        %v3939 = vunpack.c.h.b16 %v1269
        %v3940 = vunpack.c.l.b16 %v1270
        %v3941 = vunpack.c.h.b16 %v1270
        %v3942 = vunpack.c.l.b16 %v1271
        %v3943 = vunpack.c.h.b16 %v1271
        %v3944 = vunpack.c.l.b16 %v1272
        %v3945 = vunpack.c.h.b16 %v1272
        %v3946 = vunpack.c.l.b16 %v1273
        %v3947 = vunpack.c.h.b16 %v1273
        %v3948 = vunpack.c.l.b16 %v1274
        %v3949 = vunpack.c.h.b16 %v1274
        %v3950 = vunpack.c.l.b16 %v1275
        %v3951 = vunpack.c.h.b16 %v1275
        %v3952 = vunpack.c.l.b16 %v1276
        %v3953 = vunpack.c.h.b16 %v1276
        %v3954 = vunpack.c.l.b16 %v1277
        %v3955 = vunpack.c.h.b16 %v1277
        %v3956 = vunpack.c.l.b16 %v1278
        %v3957 = vunpack.c.h.b16 %v1278
        %v3958 = vunpack.c.l.b16 %v1279
        %v3959 = vunpack.c.h.b16 %v1279
        %v3960 = vunpack.c.l.b16 %v1280
        %v3961 = vunpack.c.h.b16 %v1280
        %v3962 = vunpack.c.l.b16 %v1281
        %v3963 = vunpack.c.h.b16 %v1281
        %v3964 = vunpack.c.l.b16 %v1282
        %v3965 = vunpack.c.h.b16 %v1282
        %v3966 = vunpack.c.l.b16 %v1283
        %v3967 = vunpack.c.h.b16 %v1283
        %v3968 = vunpack.c.l.b16 %v1284
        %v3969 = vunpack.c.h.b16 %v1284
        %v3970 = vunpack.c.l.b16 %v1285
        %v3971 = vunpack.c.h.b16 %v1285
        %v3972 = vunpack.c.l.b16 %v1286
        %v3973 = vunpack.c.h.b16 %v1286
        %v3974 = vunpack.c.l.b16 %v1287
        %v3975 = vunpack.c.h.b16 %v1287
        %v3976 = vunpack.c.l.b16 %v1288
        %v3977 = vunpack.c.h.b16 %v1288
        %v3978 = vunpack.c.l.b16 %v1289
        %v3979 = vunpack.c.h.b16 %v1289
        %v3980 = vunpack.c.l.b16 %v1290
        %v3981 = vunpack.c.h.b16 %v1290
        %v3982 = vunpack.c.l.b16 %v1291
        %v3983 = vunpack.c.h.b16 %v1291
        %v3984 = vunpack.c.l.b16 %v1292
        %v3985 = vunpack.c.h.b16 %v1292
        %v3986 = vunpack.c.l.b16 %v1293
        %v3987 = vunpack.c.h.b16 %v1293
        %v3988 = vunpack.c.l.b16 %v1294
        %v3989 = vunpack.c.h.b16 %v1294
        %v3990 = vunpack.c.l.b16 %v1295
        %v3991 = vunpack.c.h.b16 %v1295
        %v3992 = vunpack.c.l.b16 %v1296
        %v3993 = vunpack.c.h.b16 %v1296
        %v3994 = vunpack.c.l.b16 %v1297
        %v3995 = vunpack.c.h.b16 %v1297
        %v3996 = vunpack.c.l.b16 %v1298
        %v3997 = vunpack.c.h.b16 %v1298
        %v3998 = vunpack.c.l.b16 %v1299
        %v3999 = vunpack.c.h.b16 %v1299
        %v4000 = vunpack.c.l.b16 %v1300
        %v4001 = vunpack.c.h.b16 %v1300
        %v4002 = vunpack.c.l.b16 %v1301
        %v4003 = vunpack.c.h.b16 %v1301
        %v4004 = vunpack.c.l.b16 %v1302
        %v4005 = vunpack.c.h.b16 %v1302
        %v4006 = vunpack.c.l.b16 %v1303
        %v4007 = vunpack.c.h.b16 %v1303
        %v4008 = vunpack.c.l.b16 %v1304
        %v4009 = vunpack.c.h.b16 %v1304
        %v4010 = vunpack.c.l.b16 %v1305
        %v4011 = vunpack.c.h.b16 %v1305
        %v4012 = vunpack.c.l.b16 %v1306
        %v4013 = vunpack.c.h.b16 %v1306
        %v4014 = vunpack.c.l.b16 %v1307
        %v4015 = vunpack.c.h.b16 %v1307
        %v4016 = vunpack.c.l.b16 %v1308
        %v4017 = vunpack.c.h.b16 %v1308
        %v4018 = vunpack.c.l.b16 %v1309
        %v4019 = vunpack.c.h.b16 %v1309
        %v4020 = vunpack.c.l.b16 %v1310
        %v4021 = vunpack.c.h.b16 %v1310
        %v4022 = vunpack.c.l.b16 %v1311
        %v4023 = vunpack.c.h.b16 %v1311
        %v4024 = vunpack.c.l.b16 %v1312
        %v4025 = vunpack.c.h.b16 %v1312
        %v4026 = vunpack.c.l.b16 %v1313
        %v4027 = vunpack.c.h.b16 %v1313
        %v4028 = vunpack.c.l.b16 %v1314
        %v4029 = vunpack.c.h.b16 %v1314
        %v4030 = vunpack.c.l.b16 %v1315
        %v4031 = vunpack.c.h.b16 %v1315
        %v4032 = vunpack.c.l.b16 %v1316
        %v4033 = vunpack.c.h.b16 %v1316
        %v4034 = vunpack.c.l.b16 %v1317
        %v4035 = vunpack.c.h.b16 %v1317
        %v4036 = vunpack.c.l.b16 %v1318
        %v4037 = vunpack.c.h.b16 %v1318
        %v4038 = vunpack.c.l.b16 %v1319
        %v4039 = vunpack.c.h.b16 %v1319
        %v4040 = vunpack.c.l.b16 %v1320
        %v4041 = vunpack.c.h.b16 %v1320
        %v4042 = vunpack.c.l.b16 %v1321
        %v4043 = vunpack.c.h.b16 %v1321
        %v4044 = vunpack.c.l.b16 %v1322
        %v4045 = vunpack.c.h.b16 %v1322
        %v4046 = vunpack.c.l.b16 %v1323
        %v4047 = vunpack.c.h.b16 %v1323
        %v4048 = vunpack.c.l.b16 %v1324
        %v4049 = vunpack.c.h.b16 %v1324
        %v4050 = vunpack.c.l.b16 %v1325
        %v4051 = vunpack.c.h.b16 %v1325
        %v4052 = vunpack.c.l.b16 %v1326
        %v4053 = vunpack.c.h.b16 %v1326
        %v4054 = vunpack.c.l.b16 %v1327
        %v4055 = vunpack.c.h.b16 %v1327
        %v4056 = vunpack.c.l.b16 %v1328
        %v4057 = vunpack.c.h.b16 %v1328
        %v4058 = vunpack.c.l.b16 %v1329
        %v4059 = vunpack.c.h.b16 %v1329
        %v4060 = vunpack.c.l.b16 %v1330
        %v4061 = vunpack.c.h.b16 %v1330
        %v4062 = vunpack.c.l.b16 %v1331
        %v4063 = vunpack.c.h.b16 %v1331
        %v4064 = vunpack.c.l.b16 %v1332
        %v4065 = vunpack.c.h.b16 %v1332
        %v4066 = vunpack.c.l.b16 %v1333
        %v4067 = vunpack.c.h.b16 %v1333
        %v4068 = vunpack.c.l.b16 %v1334
        %v4069 = vunpack.c.h.b16 %v1334
        %v4070 = vunpack.c.l.b16 %v1335
        %v4071 = vunpack.c.h.b16 %v1335
        %v4072 = vunpack.c.l.b16 %v1336
        %v4073 = vunpack.c.h.b16 %v1336
        %v4074 = vpack.c.b16 %v2290, %v2282
        %v4075 = vpack.c.b16 %v2291, %v2283
        %v4076 = vpack.c.b16 %v2292, %v2284
        %v4077 = vpack.c.b16 %v2293, %v2285
        %v4078 = vpack.c.b16 %v2294, %v2286
        %v4079 = vpack.c.b16 %v2295, %v2287
        %v4080 = vpack.c.b16 %v2296, %v2288
        %v4081 = vpack.c.b16 %v2297, %v2289
        %v4082 = vpack.c.b16 %v2306, %v2298
        %v4083 = vpack.c.b16 %v2307, %v2299
        %v4084 = vpack.c.b16 %v2308, %v2300
        %v4085 = vpack.c.b16 %v2309, %v2301
        %v4086 = vpack.c.b16 %v2310, %v2302
        %v4087 = vpack.c.b16 %v2311, %v2303
        %v4088 = vpack.c.b16 %v2312, %v2304
        %v4089 = vpack.c.b16 %v2313, %v2305
        %v4090 = vpack.c.b16 %v2322, %v2314
        %v4091 = vpack.c.b16 %v2323, %v2315
        %v4092 = vpack.c.b16 %v2324, %v2316
        %v4093 = vpack.c.b16 %v2325, %v2317
        %v4094 = vpack.c.b16 %v2326, %v2318
        %v4095 = vpack.c.b16 %v2327, %v2319
        %v4096 = vpack.c.b16 %v2328, %v2320
        %v4097 = vpack.c.b16 %v2329, %v2321
        %v4098 = vpack.c.b16 %v2338, %v2330
        %v4099 = vpack.c.b16 %v2339, %v2331
        %v4100 = vpack.c.b16 %v2340, %v2332
        %v4101 = vpack.c.b16 %v2341, %v2333
        %v4102 = vpack.c.b16 %v2342, %v2334
        %v4103 = vpack.c.b16 %v2343, %v2335
        %v4104 = vpack.c.b16 %v2344, %v2336
        %v4105 = vpack.c.b16 %v2345, %v2337
        %v4106 = vpack.c.b16 %v2354, %v2346
        %v4107 = vpack.c.b16 %v2355, %v2347
        %v4108 = vpack.c.b16 %v2356, %v2348
        %v4109 = vpack.c.b16 %v2357, %v2349
        %v4110 = vpack.c.b16 %v2358, %v2350
        %v4111 = vpack.c.b16 %v2359, %v2351
        %v4112 = vpack.c.b16 %v2360, %v2352
        %v4113 = vpack.c.b16 %v2361, %v2353
        %v4114 = vpack.c.b16 %v2370, %v2362
        %v4115 = vpack.c.b16 %v2371, %v2363
        %v4116 = vpack.c.b16 %v2372, %v2364
        %v4117 = vpack.c.b16 %v2373, %v2365
        %v4118 = vpack.c.b16 %v2374, %v2366
        %v4119 = vpack.c.b16 %v2375, %v2367
        %v4120 = vpack.c.b16 %v2376, %v2368
        %v4121 = vpack.c.b16 %v2377, %v2369
        %v4122 = vpack.c.b16 %v2386, %v2378
        %v4123 = vpack.c.b16 %v2387, %v2379
        %v4124 = vpack.c.b16 %v2388, %v2380
        %v4125 = vpack.c.b16 %v2389, %v2381
        %v4126 = vpack.c.b16 %v2390, %v2382
        %v4127 = vpack.c.b16 %v2391, %v2383
        %v4128 = vpack.c.b16 %v2392, %v2384
        %v4129 = vpack.c.b16 %v2393, %v2385
        %v4130 = vpack.c.b16 %v2402, %v2394
        %v4131 = vpack.c.b16 %v2403, %v2395
        %v4132 = vpack.c.b16 %v2404, %v2396
        %v4133 = vpack.c.b16 %v2405, %v2397
        %v4134 = vpack.c.b16 %v2406, %v2398
        %v4135 = vpack.c.b16 %v2407, %v2399
        %v4136 = vpack.c.b16 %v2408, %v2400
        %v4137 = vpack.c.b16 %v2409, %v2401
        %v4138 = vpack.c.b16 %v2418, %v2410
        %v4139 = vpack.c.b16 %v2419, %v2411
        %v4140 = vpack.c.b16 %v2420, %v2412
        %v4141 = vpack.c.b16 %v2421, %v2413
        %v4142 = vpack.c.b16 %v2422, %v2414
        %v4143 = vpack.c.b16 %v2423, %v2415
        %v4144 = vpack.c.b16 %v2424, %v2416
        %v4145 = vpack.c.b16 %v2425, %v2417
        %v4146 = vpack.c.b16 %v2434, %v2426
        %v4147 = vpack.c.b16 %v2435, %v2427
        %v4148 = vpack.c.b16 %v2436, %v2428
        %v4149 = vpack.c.b16 %v2437, %v2429
        %v4150 = vpack.c.b16 %v2438, %v2430
        %v4151 = vpack.c.b16 %v2439, %v2431
        %v4152 = vpack.c.b16 %v2440, %v2432
        %v4153 = vpack.c.b16 %v2441, %v2433
        %v4154 = vpack.c.b16 %v2450, %v2442
        %v4155 = vpack.c.b16 %v2451, %v2443
        %v4156 = vpack.c.b16 %v2452, %v2444
        %v4157 = vpack.c.b16 %v2453, %v2445
        %v4158 = vpack.c.b16 %v2454, %v2446
        %v4159 = vpack.c.b16 %v2455, %v2447
        %v4160 = vpack.c.b16 %v2456, %v2448
        %v4161 = vpack.c.b16 %v2457, %v2449
        %v4162 = vpack.c.b16 %v2466, %v2458
        %v4163 = vpack.c.b16 %v2467, %v2459
        %v4164 = vpack.c.b16 %v2468, %v2460
        %v4165 = vpack.c.b16 %v2469, %v2461
        %v4166 = vpack.c.b16 %v2470, %v2462
        %v4167 = vpack.c.b16 %v2471, %v2463
        %v4168 = vpack.c.b16 %v2472, %v2464
        %v4169 = vpack.c.b16 %v2473, %v2465
        %v4170 = vpack.c.b16 %v2482, %v2474
        %v4171 = vpack.c.b16 %v2483, %v2475
        %v4172 = vpack.c.b16 %v2484, %v2476
        %v4173 = vpack.c.b16 %v2485, %v2477
        %v4174 = vpack.c.b16 %v2486, %v2478
        %v4175 = vpack.c.b16 %v2487, %v2479
        %v4176 = vpack.c.b16 %v2488, %v2480
        %v4177 = vpack.c.b16 %v2489, %v2481
        %v4178 = vpack.c.b16 %v2498, %v2490
        %v4179 = vpack.c.b16 %v2499, %v2491
        %v4180 = vpack.c.b16 %v2500, %v2492
        %v4181 = vpack.c.b16 %v2501, %v2493
        %v4182 = vpack.c.b16 %v2502, %v2494
        %v4183 = vpack.c.b16 %v2503, %v2495
        %v4184 = vpack.c.b16 %v2504, %v2496
        %v4185 = vpack.c.b16 %v2505, %v2497
        %v4186 = vpack.c.b16 %v2514, %v2506
        %v4187 = vpack.c.b16 %v2515, %v2507
        %v4188 = vpack.c.b16 %v2516, %v2508
        %v4189 = vpack.c.b16 %v2517, %v2509
        %v4190 = vpack.c.b16 %v2518, %v2510
        %v4191 = vpack.c.b16 %v2519, %v2511
        %v4192 = vpack.c.b16 %v2520, %v2512
        %v4193 = vpack.c.b16 %v2521, %v2513
        %v4194 = vpack.c.b16 %v2530, %v2522
        %v4195 = vpack.c.b16 %v2531, %v2523
        %v4196 = vpack.c.b16 %v2532, %v2524
        %v4197 = vpack.c.b16 %v2533, %v2525
        %v4198 = vpack.c.b16 %v2534, %v2526
        %v4199 = vpack.c.b16 %v2535, %v2527
        %v4200 = vpack.c.b16 %v2536, %v2528
        %v4201 = vpack.c.b16 %v2537, %v2529
        %v4202 = vpack.c.b16 %v2546, %v2538
        %v4203 = vpack.c.b16 %v2547, %v2539
        %v4204 = vpack.c.b16 %v2548, %v2540
        %v4205 = vpack.c.b16 %v2549, %v2541
        %v4206 = vpack.c.b16 %v2550, %v2542
        %v4207 = vpack.c.b16 %v2551, %v2543
        %v4208 = vpack.c.b16 %v2552, %v2544
        %v4209 = vpack.c.b16 %v2553, %v2545
        %v4210 = vpack.c.b16 %v2562, %v2554
        %v4211 = vpack.c.b16 %v2563, %v2555
        %v4212 = vpack.c.b16 %v2564, %v2556
        %v4213 = vpack.c.b16 %v2565, %v2557
        %v4214 = vpack.c.b16 %v2566, %v2558
        %v4215 = vpack.c.b16 %v2567, %v2559
        %v4216 = vpack.c.b16 %v2568, %v2560
        %v4217 = vpack.c.b16 %v2569, %v2561
        %v4218 = vpack.c.b16 %v2578, %v2570
        %v4219 = vpack.c.b16 %v2579, %v2571
        %v4220 = vpack.c.b16 %v2580, %v2572
        %v4221 = vpack.c.b16 %v2581, %v2573
        %v4222 = vpack.c.b16 %v2582, %v2574
        %v4223 = vpack.c.b16 %v2583, %v2575
        %v4224 = vpack.c.b16 %v2584, %v2576
        %v4225 = vpack.c.b16 %v2585, %v2577
        %v4226 = vpack.c.b16 %v2594, %v2586
        %v4227 = vpack.c.b16 %v2595, %v2587
        %v4228 = vpack.c.b16 %v2596, %v2588
        %v4229 = vpack.c.b16 %v2597, %v2589
        %v4230 = vpack.c.b16 %v2598, %v2590
        %v4231 = vpack.c.b16 %v2599, %v2591
        %v4232 = vpack.c.b16 %v2600, %v2592
        %v4233 = vpack.c.b16 %v2601, %v2593
        %v4234 = vpack.c.b16 %v2610, %v2602
        %v4235 = vpack.c.b16 %v2611, %v2603
        %v4236 = vpack.c.b16 %v2612, %v2604
        %v4237 = vpack.c.b16 %v2613, %v2605
        %v4238 = vpack.c.b16 %v2614, %v2606
        %v4239 = vpack.c.b16 %v2615, %v2607
        %v4240 = vpack.c.b16 %v2616, %v2608
        %v4241 = vpack.c.b16 %v2617, %v2609
        %v4242 = vpack.c.b16 %v2626, %v2618
        %v4243 = vpack.c.b16 %v2627, %v2619
        %v4244 = vpack.c.b16 %v2628, %v2620
        %v4245 = vpack.c.b16 %v2629, %v2621
        %v4246 = vpack.c.b16 %v2630, %v2622
        %v4247 = vpack.c.b16 %v2631, %v2623
        %v4248 = vpack.c.b16 %v2632, %v2624
        %v4249 = vpack.c.b16 %v2633, %v2625
        %v4250 = vpack.c.b16 %v2642, %v2634
        %v4251 = vpack.c.b16 %v2643, %v2635
        %v4252 = vpack.c.b16 %v2644, %v2636
        %v4253 = vpack.c.b16 %v2645, %v2637
        %v4254 = vpack.c.b16 %v2646, %v2638
        %v4255 = vpack.c.b16 %v2647, %v2639
        %v4256 = vpack.c.b16 %v2648, %v2640
        %v4257 = vpack.c.b16 %v2649, %v2641
        %v4258 = vpack.c.b16 %v2658, %v2650
        %v4259 = vpack.c.b16 %v2659, %v2651
        %v4260 = vpack.c.b16 %v2660, %v2652
        %v4261 = vpack.c.b16 %v2661, %v2653
        %v4262 = vpack.c.b16 %v2662, %v2654
        %v4263 = vpack.c.b16 %v2663, %v2655
        %v4264 = vpack.c.b16 %v2664, %v2656
        %v4265 = vpack.c.b16 %v2665, %v2657
        %v4266 = vpack.c.b16 %v2674, %v2666
        %v4267 = vpack.c.b16 %v2675, %v2667
        %v4268 = vpack.c.b16 %v2676, %v2668
        %v4269 = vpack.c.b16 %v2677, %v2669
        %v4270 = vpack.c.b16 %v2678, %v2670
        %v4271 = vpack.c.b16 %v2679, %v2671
        %v4272 = vpack.c.b16 %v2680, %v2672
        %v4273 = vpack.c.b16 %v2681, %v2673
        %v4274 = vpack.c.b16 %v2690, %v2682
        %v4275 = vpack.c.b16 %v2691, %v2683
        %v4276 = vpack.c.b16 %v2692, %v2684
        %v4277 = vpack.c.b16 %v2693, %v2685
        %v4278 = vpack.c.b16 %v2694, %v2686
        %v4279 = vpack.c.b16 %v2695, %v2687
        %v4280 = vpack.c.b16 %v2696, %v2688
        %v4281 = vpack.c.b16 %v2697, %v2689
        %v4282 = vpack.c.b16 %v2706, %v2698
        %v4283 = vpack.c.b16 %v2707, %v2699
        %v4284 = vpack.c.b16 %v2708, %v2700
        %v4285 = vpack.c.b16 %v2709, %v2701
        %v4286 = vpack.c.b16 %v2710, %v2702
        %v4287 = vpack.c.b16 %v2711, %v2703
        %v4288 = vpack.c.b16 %v2712, %v2704
        %v4289 = vpack.c.b16 %v2713, %v2705
        %v4290 = vpack.c.b16 %v2722, %v2714
        %v4291 = vpack.c.b16 %v2723, %v2715
        %v4292 = vpack.c.b16 %v2724, %v2716
        %v4293 = vpack.c.b16 %v2725, %v2717
        %v4294 = vpack.c.b16 %v2726, %v2718
        %v4295 = vpack.c.b16 %v2727, %v2719
        %v4296 = vpack.c.b16 %v2728, %v2720
        %v4297 = vpack.c.b16 %v2729, %v2721
        %v4298 = vpack.c.b16 %v2738, %v2730
        %v4299 = vpack.c.b16 %v2739, %v2731
        %v4300 = vpack.c.b16 %v2740, %v2732
        %v4301 = vpack.c.b16 %v2741, %v2733
        %v4302 = vpack.c.b16 %v2742, %v2734
        %v4303 = vpack.c.b16 %v2743, %v2735
        %v4304 = vpack.c.b16 %v2744, %v2736
        %v4305 = vpack.c.b16 %v2745, %v2737
        %v4306 = vpack.c.b16 %v2754, %v2746
        %v4307 = vpack.c.b16 %v2755, %v2747
        %v4308 = vpack.c.b16 %v2756, %v2748
        %v4309 = vpack.c.b16 %v2757, %v2749
        %v4310 = vpack.c.b16 %v2758, %v2750
        %v4311 = vpack.c.b16 %v2759, %v2751
        %v4312 = vpack.c.b16 %v2760, %v2752
        %v4313 = vpack.c.b16 %v2761, %v2753
        %v4314 = vpack.c.b16 %v2770, %v2762
        %v4315 = vpack.c.b16 %v2771, %v2763
        %v4316 = vpack.c.b16 %v2772, %v2764
        %v4317 = vpack.c.b16 %v2773, %v2765
        %v4318 = vpack.c.b16 %v2774, %v2766
        %v4319 = vpack.c.b16 %v2775, %v2767
        %v4320 = vpack.c.b16 %v2776, %v2768
        %v4321 = vpack.c.b16 %v2777, %v2769
        %v4322 = vpack.c.b16 %v2786, %v2778
        %v4323 = vpack.c.b16 %v2787, %v2779
        %v4324 = vpack.c.b16 %v2788, %v2780
        %v4325 = vpack.c.b16 %v2789, %v2781
        %v4326 = vpack.c.b16 %v2790, %v2782
        %v4327 = vpack.c.b16 %v2791, %v2783
        %v4328 = vpack.c.b16 %v2792, %v2784
        %v4329 = vpack.c.b16 %v2793, %v2785
        %v4330 = vpack.c.b16 %v2802, %v2794
        %v4331 = vpack.c.b16 %v2803, %v2795
        %v4332 = vpack.c.b16 %v2804, %v2796
        %v4333 = vpack.c.b16 %v2805, %v2797
        %v4334 = vpack.c.b16 %v2806, %v2798
        %v4335 = vpack.c.b16 %v2807, %v2799
        %v4336 = vpack.c.b16 %v2808, %v2800
        %v4337 = vpack.c.b16 %v2809, %v2801
        %v4338 = vpack.c.b16 %v2818, %v2810
        %v4339 = vpack.c.b16 %v2819, %v2811
        %v4340 = vpack.c.b16 %v2820, %v2812
        %v4341 = vpack.c.b16 %v2821, %v2813
        %v4342 = vpack.c.b16 %v2822, %v2814
        %v4343 = vpack.c.b16 %v2823, %v2815
        %v4344 = vpack.c.b16 %v2824, %v2816
        %v4345 = vpack.c.b16 %v2825, %v2817
        %v4346 = vpack.c.b16 %v2834, %v2826
        %v4347 = vpack.c.b16 %v2835, %v2827
        %v4348 = vpack.c.b16 %v2836, %v2828
        %v4349 = vpack.c.b16 %v2837, %v2829
        %v4350 = vpack.c.b16 %v2838, %v2830
        %v4351 = vpack.c.b16 %v2839, %v2831
        %v4352 = vpack.c.b16 %v2840, %v2832
        %v4353 = vpack.c.b16 %v2841, %v2833
        %v4354 = vpack.c.b16 %v2850, %v2842
        %v4355 = vpack.c.b16 %v2851, %v2843
        %v4356 = vpack.c.b16 %v2852, %v2844
        %v4357 = vpack.c.b16 %v2853, %v2845
        %v4358 = vpack.c.b16 %v2854, %v2846
        %v4359 = vpack.c.b16 %v2855, %v2847
        %v4360 = vpack.c.b16 %v2856, %v2848
        %v4361 = vpack.c.b16 %v2857, %v2849
        %v4362 = vpack.c.b16 %v2866, %v2858
        %v4363 = vpack.c.b16 %v2867, %v2859
        %v4364 = vpack.c.b16 %v2868, %v2860
        %v4365 = vpack.c.b16 %v2869, %v2861
        %v4366 = vpack.c.b16 %v2870, %v2862
        %v4367 = vpack.c.b16 %v2871, %v2863
        %v4368 = vpack.c.b16 %v2872, %v2864
        %v4369 = vpack.c.b16 %v2873, %v2865
        %v4370 = vpack.c.b16 %v2882, %v2874
        %v4371 = vpack.c.b16 %v2883, %v2875
        %v4372 = vpack.c.b16 %v2884, %v2876
        %v4373 = vpack.c.b16 %v2885, %v2877
        %v4374 = vpack.c.b16 %v2886, %v2878
        %v4375 = vpack.c.b16 %v2887, %v2879
        %v4376 = vpack.c.b16 %v2888, %v2880
        %v4377 = vpack.c.b16 %v2889, %v2881
        %v4378 = vpack.c.b16 %v2898, %v2890
        %v4379 = vpack.c.b16 %v2899, %v2891
        %v4380 = vpack.c.b16 %v2900, %v2892
        %v4381 = vpack.c.b16 %v2901, %v2893
        %v4382 = vpack.c.b16 %v2902, %v2894
        %v4383 = vpack.c.b16 %v2903, %v2895
        %v4384 = vpack.c.b16 %v2904, %v2896
        %v4385 = vpack.c.b16 %v2905, %v2897
        %v4386 = vpack.c.b16 %v2914, %v2906
        %v4387 = vpack.c.b16 %v2915, %v2907
        %v4388 = vpack.c.b16 %v2916, %v2908
        %v4389 = vpack.c.b16 %v2917, %v2909
        %v4390 = vpack.c.b16 %v2918, %v2910
        %v4391 = vpack.c.b16 %v2919, %v2911
        %v4392 = vpack.c.b16 %v2920, %v2912
        %v4393 = vpack.c.b16 %v2921, %v2913
        %v4394 = vpack.c.b16 %v2930, %v2922
        %v4395 = vpack.c.b16 %v2931, %v2923
        %v4396 = vpack.c.b16 %v2932, %v2924
        %v4397 = vpack.c.b16 %v2933, %v2925
        %v4398 = vpack.c.b16 %v2934, %v2926
        %v4399 = vpack.c.b16 %v2935, %v2927
        %v4400 = vpack.c.b16 %v2936, %v2928
        %v4401 = vpack.c.b16 %v2937, %v2929
        %v4402 = vpack.c.b16 %v2946, %v2938
        %v4403 = vpack.c.b16 %v2947, %v2939
        %v4404 = vpack.c.b16 %v2948, %v2940
        %v4405 = vpack.c.b16 %v2949, %v2941
        %v4406 = vpack.c.b16 %v2950, %v2942
        %v4407 = vpack.c.b16 %v2951, %v2943
        %v4408 = vpack.c.b16 %v2952, %v2944
        %v4409 = vpack.c.b16 %v2953, %v2945
        %v4410 = vpack.c.b16 %v2962, %v2954
        %v4411 = vpack.c.b16 %v2963, %v2955
        %v4412 = vpack.c.b16 %v2964, %v2956
        %v4413 = vpack.c.b16 %v2965, %v2957
        %v4414 = vpack.c.b16 %v2966, %v2958
        %v4415 = vpack.c.b16 %v2967, %v2959
        %v4416 = vpack.c.b16 %v2968, %v2960
        %v4417 = vpack.c.b16 %v2969, %v2961
        %v4418 = vpack.c.b16 %v2978, %v2970
        %v4419 = vpack.c.b16 %v2979, %v2971
        %v4420 = vpack.c.b16 %v2980, %v2972
        %v4421 = vpack.c.b16 %v2981, %v2973
        %v4422 = vpack.c.b16 %v2982, %v2974
        %v4423 = vpack.c.b16 %v2983, %v2975
        %v4424 = vpack.c.b16 %v2984, %v2976
        %v4425 = vpack.c.b16 %v2985, %v2977
        %v4426 = vpack.c.b16 %v2994, %v2986
        %v4427 = vpack.c.b16 %v2995, %v2987
        %v4428 = vpack.c.b16 %v2996, %v2988
        %v4429 = vpack.c.b16 %v2997, %v2989
        %v4430 = vpack.c.b16 %v2998, %v2990
        %v4431 = vpack.c.b16 %v2999, %v2991
        %v4432 = vpack.c.b16 %v3000, %v2992
        %v4433 = vpack.c.b16 %v3001, %v2993
        %v4434 = vpack.c.b16 %v3010, %v3002
        %v4435 = vpack.c.b16 %v3011, %v3003
        %v4436 = vpack.c.b16 %v3012, %v3004
        %v4437 = vpack.c.b16 %v3013, %v3005
        %v4438 = vpack.c.b16 %v3014, %v3006
        %v4439 = vpack.c.b16 %v3015, %v3007
        %v4440 = vpack.c.b16 %v3016, %v3008
        %v4441 = vpack.c.b16 %v3017, %v3009
        %v4442 = vpack.c.b16 %v3026, %v3018
        %v4443 = vpack.c.b16 %v3027, %v3019
        %v4444 = vpack.c.b16 %v3028, %v3020
        %v4445 = vpack.c.b16 %v3029, %v3021
        %v4446 = vpack.c.b16 %v3030, %v3022
        %v4447 = vpack.c.b16 %v3031, %v3023
        %v4448 = vpack.c.b16 %v3032, %v3024
        %v4449 = vpack.c.b16 %v3033, %v3025
        %v4450 = vpack.c.b16 %v3042, %v3034
        %v4451 = vpack.c.b16 %v3043, %v3035
        %v4452 = vpack.c.b16 %v3044, %v3036
        %v4453 = vpack.c.b16 %v3045, %v3037
        %v4454 = vpack.c.b16 %v3046, %v3038
        %v4455 = vpack.c.b16 %v3047, %v3039
        %v4456 = vpack.c.b16 %v3048, %v3040
        %v4457 = vpack.c.b16 %v3049, %v3041
        %v4458 = vpack.c.b16 %v3058, %v3050
        %v4459 = vpack.c.b16 %v3059, %v3051
        %v4460 = vpack.c.b16 %v3060, %v3052
        %v4461 = vpack.c.b16 %v3061, %v3053
        %v4462 = vpack.c.b16 %v3062, %v3054
        %v4463 = vpack.c.b16 %v3063, %v3055
        %v4464 = vpack.c.b16 %v3064, %v3056
        %v4465 = vpack.c.b16 %v3065, %v3057
        %v4466 = vpack.c.b16 %v3074, %v3066
        %v4467 = vpack.c.b16 %v3075, %v3067
        %v4468 = vpack.c.b16 %v3076, %v3068
        %v4469 = vpack.c.b16 %v3077, %v3069
        %v4470 = vpack.c.b16 %v3078, %v3070
        %v4471 = vpack.c.b16 %v3079, %v3071
        %v4472 = vpack.c.b16 %v3080, %v3072
        %v4473 = vpack.c.b16 %v3081, %v3073
        %v4474 = vpack.c.b16 %v3090, %v3082
        %v4475 = vpack.c.b16 %v3091, %v3083
        %v4476 = vpack.c.b16 %v3092, %v3084
        %v4477 = vpack.c.b16 %v3093, %v3085
        %v4478 = vpack.c.b16 %v3094, %v3086
        %v4479 = vpack.c.b16 %v3095, %v3087
        %v4480 = vpack.c.b16 %v3096, %v3088
        %v4481 = vpack.c.b16 %v3097, %v3089
        %v4482 = vpack.c.b16 %v3106, %v3098
        %v4483 = vpack.c.b16 %v3107, %v3099
        %v4484 = vpack.c.b16 %v3108, %v3100
        %v4485 = vpack.c.b16 %v3109, %v3101
        %v4486 = vpack.c.b16 %v3110, %v3102
        %v4487 = vpack.c.b16 %v3111, %v3103
        %v4488 = vpack.c.b16 %v3112, %v3104
        %v4489 = vpack.c.b16 %v3113, %v3105
        %v4490 = vpack.c.b16 %v3122, %v3114
        %v4491 = vpack.c.b16 %v3123, %v3115
        %v4492 = vpack.c.b16 %v3124, %v3116
        %v4493 = vpack.c.b16 %v3125, %v3117
        %v4494 = vpack.c.b16 %v3126, %v3118
        %v4495 = vpack.c.b16 %v3127, %v3119
        %v4496 = vpack.c.b16 %v3128, %v3120
        %v4497 = vpack.c.b16 %v3129, %v3121
        %v4498 = vpack.c.b16 %v3138, %v3130
        %v4499 = vpack.c.b16 %v3139, %v3131
        %v4500 = vpack.c.b16 %v3140, %v3132
        %v4501 = vpack.c.b16 %v3141, %v3133
        %v4502 = vpack.c.b16 %v3142, %v3134
        %v4503 = vpack.c.b16 %v3143, %v3135
        %v4504 = vpack.c.b16 %v3144, %v3136
        %v4505 = vpack.c.b16 %v3145, %v3137
        %v4506 = vpack.c.b16 %v3154, %v3146
        %v4507 = vpack.c.b16 %v3155, %v3147
        %v4508 = vpack.c.b16 %v3156, %v3148
        %v4509 = vpack.c.b16 %v3157, %v3149
        %v4510 = vpack.c.b16 %v3158, %v3150
        %v4511 = vpack.c.b16 %v3159, %v3151
        %v4512 = vpack.c.b16 %v3160, %v3152
        %v4513 = vpack.c.b16 %v3161, %v3153
        %v4514 = vpack.c.b16 %v3170, %v3162
        %v4515 = vpack.c.b16 %v3171, %v3163
        %v4516 = vpack.c.b16 %v3172, %v3164
        %v4517 = vpack.c.b16 %v3173, %v3165
        %v4518 = vpack.c.b16 %v3174, %v3166
        %v4519 = vpack.c.b16 %v3175, %v3167
        %v4520 = vpack.c.b16 %v3176, %v3168
        %v4521 = vpack.c.b16 %v3177, %v3169
        %v4522 = vpack.c.b16 %v3186, %v3178
        %v4523 = vpack.c.b16 %v3187, %v3179
        %v4524 = vpack.c.b16 %v3188, %v3180
        %v4525 = vpack.c.b16 %v3189, %v3181
        %v4526 = vpack.c.b16 %v3190, %v3182
        %v4527 = vpack.c.b16 %v3191, %v3183
        %v4528 = vpack.c.b16 %v3192, %v3184
        %v4529 = vpack.c.b16 %v3193, %v3185
        %v4530 = vpack.c.b16 %v3202, %v3194
        %v4531 = vpack.c.b16 %v3203, %v3195
        %v4532 = vpack.c.b16 %v3204, %v3196
        %v4533 = vpack.c.b16 %v3205, %v3197
        %v4534 = vpack.c.b16 %v3206, %v3198
        %v4535 = vpack.c.b16 %v3207, %v3199
        %v4536 = vpack.c.b16 %v3208, %v3200
        %v4537 = vpack.c.b16 %v3209, %v3201
        %v4538 = vpack.c.b16 %v3218, %v3210
        %v4539 = vpack.c.b16 %v3219, %v3211
        %v4540 = vpack.c.b16 %v3220, %v3212
        %v4541 = vpack.c.b16 %v3221, %v3213
        %v4542 = vpack.c.b16 %v3222, %v3214
        %v4543 = vpack.c.b16 %v3223, %v3215
        %v4544 = vpack.c.b16 %v3224, %v3216
        %v4545 = vpack.c.b16 %v3225, %v3217
        %v4546 = vpack.c.b16 %v3234, %v3226
        %v4547 = vpack.c.b16 %v3235, %v3227
        %v4548 = vpack.c.b16 %v3236, %v3228
        %v4549 = vpack.c.b16 %v3237, %v3229
        %v4550 = vpack.c.b16 %v3238, %v3230
        %v4551 = vpack.c.b16 %v3239, %v3231
        %v4552 = vpack.c.b16 %v3240, %v3232
        %v4553 = vpack.c.b16 %v3241, %v3233
        %v4554 = vpack.c.b16 %v3250, %v3242
        %v4555 = vpack.c.b16 %v3251, %v3243
        %v4556 = vpack.c.b16 %v3252, %v3244
        %v4557 = vpack.c.b16 %v3253, %v3245
        %v4558 = vpack.c.b16 %v3254, %v3246
        %v4559 = vpack.c.b16 %v3255, %v3247
        %v4560 = vpack.c.b16 %v3256, %v3248
        %v4561 = vpack.c.b16 %v3257, %v3249
        %v4562 = vpack.c.b16 %v3266, %v3258
        %v4563 = vpack.c.b16 %v3267, %v3259
        %v4564 = vpack.c.b16 %v3268, %v3260
        %v4565 = vpack.c.b16 %v3269, %v3261
        %v4566 = vpack.c.b16 %v3270, %v3262
        %v4567 = vpack.c.b16 %v3271, %v3263
        %v4568 = vpack.c.b16 %v3272, %v3264
        %v4569 = vpack.c.b16 %v3273, %v3265
        %v4570 = vpack.c.b16 %v3282, %v3274
        %v4571 = vpack.c.b16 %v3283, %v3275
        %v4572 = vpack.c.b16 %v3284, %v3276
        %v4573 = vpack.c.b16 %v3285, %v3277
        %v4574 = vpack.c.b16 %v3286, %v3278
        %v4575 = vpack.c.b16 %v3287, %v3279
        %v4576 = vpack.c.b16 %v3288, %v3280
        %v4577 = vpack.c.b16 %v3289, %v3281
        %v4578 = vpack.c.b16 %v3298, %v3290
        %v4579 = vpack.c.b16 %v3299, %v3291
        %v4580 = vpack.c.b16 %v3300, %v3292
        %v4581 = vpack.c.b16 %v3301, %v3293
        %v4582 = vpack.c.b16 %v3302, %v3294
        %v4583 = vpack.c.b16 %v3303, %v3295
        %v4584 = vpack.c.b16 %v3304, %v3296
        %v4585 = vpack.c.b16 %v3305, %v3297
        %v4586 = vpack.c.b16 %v3314, %v3306
        %v4587 = vpack.c.b16 %v3315, %v3307
        %v4588 = vpack.c.b16 %v3316, %v3308
        %v4589 = vpack.c.b16 %v3317, %v3309
        %v4590 = vpack.c.b16 %v3318, %v3310
        %v4591 = vpack.c.b16 %v3319, %v3311
        %v4592 = vpack.c.b16 %v3320, %v3312
        %v4593 = vpack.c.b16 %v3321, %v3313
        %v4594 = vpack.c.b16 %v3330, %v3322
        %v4595 = vpack.c.b16 %v3331, %v3323
        %v4596 = vpack.c.b16 %v3332, %v3324
        %v4597 = vpack.c.b16 %v3333, %v3325
        %v4598 = vpack.c.b16 %v3334, %v3326
        %v4599 = vpack.c.b16 %v3335, %v3327
        %v4600 = vpack.c.b16 %v3336, %v3328
        %v4601 = vpack.c.b16 %v3337, %v3329
        %v4602 = vpack.c.b16 %v3346, %v3338
        %v4603 = vpack.c.b16 %v3347, %v3339
        %v4604 = vpack.c.b16 %v3348, %v3340
        %v4605 = vpack.c.b16 %v3349, %v3341
        %v4606 = vpack.c.b16 %v3350, %v3342
        %v4607 = vpack.c.b16 %v3351, %v3343
        %v4608 = vpack.c.b16 %v3352, %v3344
        %v4609 = vpack.c.b16 %v3353, %v3345
        %v4610 = vpack.c.b16 %v3362, %v3354
        %v4611 = vpack.c.b16 %v3363, %v3355
        %v4612 = vpack.c.b16 %v3364, %v3356
        %v4613 = vpack.c.b16 %v3365, %v3357
        %v4614 = vpack.c.b16 %v3366, %v3358
        %v4615 = vpack.c.b16 %v3367, %v3359
        %v4616 = vpack.c.b16 %v3368, %v3360
        %v4617 = vpack.c.b16 %v3369, %v3361
        %v4618 = vpack.c.b16 %v3378, %v3370
        %v4619 = vpack.c.b16 %v3379, %v3371
        %v4620 = vpack.c.b16 %v3380, %v3372
        %v4621 = vpack.c.b16 %v3381, %v3373
        %v4622 = vpack.c.b16 %v3382, %v3374
        %v4623 = vpack.c.b16 %v3383, %v3375
        %v4624 = vpack.c.b16 %v3384, %v3376
        %v4625 = vpack.c.b16 %v3385, %v3377
        %v4626 = vpack.c.b16 %v3394, %v3386
        %v4627 = vpack.c.b16 %v3395, %v3387
        %v4628 = vpack.c.b16 %v3396, %v3388
        %v4629 = vpack.c.b16 %v3397, %v3389
        %v4630 = vpack.c.b16 %v3398, %v3390
        %v4631 = vpack.c.b16 %v3399, %v3391
        %v4632 = vpack.c.b16 %v3400, %v3392
        %v4633 = vpack.c.b16 %v3401, %v3393
        %v4634 = vpack.c.b16 %v3410, %v3402
        %v4635 = vpack.c.b16 %v3411, %v3403
        %v4636 = vpack.c.b16 %v3412, %v3404
        %v4637 = vpack.c.b16 %v3413, %v3405
        %v4638 = vpack.c.b16 %v3414, %v3406
        %v4639 = vpack.c.b16 %v3415, %v3407
        %v4640 = vpack.c.b16 %v3416, %v3408
        %v4641 = vpack.c.b16 %v3417, %v3409
        %v4642 = vpack.c.b16 %v3426, %v3418
        %v4643 = vpack.c.b16 %v3427, %v3419
        %v4644 = vpack.c.b16 %v3428, %v3420
        %v4645 = vpack.c.b16 %v3429, %v3421
        %v4646 = vpack.c.b16 %v3430, %v3422
        %v4647 = vpack.c.b16 %v3431, %v3423
        %v4648 = vpack.c.b16 %v3432, %v3424
        %v4649 = vpack.c.b16 %v3433, %v3425
        %v4650 = vpack.c.b16 %v3442, %v3434
        %v4651 = vpack.c.b16 %v3443, %v3435
        %v4652 = vpack.c.b16 %v3444, %v3436
        %v4653 = vpack.c.b16 %v3445, %v3437
        %v4654 = vpack.c.b16 %v3446, %v3438
        %v4655 = vpack.c.b16 %v3447, %v3439
        %v4656 = vpack.c.b16 %v3448, %v3440
        %v4657 = vpack.c.b16 %v3449, %v3441
        %v4658 = vpack.c.b16 %v3458, %v3450
        %v4659 = vpack.c.b16 %v3459, %v3451
        %v4660 = vpack.c.b16 %v3460, %v3452
        %v4661 = vpack.c.b16 %v3461, %v3453
        %v4662 = vpack.c.b16 %v3462, %v3454
        %v4663 = vpack.c.b16 %v3463, %v3455
        %v4664 = vpack.c.b16 %v3464, %v3456
        %v4665 = vpack.c.b16 %v3465, %v3457
        %v4666 = vpack.c.b16 %v3474, %v3466
        %v4667 = vpack.c.b16 %v3475, %v3467
        %v4668 = vpack.c.b16 %v3476, %v3468
        %v4669 = vpack.c.b16 %v3477, %v3469
        %v4670 = vpack.c.b16 %v3478, %v3470
        %v4671 = vpack.c.b16 %v3479, %v3471
        %v4672 = vpack.c.b16 %v3480, %v3472
        %v4673 = vpack.c.b16 %v3481, %v3473
        %v4674 = vpack.c.b16 %v3490, %v3482
        %v4675 = vpack.c.b16 %v3491, %v3483
        %v4676 = vpack.c.b16 %v3492, %v3484
        %v4677 = vpack.c.b16 %v3493, %v3485
        %v4678 = vpack.c.b16 %v3494, %v3486
        %v4679 = vpack.c.b16 %v3495, %v3487
        %v4680 = vpack.c.b16 %v3496, %v3488
        %v4681 = vpack.c.b16 %v3497, %v3489
        %v4682 = vpack.c.b16 %v3506, %v3498
        %v4683 = vpack.c.b16 %v3507, %v3499
        %v4684 = vpack.c.b16 %v3508, %v3500
        %v4685 = vpack.c.b16 %v3509, %v3501
        %v4686 = vpack.c.b16 %v3510, %v3502
        %v4687 = vpack.c.b16 %v3511, %v3503
        %v4688 = vpack.c.b16 %v3512, %v3504
        %v4689 = vpack.c.b16 %v3513, %v3505
        %v4690 = vpack.c.b16 %v3522, %v3514
        %v4691 = vpack.c.b16 %v3523, %v3515
        %v4692 = vpack.c.b16 %v3524, %v3516
        %v4693 = vpack.c.b16 %v3525, %v3517
        %v4694 = vpack.c.b16 %v3526, %v3518
        %v4695 = vpack.c.b16 %v3527, %v3519
        %v4696 = vpack.c.b16 %v3528, %v3520
        %v4697 = vpack.c.b16 %v3529, %v3521
        %v4698 = vpack.c.b16 %v3538, %v3530
        %v4699 = vpack.c.b16 %v3539, %v3531
        %v4700 = vpack.c.b16 %v3540, %v3532
        %v4701 = vpack.c.b16 %v3541, %v3533
        %v4702 = vpack.c.b16 %v3542, %v3534
        %v4703 = vpack.c.b16 %v3543, %v3535
        %v4704 = vpack.c.b16 %v3544, %v3536
        %v4705 = vpack.c.b16 %v3545, %v3537
        %v4706 = vpack.c.b16 %v3554, %v3546
        %v4707 = vpack.c.b16 %v3555, %v3547
        %v4708 = vpack.c.b16 %v3556, %v3548
        %v4709 = vpack.c.b16 %v3557, %v3549
        %v4710 = vpack.c.b16 %v3558, %v3550
        %v4711 = vpack.c.b16 %v3559, %v3551
        %v4712 = vpack.c.b16 %v3560, %v3552
        %v4713 = vpack.c.b16 %v3561, %v3553
        %v4714 = vpack.c.b16 %v3570, %v3562
        %v4715 = vpack.c.b16 %v3571, %v3563
        %v4716 = vpack.c.b16 %v3572, %v3564
        %v4717 = vpack.c.b16 %v3573, %v3565
        %v4718 = vpack.c.b16 %v3574, %v3566
        %v4719 = vpack.c.b16 %v3575, %v3567
        %v4720 = vpack.c.b16 %v3576, %v3568
        %v4721 = vpack.c.b16 %v3577, %v3569
        %v4722 = vpack.c.b16 %v3586, %v3578
        %v4723 = vpack.c.b16 %v3587, %v3579
        %v4724 = vpack.c.b16 %v3588, %v3580
        %v4725 = vpack.c.b16 %v3589, %v3581
        %v4726 = vpack.c.b16 %v3590, %v3582
        %v4727 = vpack.c.b16 %v3591, %v3583
        %v4728 = vpack.c.b16 %v3592, %v3584
        %v4729 = vpack.c.b16 %v3593, %v3585
        %v4730 = vpack.c.b16 %v3602, %v3594
        %v4731 = vpack.c.b16 %v3603, %v3595
        %v4732 = vpack.c.b16 %v3604, %v3596
        %v4733 = vpack.c.b16 %v3605, %v3597
        %v4734 = vpack.c.b16 %v3606, %v3598
        %v4735 = vpack.c.b16 %v3607, %v3599
        %v4736 = vpack.c.b16 %v3608, %v3600
        %v4737 = vpack.c.b16 %v3609, %v3601
        %v4738 = vpack.c.b16 %v3618, %v3610
        %v4739 = vpack.c.b16 %v3619, %v3611
        %v4740 = vpack.c.b16 %v3620, %v3612
        %v4741 = vpack.c.b16 %v3621, %v3613
        %v4742 = vpack.c.b16 %v3622, %v3614
        %v4743 = vpack.c.b16 %v3623, %v3615
        %v4744 = vpack.c.b16 %v3624, %v3616
        %v4745 = vpack.c.b16 %v3625, %v3617
        %v4746 = vpack.c.b16 %v3634, %v3626
        %v4747 = vpack.c.b16 %v3635, %v3627
        %v4748 = vpack.c.b16 %v3636, %v3628
        %v4749 = vpack.c.b16 %v3637, %v3629
        %v4750 = vpack.c.b16 %v3638, %v3630
        %v4751 = vpack.c.b16 %v3639, %v3631
        %v4752 = vpack.c.b16 %v3640, %v3632
        %v4753 = vpack.c.b16 %v3641, %v3633
        %v4754 = vpack.c.b16 %v3650, %v3642
        %v4755 = vpack.c.b16 %v3651, %v3643
        %v4756 = vpack.c.b16 %v3652, %v3644
        %v4757 = vpack.c.b16 %v3653, %v3645
        %v4758 = vpack.c.b16 %v3654, %v3646
        %v4759 = vpack.c.b16 %v3655, %v3647
        %v4760 = vpack.c.b16 %v3656, %v3648
        %v4761 = vpack.c.b16 %v3657, %v3649
        %v4762 = vpack.c.b16 %v3666, %v3658
        %v4763 = vpack.c.b16 %v3667, %v3659
        %v4764 = vpack.c.b16 %v3668, %v3660
        %v4765 = vpack.c.b16 %v3669, %v3661
        %v4766 = vpack.c.b16 %v3670, %v3662
        %v4767 = vpack.c.b16 %v3671, %v3663
        %v4768 = vpack.c.b16 %v3672, %v3664
        %v4769 = vpack.c.b16 %v3673, %v3665
        %v4770 = vpack.c.b16 %v3682, %v3674
        %v4771 = vpack.c.b16 %v3683, %v3675
        %v4772 = vpack.c.b16 %v3684, %v3676
        %v4773 = vpack.c.b16 %v3685, %v3677
        %v4774 = vpack.c.b16 %v3686, %v3678
        %v4775 = vpack.c.b16 %v3687, %v3679
        %v4776 = vpack.c.b16 %v3688, %v3680
        %v4777 = vpack.c.b16 %v3689, %v3681
        %v4778 = vpack.c.b16 %v3698, %v3690
        %v4779 = vpack.c.b16 %v3699, %v3691
        %v4780 = vpack.c.b16 %v3700, %v3692
        %v4781 = vpack.c.b16 %v3701, %v3693
        %v4782 = vpack.c.b16 %v3702, %v3694
        %v4783 = vpack.c.b16 %v3703, %v3695
        %v4784 = vpack.c.b16 %v3704, %v3696
        %v4785 = vpack.c.b16 %v3705, %v3697
        %v4786 = vpack.c.b16 %v3714, %v3706
        %v4787 = vpack.c.b16 %v3715, %v3707
        %v4788 = vpack.c.b16 %v3716, %v3708
        %v4789 = vpack.c.b16 %v3717, %v3709
        %v4790 = vpack.c.b16 %v3718, %v3710
        %v4791 = vpack.c.b16 %v3719, %v3711
        %v4792 = vpack.c.b16 %v3720, %v3712
        %v4793 = vpack.c.b16 %v3721, %v3713
        %v4794 = vpack.c.b16 %v3730, %v3722
        %v4795 = vpack.c.b16 %v3731, %v3723
        %v4796 = vpack.c.b16 %v3732, %v3724
        %v4797 = vpack.c.b16 %v3733, %v3725
        %v4798 = vpack.c.b16 %v3734, %v3726
        %v4799 = vpack.c.b16 %v3735, %v3727
        %v4800 = vpack.c.b16 %v3736, %v3728
        %v4801 = vpack.c.b16 %v3737, %v3729
        %v4802 = vpack.c.b16 %v3746, %v3738
        %v4803 = vpack.c.b16 %v3747, %v3739
        %v4804 = vpack.c.b16 %v3748, %v3740
        %v4805 = vpack.c.b16 %v3749, %v3741
        %v4806 = vpack.c.b16 %v3750, %v3742
        %v4807 = vpack.c.b16 %v3751, %v3743
        %v4808 = vpack.c.b16 %v3752, %v3744
        %v4809 = vpack.c.b16 %v3753, %v3745
        %v4810 = vpack.c.b16 %v3762, %v3754
        %v4811 = vpack.c.b16 %v3763, %v3755
        %v4812 = vpack.c.b16 %v3764, %v3756
        %v4813 = vpack.c.b16 %v3765, %v3757
        %v4814 = vpack.c.b16 %v3766, %v3758
        %v4815 = vpack.c.b16 %v3767, %v3759
        %v4816 = vpack.c.b16 %v3768, %v3760
        %v4817 = vpack.c.b16 %v3769, %v3761
        %v4818 = vpack.c.b16 %v3778, %v3770
        %v4819 = vpack.c.b16 %v3779, %v3771
        %v4820 = vpack.c.b16 %v3780, %v3772
        %v4821 = vpack.c.b16 %v3781, %v3773
        %v4822 = vpack.c.b16 %v3782, %v3774
        %v4823 = vpack.c.b16 %v3783, %v3775
        %v4824 = vpack.c.b16 %v3784, %v3776
        %v4825 = vpack.c.b16 %v3785, %v3777
        %v4826 = vpack.c.b16 %v3794, %v3786
        %v4827 = vpack.c.b16 %v3795, %v3787
        %v4828 = vpack.c.b16 %v3796, %v3788
        %v4829 = vpack.c.b16 %v3797, %v3789
        %v4830 = vpack.c.b16 %v3798, %v3790
        %v4831 = vpack.c.b16 %v3799, %v3791
        %v4832 = vpack.c.b16 %v3800, %v3792
        %v4833 = vpack.c.b16 %v3801, %v3793
        %v4834 = vpack.c.b16 %v3810, %v3802
        %v4835 = vpack.c.b16 %v3811, %v3803
        %v4836 = vpack.c.b16 %v3812, %v3804
        %v4837 = vpack.c.b16 %v3813, %v3805
        %v4838 = vpack.c.b16 %v3814, %v3806
        %v4839 = vpack.c.b16 %v3815, %v3807
        %v4840 = vpack.c.b16 %v3816, %v3808
        %v4841 = vpack.c.b16 %v3817, %v3809
        %v4842 = vpack.c.b16 %v3826, %v3818
        %v4843 = vpack.c.b16 %v3827, %v3819
        %v4844 = vpack.c.b16 %v3828, %v3820
        %v4845 = vpack.c.b16 %v3829, %v3821
        %v4846 = vpack.c.b16 %v3830, %v3822
        %v4847 = vpack.c.b16 %v3831, %v3823
        %v4848 = vpack.c.b16 %v3832, %v3824
        %v4849 = vpack.c.b16 %v3833, %v3825
        %v4850 = vpack.c.b16 %v3842, %v3834
        %v4851 = vpack.c.b16 %v3843, %v3835
        %v4852 = vpack.c.b16 %v3844, %v3836
        %v4853 = vpack.c.b16 %v3845, %v3837
        %v4854 = vpack.c.b16 %v3846, %v3838
        %v4855 = vpack.c.b16 %v3847, %v3839
        %v4856 = vpack.c.b16 %v3848, %v3840
        %v4857 = vpack.c.b16 %v3849, %v3841
        %v4858 = vpack.c.b16 %v3858, %v3850
        %v4859 = vpack.c.b16 %v3859, %v3851
        %v4860 = vpack.c.b16 %v3860, %v3852
        %v4861 = vpack.c.b16 %v3861, %v3853
        %v4862 = vpack.c.b16 %v3862, %v3854
        %v4863 = vpack.c.b16 %v3863, %v3855
        %v4864 = vpack.c.b16 %v3864, %v3856
        %v4865 = vpack.c.b16 %v3865, %v3857
        %v4866 = vpack.c.b16 %v3874, %v3866
        %v4867 = vpack.c.b16 %v3875, %v3867
        %v4868 = vpack.c.b16 %v3876, %v3868
        %v4869 = vpack.c.b16 %v3877, %v3869
        %v4870 = vpack.c.b16 %v3878, %v3870
        %v4871 = vpack.c.b16 %v3879, %v3871
        %v4872 = vpack.c.b16 %v3880, %v3872
        %v4873 = vpack.c.b16 %v3881, %v3873
        %v4874 = vpack.c.b16 %v3890, %v3882
        %v4875 = vpack.c.b16 %v3891, %v3883
        %v4876 = vpack.c.b16 %v3892, %v3884
        %v4877 = vpack.c.b16 %v3893, %v3885
        %v4878 = vpack.c.b16 %v3894, %v3886
        %v4879 = vpack.c.b16 %v3895, %v3887
        %v4880 = vpack.c.b16 %v3896, %v3888
        %v4881 = vpack.c.b16 %v3897, %v3889
        %v4882 = vpack.c.b16 %v3906, %v3898
        %v4883 = vpack.c.b16 %v3907, %v3899
        %v4884 = vpack.c.b16 %v3908, %v3900
        %v4885 = vpack.c.b16 %v3909, %v3901
        %v4886 = vpack.c.b16 %v3910, %v3902
        %v4887 = vpack.c.b16 %v3911, %v3903
        %v4888 = vpack.c.b16 %v3912, %v3904
        %v4889 = vpack.c.b16 %v3913, %v3905
        %v4890 = vpack.c.b16 %v3922, %v3914
        %v4891 = vpack.c.b16 %v3923, %v3915
        %v4892 = vpack.c.b16 %v3924, %v3916
        %v4893 = vpack.c.b16 %v3925, %v3917
        %v4894 = vpack.c.b16 %v3926, %v3918
        %v4895 = vpack.c.b16 %v3927, %v3919
        %v4896 = vpack.c.b16 %v3928, %v3920
        %v4897 = vpack.c.b16 %v3929, %v3921
        %v4898 = vpack.c.b16 %v3938, %v3930
        %v4899 = vpack.c.b16 %v3939, %v3931
        %v4900 = vpack.c.b16 %v3940, %v3932
        %v4901 = vpack.c.b16 %v3941, %v3933
        %v4902 = vpack.c.b16 %v3942, %v3934
        %v4903 = vpack.c.b16 %v3943, %v3935
        %v4904 = vpack.c.b16 %v3944, %v3936
        %v4905 = vpack.c.b16 %v3945, %v3937
        %v4906 = vpack.c.b16 %v3954, %v3946
        %v4907 = vpack.c.b16 %v3955, %v3947
        %v4908 = vpack.c.b16 %v3956, %v3948
        %v4909 = vpack.c.b16 %v3957, %v3949
        %v4910 = vpack.c.b16 %v3958, %v3950
        %v4911 = vpack.c.b16 %v3959, %v3951
        %v4912 = vpack.c.b16 %v3960, %v3952
        %v4913 = vpack.c.b16 %v3961, %v3953
        %v4914 = vpack.c.b16 %v3970, %v3962
        %v4915 = vpack.c.b16 %v3971, %v3963
        %v4916 = vpack.c.b16 %v3972, %v3964
        %v4917 = vpack.c.b16 %v3973, %v3965
        %v4918 = vpack.c.b16 %v3974, %v3966
        %v4919 = vpack.c.b16 %v3975, %v3967
        %v4920 = vpack.c.b16 %v3976, %v3968
        %v4921 = vpack.c.b16 %v3977, %v3969
        %v4922 = vpack.c.b16 %v3986, %v3978
        %v4923 = vpack.c.b16 %v3987, %v3979
        %v4924 = vpack.c.b16 %v3988, %v3980
        %v4925 = vpack.c.b16 %v3989, %v3981
        %v4926 = vpack.c.b16 %v3990, %v3982
        %v4927 = vpack.c.b16 %v3991, %v3983
        %v4928 = vpack.c.b16 %v3992, %v3984
        %v4929 = vpack.c.b16 %v3993, %v3985
        %v4930 = vpack.c.b16 %v4002, %v3994
        %v4931 = vpack.c.b16 %v4003, %v3995
        %v4932 = vpack.c.b16 %v4004, %v3996
        %v4933 = vpack.c.b16 %v4005, %v3997
        %v4934 = vpack.c.b16 %v4006, %v3998
        %v4935 = vpack.c.b16 %v4007, %v3999
        %v4936 = vpack.c.b16 %v4008, %v4000
        %v4937 = vpack.c.b16 %v4009, %v4001
        %v4938 = vpack.c.b16 %v4018, %v4010
        %v4939 = vpack.c.b16 %v4019, %v4011
        %v4940 = vpack.c.b16 %v4020, %v4012
        %v4941 = vpack.c.b16 %v4021, %v4013
        %v4942 = vpack.c.b16 %v4022, %v4014
        %v4943 = vpack.c.b16 %v4023, %v4015
        %v4944 = vpack.c.b16 %v4024, %v4016
        %v4945 = vpack.c.b16 %v4025, %v4017
        %v4946 = vpack.c.b16 %v4034, %v4026
        %v4947 = vpack.c.b16 %v4035, %v4027
        %v4948 = vpack.c.b16 %v4036, %v4028
        %v4949 = vpack.c.b16 %v4037, %v4029
        %v4950 = vpack.c.b16 %v4038, %v4030
        %v4951 = vpack.c.b16 %v4039, %v4031
        %v4952 = vpack.c.b16 %v4040, %v4032
        %v4953 = vpack.c.b16 %v4041, %v4033
        %v4954 = vpack.c.b16 %v4050, %v4042
        %v4955 = vpack.c.b16 %v4051, %v4043
        %v4956 = vpack.c.b16 %v4052, %v4044
        %v4957 = vpack.c.b16 %v4053, %v4045
        %v4958 = vpack.c.b16 %v4054, %v4046
        %v4959 = vpack.c.b16 %v4055, %v4047
        %v4960 = vpack.c.b16 %v4056, %v4048
        %v4961 = vpack.c.b16 %v4057, %v4049
        %v4962 = vpack.c.b16 %v4066, %v4058
        %v4963 = vpack.c.b16 %v4067, %v4059
        %v4964 = vpack.c.b16 %v4068, %v4060
        %v4965 = vpack.c.b16 %v4069, %v4061
        %v4966 = vpack.c.b16 %v4070, %v4062
        %v4967 = vpack.c.b16 %v4071, %v4063
        %v4968 = vpack.c.b16 %v4072, %v4064
        %v4969 = vpack.c.b16 %v4073, %v4065
        %5866 = vmatprep.subr.bf16.mxu0 %v4075
        %5867 = vmatpush1.bf16.msra.mxu0 %v4074
        %5868 = vmatprep.subr.bf16.mxu0 %v4083
        %5869 = vmatpush1.bf16.msra.mxu0 %v4082
        %5870 = vmatprep.subr.bf16.mxu0 %v4091
        %5871 = vmatpush1.bf16.msra.mxu0 %v4090
        %5872 = vmatprep.subr.bf16.mxu0 %v4099
        %5873 = vmatpush1.bf16.msra.mxu0 %v4098
        %5874 = vmatprep.subr.bf16.mxu0 %v4107
        %5875 = vmatpush1.bf16.msra.mxu0 %v4106
        %5876 = vmatprep.subr.bf16.mxu0 %v4115
        %5877 = vmatpush1.bf16.msra.mxu0 %v4114
        %5878 = vmatprep.subr.bf16.mxu0 %v4123
        %5879 = vmatpush1.bf16.msra.mxu0 %v4122
        %5880 = vmatprep.subr.bf16.mxu0 %v4131
        %5881 = vmatpush1.bf16.msra.mxu0 %v4130
        %5882 = vmatprep.subr.bf16.mxu0 %v4139
        %5883 = vmatpush1.bf16.msra.mxu0 %v4138
        %5884 = vmatprep.subr.bf16.mxu0 %v4147
        %5885 = vmatpush1.bf16.msra.mxu0 %v4146
        %5886 = vmatprep.subr.bf16.mxu0 %v4155
        %5887 = vmatpush1.bf16.msra.mxu0 %v4154
        %5888 = vmatprep.subr.bf16.mxu0 %v4163
        %5889 = vmatpush1.bf16.msra.mxu0 %v4162
        %5890 = vmatprep.subr.bf16.mxu0 %v4171
        %5891 = vmatpush1.bf16.msra.mxu0 %v4170
        %5892 = vmatprep.subr.bf16.mxu0 %v4179
        %5893 = vmatpush1.bf16.msra.mxu0 %v4178
        %5894 = vmatprep.subr.bf16.mxu0 %v4187
        %5895 = vmatpush1.bf16.msra.mxu0 %v4186
        %5896 = vmatprep.subr.bf16.mxu0 %v4195
        %5897 = vmatpush1.bf16.msra.mxu0 %v4194
        %5898 = vmatprep.mubr.bf16.mxu0 %v1359
        %5899 = vmatmul.mubr.bf16.gmra.mrb[0].mxu0 %v1358
        %v5900 = vpop.f32.mrb[0].mxu0
        %v5901 = vadd.f32 0.0, %v5900
        %v5902 = vpop.f32.mrb[0].mxu0
        %v5903 = vadd.f32 0.0, %v5902
        %v5904 = vpop.f32.mrb[0].mxu0
        %v5905 = vpop.f32.mrb[0].mxu0
        %5906 = vdwg.mxu0
        %5907 = vmatprep.subr.bf16.mxu0 %v4203
        %5908 = vmatpush1.bf16.msra.mxu0 %v4202
        %5909 = vmatprep.subr.bf16.mxu0 %v4211
        %5910 = vmatpush1.bf16.msra.mxu0 %v4210
        %5911 = vmatprep.subr.bf16.mxu0 %v4219
        %5912 = vmatpush1.bf16.msra.mxu0 %v4218
        %5913 = vmatprep.subr.bf16.mxu0 %v4227
        %5914 = vmatpush1.bf16.msra.mxu0 %v4226
        %5915 = vmatprep.subr.bf16.mxu0 %v4235
        %5916 = vmatpush1.bf16.msra.mxu0 %v4234
        %5917 = vmatprep.subr.bf16.mxu0 %v4243
        %5918 = vmatpush1.bf16.msra.mxu0 %v4242
        %5919 = vmatprep.subr.bf16.mxu0 %v4251
        %5920 = vmatpush1.bf16.msra.mxu0 %v4250
        %5921 = vmatprep.subr.bf16.mxu0 %v4259
        %5922 = vmatpush1.bf16.msra.mxu0 %v4258
        %5923 = vmatprep.subr.bf16.mxu0 %v4267
        %5924 = vmatpush1.bf16.msra.mxu0 %v4266
        %5925 = vmatprep.subr.bf16.mxu0 %v4275
        %5926 = vmatpush1.bf16.msra.mxu0 %v4274
        %5927 = vmatprep.subr.bf16.mxu0 %v4283
        %5928 = vmatpush1.bf16.msra.mxu0 %v4282
        %5929 = vmatprep.subr.bf16.mxu0 %v4291
        %5930 = vmatpush1.bf16.msra.mxu0 %v4290
        %5931 = vmatprep.subr.bf16.mxu0 %v4299
        %5932 = vmatpush1.bf16.msra.mxu0 %v4298
        %5933 = vmatprep.subr.bf16.mxu0 %v4307
        %5934 = vmatpush1.bf16.msra.mxu0 %v4306
        %5935 = vmatprep.subr.bf16.mxu0 %v4315
        %5936 = vmatpush1.bf16.msra.mxu0 %v4314
        %5937 = vmatprep.subr.bf16.mxu0 %v4323
        %5938 = vmatpush1.bf16.msra.mxu0 %v4322
        %5939 = vmatprep.mubr.bf16.mxu0 %v1361
        %5940 = vmatmul.mubr.bf16.gmra.mrb[0].mxu0 %v1360
        %v5941 = vpop.f32.mrb[0].mxu0
        %v5942 = vadd.f32 %v5901, %v5941
        %v5943 = vpop.f32.mrb[0].mxu0
        %v5944 = vadd.f32 %v5903, %v5943
        %v5945 = vpop.f32.mrb[0].mxu0
        %v5946 = vpop.f32.mrb[0].mxu0
        %5947 = vdwg.mxu0
        %5948 = vmatprep.subr.bf16.mxu0 %v4331
        %5949 = vmatpush1.bf16.msra.mxu0 %v4330
        %5950 = vmatprep.subr.bf16.mxu0 %v4339
        %5951 = vmatpush1.bf16.msra.mxu0 %v4338
        %5952 = vmatprep.subr.bf16.mxu0 %v4347
        %5953 = vmatpush1.bf16.msra.mxu0 %v4346
        %5954 = vmatprep.subr.bf16.mxu0 %v4355
        %5955 = vmatpush1.bf16.msra.mxu0 %v4354
        %5956 = vmatprep.subr.bf16.mxu0 %v4363
        %5957 = vmatpush1.bf16.msra.mxu0 %v4362
        %5958 = vmatprep.subr.bf16.mxu0 %v4371
        %5959 = vmatpush1.bf16.msra.mxu0 %v4370
        %5960 = vmatprep.subr.bf16.mxu0 %v4379
        %5961 = vmatpush1.bf16.msra.mxu0 %v4378
        %5962 = vmatprep.subr.bf16.mxu0 %v4387
        %5963 = vmatpush1.bf16.msra.mxu0 %v4386
        %5964 = vmatprep.subr.bf16.mxu0 %v4395
        %5965 = vmatpush1.bf16.msra.mxu0 %v4394
        %5966 = vmatprep.subr.bf16.mxu0 %v4403
        %5967 = vmatpush1.bf16.msra.mxu0 %v4402
        %5968 = vmatprep.subr.bf16.mxu0 %v4411
        %5969 = vmatpush1.bf16.msra.mxu0 %v4410
        %5970 = vmatprep.subr.bf16.mxu0 %v4419
        %5971 = vmatpush1.bf16.msra.mxu0 %v4418
        %5972 = vmatprep.subr.bf16.mxu0 %v4427
        %5973 = vmatpush1.bf16.msra.mxu0 %v4426
        %5974 = vmatprep.subr.bf16.mxu0 %v4435
        %5975 = vmatpush1.bf16.msra.mxu0 %v4434
        %5976 = vmatprep.subr.bf16.mxu0 %v4443
        %5977 = vmatpush1.bf16.msra.mxu0 %v4442
        %5978 = vmatprep.subr.bf16.mxu0 %v4451
        %5979 = vmatpush1.bf16.msra.mxu0 %v4450
        %5980 = vmatprep.mubr.bf16.mxu0 %v1363
        %5981 = vmatmul.mubr.bf16.gmra.mrb[0].mxu0 %v1362
        %v5982 = vpop.f32.mrb[0].mxu0
        %v5983 = vadd.f32 %v5942, %v5982
        %v5984 = vpop.f32.mrb[0].mxu0
        %v5985 = vadd.f32 %v5944, %v5984
        %v5986 = vpop.f32.mrb[0].mxu0
        %v5987 = vpop.f32.mrb[0].mxu0
        %5988 = vdwg.mxu0
        %5989 = vmatprep.subr.bf16.mxu0 %v4459
        %5990 = vmatpush1.bf16.msra.mxu0 %v4458
        %5991 = vmatprep.subr.bf16.mxu0 %v4467
        %5992 = vmatpush1.bf16.msra.mxu0 %v4466
        %5993 = vmatprep.subr.bf16.mxu0 %v4475
        %5994 = vmatpush1.bf16.msra.mxu0 %v4474
        %5995 = vmatprep.subr.bf16.mxu0 %v4483
        %5996 = vmatpush1.bf16.msra.mxu0 %v4482
        %5997 = vmatprep.subr.bf16.mxu0 %v4491
        %5998 = vmatpush1.bf16.msra.mxu0 %v4490
        %5999 = vmatprep.subr.bf16.mxu0 %v4499
        %6000 = vmatpush1.bf16.msra.mxu0 %v4498
        %6001 = vmatprep.subr.bf16.mxu0 %v4507
        %6002 = vmatpush1.bf16.msra.mxu0 %v4506
        %6003 = vmatprep.subr.bf16.mxu0 %v4515
        %6004 = vmatpush1.bf16.msra.mxu0 %v4514
        %6005 = vmatprep.subr.bf16.mxu0 %v4523
        %6006 = vmatpush1.bf16.msra.mxu0 %v4522
        %6007 = vmatprep.subr.bf16.mxu0 %v4531
        %6008 = vmatpush1.bf16.msra.mxu0 %v4530
        %6009 = vmatprep.subr.bf16.mxu0 %v4539
        %6010 = vmatpush1.bf16.msra.mxu0 %v4538
        %6011 = vmatprep.subr.bf16.mxu0 %v4547
        %6012 = vmatpush1.bf16.msra.mxu0 %v4546
        %6013 = vmatprep.subr.bf16.mxu0 %v4555
        %6014 = vmatpush1.bf16.msra.mxu0 %v4554
        %6015 = vmatprep.subr.bf16.mxu0 %v4563
        %6016 = vmatpush1.bf16.msra.mxu0 %v4562
        %6017 = vmatprep.subr.bf16.mxu0 %v4571
        %6018 = vmatpush1.bf16.msra.mxu0 %v4570
        %6019 = vmatprep.subr.bf16.mxu0 %v4579
        %6020 = vmatpush1.bf16.msra.mxu0 %v4578
        %6021 = vmatprep.mubr.bf16.mxu0 %v1365
        %6022 = vmatmul.mubr.bf16.gmra.mrb[0].mxu0 %v1364
        %v6023 = vpop.f32.mrb[0].mxu0
        %v6024 = vadd.f32 %v5983, %v6023
        %v6025 = vpop.f32.mrb[0].mxu0
        %v6026 = vadd.f32 %v5985, %v6025
        %v6027 = vpop.f32.mrb[0].mxu0
        %v6028 = vpop.f32.mrb[0].mxu0
        %6029 = vdwg.mxu0
        %6030 = vmatprep.subr.bf16.mxu0 %v4587
        %6031 = vmatpush1.bf16.msra.mxu0 %v4586
        %6032 = vmatprep.subr.bf16.mxu0 %v4595
        %6033 = vmatpush1.bf16.msra.mxu0 %v4594
        %6034 = vmatprep.subr.bf16.mxu0 %v4603
        %6035 = vmatpush1.bf16.msra.mxu0 %v4602
        %6036 = vmatprep.subr.bf16.mxu0 %v4611
        %6037 = vmatpush1.bf16.msra.mxu0 %v4610
        %6038 = vmatprep.subr.bf16.mxu0 %v4619
        %6039 = vmatpush1.bf16.msra.mxu0 %v4618
        %6040 = vmatprep.subr.bf16.mxu0 %v4627
        %6041 = vmatpush1.bf16.msra.mxu0 %v4626
        %6042 = vmatprep.subr.bf16.mxu0 %v4635
        %6043 = vmatpush1.bf16.msra.mxu0 %v4634
        %6044 = vmatprep.subr.bf16.mxu0 %v4643
        %6045 = vmatpush1.bf16.msra.mxu0 %v4642
        %6046 = vmatprep.subr.bf16.mxu0 %v4651
        %6047 = vmatpush1.bf16.msra.mxu0 %v4650
        %6048 = vmatprep.subr.bf16.mxu0 %v4659
        %6049 = vmatpush1.bf16.msra.mxu0 %v4658
        %6050 = vmatprep.subr.bf16.mxu0 %v4667
        %6051 = vmatpush1.bf16.msra.mxu0 %v4666
        %6052 = vmatprep.subr.bf16.mxu0 %v4675
        %6053 = vmatpush1.bf16.msra.mxu0 %v4674
        %6054 = vmatprep.subr.bf16.mxu0 %v4683
        %6055 = vmatpush1.bf16.msra.mxu0 %v4682
        %6056 = vmatprep.subr.bf16.mxu0 %v4691
        %6057 = vmatpush1.bf16.msra.mxu0 %v4690
        %6058 = vmatprep.subr.bf16.mxu0 %v4699
        %6059 = vmatpush1.bf16.msra.mxu0 %v4698
        %6060 = vmatprep.subr.bf16.mxu0 %v4707
        %6061 = vmatpush1.bf16.msra.mxu0 %v4706
        %6062 = vmatprep.mubr.bf16.mxu0 %v1367
        %6063 = vmatmul.mubr.bf16.gmra.mrb[0].mxu0 %v1366
        %v6064 = vpop.f32.mrb[0].mxu0
        %v6065 = vadd.f32 %v6024, %v6064
        %v6066 = vpop.f32.mrb[0].mxu0
        %v6067 = vadd.f32 %v6026, %v6066
        %v6068 = vpop.f32.mrb[0].mxu0
        %v6069 = vpop.f32.mrb[0].mxu0
        %6070 = vdwg.mxu0
        %6071 = vmatprep.subr.bf16.mxu0 %v4715
        %6072 = vmatpush1.bf16.msra.mxu0 %v4714
        %6073 = vmatprep.subr.bf16.mxu0 %v4723
        %6074 = vmatpush1.bf16.msra.mxu0 %v4722
        %6075 = vmatprep.subr.bf16.mxu0 %v4731
        %6076 = vmatpush1.bf16.msra.mxu0 %v4730
        %6077 = vmatprep.subr.bf16.mxu0 %v4739
        %6078 = vmatpush1.bf16.msra.mxu0 %v4738
        %6079 = vmatprep.subr.bf16.mxu0 %v4747
        %6080 = vmatpush1.bf16.msra.mxu0 %v4746
        %6081 = vmatprep.subr.bf16.mxu0 %v4755
        %6082 = vmatpush1.bf16.msra.mxu0 %v4754
        %6083 = vmatprep.subr.bf16.mxu0 %v4763
        %6084 = vmatpush1.bf16.msra.mxu0 %v4762
        %6085 = vmatprep.subr.bf16.mxu0 %v4771
        %6086 = vmatpush1.bf16.msra.mxu0 %v4770
        %6087 = vmatprep.subr.bf16.mxu0 %v4779
        %6088 = vmatpush1.bf16.msra.mxu0 %v4778
        %6089 = vmatprep.subr.bf16.mxu0 %v4787
        %6090 = vmatpush1.bf16.msra.mxu0 %v4786
        %6091 = vmatprep.subr.bf16.mxu0 %v4795
        %6092 = vmatpush1.bf16.msra.mxu0 %v4794
        %6093 = vmatprep.subr.bf16.mxu0 %v4803
        %6094 = vmatpush1.bf16.msra.mxu0 %v4802
        %6095 = vmatprep.subr.bf16.mxu0 %v4811
        %6096 = vmatpush1.bf16.msra.mxu0 %v4810
        %6097 = vmatprep.subr.bf16.mxu0 %v4819
        %6098 = vmatpush1.bf16.msra.mxu0 %v4818
        %6099 = vmatprep.subr.bf16.mxu0 %v4827
        %6100 = vmatpush1.bf16.msra.mxu0 %v4826
        %6101 = vmatprep.subr.bf16.mxu0 %v4835
        %6102 = vmatpush1.bf16.msra.mxu0 %v4834
        %6103 = vmatprep.mubr.bf16.mxu0 %v1369
        %6104 = vmatmul.mubr.bf16.gmra.mrb[0].mxu0 %v1368
        %v6105 = vpop.f32.mrb[0].mxu0
        %v6106 = vadd.f32 %v6065, %v6105
        %v6107 = vpop.f32.mrb[0].mxu0
        %v6108 = vadd.f32 %v6067, %v6107
        %v6109 = vpop.f32.mrb[0].mxu0
        %v6110 = vpop.f32.mrb[0].mxu0
        %6111 = vdwg.mxu0
        %6112 = vmatprep.subr.bf16.mxu0 %v4843
        %6113 = vmatpush1.bf16.msra.mxu0 %v4842
        %6114 = vmatprep.subr.bf16.mxu0 %v4851
        %6115 = vmatpush1.bf16.msra.mxu0 %v4850
        %6116 = vmatprep.subr.bf16.mxu0 %v4859
        %6117 = vmatpush1.bf16.msra.mxu0 %v4858
        %6118 = vmatprep.subr.bf16.mxu0 %v4867
        %6119 = vmatpush1.bf16.msra.mxu0 %v4866
        %6120 = vmatprep.subr.bf16.mxu0 %v4875
        %6121 = vmatpush1.bf16.msra.mxu0 %v4874
        %6122 = vmatprep.subr.bf16.mxu0 %v4883
        %6123 = vmatpush1.bf16.msra.mxu0 %v4882
        %6124 = vmatprep.subr.bf16.mxu0 %v4891
        %6125 = vmatpush1.bf16.msra.mxu0 %v4890
        %6126 = vmatprep.subr.bf16.mxu0 %v4899
        %6127 = vmatpush1.bf16.msra.mxu0 %v4898
        %6128 = vmatprep.subr.bf16.mxu0 %v4907
        %6129 = vmatpush1.bf16.msra.mxu0 %v4906
        %6130 = vmatprep.subr.bf16.mxu0 %v4915
        %6131 = vmatpush1.bf16.msra.mxu0 %v4914
        %6132 = vmatprep.subr.bf16.mxu0 %v4923
        %6133 = vmatpush1.bf16.msra.mxu0 %v4922
        %6134 = vmatprep.subr.bf16.mxu0 %v4931
        %6135 = vmatpush1.bf16.msra.mxu0 %v4930
        %6136 = vmatprep.subr.bf16.mxu0 %v4939
        %6137 = vmatpush1.bf16.msra.mxu0 %v4938
        %6138 = vmatprep.subr.bf16.mxu0 %v4947
        %6139 = vmatpush1.bf16.msra.mxu0 %v4946
        %6140 = vmatprep.subr.bf16.mxu0 %v4955
        %6141 = vmatpush1.bf16.msra.mxu0 %v4954
        %6142 = vmatprep.subr.bf16.mxu0 %v4963
        %6143 = vmatpush1.bf16.msra.mxu0 %v4962
        %6144 = vmatprep.mubr.bf16.mxu0 %v1371
        %6145 = vmatmul.mubr.bf16.gmra.mrb[0].mxu0 %v1370
        %v6146 = vpop.f32.mrb[0].mxu0
        %v6147 = vadd.f32 %v6106, %v6146
        %v6148 = vpop.f32.mrb[0].mxu0
        %v6149 = vadd.f32 %v6108, %v6148
        %v6150 = vpop.f32.mrb[0].mxu0
        %v6151 = vpop.f32.mrb[0].mxu0
        %6152 = vdwg.mxu0
        %6153 = vmatprep.subr.bf16.mxu0 %v4077
        %6154 = vmatpush1.bf16.msra.mxu0 %v4076
        %6155 = vmatprep.subr.bf16.mxu0 %v4085
        %6156 = vmatpush1.bf16.msra.mxu0 %v4084
        %6157 = vmatprep.subr.bf16.mxu0 %v4093
        %6158 = vmatpush1.bf16.msra.mxu0 %v4092
        %6159 = vmatprep.subr.bf16.mxu0 %v4101
        %6160 = vmatpush1.bf16.msra.mxu0 %v4100
        %6161 = vmatprep.subr.bf16.mxu0 %v4109
        %6162 = vmatpush1.bf16.msra.mxu0 %v4108
        %6163 = vmatprep.subr.bf16.mxu0 %v4117
        %6164 = vmatpush1.bf16.msra.mxu0 %v4116
        %6165 = vmatprep.subr.bf16.mxu0 %v4125
        %6166 = vmatpush1.bf16.msra.mxu0 %v4124
        %6167 = vmatprep.subr.bf16.mxu0 %v4133
        %6168 = vmatpush1.bf16.msra.mxu0 %v4132
        %6169 = vmatprep.subr.bf16.mxu0 %v4141
        %6170 = vmatpush1.bf16.msra.mxu0 %v4140
        %6171 = vmatprep.subr.bf16.mxu0 %v4149
        %6172 = vmatpush1.bf16.msra.mxu0 %v4148
        %6173 = vmatprep.subr.bf16.mxu0 %v4157
        %6174 = vmatpush1.bf16.msra.mxu0 %v4156
        %6175 = vmatprep.subr.bf16.mxu0 %v4165
        %6176 = vmatpush1.bf16.msra.mxu0 %v4164
        %6177 = vmatprep.subr.bf16.mxu0 %v4173
        %6178 = vmatpush1.bf16.msra.mxu0 %v4172
        %6179 = vmatprep.subr.bf16.mxu0 %v4181
        %6180 = vmatpush1.bf16.msra.mxu0 %v4180
        %6181 = vmatprep.subr.bf16.mxu0 %v4189
        %6182 = vmatpush1.bf16.msra.mxu0 %v4188
        %6183 = vmatprep.subr.bf16.mxu0 %v4197
        %6184 = vmatpush1.bf16.msra.mxu0 %v4196
        %6185 = vmatprep.mubr.bf16.mxu0 %v1359
        %6186 = vmatmul.mubr.bf16.gmra.mrb[0].mxu0 %v1358
        %v6187 = vpop.f32.mrb[0].mxu0
        %v6188 = vadd.f32 0.0, %v6187
        %v6189 = vpop.f32.mrb[0].mxu0
        %v6190 = vadd.f32 0.0, %v6189
        %v6191 = vpop.f32.mrb[0].mxu0
        %v6192 = vpop.f32.mrb[0].mxu0
        %6193 = vdwg.mxu0
        %6194 = vmatprep.subr.bf16.mxu0 %v4205
        %6195 = vmatpush1.bf16.msra.mxu0 %v4204
        %6196 = vmatprep.subr.bf16.mxu0 %v4213
        %6197 = vmatpush1.bf16.msra.mxu0 %v4212
        %6198 = vmatprep.subr.bf16.mxu0 %v4221
        %6199 = vmatpush1.bf16.msra.mxu0 %v4220
        %6200 = vmatprep.subr.bf16.mxu0 %v4229
        %6201 = vmatpush1.bf16.msra.mxu0 %v4228
        %6202 = vmatprep.subr.bf16.mxu0 %v4237
        %6203 = vmatpush1.bf16.msra.mxu0 %v4236
        %6204 = vmatprep.subr.bf16.mxu0 %v4245
        %6205 = vmatpush1.bf16.msra.mxu0 %v4244
        %6206 = vmatprep.subr.bf16.mxu0 %v4253
        %6207 = vmatpush1.bf16.msra.mxu0 %v4252
        %6208 = vmatprep.subr.bf16.mxu0 %v4261
        %6209 = vmatpush1.bf16.msra.mxu0 %v4260
        %6210 = vmatprep.subr.bf16.mxu0 %v4269
        %6211 = vmatpush1.bf16.msra.mxu0 %v4268
        %6212 = vmatprep.subr.bf16.mxu0 %v4277
        %6213 = vmatpush1.bf16.msra.mxu0 %v4276
        %6214 = vmatprep.subr.bf16.mxu0 %v4285
        %6215 = vmatpush1.bf16.msra.mxu0 %v4284
        %6216 = vmatprep.subr.bf16.mxu0 %v4293
        %6217 = vmatpush1.bf16.msra.mxu0 %v4292
        %6218 = vmatprep.subr.bf16.mxu0 %v4301
        %6219 = vmatpush1.bf16.msra.mxu0 %v4300
        %6220 = vmatprep.subr.bf16.mxu0 %v4309
        %6221 = vmatpush1.bf16.msra.mxu0 %v4308
        %6222 = vmatprep.subr.bf16.mxu0 %v4317
        %6223 = vmatpush1.bf16.msra.mxu0 %v4316
        %6224 = vmatprep.subr.bf16.mxu0 %v4325
        %6225 = vmatpush1.bf16.msra.mxu0 %v4324
        %6226 = vmatprep.mubr.bf16.mxu0 %v1361
        %6227 = vmatmul.mubr.bf16.gmra.mrb[0].mxu0 %v1360
        %v6228 = vpop.f32.mrb[0].mxu0
        %v6229 = vadd.f32 %v6188, %v6228
        %v6230 = vpop.f32.mrb[0].mxu0
        %v6231 = vadd.f32 %v6190, %v6230
        %v6232 = vpop.f32.mrb[0].mxu0
        %v6233 = vpop.f32.mrb[0].mxu0
        %6234 = vdwg.mxu0
        %6235 = vmatprep.subr.bf16.mxu0 %v4333
        %6236 = vmatpush1.bf16.msra.mxu0 %v4332
        %6237 = vmatprep.subr.bf16.mxu0 %v4341
        %6238 = vmatpush1.bf16.msra.mxu0 %v4340
        %6239 = vmatprep.subr.bf16.mxu0 %v4349
        %6240 = vmatpush1.bf16.msra.mxu0 %v4348
        %6241 = vmatprep.subr.bf16.mxu0 %v4357
        %6242 = vmatpush1.bf16.msra.mxu0 %v4356
        %6243 = vmatprep.subr.bf16.mxu0 %v4365
        %6244 = vmatpush1.bf16.msra.mxu0 %v4364
        %6245 = vmatprep.subr.bf16.mxu0 %v4373
        %6246 = vmatpush1.bf16.msra.mxu0 %v4372
        %6247 = vmatprep.subr.bf16.mxu0 %v4381
        %6248 = vmatpush1.bf16.msra.mxu0 %v4380
        %6249 = vmatprep.subr.bf16.mxu0 %v4389
        %6250 = vmatpush1.bf16.msra.mxu0 %v4388
        %6251 = vmatprep.subr.bf16.mxu0 %v4397
        %6252 = vmatpush1.bf16.msra.mxu0 %v4396
        %6253 = vmatprep.subr.bf16.mxu0 %v4405
        %6254 = vmatpush1.bf16.msra.mxu0 %v4404
        %6255 = vmatprep.subr.bf16.mxu0 %v4413
        %6256 = vmatpush1.bf16.msra.mxu0 %v4412
        %6257 = vmatprep.subr.bf16.mxu0 %v4421
        %6258 = vmatpush1.bf16.msra.mxu0 %v4420
        %6259 = vmatprep.subr.bf16.mxu0 %v4429
        %6260 = vmatpush1.bf16.msra.mxu0 %v4428
        %6261 = vmatprep.subr.bf16.mxu0 %v4437
        %6262 = vmatpush1.bf16.msra.mxu0 %v4436
        %6263 = vmatprep.subr.bf16.mxu0 %v4445
        %6264 = vmatpush1.bf16.msra.mxu0 %v4444
        %6265 = vmatprep.subr.bf16.mxu0 %v4453
        %6266 = vmatpush1.bf16.msra.mxu0 %v4452
        %6267 = vmatprep.mubr.bf16.mxu0 %v1363
        %6268 = vmatmul.mubr.bf16.gmra.mrb[0].mxu0 %v1362
        %v6269 = vpop.f32.mrb[0].mxu0
        %v6270 = vadd.f32 %v6229, %v6269
        %v6271 = vpop.f32.mrb[0].mxu0
        %v6272 = vadd.f32 %v6231, %v6271
        %v6273 = vpop.f32.mrb[0].mxu0
        %v6274 = vpop.f32.mrb[0].mxu0
        %6275 = vdwg.mxu0
        %6276 = vmatprep.subr.bf16.mxu0 %v4461
        %6277 = vmatpush1.bf16.msra.mxu0 %v4460
        %6278 = vmatprep.subr.bf16.mxu0 %v4469
        %6279 = vmatpush1.bf16.msra.mxu0 %v4468
        %6280 = vmatprep.subr.bf16.mxu0 %v4477
        %6281 = vmatpush1.bf16.msra.mxu0 %v4476
        %6282 = vmatprep.subr.bf16.mxu0 %v4485
        %6283 = vmatpush1.bf16.msra.mxu0 %v4484
        %6284 = vmatprep.subr.bf16.mxu0 %v4493
        %6285 = vmatpush1.bf16.msra.mxu0 %v4492
        %6286 = vmatprep.subr.bf16.mxu0 %v4501
        %6287 = vmatpush1.bf16.msra.mxu0 %v4500
        %6288 = vmatprep.subr.bf16.mxu0 %v4509
        %6289 = vmatpush1.bf16.msra.mxu0 %v4508
        %6290 = vmatprep.subr.bf16.mxu0 %v4517
        %6291 = vmatpush1.bf16.msra.mxu0 %v4516
        %6292 = vmatprep.subr.bf16.mxu0 %v4525
        %6293 = vmatpush1.bf16.msra.mxu0 %v4524
        %6294 = vmatprep.subr.bf16.mxu0 %v4533
        %6295 = vmatpush1.bf16.msra.mxu0 %v4532
        %6296 = vmatprep.subr.bf16.mxu0 %v4541
        %6297 = vmatpush1.bf16.msra.mxu0 %v4540
        %6298 = vmatprep.subr.bf16.mxu0 %v4549
        %6299 = vmatpush1.bf16.msra.mxu0 %v4548
        %6300 = vmatprep.subr.bf16.mxu0 %v4557
        %6301 = vmatpush1.bf16.msra.mxu0 %v4556
        %6302 = vmatprep.subr.bf16.mxu0 %v4565
        %6303 = vmatpush1.bf16.msra.mxu0 %v4564
        %6304 = vmatprep.subr.bf16.mxu0 %v4573
        %6305 = vmatpush1.bf16.msra.mxu0 %v4572
        %6306 = vmatprep.subr.bf16.mxu0 %v4581
        %6307 = vmatpush1.bf16.msra.mxu0 %v4580
        %6308 = vmatprep.mubr.bf16.mxu0 %v1365
        %6309 = vmatmul.mubr.bf16.gmra.mrb[0].mxu0 %v1364
        %v6310 = vpop.f32.mrb[0].mxu0
        %v6311 = vadd.f32 %v6270, %v6310
        %v6312 = vpop.f32.mrb[0].mxu0
        %v6313 = vadd.f32 %v6272, %v6312
        %v6314 = vpop.f32.mrb[0].mxu0
        %v6315 = vpop.f32.mrb[0].mxu0
        %6316 = vdwg.mxu0
        %6317 = vmatprep.subr.bf16.mxu0 %v4589
        %6318 = vmatpush1.bf16.msra.mxu0 %v4588
        %6319 = vmatprep.subr.bf16.mxu0 %v4597
        %6320 = vmatpush1.bf16.msra.mxu0 %v4596
        %6321 = vmatprep.subr.bf16.mxu0 %v4605
        %6322 = vmatpush1.bf16.msra.mxu0 %v4604
        %6323 = vmatprep.subr.bf16.mxu0 %v4613
        %6324 = vmatpush1.bf16.msra.mxu0 %v4612
        %6325 = vmatprep.subr.bf16.mxu0 %v4621
        %6326 = vmatpush1.bf16.msra.mxu0 %v4620
        %6327 = vmatprep.subr.bf16.mxu0 %v4629
        %6328 = vmatpush1.bf16.msra.mxu0 %v4628
        %6329 = vmatprep.subr.bf16.mxu0 %v4637
        %6330 = vmatpush1.bf16.msra.mxu0 %v4636
        %6331 = vmatprep.subr.bf16.mxu0 %v4645
        %6332 = vmatpush1.bf16.msra.mxu0 %v4644
        %6333 = vmatprep.subr.bf16.mxu0 %v4653
        %6334 = vmatpush1.bf16.msra.mxu0 %v4652
        %6335 = vmatprep.subr.bf16.mxu0 %v4661
        %6336 = vmatpush1.bf16.msra.mxu0 %v4660
        %6337 = vmatprep.subr.bf16.mxu0 %v4669
        %6338 = vmatpush1.bf16.msra.mxu0 %v4668
        %6339 = vmatprep.subr.bf16.mxu0 %v4677
        %6340 = vmatpush1.bf16.msra.mxu0 %v4676
        %6341 = vmatprep.subr.bf16.mxu0 %v4685
        %6342 = vmatpush1.bf16.msra.mxu0 %v4684
        %6343 = vmatprep.subr.bf16.mxu0 %v4693
        %6344 = vmatpush1.bf16.msra.mxu0 %v4692
        %6345 = vmatprep.subr.bf16.mxu0 %v4701
        %6346 = vmatpush1.bf16.msra.mxu0 %v4700
        %6347 = vmatprep.subr.bf16.mxu0 %v4709
        %6348 = vmatpush1.bf16.msra.mxu0 %v4708
        %6349 = vmatprep.mubr.bf16.mxu0 %v1367
        %6350 = vmatmul.mubr.bf16.gmra.mrb[0].mxu0 %v1366
        %v6351 = vpop.f32.mrb[0].mxu0
        %v6352 = vadd.f32 %v6311, %v6351
        %v6353 = vpop.f32.mrb[0].mxu0
        %v6354 = vadd.f32 %v6313, %v6353
        %v6355 = vpop.f32.mrb[0].mxu0
        %v6356 = vpop.f32.mrb[0].mxu0
        %6357 = vdwg.mxu0
        %6358 = vmatprep.subr.bf16.mxu0 %v4717
        %6359 = vmatpush1.bf16.msra.mxu0 %v4716
        %6360 = vmatprep.subr.bf16.mxu0 %v4725
        %6361 = vmatpush1.bf16.msra.mxu0 %v4724
        %6362 = vmatprep.subr.bf16.mxu0 %v4733
        %6363 = vmatpush1.bf16.msra.mxu0 %v4732
        %6364 = vmatprep.subr.bf16.mxu0 %v4741
        %6365 = vmatpush1.bf16.msra.mxu0 %v4740
        %6366 = vmatprep.subr.bf16.mxu0 %v4749
        %6367 = vmatpush1.bf16.msra.mxu0 %v4748
        %6368 = vmatprep.subr.bf16.mxu0 %v4757
        %6369 = vmatpush1.bf16.msra.mxu0 %v4756
        %6370 = vmatprep.subr.bf16.mxu0 %v4765
        %6371 = vmatpush1.bf16.msra.mxu0 %v4764
        %6372 = vmatprep.subr.bf16.mxu0 %v4773
        %6373 = vmatpush1.bf16.msra.mxu0 %v4772
        %6374 = vmatprep.subr.bf16.mxu0 %v4781
        %6375 = vmatpush1.bf16.msra.mxu0 %v4780
        %6376 = vmatprep.subr.bf16.mxu0 %v4789
        %6377 = vmatpush1.bf16.msra.mxu0 %v4788
        %6378 = vmatprep.subr.bf16.mxu0 %v4797
        %6379 = vmatpush1.bf16.msra.mxu0 %v4796
        %6380 = vmatprep.subr.bf16.mxu0 %v4805
        %6381 = vmatpush1.bf16.msra.mxu0 %v4804
        %6382 = vmatprep.subr.bf16.mxu0 %v4813
        %6383 = vmatpush1.bf16.msra.mxu0 %v4812
        %6384 = vmatprep.subr.bf16.mxu0 %v4821
        %6385 = vmatpush1.bf16.msra.mxu0 %v4820
        %6386 = vmatprep.subr.bf16.mxu0 %v4829
        %6387 = vmatpush1.bf16.msra.mxu0 %v4828
        %6388 = vmatprep.subr.bf16.mxu0 %v4837
        %6389 = vmatpush1.bf16.msra.mxu0 %v4836
        %6390 = vmatprep.mubr.bf16.mxu0 %v1369
        %6391 = vmatmul.mubr.bf16.gmra.mrb[0].mxu0 %v1368
        %v6392 = vpop.f32.mrb[0].mxu0
        %v6393 = vadd.f32 %v6352, %v6392
        %v6394 = vpop.f32.mrb[0].mxu0
        %v6395 = vadd.f32 %v6354, %v6394
        %v6396 = vpop.f32.mrb[0].mxu0
        %v6397 = vpop.f32.mrb[0].mxu0
        %6398 = vdwg.mxu0
        %6399 = vmatprep.subr.bf16.mxu0 %v4845
        %6400 = vmatpush1.bf16.msra.mxu0 %v4844
        %6401 = vmatprep.subr.bf16.mxu0 %v4853
        %6402 = vmatpush1.bf16.msra.mxu0 %v4852
        %6403 = vmatprep.subr.bf16.mxu0 %v4861
        %6404 = vmatpush1.bf16.msra.mxu0 %v4860
        %6405 = vmatprep.subr.bf16.mxu0 %v4869
        %6406 = vmatpush1.bf16.msra.mxu0 %v4868
        %6407 = vmatprep.subr.bf16.mxu0 %v4877
        %6408 = vmatpush1.bf16.msra.mxu0 %v4876
        %6409 = vmatprep.subr.bf16.mxu0 %v4885
        %6410 = vmatpush1.bf16.msra.mxu0 %v4884
        %6411 = vmatprep.subr.bf16.mxu0 %v4893
        %6412 = vmatpush1.bf16.msra.mxu0 %v4892
        %6413 = vmatprep.subr.bf16.mxu0 %v4901
        %6414 = vmatpush1.bf16.msra.mxu0 %v4900
        %6415 = vmatprep.subr.bf16.mxu0 %v4909
        %6416 = vmatpush1.bf16.msra.mxu0 %v4908
        %6417 = vmatprep.subr.bf16.mxu0 %v4917
        %6418 = vmatpush1.bf16.msra.mxu0 %v4916
        %6419 = vmatprep.subr.bf16.mxu0 %v4925
        %6420 = vmatpush1.bf16.msra.mxu0 %v4924
        %6421 = vmatprep.subr.bf16.mxu0 %v4933
        %6422 = vmatpush1.bf16.msra.mxu0 %v4932
        %6423 = vmatprep.subr.bf16.mxu0 %v4941
        %6424 = vmatpush1.bf16.msra.mxu0 %v4940
        %6425 = vmatprep.subr.bf16.mxu0 %v4949
        %6426 = vmatpush1.bf16.msra.mxu0 %v4948
        %6427 = vmatprep.subr.bf16.mxu0 %v4957
        %6428 = vmatpush1.bf16.msra.mxu0 %v4956
        %6429 = vmatprep.subr.bf16.mxu0 %v4965
        %6430 = vmatpush1.bf16.msra.mxu0 %v4964
        %6431 = vmatprep.mubr.bf16.mxu0 %v1371
        %6432 = vmatmul.mubr.bf16.gmra.mrb[0].mxu0 %v1370
        %v6433 = vpop.f32.mrb[0].mxu0
        %v6434 = vadd.f32 %v6393, %v6433
        %v6435 = vpop.f32.mrb[0].mxu0
        %v6436 = vadd.f32 %v6395, %v6435
        %v6437 = vpop.f32.mrb[0].mxu0
        %v6438 = vpop.f32.mrb[0].mxu0
        %6439 = vdwg.mxu0
        %6440 = vmatprep.subr.bf16.mxu0 %v4079
        %6441 = vmatpush1.bf16.msra.mxu0 %v4078
        %6442 = vmatprep.subr.bf16.mxu0 %v4087
        %6443 = vmatpush1.bf16.msra.mxu0 %v4086
        %6444 = vmatprep.subr.bf16.mxu0 %v4095
        %6445 = vmatpush1.bf16.msra.mxu0 %v4094
        %6446 = vmatprep.subr.bf16.mxu0 %v4103
        %6447 = vmatpush1.bf16.msra.mxu0 %v4102
        %6448 = vmatprep.subr.bf16.mxu0 %v4111
        %6449 = vmatpush1.bf16.msra.mxu0 %v4110
        %6450 = vmatprep.subr.bf16.mxu0 %v4119
        %6451 = vmatpush1.bf16.msra.mxu0 %v4118
        %6452 = vmatprep.subr.bf16.mxu0 %v4127
        %6453 = vmatpush1.bf16.msra.mxu0 %v4126
        %6454 = vmatprep.subr.bf16.mxu0 %v4135
        %6455 = vmatpush1.bf16.msra.mxu0 %v4134
        %6456 = vmatprep.subr.bf16.mxu0 %v4143
        %6457 = vmatpush1.bf16.msra.mxu0 %v4142
        %6458 = vmatprep.subr.bf16.mxu0 %v4151
        %6459 = vmatpush1.bf16.msra.mxu0 %v4150
        %6460 = vmatprep.subr.bf16.mxu0 %v4159
        %6461 = vmatpush1.bf16.msra.mxu0 %v4158
        %6462 = vmatprep.subr.bf16.mxu0 %v4167
        %6463 = vmatpush1.bf16.msra.mxu0 %v4166
        %6464 = vmatprep.subr.bf16.mxu0 %v4175
        %6465 = vmatpush1.bf16.msra.mxu0 %v4174
        %6466 = vmatprep.subr.bf16.mxu0 %v4183
        %6467 = vmatpush1.bf16.msra.mxu0 %v4182
        %6468 = vmatprep.subr.bf16.mxu0 %v4191
        %6469 = vmatpush1.bf16.msra.mxu0 %v4190
        %6470 = vmatprep.subr.bf16.mxu0 %v4199
        %6471 = vmatpush1.bf16.msra.mxu0 %v4198
        %6472 = vmatprep.mubr.bf16.mxu0 %v1359
        %6473 = vmatmul.mubr.bf16.gmra.mrb[0].mxu0 %v1358
        %v6474 = vpop.f32.mrb[0].mxu0
        %v6475 = vadd.f32 0.0, %v6474
        %v6476 = vpop.f32.mrb[0].mxu0
        %v6477 = vadd.f32 0.0, %v6476
        %v6478 = vpop.f32.mrb[0].mxu0
        %v6479 = vpop.f32.mrb[0].mxu0
        %6480 = vdwg.mxu0
        %6481 = vmatprep.subr.bf16.mxu0 %v4207
        %6482 = vmatpush1.bf16.msra.mxu0 %v4206
        %6483 = vmatprep.subr.bf16.mxu0 %v4215
        %6484 = vmatpush1.bf16.msra.mxu0 %v4214
        %6485 = vmatprep.subr.bf16.mxu0 %v4223
        %6486 = vmatpush1.bf16.msra.mxu0 %v4222
        %6487 = vmatprep.subr.bf16.mxu0 %v4231
        %6488 = vmatpush1.bf16.msra.mxu0 %v4230
        %6489 = vmatprep.subr.bf16.mxu0 %v4239
        %6490 = vmatpush1.bf16.msra.mxu0 %v4238
        %6491 = vmatprep.subr.bf16.mxu0 %v4247
        %6492 = vmatpush1.bf16.msra.mxu0 %v4246
        %6493 = vmatprep.subr.bf16.mxu0 %v4255
        %6494 = vmatpush1.bf16.msra.mxu0 %v4254
        %6495 = vmatprep.subr.bf16.mxu0 %v4263
        %6496 = vmatpush1.bf16.msra.mxu0 %v4262
        %6497 = vmatprep.subr.bf16.mxu0 %v4271
        %6498 = vmatpush1.bf16.msra.mxu0 %v4270
        %6499 = vmatprep.subr.bf16.mxu0 %v4279
        %6500 = vmatpush1.bf16.msra.mxu0 %v4278
        %6501 = vmatprep.subr.bf16.mxu0 %v4287
        %6502 = vmatpush1.bf16.msra.mxu0 %v4286
        %6503 = vmatprep.subr.bf16.mxu0 %v4295
        %6504 = vmatpush1.bf16.msra.mxu0 %v4294
        %6505 = vmatprep.subr.bf16.mxu0 %v4303
        %6506 = vmatpush1.bf16.msra.mxu0 %v4302
        %6507 = vmatprep.subr.bf16.mxu0 %v4311
        %6508 = vmatpush1.bf16.msra.mxu0 %v4310
        %6509 = vmatprep.subr.bf16.mxu0 %v4319
        %6510 = vmatpush1.bf16.msra.mxu0 %v4318
        %6511 = vmatprep.subr.bf16.mxu0 %v4327
        %6512 = vmatpush1.bf16.msra.mxu0 %v4326
        %6513 = vmatprep.mubr.bf16.mxu0 %v1361
        %6514 = vmatmul.mubr.bf16.gmra.mrb[0].mxu0 %v1360
        %v6515 = vpop.f32.mrb[0].mxu0
        %v6516 = vadd.f32 %v6475, %v6515
        %v6517 = vpop.f32.mrb[0].mxu0
        %v6518 = vadd.f32 %v6477, %v6517
        %v6519 = vpop.f32.mrb[0].mxu0
        %v6520 = vpop.f32.mrb[0].mxu0
        %6521 = vdwg.mxu0
        %6522 = vmatprep.subr.bf16.mxu0 %v4335
        %6523 = vmatpush1.bf16.msra.mxu0 %v4334
        %6524 = vmatprep.subr.bf16.mxu0 %v4343
        %6525 = vmatpush1.bf16.msra.mxu0 %v4342
        %6526 = vmatprep.subr.bf16.mxu0 %v4351
        %6527 = vmatpush1.bf16.msra.mxu0 %v4350
        %6528 = vmatprep.subr.bf16.mxu0 %v4359
        %6529 = vmatpush1.bf16.msra.mxu0 %v4358
        %6530 = vmatprep.subr.bf16.mxu0 %v4367
        %6531 = vmatpush1.bf16.msra.mxu0 %v4366
        %6532 = vmatprep.subr.bf16.mxu0 %v4375
        %6533 = vmatpush1.bf16.msra.mxu0 %v4374
        %6534 = vmatprep.subr.bf16.mxu0 %v4383
        %6535 = vmatpush1.bf16.msra.mxu0 %v4382
        %6536 = vmatprep.subr.bf16.mxu0 %v4391
        %6537 = vmatpush1.bf16.msra.mxu0 %v4390
        %6538 = vmatprep.subr.bf16.mxu0 %v4399
        %6539 = vmatpush1.bf16.msra.mxu0 %v4398
        %6540 = vmatprep.subr.bf16.mxu0 %v4407
        %6541 = vmatpush1.bf16.msra.mxu0 %v4406
        %6542 = vmatprep.subr.bf16.mxu0 %v4415
        %6543 = vmatpush1.bf16.msra.mxu0 %v4414
        %6544 = vmatprep.subr.bf16.mxu0 %v4423
        %6545 = vmatpush1.bf16.msra.mxu0 %v4422
        %6546 = vmatprep.subr.bf16.mxu0 %v4431
        %6547 = vmatpush1.bf16.msra.mxu0 %v4430
        %6548 = vmatprep.subr.bf16.mxu0 %v4439
        %6549 = vmatpush1.bf16.msra.mxu0 %v4438
        %6550 = vmatprep.subr.bf16.mxu0 %v4447
        %6551 = vmatpush1.bf16.msra.mxu0 %v4446
        %6552 = vmatprep.subr.bf16.mxu0 %v4455
        %6553 = vmatpush1.bf16.msra.mxu0 %v4454
        %6554 = vmatprep.mubr.bf16.mxu0 %v1363
        %6555 = vmatmul.mubr.bf16.gmra.mrb[0].mxu0 %v1362
        %v6556 = vpop.f32.mrb[0].mxu0
        %v6557 = vadd.f32 %v6516, %v6556
        %v6558 = vpop.f32.mrb[0].mxu0
        %v6559 = vadd.f32 %v6518, %v6558
        %v6560 = vpop.f32.mrb[0].mxu0
        %v6561 = vpop.f32.mrb[0].mxu0
        %6562 = vdwg.mxu0
        %6563 = vmatprep.subr.bf16.mxu0 %v4463
        %6564 = vmatpush1.bf16.msra.mxu0 %v4462
        %6565 = vmatprep.subr.bf16.mxu0 %v4471
        %6566 = vmatpush1.bf16.msra.mxu0 %v4470
        %6567 = vmatprep.subr.bf16.mxu0 %v4479
        %6568 = vmatpush1.bf16.msra.mxu0 %v4478
        %6569 = vmatprep.subr.bf16.mxu0 %v4487
        %6570 = vmatpush1.bf16.msra.mxu0 %v4486
        %6571 = vmatprep.subr.bf16.mxu0 %v4495
        %6572 = vmatpush1.bf16.msra.mxu0 %v4494
        %6573 = vmatprep.subr.bf16.mxu0 %v4503
        %6574 = vmatpush1.bf16.msra.mxu0 %v4502
        %6575 = vmatprep.subr.bf16.mxu0 %v4511
        %6576 = vmatpush1.bf16.msra.mxu0 %v4510
        %6577 = vmatprep.subr.bf16.mxu0 %v4519
        %6578 = vmatpush1.bf16.msra.mxu0 %v4518
        %6579 = vmatprep.subr.bf16.mxu0 %v4527
        %6580 = vmatpush1.bf16.msra.mxu0 %v4526
        %6581 = vmatprep.subr.bf16.mxu0 %v4535
        %6582 = vmatpush1.bf16.msra.mxu0 %v4534
        %6583 = vmatprep.subr.bf16.mxu0 %v4543
        %6584 = vmatpush1.bf16.msra.mxu0 %v4542
        %6585 = vmatprep.subr.bf16.mxu0 %v4551
        %6586 = vmatpush1.bf16.msra.mxu0 %v4550
        %6587 = vmatprep.subr.bf16.mxu0 %v4559
        %6588 = vmatpush1.bf16.msra.mxu0 %v4558
        %6589 = vmatprep.subr.bf16.mxu0 %v4567
        %6590 = vmatpush1.bf16.msra.mxu0 %v4566
        %6591 = vmatprep.subr.bf16.mxu0 %v4575
        %6592 = vmatpush1.bf16.msra.mxu0 %v4574
        %6593 = vmatprep.subr.bf16.mxu0 %v4583
        %6594 = vmatpush1.bf16.msra.mxu0 %v4582
        %6595 = vmatprep.mubr.bf16.mxu0 %v1365
        %6596 = vmatmul.mubr.bf16.gmra.mrb[0].mxu0 %v1364
        %v6597 = vpop.f32.mrb[0].mxu0
        %v6598 = vadd.f32 %v6557, %v6597
        %v6599 = vpop.f32.mrb[0].mxu0
        %v6600 = vadd.f32 %v6559, %v6599
        %v6601 = vpop.f32.mrb[0].mxu0
        %v6602 = vpop.f32.mrb[0].mxu0
        %6603 = vdwg.mxu0
        %6604 = vmatprep.subr.bf16.mxu0 %v4591
        %6605 = vmatpush1.bf16.msra.mxu0 %v4590
        %6606 = vmatprep.subr.bf16.mxu0 %v4599
        %6607 = vmatpush1.bf16.msra.mxu0 %v4598
        %6608 = vmatprep.subr.bf16.mxu0 %v4607
        %6609 = vmatpush1.bf16.msra.mxu0 %v4606
        %6610 = vmatprep.subr.bf16.mxu0 %v4615
        %6611 = vmatpush1.bf16.msra.mxu0 %v4614
        %6612 = vmatprep.subr.bf16.mxu0 %v4623
        %6613 = vmatpush1.bf16.msra.mxu0 %v4622
        %6614 = vmatprep.subr.bf16.mxu0 %v4631
        %6615 = vmatpush1.bf16.msra.mxu0 %v4630
        %6616 = vmatprep.subr.bf16.mxu0 %v4639
        %6617 = vmatpush1.bf16.msra.mxu0 %v4638
        %6618 = vmatprep.subr.bf16.mxu0 %v4647
        %6619 = vmatpush1.bf16.msra.mxu0 %v4646
        %6620 = vmatprep.subr.bf16.mxu0 %v4655
        %6621 = vmatpush1.bf16.msra.mxu0 %v4654
        %6622 = vmatprep.subr.bf16.mxu0 %v4663
        %6623 = vmatpush1.bf16.msra.mxu0 %v4662
        %6624 = vmatprep.subr.bf16.mxu0 %v4671
        %6625 = vmatpush1.bf16.msra.mxu0 %v4670
        %6626 = vmatprep.subr.bf16.mxu0 %v4679
        %6627 = vmatpush1.bf16.msra.mxu0 %v4678
        %6628 = vmatprep.subr.bf16.mxu0 %v4687
        %6629 = vmatpush1.bf16.msra.mxu0 %v4686
        %6630 = vmatprep.subr.bf16.mxu0 %v4695
        %6631 = vmatpush1.bf16.msra.mxu0 %v4694
        %6632 = vmatprep.subr.bf16.mxu0 %v4703
        %6633 = vmatpush1.bf16.msra.mxu0 %v4702
        %6634 = vmatprep.subr.bf16.mxu0 %v4711
        %6635 = vmatpush1.bf16.msra.mxu0 %v4710
        %6636 = vmatprep.mubr.bf16.mxu0 %v1367
        %6637 = vmatmul.mubr.bf16.gmra.mrb[0].mxu0 %v1366
        %v6638 = vpop.f32.mrb[0].mxu0
        %v6639 = vadd.f32 %v6598, %v6638
        %v6640 = vpop.f32.mrb[0].mxu0
        %v6641 = vadd.f32 %v6600, %v6640
        %v6642 = vpop.f32.mrb[0].mxu0
        %v6643 = vpop.f32.mrb[0].mxu0
        %6644 = vdwg.mxu0
        %6645 = vmatprep.subr.bf16.mxu0 %v4719
        %6646 = vmatpush1.bf16.msra.mxu0 %v4718
        %6647 = vmatprep.subr.bf16.mxu0 %v4727
        %6648 = vmatpush1.bf16.msra.mxu0 %v4726
        %6649 = vmatprep.subr.bf16.mxu0 %v4735
        %6650 = vmatpush1.bf16.msra.mxu0 %v4734
        %6651 = vmatprep.subr.bf16.mxu0 %v4743
        %6652 = vmatpush1.bf16.msra.mxu0 %v4742
        %6653 = vmatprep.subr.bf16.mxu0 %v4751
        %6654 = vmatpush1.bf16.msra.mxu0 %v4750
        %6655 = vmatprep.subr.bf16.mxu0 %v4759
        %6656 = vmatpush1.bf16.msra.mxu0 %v4758
        %6657 = vmatprep.subr.bf16.mxu0 %v4767
        %6658 = vmatpush1.bf16.msra.mxu0 %v4766
        %6659 = vmatprep.subr.bf16.mxu0 %v4775
        %6660 = vmatpush1.bf16.msra.mxu0 %v4774
        %6661 = vmatprep.subr.bf16.mxu0 %v4783
        %6662 = vmatpush1.bf16.msra.mxu0 %v4782
        %6663 = vmatprep.subr.bf16.mxu0 %v4791
        %6664 = vmatpush1.bf16.msra.mxu0 %v4790
        %6665 = vmatprep.subr.bf16.mxu0 %v4799
        %6666 = vmatpush1.bf16.msra.mxu0 %v4798
        %6667 = vmatprep.subr.bf16.mxu0 %v4807
        %6668 = vmatpush1.bf16.msra.mxu0 %v4806
        %6669 = vmatprep.subr.bf16.mxu0 %v4815
        %6670 = vmatpush1.bf16.msra.mxu0 %v4814
        %6671 = vmatprep.subr.bf16.mxu0 %v4823
        %6672 = vmatpush1.bf16.msra.mxu0 %v4822
        %6673 = vmatprep.subr.bf16.mxu0 %v4831
        %6674 = vmatpush1.bf16.msra.mxu0 %v4830
        %6675 = vmatprep.subr.bf16.mxu0 %v4839
        %6676 = vmatpush1.bf16.msra.mxu0 %v4838
        %6677 = vmatprep.mubr.bf16.mxu0 %v1369
        %6678 = vmatmul.mubr.bf16.gmra.mrb[0].mxu0 %v1368
        %v6679 = vpop.f32.mrb[0].mxu0
        %v6680 = vadd.f32 %v6639, %v6679
        %v6681 = vpop.f32.mrb[0].mxu0
        %v6682 = vadd.f32 %v6641, %v6681
        %v6683 = vpop.f32.mrb[0].mxu0
        %v6684 = vpop.f32.mrb[0].mxu0
        %6685 = vdwg.mxu0
        %6686 = vmatprep.subr.bf16.mxu0 %v4847
        %6687 = vmatpush1.bf16.msra.mxu0 %v4846
        %6688 = vmatprep.subr.bf16.mxu0 %v4855
        %6689 = vmatpush1.bf16.msra.mxu0 %v4854
        %6690 = vmatprep.subr.bf16.mxu0 %v4863
        %6691 = vmatpush1.bf16.msra.mxu0 %v4862
        %6692 = vmatprep.subr.bf16.mxu0 %v4871
        %6693 = vmatpush1.bf16.msra.mxu0 %v4870
        %6694 = vmatprep.subr.bf16.mxu0 %v4879
        %6695 = vmatpush1.bf16.msra.mxu0 %v4878
        %6696 = vmatprep.subr.bf16.mxu0 %v4887
        %6697 = vmatpush1.bf16.msra.mxu0 %v4886
        %6698 = vmatprep.subr.bf16.mxu0 %v4895
        %6699 = vmatpush1.bf16.msra.mxu0 %v4894
        %6700 = vmatprep.subr.bf16.mxu0 %v4903
        %6701 = vmatpush1.bf16.msra.mxu0 %v4902
        %6702 = vmatprep.subr.bf16.mxu0 %v4911
        %6703 = vmatpush1.bf16.msra.mxu0 %v4910
        %6704 = vmatprep.subr.bf16.mxu0 %v4919
        %6705 = vmatpush1.bf16.msra.mxu0 %v4918
        %6706 = vmatprep.subr.bf16.mxu0 %v4927
        %6707 = vmatpush1.bf16.msra.mxu0 %v4926
        %6708 = vmatprep.subr.bf16.mxu0 %v4935
        %6709 = vmatpush1.bf16.msra.mxu0 %v4934
        %6710 = vmatprep.subr.bf16.mxu0 %v4943
        %6711 = vmatpush1.bf16.msra.mxu0 %v4942
        %6712 = vmatprep.subr.bf16.mxu0 %v4951
        %6713 = vmatpush1.bf16.msra.mxu0 %v4950
        %6714 = vmatprep.subr.bf16.mxu0 %v4959
        %6715 = vmatpush1.bf16.msra.mxu0 %v4958
        %6716 = vmatprep.subr.bf16.mxu0 %v4967
        %6717 = vmatpush1.bf16.msra.mxu0 %v4966
        %6718 = vmatprep.mubr.bf16.mxu0 %v1371
        %6719 = vmatmul.mubr.bf16.gmra.mrb[0].mxu0 %v1370
        %v6720 = vpop.f32.mrb[0].mxu0
        %v6721 = vadd.f32 %v6680, %v6720
        %v6722 = vpop.f32.mrb[0].mxu0
        %v6723 = vadd.f32 %v6682, %v6722
        %v6724 = vpop.f32.mrb[0].mxu0
        %v6725 = vpop.f32.mrb[0].mxu0
        %6726 = vdwg.mxu0
        %6727 = vmatprep.subr.bf16.mxu0 %v4081
        %6728 = vmatpush1.bf16.msra.mxu0 %v4080
        %6729 = vmatprep.subr.bf16.mxu0 %v4089
        %6730 = vmatpush1.bf16.msra.mxu0 %v4088
        %6731 = vmatprep.subr.bf16.mxu0 %v4097
        %6732 = vmatpush1.bf16.msra.mxu0 %v4096
        %6733 = vmatprep.subr.bf16.mxu0 %v4105
        %6734 = vmatpush1.bf16.msra.mxu0 %v4104
        %6735 = vmatprep.subr.bf16.mxu0 %v4113
        %6736 = vmatpush1.bf16.msra.mxu0 %v4112
        %6737 = vmatprep.subr.bf16.mxu0 %v4121
        %6738 = vmatpush1.bf16.msra.mxu0 %v4120
        %6739 = vmatprep.subr.bf16.mxu0 %v4129
        %6740 = vmatpush1.bf16.msra.mxu0 %v4128
        %6741 = vmatprep.subr.bf16.mxu0 %v4137
        %6742 = vmatpush1.bf16.msra.mxu0 %v4136
        %6743 = vmatprep.subr.bf16.mxu0 %v4145
        %6744 = vmatpush1.bf16.msra.mxu0 %v4144
        %6745 = vmatprep.subr.bf16.mxu0 %v4153
        %6746 = vmatpush1.bf16.msra.mxu0 %v4152
        %6747 = vmatprep.subr.bf16.mxu0 %v4161
        %6748 = vmatpush1.bf16.msra.mxu0 %v4160
        %6749 = vmatprep.subr.bf16.mxu0 %v4169
        %6750 = vmatpush1.bf16.msra.mxu0 %v4168
        %6751 = vmatprep.subr.bf16.mxu0 %v4177
        %6752 = vmatpush1.bf16.msra.mxu0 %v4176
        %6753 = vmatprep.subr.bf16.mxu0 %v4185
        %6754 = vmatpush1.bf16.msra.mxu0 %v4184
        %6755 = vmatprep.subr.bf16.mxu0 %v4193
        %6756 = vmatpush1.bf16.msra.mxu0 %v4192
        %6757 = vmatprep.subr.bf16.mxu0 %v4201
        %6758 = vmatpush1.bf16.msra.mxu0 %v4200
        %6759 = vmatprep.mubr.bf16.mxu0 %v1359
        %6760 = vmatmul.mubr.bf16.gmra.mrb[0].mxu0 %v1358
        %v6761 = vpop.f32.mrb[0].mxu0
        %v6762 = vadd.f32 0.0, %v6761
        %v6763 = vpop.f32.mrb[0].mxu0
        %v6764 = vadd.f32 0.0, %v6763
        %v6765 = vpop.f32.mrb[0].mxu0
        %v6766 = vpop.f32.mrb[0].mxu0
        %6767 = vdwg.mxu0
        %6768 = vmatprep.subr.bf16.mxu0 %v4209
        %6769 = vmatpush1.bf16.msra.mxu0 %v4208
        %6770 = vmatprep.subr.bf16.mxu0 %v4217
        %6771 = vmatpush1.bf16.msra.mxu0 %v4216
        %6772 = vmatprep.subr.bf16.mxu0 %v4225
        %6773 = vmatpush1.bf16.msra.mxu0 %v4224
        %6774 = vmatprep.subr.bf16.mxu0 %v4233
        %6775 = vmatpush1.bf16.msra.mxu0 %v4232
        %6776 = vmatprep.subr.bf16.mxu0 %v4241
        %6777 = vmatpush1.bf16.msra.mxu0 %v4240
        %6778 = vmatprep.subr.bf16.mxu0 %v4249
        %6779 = vmatpush1.bf16.msra.mxu0 %v4248
        %6780 = vmatprep.subr.bf16.mxu0 %v4257
        %6781 = vmatpush1.bf16.msra.mxu0 %v4256
        %6782 = vmatprep.subr.bf16.mxu0 %v4265
        %6783 = vmatpush1.bf16.msra.mxu0 %v4264
        %6784 = vmatprep.subr.bf16.mxu0 %v4273
        %6785 = vmatpush1.bf16.msra.mxu0 %v4272
        %6786 = vmatprep.subr.bf16.mxu0 %v4281
        %6787 = vmatpush1.bf16.msra.mxu0 %v4280
        %6788 = vmatprep.subr.bf16.mxu0 %v4289
        %6789 = vmatpush1.bf16.msra.mxu0 %v4288
        %6790 = vmatprep.subr.bf16.mxu0 %v4297
        %6791 = vmatpush1.bf16.msra.mxu0 %v4296
        %6792 = vmatprep.subr.bf16.mxu0 %v4305
        %6793 = vmatpush1.bf16.msra.mxu0 %v4304
        %6794 = vmatprep.subr.bf16.mxu0 %v4313
        %6795 = vmatpush1.bf16.msra.mxu0 %v4312
        %6796 = vmatprep.subr.bf16.mxu0 %v4321
        %6797 = vmatpush1.bf16.msra.mxu0 %v4320
        %6798 = vmatprep.subr.bf16.mxu0 %v4329
        %6799 = vmatpush1.bf16.msra.mxu0 %v4328
        %6800 = vmatprep.mubr.bf16.mxu0 %v1361
        %6801 = vmatmul.mubr.bf16.gmra.mrb[0].mxu0 %v1360
        %v6802 = vpop.f32.mrb[0].mxu0
        %v6803 = vadd.f32 %v6762, %v6802
        %v6804 = vpop.f32.mrb[0].mxu0
        %v6805 = vadd.f32 %v6764, %v6804
        %v6806 = vpop.f32.mrb[0].mxu0
        %v6807 = vpop.f32.mrb[0].mxu0
        %6808 = vdwg.mxu0
        %6809 = vmatprep.subr.bf16.mxu0 %v4337
        %6810 = vmatpush1.bf16.msra.mxu0 %v4336
        %6811 = vmatprep.subr.bf16.mxu0 %v4345
        %6812 = vmatpush1.bf16.msra.mxu0 %v4344
        %6813 = vmatprep.subr.bf16.mxu0 %v4353
        %6814 = vmatpush1.bf16.msra.mxu0 %v4352
        %6815 = vmatprep.subr.bf16.mxu0 %v4361
        %6816 = vmatpush1.bf16.msra.mxu0 %v4360
        %6817 = vmatprep.subr.bf16.mxu0 %v4369
        %6818 = vmatpush1.bf16.msra.mxu0 %v4368
        %6819 = vmatprep.subr.bf16.mxu0 %v4377
        %6820 = vmatpush1.bf16.msra.mxu0 %v4376
        %6821 = vmatprep.subr.bf16.mxu0 %v4385
        %6822 = vmatpush1.bf16.msra.mxu0 %v4384
        %6823 = vmatprep.subr.bf16.mxu0 %v4393
        %6824 = vmatpush1.bf16.msra.mxu0 %v4392
        %6825 = vmatprep.subr.bf16.mxu0 %v4401
        %6826 = vmatpush1.bf16.msra.mxu0 %v4400
        %6827 = vmatprep.subr.bf16.mxu0 %v4409
        %6828 = vmatpush1.bf16.msra.mxu0 %v4408
        %6829 = vmatprep.subr.bf16.mxu0 %v4417
        %6830 = vmatpush1.bf16.msra.mxu0 %v4416
        %6831 = vmatprep.subr.bf16.mxu0 %v4425
        %6832 = vmatpush1.bf16.msra.mxu0 %v4424
        %6833 = vmatprep.subr.bf16.mxu0 %v4433
        %6834 = vmatpush1.bf16.msra.mxu0 %v4432
        %6835 = vmatprep.subr.bf16.mxu0 %v4441
        %6836 = vmatpush1.bf16.msra.mxu0 %v4440
        %6837 = vmatprep.subr.bf16.mxu0 %v4449
        %6838 = vmatpush1.bf16.msra.mxu0 %v4448
        %6839 = vmatprep.subr.bf16.mxu0 %v4457
        %6840 = vmatpush1.bf16.msra.mxu0 %v4456
        %6841 = vmatprep.mubr.bf16.mxu0 %v1363
        %6842 = vmatmul.mubr.bf16.gmra.mrb[0].mxu0 %v1362
        %v6843 = vpop.f32.mrb[0].mxu0
        %v6844 = vadd.f32 %v6803, %v6843
        %v6845 = vpop.f32.mrb[0].mxu0
        %v6846 = vadd.f32 %v6805, %v6845
        %v6847 = vpop.f32.mrb[0].mxu0
        %v6848 = vpop.f32.mrb[0].mxu0
        %6849 = vdwg.mxu0
        %6850 = vmatprep.subr.bf16.mxu0 %v4465
        %6851 = vmatpush1.bf16.msra.mxu0 %v4464
        %6852 = vmatprep.subr.bf16.mxu0 %v4473
        %6853 = vmatpush1.bf16.msra.mxu0 %v4472
        %6854 = vmatprep.subr.bf16.mxu0 %v4481
        %6855 = vmatpush1.bf16.msra.mxu0 %v4480
        %6856 = vmatprep.subr.bf16.mxu0 %v4489
        %6857 = vmatpush1.bf16.msra.mxu0 %v4488
        %6858 = vmatprep.subr.bf16.mxu0 %v4497
        %6859 = vmatpush1.bf16.msra.mxu0 %v4496
        %6860 = vmatprep.subr.bf16.mxu0 %v4505
        %6861 = vmatpush1.bf16.msra.mxu0 %v4504
        %6862 = vmatprep.subr.bf16.mxu0 %v4513
        %6863 = vmatpush1.bf16.msra.mxu0 %v4512
        %6864 = vmatprep.subr.bf16.mxu0 %v4521
        %6865 = vmatpush1.bf16.msra.mxu0 %v4520
        %6866 = vmatprep.subr.bf16.mxu0 %v4529
        %6867 = vmatpush1.bf16.msra.mxu0 %v4528
        %6868 = vmatprep.subr.bf16.mxu0 %v4537
        %6869 = vmatpush1.bf16.msra.mxu0 %v4536
        %6870 = vmatprep.subr.bf16.mxu0 %v4545
        %6871 = vmatpush1.bf16.msra.mxu0 %v4544
        %6872 = vmatprep.subr.bf16.mxu0 %v4553
        %6873 = vmatpush1.bf16.msra.mxu0 %v4552
        %6874 = vmatprep.subr.bf16.mxu0 %v4561
        %6875 = vmatpush1.bf16.msra.mxu0 %v4560
        %6876 = vmatprep.subr.bf16.mxu0 %v4569
        %6877 = vmatpush1.bf16.msra.mxu0 %v4568
        %6878 = vmatprep.subr.bf16.mxu0 %v4577
        %6879 = vmatpush1.bf16.msra.mxu0 %v4576
        %6880 = vmatprep.subr.bf16.mxu0 %v4585
        %6881 = vmatpush1.bf16.msra.mxu0 %v4584
        %6882 = vmatprep.mubr.bf16.mxu0 %v1365
        %6883 = vmatmul.mubr.bf16.gmra.mrb[0].mxu0 %v1364
        %v6884 = vpop.f32.mrb[0].mxu0
        %v6885 = vadd.f32 %v6844, %v6884
        %v6886 = vpop.f32.mrb[0].mxu0
        %v6887 = vadd.f32 %v6846, %v6886
        %v6888 = vpop.f32.mrb[0].mxu0
        %v6889 = vpop.f32.mrb[0].mxu0
        %6890 = vdwg.mxu0
        %6891 = vmatprep.subr.bf16.mxu0 %v4593
        %6892 = vmatpush1.bf16.msra.mxu0 %v4592
        %6893 = vmatprep.subr.bf16.mxu0 %v4601
        %6894 = vmatpush1.bf16.msra.mxu0 %v4600
        %6895 = vmatprep.subr.bf16.mxu0 %v4609
        %6896 = vmatpush1.bf16.msra.mxu0 %v4608
        %6897 = vmatprep.subr.bf16.mxu0 %v4617
        %6898 = vmatpush1.bf16.msra.mxu0 %v4616
        %6899 = vmatprep.subr.bf16.mxu0 %v4625
        %6900 = vmatpush1.bf16.msra.mxu0 %v4624
        %6901 = vmatprep.subr.bf16.mxu0 %v4633
        %6902 = vmatpush1.bf16.msra.mxu0 %v4632
        %6903 = vmatprep.subr.bf16.mxu0 %v4641
        %6904 = vmatpush1.bf16.msra.mxu0 %v4640
        %6905 = vmatprep.subr.bf16.mxu0 %v4649
        %6906 = vmatpush1.bf16.msra.mxu0 %v4648
        %6907 = vmatprep.subr.bf16.mxu0 %v4657
        %6908 = vmatpush1.bf16.msra.mxu0 %v4656
        %6909 = vmatprep.subr.bf16.mxu0 %v4665
        %6910 = vmatpush1.bf16.msra.mxu0 %v4664
        %6911 = vmatprep.subr.bf16.mxu0 %v4673
        %6912 = vmatpush1.bf16.msra.mxu0 %v4672
        %6913 = vmatprep.subr.bf16.mxu0 %v4681
        %6914 = vmatpush1.bf16.msra.mxu0 %v4680
        %6915 = vmatprep.subr.bf16.mxu0 %v4689
        %6916 = vmatpush1.bf16.msra.mxu0 %v4688
        %6917 = vmatprep.subr.bf16.mxu0 %v4697
        %6918 = vmatpush1.bf16.msra.mxu0 %v4696
        %6919 = vmatprep.subr.bf16.mxu0 %v4705
        %6920 = vmatpush1.bf16.msra.mxu0 %v4704
        %6921 = vmatprep.subr.bf16.mxu0 %v4713
        %6922 = vmatpush1.bf16.msra.mxu0 %v4712
        %6923 = vmatprep.mubr.bf16.mxu0 %v1367
        %6924 = vmatmul.mubr.bf16.gmra.mrb[0].mxu0 %v1366
        %v6925 = vpop.f32.mrb[0].mxu0
        %v6926 = vadd.f32 %v6885, %v6925
        %v6927 = vpop.f32.mrb[0].mxu0
        %v6928 = vadd.f32 %v6887, %v6927
        %v6929 = vpop.f32.mrb[0].mxu0
        %v6930 = vpop.f32.mrb[0].mxu0
        %6931 = vdwg.mxu0
        %6932 = vmatprep.subr.bf16.mxu0 %v4721
        %6933 = vmatpush1.bf16.msra.mxu0 %v4720
        %6934 = vmatprep.subr.bf16.mxu0 %v4729
        %6935 = vmatpush1.bf16.msra.mxu0 %v4728
        %6936 = vmatprep.subr.bf16.mxu0 %v4737
        %6937 = vmatpush1.bf16.msra.mxu0 %v4736
        %6938 = vmatprep.subr.bf16.mxu0 %v4745
        %6939 = vmatpush1.bf16.msra.mxu0 %v4744
        %6940 = vmatprep.subr.bf16.mxu0 %v4753
        %6941 = vmatpush1.bf16.msra.mxu0 %v4752
        %6942 = vmatprep.subr.bf16.mxu0 %v4761
        %6943 = vmatpush1.bf16.msra.mxu0 %v4760
        %6944 = vmatprep.subr.bf16.mxu0 %v4769
        %6945 = vmatpush1.bf16.msra.mxu0 %v4768
        %6946 = vmatprep.subr.bf16.mxu0 %v4777
        %6947 = vmatpush1.bf16.msra.mxu0 %v4776
        %6948 = vmatprep.subr.bf16.mxu0 %v4785
        %6949 = vmatpush1.bf16.msra.mxu0 %v4784
        %6950 = vmatprep.subr.bf16.mxu0 %v4793
        %6951 = vmatpush1.bf16.msra.mxu0 %v4792
        %6952 = vmatprep.subr.bf16.mxu0 %v4801
        %6953 = vmatpush1.bf16.msra.mxu0 %v4800
        %6954 = vmatprep.subr.bf16.mxu0 %v4809
        %6955 = vmatpush1.bf16.msra.mxu0 %v4808
        %6956 = vmatprep.subr.bf16.mxu0 %v4817
        %6957 = vmatpush1.bf16.msra.mxu0 %v4816
        %6958 = vmatprep.subr.bf16.mxu0 %v4825
        %6959 = vmatpush1.bf16.msra.mxu0 %v4824
        %6960 = vmatprep.subr.bf16.mxu0 %v4833
        %6961 = vmatpush1.bf16.msra.mxu0 %v4832
        %6962 = vmatprep.subr.bf16.mxu0 %v4841
        %6963 = vmatpush1.bf16.msra.mxu0 %v4840
        %6964 = vmatprep.mubr.bf16.mxu0 %v1369
        %6965 = vmatmul.mubr.bf16.gmra.mrb[0].mxu0 %v1368
        %v6966 = vpop.f32.mrb[0].mxu0
        %v6967 = vadd.f32 %v6926, %v6966
        %v6968 = vpop.f32.mrb[0].mxu0
        %v6969 = vadd.f32 %v6928, %v6968
        %v6970 = vpop.f32.mrb[0].mxu0
        %v6971 = vpop.f32.mrb[0].mxu0
        %6972 = vdwg.mxu0
        %6973 = vmatprep.subr.bf16.mxu0 %v4849
        %6974 = vmatpush1.bf16.msra.mxu0 %v4848
        %6975 = vmatprep.subr.bf16.mxu0 %v4857
        %6976 = vmatpush1.bf16.msra.mxu0 %v4856
        %6977 = vmatprep.subr.bf16.mxu0 %v4865
        %6978 = vmatpush1.bf16.msra.mxu0 %v4864
        %6979 = vmatprep.subr.bf16.mxu0 %v4873
        %6980 = vmatpush1.bf16.msra.mxu0 %v4872
        %6981 = vmatprep.subr.bf16.mxu0 %v4881
        %6982 = vmatpush1.bf16.msra.mxu0 %v4880
        %6983 = vmatprep.subr.bf16.mxu0 %v4889
        %6984 = vmatpush1.bf16.msra.mxu0 %v4888
        %6985 = vmatprep.subr.bf16.mxu0 %v4897
        %6986 = vmatpush1.bf16.msra.mxu0 %v4896
        %6987 = vmatprep.subr.bf16.mxu0 %v4905
        %6988 = vmatpush1.bf16.msra.mxu0 %v4904
        %6989 = vmatprep.subr.bf16.mxu0 %v4913
        %6990 = vmatpush1.bf16.msra.mxu0 %v4912
        %6991 = vmatprep.subr.bf16.mxu0 %v4921
        %6992 = vmatpush1.bf16.msra.mxu0 %v4920
        %6993 = vmatprep.subr.bf16.mxu0 %v4929
        %6994 = vmatpush1.bf16.msra.mxu0 %v4928
        %6995 = vmatprep.subr.bf16.mxu0 %v4937
        %6996 = vmatpush1.bf16.msra.mxu0 %v4936
        %6997 = vmatprep.subr.bf16.mxu0 %v4945
        %6998 = vmatpush1.bf16.msra.mxu0 %v4944
        %6999 = vmatprep.subr.bf16.mxu0 %v4953
        %7000 = vmatpush1.bf16.msra.mxu0 %v4952
        %7001 = vmatprep.subr.bf16.mxu0 %v4961
        %7002 = vmatpush1.bf16.msra.mxu0 %v4960
        %7003 = vmatprep.subr.bf16.mxu0 %v4969
        %7004 = vmatpush1.bf16.msra.mxu0 %v4968
        %7005 = vmatprep.mubr.bf16.mxu0 %v1371
        %7006 = vmatmul.mubr.bf16.gmra.mrb[0].mxu0 %v1370
        %v7007 = vpop.f32.mrb[0].mxu0
        %v7008 = vadd.f32 %v6967, %v7007
        %v7009 = vpop.f32.mrb[0].mxu0
        %v7010 = vadd.f32 %v6969, %v7009
        %v7011 = vpop.f32.mrb[0].mxu0
        %v7012 = vpop.f32.mrb[0].mxu0
        %7013 = vdwg.mxu0
        %v7014 = vadd.f32 %v426, %v6147
        %v7015 = vadd.f32 %v427, %v6149
        %v7016 = vadd.f32 %v428, %v6434
        %v7017 = vadd.f32 %v429, %v6436
        %v7018 = vadd.f32 %v430, %v6721
        %v7019 = vadd.f32 %v431, %v6723
        %v7020 = vadd.f32 %v432, %v7008
        %v7021 = vadd.f32 %v433, %v7010
        %7022 = vst [vmem:[#allocation2] sm:$0xff] %v7014
        %7023 = vst [vmem:[#allocation2 + $0x8] sm:$0xff] %v7015
        %7024 = vst [vmem:[#allocation2 + $0x10] sm:$0xff] %v7016
        %7025 = vst [vmem:[#allocation2 + $0x18] sm:$0xff] %v7017
        %7026 = vst [vmem:[#allocation2 + $0x20] sm:$0xff] %v7018
        %7027 = vst [vmem:[#allocation2 + $0x28] sm:$0xff] %v7019
        %7028 = vst [vmem:[#allocation2 + $0x30] sm:$0xff] %v7020
        %7029 = vst [vmem:[#allocation2 + $0x38] sm:$0xff] %v7021
        %p7030 = scmp.eq.s32.totalorder %s32, 6
        // Predicated region
        $region81: #{tpu_custom_call.1} parent=47 // pred_check
          %p7031 = pneg %p7030
        $region82: #{tpu_custom_call.1} parent=47 // pred_check_branch
          %7033 = sbr.rel (%p7031) target = $region84
        $region83: #{tpu_custom_call.1} parent=47 // pred_region
          %v7034 = vld [vmem:[#allocation2] sm:$0xff]
          %v7035 = vld [vmem:[#allocation2 + $0x8] sm:$0xff]
          %v7036 = vld [vmem:[#allocation2 + $0x10] sm:$0xff]
          %v7037 = vld [vmem:[#allocation2 + $0x18] sm:$0xff]
          %v7038 = vld [vmem:[#allocation2 + $0x20] sm:$0xff]
          %v7039 = vld [vmem:[#allocation2 + $0x28] sm:$0xff]
          %v7040 = vld [vmem:[#allocation2 + $0x30] sm:$0xff]
          %v7041 = vld [vmem:[#allocation2 + $0x38] sm:$0xff]
          %v7042 = vld [vmem:[#allocation8] sm:$0xff]
          %v7044 = vlaneseq
          %v7045 = vshrl.u32 %v7044, 7
          %v7046 = vsub.s32 0, %v7045
          %v7047 = vrot.slane %v7042, %v7046
          %v7048 = vlaneseq
          %v7049 = vshrl.u32 %v7048, 7
          %v7050 = vsub.s32 1, %v7049
          %v7051 = vrot.slane %v7042, %v7050
          %v7052 = vlaneseq
          %v7053 = vshrl.u32 %v7052, 7
          %v7054 = vsub.s32 2, %v7053
          %v7055 = vrot.slane %v7042, %v7054
          %v7056 = vlaneseq
          %v7057 = vshrl.u32 %v7056, 7
          %v7058 = vsub.s32 3, %v7057
          %v7059 = vrot.slane %v7042, %v7058
          %v7060 = vlaneseq
          %v7061 = vshrl.u32 %v7060, 7
          %v7062 = vsub.s32 4, %v7061
          %v7063 = vrot.slane %v7042, %v7062
          %v7064 = vlaneseq
          %v7065 = vshrl.u32 %v7064, 7
          %v7066 = vsub.s32 5, %v7065
          %v7067 = vrot.slane %v7042, %v7066
          %v7068 = vlaneseq
          %v7069 = vshrl.u32 %v7068, 7
          %v7070 = vsub.s32 6, %v7069
          %v7071 = vrot.slane %v7042, %v7070
          %v7072 = vlaneseq
          %v7073 = vshrl.u32 %v7072, 7
          %v7074 = vsub.s32 7, %v7073
          %v7075 = vrot.slane %v7042, %v7074
          %v7084 = vadd.f32 %v7034, %v7047
          %v7085 = vadd.f32 %v7035, %v7051
          %v7086 = vadd.f32 %v7036, %v7055
          %v7087 = vadd.f32 %v7037, %v7059
          %v7088 = vadd.f32 %v7038, %v7063
          %v7089 = vadd.f32 %v7039, %v7067
          %v7090 = vadd.f32 %v7040, %v7071
          %v7091 = vadd.f32 %v7041, %v7075
          %v7092 = vmax.f32 %v7084, 0.0
          %v7093 = vmax.f32 %v7085, 0.0
          %v7094 = vmax.f32 %v7086, 0.0
          %v7095 = vmax.f32 %v7087, 0.0
          %v7096 = vmax.f32 %v7088, 0.0
          %v7097 = vmax.f32 %v7089, 0.0
          %v7098 = vmax.f32 %v7090, 0.0
          %v7099 = vmax.f32 %v7091, 0.0
          %v7100 = vpack.c.bf16 %v7092, %v7092
          %v7101 = vpack.c.bf16 %v7093, %v7093
          %v7102 = vpack.c.bf16 %v7094, %v7094
          %v7103 = vpack.c.bf16 %v7095, %v7095
          %v7104 = vpack.c.bf16 %v7096, %v7096
          %v7105 = vpack.c.bf16 %v7097, %v7097
          %v7106 = vpack.c.bf16 %v7098, %v7098
          %v7107 = vpack.c.bf16 %v7099, %v7099
          %v7108 = vld [vmem:[#allocation9] sm:$0xff]
          %v7109 = vld [vmem:[#allocation9 + $0x8] sm:$0xff]
          %v7110 = vld [vmem:[#allocation9 + $0x10] sm:$0xff]
          %v7111 = vld [vmem:[#allocation9 + $0x18] sm:$0xff]
          %v7112 = vld [vmem:[#allocation9 + $0x20] sm:$0xff]
          %v7113 = vld [vmem:[#allocation9 + $0x28] sm:$0xff]
          %v7114 = vld [vmem:[#allocation9 + $0x30] sm:$0xff]
          %v7115 = vld [vmem:[#allocation9 + $0x38] sm:$0xff]
          %v7116 = vld [vmem:[#allocation9 + $0x40] sm:$0xff]
          %v7117 = vld [vmem:[#allocation9 + $0x48] sm:$0xff]
          %v7118 = vld [vmem:[#allocation9 + $0x50] sm:$0xff]
          %v7119 = vld [vmem:[#allocation9 + $0x58] sm:$0xff]
          %v7120 = vld [vmem:[#allocation9 + $0x60] sm:$0xff]
          %v7121 = vld [vmem:[#allocation9 + $0x68] sm:$0xff]
          %v7122 = vld [vmem:[#allocation9 + $0x70] sm:$0xff]
          %v7123 = vld [vmem:[#allocation9 + $0x78] sm:$0xff]
          %v7124 = vld [vmem:[#allocation9 + $0x80] sm:$0xff]
          %v7125 = vld [vmem:[#allocation9 + $0x88] sm:$0xff]
          %v7126 = vld [vmem:[#allocation9 + $0x90] sm:$0xff]
          %v7127 = vld [vmem:[#allocation9 + $0x98] sm:$0xff]
          %v7128 = vld [vmem:[#allocation9 + $0xa0] sm:$0xff]
          %v7129 = vld [vmem:[#allocation9 + $0xa8] sm:$0xff]
          %v7130 = vld [vmem:[#allocation9 + $0xb0] sm:$0xff]
          %v7131 = vld [vmem:[#allocation9 + $0xb8] sm:$0xff]
          %v7132 = vld [vmem:[#allocation9 + $0xc0] sm:$0xff]
          %v7133 = vld [vmem:[#allocation9 + $0xc8] sm:$0xff]
          %v7134 = vld [vmem:[#allocation9 + $0xd0] sm:$0xff]
          %v7135 = vld [vmem:[#allocation9 + $0xd8] sm:$0xff]
          %v7136 = vld [vmem:[#allocation9 + $0xe0] sm:$0xff]
          %v7137 = vld [vmem:[#allocation9 + $0xe8] sm:$0xff]
          %v7138 = vld [vmem:[#allocation9 + $0xf0] sm:$0xff]
          %v7139 = vld [vmem:[#allocation9 + $0xf8] sm:$0xff]
          %v7140 = vld [vmem:[#allocation9 + $0x100] sm:$0xff]
          %v7141 = vld [vmem:[#allocation9 + $0x108] sm:$0xff]
          %v7142 = vld [vmem:[#allocation9 + $0x110] sm:$0xff]
          %v7143 = vld [vmem:[#allocation9 + $0x118] sm:$0xff]
          %v7144 = vld [vmem:[#allocation9 + $0x120] sm:$0xff]
          %v7145 = vld [vmem:[#allocation9 + $0x128] sm:$0xff]
          %v7146 = vld [vmem:[#allocation9 + $0x130] sm:$0xff]
          %v7147 = vld [vmem:[#allocation9 + $0x138] sm:$0xff]
          %v7148 = vld [vmem:[#allocation9 + $0x140] sm:$0xff]
          %v7149 = vld [vmem:[#allocation9 + $0x148] sm:$0xff]
          %v7150 = vld [vmem:[#allocation9 + $0x150] sm:$0xff]
          %v7151 = vld [vmem:[#allocation9 + $0x158] sm:$0xff]
          %v7152 = vld [vmem:[#allocation9 + $0x160] sm:$0xff]
          %v7153 = vld [vmem:[#allocation9 + $0x168] sm:$0xff]
          %v7154 = vld [vmem:[#allocation9 + $0x170] sm:$0xff]
          %v7155 = vld [vmem:[#allocation9 + $0x178] sm:$0xff]
          %v7156 = vld [vmem:[#allocation9 + $0x180] sm:$0xff]
          %v7157 = vld [vmem:[#allocation9 + $0x188] sm:$0xff]
          %v7158 = vld [vmem:[#allocation9 + $0x190] sm:$0xff]
          %v7159 = vld [vmem:[#allocation9 + $0x198] sm:$0xff]
          %v7160 = vld [vmem:[#allocation9 + $0x1a0] sm:$0xff]
          %v7161 = vld [vmem:[#allocation9 + $0x1a8] sm:$0xff]
          %v7162 = vld [vmem:[#allocation9 + $0x1b0] sm:$0xff]
          %v7163 = vld [vmem:[#allocation9 + $0x1b8] sm:$0xff]
          %v7164 = vld [vmem:[#allocation9 + $0x1c0] sm:$0xff]
          %v7165 = vld [vmem:[#allocation9 + $0x1c8] sm:$0xff]
          %v7166 = vld [vmem:[#allocation9 + $0x1d0] sm:$0xff]
          %v7167 = vld [vmem:[#allocation9 + $0x1d8] sm:$0xff]
          %v7168 = vld [vmem:[#allocation9 + $0x1e0] sm:$0xff]
          %v7169 = vld [vmem:[#allocation9 + $0x1e8] sm:$0xff]
          %v7170 = vld [vmem:[#allocation9 + $0x1f0] sm:$0xff]
          %v7171 = vld [vmem:[#allocation9 + $0x1f8] sm:$0xff]
          %v7172 = vld [vmem:[#allocation9 + $0x200] sm:$0xff]
          %v7173 = vld [vmem:[#allocation9 + $0x208] sm:$0xff]
          %v7174 = vld [vmem:[#allocation9 + $0x210] sm:$0xff]
          %v7175 = vld [vmem:[#allocation9 + $0x218] sm:$0xff]
          %v7176 = vld [vmem:[#allocation9 + $0x220] sm:$0xff]
          %v7177 = vld [vmem:[#allocation9 + $0x228] sm:$0xff]
          %v7178 = vld [vmem:[#allocation9 + $0x230] sm:$0xff]
          %v7179 = vld [vmem:[#allocation9 + $0x238] sm:$0xff]
          %v7180 = vld [vmem:[#allocation9 + $0x240] sm:$0xff]
          %v7181 = vld [vmem:[#allocation9 + $0x248] sm:$0xff]
          %v7182 = vld [vmem:[#allocation9 + $0x250] sm:$0xff]
          %v7183 = vld [vmem:[#allocation9 + $0x258] sm:$0xff]
          %v7184 = vld [vmem:[#allocation9 + $0x260] sm:$0xff]
          %v7185 = vld [vmem:[#allocation9 + $0x268] sm:$0xff]
          %v7186 = vld [vmem:[#allocation9 + $0x270] sm:$0xff]
          %v7187 = vld [vmem:[#allocation9 + $0x278] sm:$0xff]
          %v7188 = vld [vmem:[#allocation9 + $0x280] sm:$0xff]
          %v7189 = vld [vmem:[#allocation9 + $0x288] sm:$0xff]
          %v7190 = vld [vmem:[#allocation9 + $0x290] sm:$0xff]
          %v7191 = vld [vmem:[#allocation9 + $0x298] sm:$0xff]
          %v7192 = vld [vmem:[#allocation9 + $0x2a0] sm:$0xff]
          %v7193 = vld [vmem:[#allocation9 + $0x2a8] sm:$0xff]
          %v7194 = vld [vmem:[#allocation9 + $0x2b0] sm:$0xff]
          %v7195 = vld [vmem:[#allocation9 + $0x2b8] sm:$0xff]
          %v7196 = vld [vmem:[#allocation9 + $0x2c0] sm:$0xff]
          %v7197 = vld [vmem:[#allocation9 + $0x2c8] sm:$0xff]
          %v7198 = vld [vmem:[#allocation9 + $0x2d0] sm:$0xff]
          %v7199 = vld [vmem:[#allocation9 + $0x2d8] sm:$0xff]
          %v7200 = vld [vmem:[#allocation9 + $0x2e0] sm:$0xff]
          %v7201 = vld [vmem:[#allocation9 + $0x2e8] sm:$0xff]
          %v7202 = vld [vmem:[#allocation9 + $0x2f0] sm:$0xff]
          %v7203 = vld [vmem:[#allocation9 + $0x2f8] sm:$0xff]
          %v7204 = vld [vmem:[#allocation9 + $0x300] sm:$0xff]
          %v7205 = vld [vmem:[#allocation9 + $0x308] sm:$0xff]
          %v7206 = vld [vmem:[#allocation9 + $0x310] sm:$0xff]
          %v7207 = vld [vmem:[#allocation9 + $0x318] sm:$0xff]
          %v7208 = vld [vmem:[#allocation9 + $0x320] sm:$0xff]
          %v7209 = vld [vmem:[#allocation9 + $0x328] sm:$0xff]
          %v7210 = vld [vmem:[#allocation9 + $0x330] sm:$0xff]
          %v7211 = vld [vmem:[#allocation9 + $0x338] sm:$0xff]
          %v7212 = vld [vmem:[#allocation9 + $0x340] sm:$0xff]
          %v7213 = vld [vmem:[#allocation9 + $0x348] sm:$0xff]
          %v7214 = vld [vmem:[#allocation9 + $0x350] sm:$0xff]
          %v7215 = vld [vmem:[#allocation9 + $0x358] sm:$0xff]
          %v7216 = vld [vmem:[#allocation9 + $0x360] sm:$0xff]
          %v7217 = vld [vmem:[#allocation9 + $0x368] sm:$0xff]
          %v7218 = vld [vmem:[#allocation9 + $0x370] sm:$0xff]
          %v7219 = vld [vmem:[#allocation9 + $0x378] sm:$0xff]
          %v7220 = vld [vmem:[#allocation9 + $0x380] sm:$0xff]
          %v7221 = vld [vmem:[#allocation9 + $0x388] sm:$0xff]
          %v7222 = vld [vmem:[#allocation9 + $0x390] sm:$0xff]
          %v7223 = vld [vmem:[#allocation9 + $0x398] sm:$0xff]
          %v7224 = vld [vmem:[#allocation9 + $0x3a0] sm:$0xff]
          %v7225 = vld [vmem:[#allocation9 + $0x3a8] sm:$0xff]
          %v7226 = vld [vmem:[#allocation9 + $0x3b0] sm:$0xff]
          %v7227 = vld [vmem:[#allocation9 + $0x3b8] sm:$0xff]
          %v7228 = vld [vmem:[#allocation9 + $0x3c0] sm:$0xff]
          %v7229 = vld [vmem:[#allocation9 + $0x3c8] sm:$0xff]
          %v7230 = vld [vmem:[#allocation9 + $0x3d0] sm:$0xff]
          %v7231 = vld [vmem:[#allocation9 + $0x3d8] sm:$0xff]
          %v7232 = vld [vmem:[#allocation9 + $0x3e0] sm:$0xff]
          %v7233 = vld [vmem:[#allocation9 + $0x3e8] sm:$0xff]
          %v7234 = vld [vmem:[#allocation9 + $0x3f0] sm:$0xff]
          %v7235 = vld [vmem:[#allocation9 + $0x3f8] sm:$0xff]
          %v7236 = vld [vmem:[#allocation9 + $0x400] sm:$0xff]
          %v7237 = vld [vmem:[#allocation9 + $0x408] sm:$0xff]
          %v7238 = vld [vmem:[#allocation9 + $0x410] sm:$0xff]
          %v7239 = vld [vmem:[#allocation9 + $0x418] sm:$0xff]
          %v7240 = vld [vmem:[#allocation9 + $0x420] sm:$0xff]
          %v7241 = vld [vmem:[#allocation9 + $0x428] sm:$0xff]
          %v7242 = vld [vmem:[#allocation9 + $0x430] sm:$0xff]
          %v7243 = vld [vmem:[#allocation9 + $0x438] sm:$0xff]
          %v7244 = vld [vmem:[#allocation9 + $0x440] sm:$0xff]
          %v7245 = vld [vmem:[#allocation9 + $0x448] sm:$0xff]
          %v7246 = vld [vmem:[#allocation9 + $0x450] sm:$0xff]
          %v7247 = vld [vmem:[#allocation9 + $0x458] sm:$0xff]
          %v7248 = vld [vmem:[#allocation9 + $0x460] sm:$0xff]
          %v7249 = vld [vmem:[#allocation9 + $0x468] sm:$0xff]
          %v7250 = vld [vmem:[#allocation9 + $0x470] sm:$0xff]
          %v7251 = vld [vmem:[#allocation9 + $0x478] sm:$0xff]
          %v7252 = vld [vmem:[#allocation9 + $0x480] sm:$0xff]
          %v7253 = vld [vmem:[#allocation9 + $0x488] sm:$0xff]
          %v7254 = vld [vmem:[#allocation9 + $0x490] sm:$0xff]
          %v7255 = vld [vmem:[#allocation9 + $0x498] sm:$0xff]
          %v7256 = vld [vmem:[#allocation9 + $0x4a0] sm:$0xff]
          %v7257 = vld [vmem:[#allocation9 + $0x4a8] sm:$0xff]
          %v7258 = vld [vmem:[#allocation9 + $0x4b0] sm:$0xff]
          %v7259 = vld [vmem:[#allocation9 + $0x4b8] sm:$0xff]
          %v7260 = vld [vmem:[#allocation9 + $0x4c0] sm:$0xff]
          %v7261 = vld [vmem:[#allocation9 + $0x4c8] sm:$0xff]
          %v7262 = vld [vmem:[#allocation9 + $0x4d0] sm:$0xff]
          %v7263 = vld [vmem:[#allocation9 + $0x4d8] sm:$0xff]
          %v7264 = vld [vmem:[#allocation9 + $0x4e0] sm:$0xff]
          %v7265 = vld [vmem:[#allocation9 + $0x4e8] sm:$0xff]
          %v7266 = vld [vmem:[#allocation9 + $0x4f0] sm:$0xff]
          %v7267 = vld [vmem:[#allocation9 + $0x4f8] sm:$0xff]
          %v7268 = vld [vmem:[#allocation9 + $0x500] sm:$0xff]
          %v7269 = vld [vmem:[#allocation9 + $0x508] sm:$0xff]
          %v7270 = vld [vmem:[#allocation9 + $0x510] sm:$0xff]
          %v7271 = vld [vmem:[#allocation9 + $0x518] sm:$0xff]
          %v7272 = vld [vmem:[#allocation9 + $0x520] sm:$0xff]
          %v7273 = vld [vmem:[#allocation9 + $0x528] sm:$0xff]
          %v7274 = vld [vmem:[#allocation9 + $0x530] sm:$0xff]
          %v7275 = vld [vmem:[#allocation9 + $0x538] sm:$0xff]
          %v7276 = vld [vmem:[#allocation9 + $0x540] sm:$0xff]
          %v7277 = vld [vmem:[#allocation9 + $0x548] sm:$0xff]
          %v7278 = vld [vmem:[#allocation9 + $0x550] sm:$0xff]
          %v7279 = vld [vmem:[#allocation9 + $0x558] sm:$0xff]
          %v7280 = vld [vmem:[#allocation9 + $0x560] sm:$0xff]
          %v7281 = vld [vmem:[#allocation9 + $0x568] sm:$0xff]
          %v7282 = vld [vmem:[#allocation9 + $0x570] sm:$0xff]
          %v7283 = vld [vmem:[#allocation9 + $0x578] sm:$0xff]
          %v7284 = vld [vmem:[#allocation9 + $0x580] sm:$0xff]
          %v7285 = vld [vmem:[#allocation9 + $0x588] sm:$0xff]
          %v7286 = vld [vmem:[#allocation9 + $0x590] sm:$0xff]
          %v7287 = vld [vmem:[#allocation9 + $0x598] sm:$0xff]
          %v7288 = vld [vmem:[#allocation9 + $0x5a0] sm:$0xff]
          %v7289 = vld [vmem:[#allocation9 + $0x5a8] sm:$0xff]
          %v7290 = vld [vmem:[#allocation9 + $0x5b0] sm:$0xff]
          %v7291 = vld [vmem:[#allocation9 + $0x5b8] sm:$0xff]
          %v7292 = vld [vmem:[#allocation9 + $0x5c0] sm:$0xff]
          %v7293 = vld [vmem:[#allocation9 + $0x5c8] sm:$0xff]
          %v7294 = vld [vmem:[#allocation9 + $0x5d0] sm:$0xff]
          %v7295 = vld [vmem:[#allocation9 + $0x5d8] sm:$0xff]
          %v7296 = vld [vmem:[#allocation9 + $0x5e0] sm:$0xff]
          %v7297 = vld [vmem:[#allocation9 + $0x5e8] sm:$0xff]
          %v7298 = vld [vmem:[#allocation9 + $0x5f0] sm:$0xff]
          %v7299 = vld [vmem:[#allocation9 + $0x5f8] sm:$0xff]
          %v7300 = vld [vmem:[#allocation9 + $0x600] sm:$0xff]
          %v7301 = vld [vmem:[#allocation9 + $0x608] sm:$0xff]
          %v7302 = vld [vmem:[#allocation9 + $0x610] sm:$0xff]
          %v7303 = vld [vmem:[#allocation9 + $0x618] sm:$0xff]
          %v7304 = vld [vmem:[#allocation9 + $0x620] sm:$0xff]
          %v7305 = vld [vmem:[#allocation9 + $0x628] sm:$0xff]
          %v7306 = vld [vmem:[#allocation9 + $0x630] sm:$0xff]
          %v7307 = vld [vmem:[#allocation9 + $0x638] sm:$0xff]
          %v7308 = vld [vmem:[#allocation9 + $0x640] sm:$0xff]
          %v7309 = vld [vmem:[#allocation9 + $0x648] sm:$0xff]
          %v7310 = vld [vmem:[#allocation9 + $0x650] sm:$0xff]
          %v7311 = vld [vmem:[#allocation9 + $0x658] sm:$0xff]
          %v7312 = vld [vmem:[#allocation9 + $0x660] sm:$0xff]
          %v7313 = vld [vmem:[#allocation9 + $0x668] sm:$0xff]
          %v7314 = vld [vmem:[#allocation9 + $0x670] sm:$0xff]
          %v7315 = vld [vmem:[#allocation9 + $0x678] sm:$0xff]
          %v7316 = vld [vmem:[#allocation9 + $0x680] sm:$0xff]
          %v7317 = vld [vmem:[#allocation9 + $0x688] sm:$0xff]
          %v7318 = vld [vmem:[#allocation9 + $0x690] sm:$0xff]
          %v7319 = vld [vmem:[#allocation9 + $0x698] sm:$0xff]
          %v7320 = vld [vmem:[#allocation9 + $0x6a0] sm:$0xff]
          %v7321 = vld [vmem:[#allocation9 + $0x6a8] sm:$0xff]
          %v7322 = vld [vmem:[#allocation9 + $0x6b0] sm:$0xff]
          %v7323 = vld [vmem:[#allocation9 + $0x6b8] sm:$0xff]
          %v7324 = vld [vmem:[#allocation9 + $0x6c0] sm:$0xff]
          %v7325 = vld [vmem:[#allocation9 + $0x6c8] sm:$0xff]
          %v7326 = vld [vmem:[#allocation9 + $0x6d0] sm:$0xff]
          %v7327 = vld [vmem:[#allocation9 + $0x6d8] sm:$0xff]
          %v7328 = vld [vmem:[#allocation9 + $0x6e0] sm:$0xff]
          %v7329 = vld [vmem:[#allocation9 + $0x6e8] sm:$0xff]
          %v7330 = vld [vmem:[#allocation9 + $0x6f0] sm:$0xff]
          %v7331 = vld [vmem:[#allocation9 + $0x6f8] sm:$0xff]
          %v7332 = vld [vmem:[#allocation9 + $0x700] sm:$0xff]
          %v7333 = vld [vmem:[#allocation9 + $0x708] sm:$0xff]
          %v7334 = vld [vmem:[#allocation9 + $0x710] sm:$0xff]
          %v7335 = vld [vmem:[#allocation9 + $0x718] sm:$0xff]
          %v7336 = vld [vmem:[#allocation9 + $0x720] sm:$0xff]
          %v7337 = vld [vmem:[#allocation9 + $0x728] sm:$0xff]
          %v7338 = vld [vmem:[#allocation9 + $0x730] sm:$0xff]
          %v7339 = vld [vmem:[#allocation9 + $0x738] sm:$0xff]
          %v7340 = vld [vmem:[#allocation9 + $0x740] sm:$0xff]
          %v7341 = vld [vmem:[#allocation9 + $0x748] sm:$0xff]
          %v7342 = vld [vmem:[#allocation9 + $0x750] sm:$0xff]
          %v7343 = vld [vmem:[#allocation9 + $0x758] sm:$0xff]
          %v7344 = vld [vmem:[#allocation9 + $0x760] sm:$0xff]
          %v7345 = vld [vmem:[#allocation9 + $0x768] sm:$0xff]
          %v7346 = vld [vmem:[#allocation9 + $0x770] sm:$0xff]
          %v7347 = vld [vmem:[#allocation9 + $0x778] sm:$0xff]
          %v7348 = vld [vmem:[#allocation9 + $0x780] sm:$0xff]
          %v7349 = vld [vmem:[#allocation9 + $0x788] sm:$0xff]
          %v7350 = vld [vmem:[#allocation9 + $0x790] sm:$0xff]
          %v7351 = vld [vmem:[#allocation9 + $0x798] sm:$0xff]
          %v7352 = vld [vmem:[#allocation9 + $0x7a0] sm:$0xff]
          %v7353 = vld [vmem:[#allocation9 + $0x7a8] sm:$0xff]
          %v7354 = vld [vmem:[#allocation9 + $0x7b0] sm:$0xff]
          %v7355 = vld [vmem:[#allocation9 + $0x7b8] sm:$0xff]
          %v7356 = vld [vmem:[#allocation9 + $0x7c0] sm:$0xff]
          %v7357 = vld [vmem:[#allocation9 + $0x7c8] sm:$0xff]
          %v7358 = vld [vmem:[#allocation9 + $0x7d0] sm:$0xff]
          %v7359 = vld [vmem:[#allocation9 + $0x7d8] sm:$0xff]
          %v7360 = vld [vmem:[#allocation9 + $0x7e0] sm:$0xff]
          %v7361 = vld [vmem:[#allocation9 + $0x7e8] sm:$0xff]
          %v7362 = vld [vmem:[#allocation9 + $0x7f0] sm:$0xff]
          %v7363 = vld [vmem:[#allocation9 + $0x7f8] sm:$0xff]
          %v7364 = vld [vmem:[#allocation9 + $0x800] sm:$0xff]
          %v7365 = vld [vmem:[#allocation9 + $0x808] sm:$0xff]
          %v7366 = vld [vmem:[#allocation9 + $0x810] sm:$0xff]
          %v7367 = vld [vmem:[#allocation9 + $0x818] sm:$0xff]
          %v7368 = vld [vmem:[#allocation9 + $0x820] sm:$0xff]
          %v7369 = vld [vmem:[#allocation9 + $0x828] sm:$0xff]
          %v7370 = vld [vmem:[#allocation9 + $0x830] sm:$0xff]
          %v7371 = vld [vmem:[#allocation9 + $0x838] sm:$0xff]
          %v7372 = vld [vmem:[#allocation9 + $0x840] sm:$0xff]
          %v7373 = vld [vmem:[#allocation9 + $0x848] sm:$0xff]
          %v7374 = vld [vmem:[#allocation9 + $0x850] sm:$0xff]
          %v7375 = vld [vmem:[#allocation9 + $0x858] sm:$0xff]
          %v7376 = vld [vmem:[#allocation9 + $0x860] sm:$0xff]
          %v7377 = vld [vmem:[#allocation9 + $0x868] sm:$0xff]
          %v7378 = vld [vmem:[#allocation9 + $0x870] sm:$0xff]
          %v7379 = vld [vmem:[#allocation9 + $0x878] sm:$0xff]
          %v7380 = vld [vmem:[#allocation9 + $0x880] sm:$0xff]
          %v7381 = vld [vmem:[#allocation9 + $0x888] sm:$0xff]
          %v7382 = vld [vmem:[#allocation9 + $0x890] sm:$0xff]
          %v7383 = vld [vmem:[#allocation9 + $0x898] sm:$0xff]
          %v7384 = vld [vmem:[#allocation9 + $0x8a0] sm:$0xff]
          %v7385 = vld [vmem:[#allocation9 + $0x8a8] sm:$0xff]
          %v7386 = vld [vmem:[#allocation9 + $0x8b0] sm:$0xff]
          %v7387 = vld [vmem:[#allocation9 + $0x8b8] sm:$0xff]
          %v7388 = vld [vmem:[#allocation9 + $0x8c0] sm:$0xff]
          %v7389 = vld [vmem:[#allocation9 + $0x8c8] sm:$0xff]
          %v7390 = vld [vmem:[#allocation9 + $0x8d0] sm:$0xff]
          %v7391 = vld [vmem:[#allocation9 + $0x8d8] sm:$0xff]
          %v7392 = vld [vmem:[#allocation9 + $0x8e0] sm:$0xff]
          %v7393 = vld [vmem:[#allocation9 + $0x8e8] sm:$0xff]
          %v7394 = vld [vmem:[#allocation9 + $0x8f0] sm:$0xff]
          %v7395 = vld [vmem:[#allocation9 + $0x8f8] sm:$0xff]
          %v7396 = vld [vmem:[#allocation9 + $0x900] sm:$0xff]
          %v7397 = vld [vmem:[#allocation9 + $0x908] sm:$0xff]
          %v7398 = vld [vmem:[#allocation9 + $0x910] sm:$0xff]
          %v7399 = vld [vmem:[#allocation9 + $0x918] sm:$0xff]
          %v7400 = vld [vmem:[#allocation9 + $0x920] sm:$0xff]
          %v7401 = vld [vmem:[#allocation9 + $0x928] sm:$0xff]
          %v7402 = vld [vmem:[#allocation9 + $0x930] sm:$0xff]
          %v7403 = vld [vmem:[#allocation9 + $0x938] sm:$0xff]
          %v7404 = vld [vmem:[#allocation9 + $0x940] sm:$0xff]
          %v7405 = vld [vmem:[#allocation9 + $0x948] sm:$0xff]
          %v7406 = vld [vmem:[#allocation9 + $0x950] sm:$0xff]
          %v7407 = vld [vmem:[#allocation9 + $0x958] sm:$0xff]
          %v7408 = vld [vmem:[#allocation9 + $0x960] sm:$0xff]
          %v7409 = vld [vmem:[#allocation9 + $0x968] sm:$0xff]
          %v7410 = vld [vmem:[#allocation9 + $0x970] sm:$0xff]
          %v7411 = vld [vmem:[#allocation9 + $0x978] sm:$0xff]
          %v7412 = vld [vmem:[#allocation9 + $0x980] sm:$0xff]
          %v7413 = vld [vmem:[#allocation9 + $0x988] sm:$0xff]
          %v7414 = vld [vmem:[#allocation9 + $0x990] sm:$0xff]
          %v7415 = vld [vmem:[#allocation9 + $0x998] sm:$0xff]
          %v7416 = vld [vmem:[#allocation9 + $0x9a0] sm:$0xff]
          %v7417 = vld [vmem:[#allocation9 + $0x9a8] sm:$0xff]
          %v7418 = vld [vmem:[#allocation9 + $0x9b0] sm:$0xff]
          %v7419 = vld [vmem:[#allocation9 + $0x9b8] sm:$0xff]
          %v7420 = vld [vmem:[#allocation9 + $0x9c0] sm:$0xff]
          %v7421 = vld [vmem:[#allocation9 + $0x9c8] sm:$0xff]
          %v7422 = vld [vmem:[#allocation9 + $0x9d0] sm:$0xff]
          %v7423 = vld [vmem:[#allocation9 + $0x9d8] sm:$0xff]
          %v7424 = vld [vmem:[#allocation9 + $0x9e0] sm:$0xff]
          %v7425 = vld [vmem:[#allocation9 + $0x9e8] sm:$0xff]
          %v7426 = vld [vmem:[#allocation9 + $0x9f0] sm:$0xff]
          %v7427 = vld [vmem:[#allocation9 + $0x9f8] sm:$0xff]
          %v7428 = vld [vmem:[#allocation9 + $0xa00] sm:$0xff]
          %v7429 = vld [vmem:[#allocation9 + $0xa08] sm:$0xff]
          %v7430 = vld [vmem:[#allocation9 + $0xa10] sm:$0xff]
          %v7431 = vld [vmem:[#allocation9 + $0xa18] sm:$0xff]
          %v7432 = vld [vmem:[#allocation9 + $0xa20] sm:$0xff]
          %v7433 = vld [vmem:[#allocation9 + $0xa28] sm:$0xff]
          %v7434 = vld [vmem:[#allocation9 + $0xa30] sm:$0xff]
          %v7435 = vld [vmem:[#allocation9 + $0xa38] sm:$0xff]
          %v7436 = vld [vmem:[#allocation9 + $0xa40] sm:$0xff]
          %v7437 = vld [vmem:[#allocation9 + $0xa48] sm:$0xff]
          %v7438 = vld [vmem:[#allocation9 + $0xa50] sm:$0xff]
          %v7439 = vld [vmem:[#allocation9 + $0xa58] sm:$0xff]
          %v7440 = vld [vmem:[#allocation9 + $0xa60] sm:$0xff]
          %v7441 = vld [vmem:[#allocation9 + $0xa68] sm:$0xff]
          %v7442 = vld [vmem:[#allocation9 + $0xa70] sm:$0xff]
          %v7443 = vld [vmem:[#allocation9 + $0xa78] sm:$0xff]
          %v7444 = vld [vmem:[#allocation9 + $0xa80] sm:$0xff]
          %v7445 = vld [vmem:[#allocation9 + $0xa88] sm:$0xff]
          %v7446 = vld [vmem:[#allocation9 + $0xa90] sm:$0xff]
          %v7447 = vld [vmem:[#allocation9 + $0xa98] sm:$0xff]
          %v7448 = vld [vmem:[#allocation9 + $0xaa0] sm:$0xff]
          %v7449 = vld [vmem:[#allocation9 + $0xaa8] sm:$0xff]
          %v7450 = vld [vmem:[#allocation9 + $0xab0] sm:$0xff]
          %v7451 = vld [vmem:[#allocation9 + $0xab8] sm:$0xff]
          %v7452 = vld [vmem:[#allocation9 + $0xac0] sm:$0xff]
          %v7453 = vld [vmem:[#allocation9 + $0xac8] sm:$0xff]
          %v7454 = vld [vmem:[#allocation9 + $0xad0] sm:$0xff]
          %v7455 = vld [vmem:[#allocation9 + $0xad8] sm:$0xff]
          %v7456 = vld [vmem:[#allocation9 + $0xae0] sm:$0xff]
          %v7457 = vld [vmem:[#allocation9 + $0xae8] sm:$0xff]
          %v7458 = vld [vmem:[#allocation9 + $0xaf0] sm:$0xff]
          %v7459 = vld [vmem:[#allocation9 + $0xaf8] sm:$0xff]
          %v7460 = vld [vmem:[#allocation9 + $0xb00] sm:$0xff]
          %v7461 = vld [vmem:[#allocation9 + $0xb08] sm:$0xff]
          %v7462 = vld [vmem:[#allocation9 + $0xb10] sm:$0xff]
          %v7463 = vld [vmem:[#allocation9 + $0xb18] sm:$0xff]
          %v7464 = vld [vmem:[#allocation9 + $0xb20] sm:$0xff]
          %v7465 = vld [vmem:[#allocation9 + $0xb28] sm:$0xff]
          %v7466 = vld [vmem:[#allocation9 + $0xb30] sm:$0xff]
          %v7467 = vld [vmem:[#allocation9 + $0xb38] sm:$0xff]
          %v7468 = vld [vmem:[#allocation9 + $0xb40] sm:$0xff]
          %v7469 = vld [vmem:[#allocation9 + $0xb48] sm:$0xff]
          %v7470 = vld [vmem:[#allocation9 + $0xb50] sm:$0xff]
          %v7471 = vld [vmem:[#allocation9 + $0xb58] sm:$0xff]
          %v7472 = vld [vmem:[#allocation9 + $0xb60] sm:$0xff]
          %v7473 = vld [vmem:[#allocation9 + $0xb68] sm:$0xff]
          %v7474 = vld [vmem:[#allocation9 + $0xb70] sm:$0xff]
          %v7475 = vld [vmem:[#allocation9 + $0xb78] sm:$0xff]
          %v7476 = vld [vmem:[#allocation9 + $0xb80] sm:$0xff]
          %v7477 = vld [vmem:[#allocation9 + $0xb88] sm:$0xff]
          %v7478 = vld [vmem:[#allocation9 + $0xb90] sm:$0xff]
          %v7479 = vld [vmem:[#allocation9 + $0xb98] sm:$0xff]
          %v7480 = vld [vmem:[#allocation9 + $0xba0] sm:$0xff]
          %v7481 = vld [vmem:[#allocation9 + $0xba8] sm:$0xff]
          %v7482 = vld [vmem:[#allocation9 + $0xbb0] sm:$0xff]
          %v7483 = vld [vmem:[#allocation9 + $0xbb8] sm:$0xff]
          %v7484 = vld [vmem:[#allocation9 + $0xbc0] sm:$0xff]
          %v7485 = vld [vmem:[#allocation9 + $0xbc8] sm:$0xff]
          %v7486 = vld [vmem:[#allocation9 + $0xbd0] sm:$0xff]
          %v7487 = vld [vmem:[#allocation9 + $0xbd8] sm:$0xff]
          %v7488 = vld [vmem:[#allocation9 + $0xbe0] sm:$0xff]
          %v7489 = vld [vmem:[#allocation9 + $0xbe8] sm:$0xff]
          %v7490 = vld [vmem:[#allocation9 + $0xbf0] sm:$0xff]
          %v7491 = vld [vmem:[#allocation9 + $0xbf8] sm:$0xff]
          %v7492 = vld [vmem:[#allocation9 + $0xc00] sm:$0xff]
          %v7493 = vld [vmem:[#allocation9 + $0xc08] sm:$0xff]
          %v7494 = vld [vmem:[#allocation9 + $0xc10] sm:$0xff]
          %v7495 = vld [vmem:[#allocation9 + $0xc18] sm:$0xff]
          %v7496 = vld [vmem:[#allocation9 + $0xc20] sm:$0xff]
          %v7497 = vld [vmem:[#allocation9 + $0xc28] sm:$0xff]
          %v7498 = vld [vmem:[#allocation9 + $0xc30] sm:$0xff]
          %v7499 = vld [vmem:[#allocation9 + $0xc38] sm:$0xff]
          %v7500 = vld [vmem:[#allocation9 + $0xc40] sm:$0xff]
          %v7501 = vld [vmem:[#allocation9 + $0xc48] sm:$0xff]
          %v7502 = vld [vmem:[#allocation9 + $0xc50] sm:$0xff]
          %v7503 = vld [vmem:[#allocation9 + $0xc58] sm:$0xff]
          %v7504 = vld [vmem:[#allocation9 + $0xc60] sm:$0xff]
          %v7505 = vld [vmem:[#allocation9 + $0xc68] sm:$0xff]
          %v7506 = vld [vmem:[#allocation9 + $0xc70] sm:$0xff]
          %v7507 = vld [vmem:[#allocation9 + $0xc78] sm:$0xff]
          %v7508 = vld [vmem:[#allocation9 + $0xc80] sm:$0xff]
          %v7509 = vld [vmem:[#allocation9 + $0xc88] sm:$0xff]
          %v7510 = vld [vmem:[#allocation9 + $0xc90] sm:$0xff]
          %v7511 = vld [vmem:[#allocation9 + $0xc98] sm:$0xff]
          %v7512 = vld [vmem:[#allocation9 + $0xca0] sm:$0xff]
          %v7513 = vld [vmem:[#allocation9 + $0xca8] sm:$0xff]
          %v7514 = vld [vmem:[#allocation9 + $0xcb0] sm:$0xff]
          %v7515 = vld [vmem:[#allocation9 + $0xcb8] sm:$0xff]
          %v7516 = vld [vmem:[#allocation9 + $0xcc0] sm:$0xff]
          %v7517 = vld [vmem:[#allocation9 + $0xcc8] sm:$0xff]
          %v7518 = vld [vmem:[#allocation9 + $0xcd0] sm:$0xff]
          %v7519 = vld [vmem:[#allocation9 + $0xcd8] sm:$0xff]
          %v7520 = vld [vmem:[#allocation9 + $0xce0] sm:$0xff]
          %v7521 = vld [vmem:[#allocation9 + $0xce8] sm:$0xff]
          %v7522 = vld [vmem:[#allocation9 + $0xcf0] sm:$0xff]
          %v7523 = vld [vmem:[#allocation9 + $0xcf8] sm:$0xff]
          %v7524 = vld [vmem:[#allocation9 + $0xd00] sm:$0xff]
          %v7525 = vld [vmem:[#allocation9 + $0xd08] sm:$0xff]
          %v7526 = vld [vmem:[#allocation9 + $0xd10] sm:$0xff]
          %v7527 = vld [vmem:[#allocation9 + $0xd18] sm:$0xff]
          %v7528 = vld [vmem:[#allocation9 + $0xd20] sm:$0xff]
          %v7529 = vld [vmem:[#allocation9 + $0xd28] sm:$0xff]
          %v7530 = vld [vmem:[#allocation9 + $0xd30] sm:$0xff]
          %v7531 = vld [vmem:[#allocation9 + $0xd38] sm:$0xff]
          %v7532 = vld [vmem:[#allocation9 + $0xd40] sm:$0xff]
          %v7533 = vld [vmem:[#allocation9 + $0xd48] sm:$0xff]
          %v7534 = vld [vmem:[#allocation9 + $0xd50] sm:$0xff]
          %v7535 = vld [vmem:[#allocation9 + $0xd58] sm:$0xff]
          %v7536 = vld [vmem:[#allocation9 + $0xd60] sm:$0xff]
          %v7537 = vld [vmem:[#allocation9 + $0xd68] sm:$0xff]
          %v7538 = vld [vmem:[#allocation9 + $0xd70] sm:$0xff]
          %v7539 = vld [vmem:[#allocation9 + $0xd78] sm:$0xff]
          %v7540 = vld [vmem:[#allocation9 + $0xd80] sm:$0xff]
          %v7541 = vld [vmem:[#allocation9 + $0xd88] sm:$0xff]
          %v7542 = vld [vmem:[#allocation9 + $0xd90] sm:$0xff]
          %v7543 = vld [vmem:[#allocation9 + $0xd98] sm:$0xff]
          %v7544 = vld [vmem:[#allocation9 + $0xda0] sm:$0xff]
          %v7545 = vld [vmem:[#allocation9 + $0xda8] sm:$0xff]
          %v7546 = vld [vmem:[#allocation9 + $0xdb0] sm:$0xff]
          %v7547 = vld [vmem:[#allocation9 + $0xdb8] sm:$0xff]
          %v7548 = vld [vmem:[#allocation9 + $0xdc0] sm:$0xff]
          %v7549 = vld [vmem:[#allocation9 + $0xdc8] sm:$0xff]
          %v7550 = vld [vmem:[#allocation9 + $0xdd0] sm:$0xff]
          %v7551 = vld [vmem:[#allocation9 + $0xdd8] sm:$0xff]
          %v7552 = vld [vmem:[#allocation9 + $0xde0] sm:$0xff]
          %v7553 = vld [vmem:[#allocation9 + $0xde8] sm:$0xff]
          %v7554 = vld [vmem:[#allocation9 + $0xdf0] sm:$0xff]
          %v7555 = vld [vmem:[#allocation9 + $0xdf8] sm:$0xff]
          %v7556 = vld [vmem:[#allocation9 + $0xe00] sm:$0xff]
          %v7557 = vld [vmem:[#allocation9 + $0xe08] sm:$0xff]
          %v7558 = vld [vmem:[#allocation9 + $0xe10] sm:$0xff]
          %v7559 = vld [vmem:[#allocation9 + $0xe18] sm:$0xff]
          %v7560 = vld [vmem:[#allocation9 + $0xe20] sm:$0xff]
          %v7561 = vld [vmem:[#allocation9 + $0xe28] sm:$0xff]
          %v7562 = vld [vmem:[#allocation9 + $0xe30] sm:$0xff]
          %v7563 = vld [vmem:[#allocation9 + $0xe38] sm:$0xff]
          %v7564 = vld [vmem:[#allocation9 + $0xe40] sm:$0xff]
          %v7565 = vld [vmem:[#allocation9 + $0xe48] sm:$0xff]
          %v7566 = vld [vmem:[#allocation9 + $0xe50] sm:$0xff]
          %v7567 = vld [vmem:[#allocation9 + $0xe58] sm:$0xff]
          %v7568 = vld [vmem:[#allocation9 + $0xe60] sm:$0xff]
          %v7569 = vld [vmem:[#allocation9 + $0xe68] sm:$0xff]
          %v7570 = vld [vmem:[#allocation9 + $0xe70] sm:$0xff]
          %v7571 = vld [vmem:[#allocation9 + $0xe78] sm:$0xff]
          %v7572 = vld [vmem:[#allocation9 + $0xe80] sm:$0xff]
          %v7573 = vld [vmem:[#allocation9 + $0xe88] sm:$0xff]
          %v7574 = vld [vmem:[#allocation9 + $0xe90] sm:$0xff]
          %v7575 = vld [vmem:[#allocation9 + $0xe98] sm:$0xff]
          %v7576 = vld [vmem:[#allocation9 + $0xea0] sm:$0xff]
          %v7577 = vld [vmem:[#allocation9 + $0xea8] sm:$0xff]
          %v7578 = vld [vmem:[#allocation9 + $0xeb0] sm:$0xff]
          %v7579 = vld [vmem:[#allocation9 + $0xeb8] sm:$0xff]
          %v7580 = vld [vmem:[#allocation9 + $0xec0] sm:$0xff]
          %v7581 = vld [vmem:[#allocation9 + $0xec8] sm:$0xff]
          %v7582 = vld [vmem:[#allocation9 + $0xed0] sm:$0xff]
          %v7583 = vld [vmem:[#allocation9 + $0xed8] sm:$0xff]
          %v7584 = vld [vmem:[#allocation9 + $0xee0] sm:$0xff]
          %v7585 = vld [vmem:[#allocation9 + $0xee8] sm:$0xff]
          %v7586 = vld [vmem:[#allocation9 + $0xef0] sm:$0xff]
          %v7587 = vld [vmem:[#allocation9 + $0xef8] sm:$0xff]
          %v7588 = vld [vmem:[#allocation9 + $0xf00] sm:$0xff]
          %v7589 = vld [vmem:[#allocation9 + $0xf08] sm:$0xff]
          %v7590 = vld [vmem:[#allocation9 + $0xf10] sm:$0xff]
          %v7591 = vld [vmem:[#allocation9 + $0xf18] sm:$0xff]
          %v7592 = vld [vmem:[#allocation9 + $0xf20] sm:$0xff]
          %v7593 = vld [vmem:[#allocation9 + $0xf28] sm:$0xff]
          %v7594 = vld [vmem:[#allocation9 + $0xf30] sm:$0xff]
          %v7595 = vld [vmem:[#allocation9 + $0xf38] sm:$0xff]
          %v7596 = vld [vmem:[#allocation9 + $0xf40] sm:$0xff]
          %v7597 = vld [vmem:[#allocation9 + $0xf48] sm:$0xff]
          %v7598 = vld [vmem:[#allocation9 + $0xf50] sm:$0xff]
          %v7599 = vld [vmem:[#allocation9 + $0xf58] sm:$0xff]
          %v7600 = vld [vmem:[#allocation9 + $0xf60] sm:$0xff]
          %v7601 = vld [vmem:[#allocation9 + $0xf68] sm:$0xff]
          %v7602 = vld [vmem:[#allocation9 + $0xf70] sm:$0xff]
          %v7603 = vld [vmem:[#allocation9 + $0xf78] sm:$0xff]
          %v7604 = vld [vmem:[#allocation9 + $0xf80] sm:$0xff]
          %v7605 = vld [vmem:[#allocation9 + $0xf88] sm:$0xff]
          %v7606 = vld [vmem:[#allocation9 + $0xf90] sm:$0xff]
          %v7607 = vld [vmem:[#allocation9 + $0xf98] sm:$0xff]
          %v7608 = vld [vmem:[#allocation9 + $0xfa0] sm:$0xff]
          %v7609 = vld [vmem:[#allocation9 + $0xfa8] sm:$0xff]
          %v7610 = vld [vmem:[#allocation9 + $0xfb0] sm:$0xff]
          %v7611 = vld [vmem:[#allocation9 + $0xfb8] sm:$0xff]
          %v7612 = vld [vmem:[#allocation9 + $0xfc0] sm:$0xff]
          %v7613 = vld [vmem:[#allocation9 + $0xfc8] sm:$0xff]
          %v7614 = vld [vmem:[#allocation9 + $0xfd0] sm:$0xff]
          %v7615 = vld [vmem:[#allocation9 + $0xfd8] sm:$0xff]
          %v7616 = vld [vmem:[#allocation9 + $0xfe0] sm:$0xff]
          %v7617 = vld [vmem:[#allocation9 + $0xfe8] sm:$0xff]
          %v7618 = vld [vmem:[#allocation9 + $0xff0] sm:$0xff]
          %v7619 = vld [vmem:[#allocation9 + $0xff8] sm:$0xff]
          %v7620 = vld [vmem:[#allocation11] sm:$0xff]
          %v7622 = vlaneseq
          %v7623 = vshrl.u32 %v7622, 7
          %v7624 = vsub.s32 0, %v7623
          %v7625 = vrot.slane %v7620, %v7624
          %v7626 = vlaneseq
          %v7627 = vshrl.u32 %v7626, 7
          %v7628 = vsub.s32 1, %v7627
          %v7629 = vrot.slane %v7620, %v7628
          %v7630 = vlaneseq
          %v7631 = vshrl.u32 %v7630, 7
          %v7632 = vsub.s32 2, %v7631
          %v7633 = vrot.slane %v7620, %v7632
          %v7634 = vlaneseq
          %v7635 = vshrl.u32 %v7634, 7
          %v7636 = vsub.s32 3, %v7635
          %v7637 = vrot.slane %v7620, %v7636
          %v7638 = vlaneseq
          %v7639 = vshrl.u32 %v7638, 7
          %v7640 = vsub.s32 4, %v7639
          %v7641 = vrot.slane %v7620, %v7640
          %v7642 = vlaneseq
          %v7643 = vshrl.u32 %v7642, 7
          %v7644 = vsub.s32 5, %v7643
          %v7645 = vrot.slane %v7620, %v7644
          %v7646 = vlaneseq
          %v7647 = vshrl.u32 %v7646, 7
          %v7648 = vsub.s32 6, %v7647
          %v7649 = vrot.slane %v7620, %v7648
          %v7650 = vlaneseq
          %v7651 = vshrl.u32 %v7650, 7
          %v7652 = vsub.s32 7, %v7651
          %v7653 = vrot.slane %v7620, %v7652
          %v8174 = vunpack.c.l.b16 %v7108
          %v8175 = vunpack.c.h.b16 %v7108
          %v8176 = vunpack.c.l.b16 %v7109
          %v8177 = vunpack.c.h.b16 %v7109
          %v8178 = vunpack.c.l.b16 %v7110
          %v8179 = vunpack.c.h.b16 %v7110
          %v8180 = vunpack.c.l.b16 %v7111
          %v8181 = vunpack.c.h.b16 %v7111
          %v8182 = vunpack.c.l.b16 %v7112
          %v8183 = vunpack.c.h.b16 %v7112
          %v8184 = vunpack.c.l.b16 %v7113
          %v8185 = vunpack.c.h.b16 %v7113
          %v8186 = vunpack.c.l.b16 %v7114
          %v8187 = vunpack.c.h.b16 %v7114
          %v8188 = vunpack.c.l.b16 %v7115
          %v8189 = vunpack.c.h.b16 %v7115
          %v8190 = vunpack.c.l.b16 %v7116
          %v8191 = vunpack.c.h.b16 %v7116
          %v8192 = vunpack.c.l.b16 %v7117
          %v8193 = vunpack.c.h.b16 %v7117
          %v8194 = vunpack.c.l.b16 %v7118
          %v8195 = vunpack.c.h.b16 %v7118
          %v8196 = vunpack.c.l.b16 %v7119
          %v8197 = vunpack.c.h.b16 %v7119
          %v8198 = vunpack.c.l.b16 %v7120
          %v8199 = vunpack.c.h.b16 %v7120
          %v8200 = vunpack.c.l.b16 %v7121
          %v8201 = vunpack.c.h.b16 %v7121
          %v8202 = vunpack.c.l.b16 %v7122
          %v8203 = vunpack.c.h.b16 %v7122
          %v8204 = vunpack.c.l.b16 %v7123
          %v8205 = vunpack.c.h.b16 %v7123
          %v8206 = vunpack.c.l.b16 %v7124
          %v8207 = vunpack.c.h.b16 %v7124
          %v8208 = vunpack.c.l.b16 %v7125
          %v8209 = vunpack.c.h.b16 %v7125
          %v8210 = vunpack.c.l.b16 %v7126
          %v8211 = vunpack.c.h.b16 %v7126
          %v8212 = vunpack.c.l.b16 %v7127
          %v8213 = vunpack.c.h.b16 %v7127
          %v8214 = vunpack.c.l.b16 %v7128
          %v8215 = vunpack.c.h.b16 %v7128
          %v8216 = vunpack.c.l.b16 %v7129
          %v8217 = vunpack.c.h.b16 %v7129
          %v8218 = vunpack.c.l.b16 %v7130
          %v8219 = vunpack.c.h.b16 %v7130
          %v8220 = vunpack.c.l.b16 %v7131
          %v8221 = vunpack.c.h.b16 %v7131
          %v8222 = vunpack.c.l.b16 %v7132
          %v8223 = vunpack.c.h.b16 %v7132
          %v8224 = vunpack.c.l.b16 %v7133
          %v8225 = vunpack.c.h.b16 %v7133
          %v8226 = vunpack.c.l.b16 %v7134
          %v8227 = vunpack.c.h.b16 %v7134
          %v8228 = vunpack.c.l.b16 %v7135
          %v8229 = vunpack.c.h.b16 %v7135
          %v8230 = vunpack.c.l.b16 %v7136
          %v8231 = vunpack.c.h.b16 %v7136
          %v8232 = vunpack.c.l.b16 %v7137
          %v8233 = vunpack.c.h.b16 %v7137
          %v8234 = vunpack.c.l.b16 %v7138
          %v8235 = vunpack.c.h.b16 %v7138
          %v8236 = vunpack.c.l.b16 %v7139
          %v8237 = vunpack.c.h.b16 %v7139
          %v8238 = vunpack.c.l.b16 %v7140
          %v8239 = vunpack.c.h.b16 %v7140
          %v8240 = vunpack.c.l.b16 %v7141
          %v8241 = vunpack.c.h.b16 %v7141
          %v8242 = vunpack.c.l.b16 %v7142
          %v8243 = vunpack.c.h.b16 %v7142
          %v8244 = vunpack.c.l.b16 %v7143
          %v8245 = vunpack.c.h.b16 %v7143
          %v8246 = vunpack.c.l.b16 %v7144
          %v8247 = vunpack.c.h.b16 %v7144
          %v8248 = vunpack.c.l.b16 %v7145
          %v8249 = vunpack.c.h.b16 %v7145
          %v8250 = vunpack.c.l.b16 %v7146
          %v8251 = vunpack.c.h.b16 %v7146
          %v8252 = vunpack.c.l.b16 %v7147
          %v8253 = vunpack.c.h.b16 %v7147
          %v8254 = vunpack.c.l.b16 %v7148
          %v8255 = vunpack.c.h.b16 %v7148
          %v8256 = vunpack.c.l.b16 %v7149
          %v8257 = vunpack.c.h.b16 %v7149
          %v8258 = vunpack.c.l.b16 %v7150
          %v8259 = vunpack.c.h.b16 %v7150
          %v8260 = vunpack.c.l.b16 %v7151
          %v8261 = vunpack.c.h.b16 %v7151
          %v8262 = vunpack.c.l.b16 %v7152
          %v8263 = vunpack.c.h.b16 %v7152
          %v8264 = vunpack.c.l.b16 %v7153
          %v8265 = vunpack.c.h.b16 %v7153
          %v8266 = vunpack.c.l.b16 %v7154
          %v8267 = vunpack.c.h.b16 %v7154
          %v8268 = vunpack.c.l.b16 %v7155
          %v8269 = vunpack.c.h.b16 %v7155
          %v8270 = vunpack.c.l.b16 %v7156
          %v8271 = vunpack.c.h.b16 %v7156
          %v8272 = vunpack.c.l.b16 %v7157
          %v8273 = vunpack.c.h.b16 %v7157
          %v8274 = vunpack.c.l.b16 %v7158
          %v8275 = vunpack.c.h.b16 %v7158
          %v8276 = vunpack.c.l.b16 %v7159
          %v8277 = vunpack.c.h.b16 %v7159
          %v8278 = vunpack.c.l.b16 %v7160
          %v8279 = vunpack.c.h.b16 %v7160
          %v8280 = vunpack.c.l.b16 %v7161
          %v8281 = vunpack.c.h.b16 %v7161
          %v8282 = vunpack.c.l.b16 %v7162
          %v8283 = vunpack.c.h.b16 %v7162
          %v8284 = vunpack.c.l.b16 %v7163
          %v8285 = vunpack.c.h.b16 %v7163
          %v8286 = vunpack.c.l.b16 %v7164
          %v8287 = vunpack.c.h.b16 %v7164
          %v8288 = vunpack.c.l.b16 %v7165
          %v8289 = vunpack.c.h.b16 %v7165
          %v8290 = vunpack.c.l.b16 %v7166
          %v8291 = vunpack.c.h.b16 %v7166
          %v8292 = vunpack.c.l.b16 %v7167
          %v8293 = vunpack.c.h.b16 %v7167
          %v8294 = vunpack.c.l.b16 %v7168
          %v8295 = vunpack.c.h.b16 %v7168
          %v8296 = vunpack.c.l.b16 %v7169
          %v8297 = vunpack.c.h.b16 %v7169
          %v8298 = vunpack.c.l.b16 %v7170
          %v8299 = vunpack.c.h.b16 %v7170
          %v8300 = vunpack.c.l.b16 %v7171
          %v8301 = vunpack.c.h.b16 %v7171
          %v8302 = vunpack.c.l.b16 %v7172
          %v8303 = vunpack.c.h.b16 %v7172
          %v8304 = vunpack.c.l.b16 %v7173
          %v8305 = vunpack.c.h.b16 %v7173
          %v8306 = vunpack.c.l.b16 %v7174
          %v8307 = vunpack.c.h.b16 %v7174
          %v8308 = vunpack.c.l.b16 %v7175
          %v8309 = vunpack.c.h.b16 %v7175
          %v8310 = vunpack.c.l.b16 %v7176
          %v8311 = vunpack.c.h.b16 %v7176
          %v8312 = vunpack.c.l.b16 %v7177
          %v8313 = vunpack.c.h.b16 %v7177
          %v8314 = vunpack.c.l.b16 %v7178
          %v8315 = vunpack.c.h.b16 %v7178
          %v8316 = vunpack.c.l.b16 %v7179
          %v8317 = vunpack.c.h.b16 %v7179
          %v8318 = vunpack.c.l.b16 %v7180
          %v8319 = vunpack.c.h.b16 %v7180
          %v8320 = vunpack.c.l.b16 %v7181
          %v8321 = vunpack.c.h.b16 %v7181
          %v8322 = vunpack.c.l.b16 %v7182
          %v8323 = vunpack.c.h.b16 %v7182
          %v8324 = vunpack.c.l.b16 %v7183
          %v8325 = vunpack.c.h.b16 %v7183
          %v8326 = vunpack.c.l.b16 %v7184
          %v8327 = vunpack.c.h.b16 %v7184
          %v8328 = vunpack.c.l.b16 %v7185
          %v8329 = vunpack.c.h.b16 %v7185
          %v8330 = vunpack.c.l.b16 %v7186
          %v8331 = vunpack.c.h.b16 %v7186
          %v8332 = vunpack.c.l.b16 %v7187
          %v8333 = vunpack.c.h.b16 %v7187
          %v8334 = vunpack.c.l.b16 %v7188
          %v8335 = vunpack.c.h.b16 %v7188
          %v8336 = vunpack.c.l.b16 %v7189
          %v8337 = vunpack.c.h.b16 %v7189
          %v8338 = vunpack.c.l.b16 %v7190
          %v8339 = vunpack.c.h.b16 %v7190
          %v8340 = vunpack.c.l.b16 %v7191
          %v8341 = vunpack.c.h.b16 %v7191
          %v8342 = vunpack.c.l.b16 %v7192
          %v8343 = vunpack.c.h.b16 %v7192
          %v8344 = vunpack.c.l.b16 %v7193
          %v8345 = vunpack.c.h.b16 %v7193
          %v8346 = vunpack.c.l.b16 %v7194
          %v8347 = vunpack.c.h.b16 %v7194
          %v8348 = vunpack.c.l.b16 %v7195
          %v8349 = vunpack.c.h.b16 %v7195
          %v8350 = vunpack.c.l.b16 %v7196
          %v8351 = vunpack.c.h.b16 %v7196
          %v8352 = vunpack.c.l.b16 %v7197
          %v8353 = vunpack.c.h.b16 %v7197
          %v8354 = vunpack.c.l.b16 %v7198
          %v8355 = vunpack.c.h.b16 %v7198
          %v8356 = vunpack.c.l.b16 %v7199
          %v8357 = vunpack.c.h.b16 %v7199
          %v8358 = vunpack.c.l.b16 %v7200
          %v8359 = vunpack.c.h.b16 %v7200
          %v8360 = vunpack.c.l.b16 %v7201
          %v8361 = vunpack.c.h.b16 %v7201
          %v8362 = vunpack.c.l.b16 %v7202
          %v8363 = vunpack.c.h.b16 %v7202
          %v8364 = vunpack.c.l.b16 %v7203
          %v8365 = vunpack.c.h.b16 %v7203
          %v8366 = vunpack.c.l.b16 %v7204
          %v8367 = vunpack.c.h.b16 %v7204
          %v8368 = vunpack.c.l.b16 %v7205
          %v8369 = vunpack.c.h.b16 %v7205
          %v8370 = vunpack.c.l.b16 %v7206
          %v8371 = vunpack.c.h.b16 %v7206
          %v8372 = vunpack.c.l.b16 %v7207
          %v8373 = vunpack.c.h.b16 %v7207
          %v8374 = vunpack.c.l.b16 %v7208
          %v8375 = vunpack.c.h.b16 %v7208
          %v8376 = vunpack.c.l.b16 %v7209
          %v8377 = vunpack.c.h.b16 %v7209
          %v8378 = vunpack.c.l.b16 %v7210
          %v8379 = vunpack.c.h.b16 %v7210
          %v8380 = vunpack.c.l.b16 %v7211
          %v8381 = vunpack.c.h.b16 %v7211
          %v8382 = vunpack.c.l.b16 %v7212
          %v8383 = vunpack.c.h.b16 %v7212
          %v8384 = vunpack.c.l.b16 %v7213
          %v8385 = vunpack.c.h.b16 %v7213
          %v8386 = vunpack.c.l.b16 %v7214
          %v8387 = vunpack.c.h.b16 %v7214
          %v8388 = vunpack.c.l.b16 %v7215
          %v8389 = vunpack.c.h.b16 %v7215
          %v8390 = vunpack.c.l.b16 %v7216
          %v8391 = vunpack.c.h.b16 %v7216
          %v8392 = vunpack.c.l.b16 %v7217
          %v8393 = vunpack.c.h.b16 %v7217
          %v8394 = vunpack.c.l.b16 %v7218
          %v8395 = vunpack.c.h.b16 %v7218
          %v8396 = vunpack.c.l.b16 %v7219
          %v8397 = vunpack.c.h.b16 %v7219
          %v8398 = vunpack.c.l.b16 %v7220
          %v8399 = vunpack.c.h.b16 %v7220
          %v8400 = vunpack.c.l.b16 %v7221
          %v8401 = vunpack.c.h.b16 %v7221
          %v8402 = vunpack.c.l.b16 %v7222
          %v8403 = vunpack.c.h.b16 %v7222
          %v8404 = vunpack.c.l.b16 %v7223
          %v8405 = vunpack.c.h.b16 %v7223
          %v8406 = vunpack.c.l.b16 %v7224
          %v8407 = vunpack.c.h.b16 %v7224
          %v8408 = vunpack.c.l.b16 %v7225
          %v8409 = vunpack.c.h.b16 %v7225
          %v8410 = vunpack.c.l.b16 %v7226
          %v8411 = vunpack.c.h.b16 %v7226
          %v8412 = vunpack.c.l.b16 %v7227
          %v8413 = vunpack.c.h.b16 %v7227
          %v8414 = vunpack.c.l.b16 %v7228
          %v8415 = vunpack.c.h.b16 %v7228
          %v8416 = vunpack.c.l.b16 %v7229
          %v8417 = vunpack.c.h.b16 %v7229
          %v8418 = vunpack.c.l.b16 %v7230
          %v8419 = vunpack.c.h.b16 %v7230
          %v8420 = vunpack.c.l.b16 %v7231
          %v8421 = vunpack.c.h.b16 %v7231
          %v8422 = vunpack.c.l.b16 %v7232
          %v8423 = vunpack.c.h.b16 %v7232
          %v8424 = vunpack.c.l.b16 %v7233
          %v8425 = vunpack.c.h.b16 %v7233
          %v8426 = vunpack.c.l.b16 %v7234
          %v8427 = vunpack.c.h.b16 %v7234
          %v8428 = vunpack.c.l.b16 %v7235
          %v8429 = vunpack.c.h.b16 %v7235
          %v8430 = vunpack.c.l.b16 %v7236
          %v8431 = vunpack.c.h.b16 %v7236
          %v8432 = vunpack.c.l.b16 %v7237
          %v8433 = vunpack.c.h.b16 %v7237
          %v8434 = vunpack.c.l.b16 %v7238
          %v8435 = vunpack.c.h.b16 %v7238
          %v8436 = vunpack.c.l.b16 %v7239
          %v8437 = vunpack.c.h.b16 %v7239
          %v8438 = vunpack.c.l.b16 %v7240
          %v8439 = vunpack.c.h.b16 %v7240
          %v8440 = vunpack.c.l.b16 %v7241
          %v8441 = vunpack.c.h.b16 %v7241
          %v8442 = vunpack.c.l.b16 %v7242
          %v8443 = vunpack.c.h.b16 %v7242
          %v8444 = vunpack.c.l.b16 %v7243
          %v8445 = vunpack.c.h.b16 %v7243
          %v8446 = vunpack.c.l.b16 %v7244
          %v8447 = vunpack.c.h.b16 %v7244
          %v8448 = vunpack.c.l.b16 %v7245
          %v8449 = vunpack.c.h.b16 %v7245
          %v8450 = vunpack.c.l.b16 %v7246
          %v8451 = vunpack.c.h.b16 %v7246
          %v8452 = vunpack.c.l.b16 %v7247
          %v8453 = vunpack.c.h.b16 %v7247
          %v8454 = vunpack.c.l.b16 %v7248
          %v8455 = vunpack.c.h.b16 %v7248
          %v8456 = vunpack.c.l.b16 %v7249
          %v8457 = vunpack.c.h.b16 %v7249
          %v8458 = vunpack.c.l.b16 %v7250
          %v8459 = vunpack.c.h.b16 %v7250
          %v8460 = vunpack.c.l.b16 %v7251
          %v8461 = vunpack.c.h.b16 %v7251
          %v8462 = vunpack.c.l.b16 %v7252
          %v8463 = vunpack.c.h.b16 %v7252
          %v8464 = vunpack.c.l.b16 %v7253
          %v8465 = vunpack.c.h.b16 %v7253
          %v8466 = vunpack.c.l.b16 %v7254
          %v8467 = vunpack.c.h.b16 %v7254
          %v8468 = vunpack.c.l.b16 %v7255
          %v8469 = vunpack.c.h.b16 %v7255
          %v8470 = vunpack.c.l.b16 %v7256
          %v8471 = vunpack.c.h.b16 %v7256
          %v8472 = vunpack.c.l.b16 %v7257
          %v8473 = vunpack.c.h.b16 %v7257
          %v8474 = vunpack.c.l.b16 %v7258
          %v8475 = vunpack.c.h.b16 %v7258
          %v8476 = vunpack.c.l.b16 %v7259
          %v8477 = vunpack.c.h.b16 %v7259
          %v8478 = vunpack.c.l.b16 %v7260
          %v8479 = vunpack.c.h.b16 %v7260
          %v8480 = vunpack.c.l.b16 %v7261
          %v8481 = vunpack.c.h.b16 %v7261
          %v8482 = vunpack.c.l.b16 %v7262
          %v8483 = vunpack.c.h.b16 %v7262
          %v8484 = vunpack.c.l.b16 %v7263
          %v8485 = vunpack.c.h.b16 %v7263
          %v8486 = vunpack.c.l.b16 %v7264
          %v8487 = vunpack.c.h.b16 %v7264
          %v8488 = vunpack.c.l.b16 %v7265
          %v8489 = vunpack.c.h.b16 %v7265
          %v8490 = vunpack.c.l.b16 %v7266
          %v8491 = vunpack.c.h.b16 %v7266
          %v8492 = vunpack.c.l.b16 %v7267
          %v8493 = vunpack.c.h.b16 %v7267
          %v8494 = vunpack.c.l.b16 %v7268
          %v8495 = vunpack.c.h.b16 %v7268
          %v8496 = vunpack.c.l.b16 %v7269
          %v8497 = vunpack.c.h.b16 %v7269
          %v8498 = vunpack.c.l.b16 %v7270
          %v8499 = vunpack.c.h.b16 %v7270
          %v8500 = vunpack.c.l.b16 %v7271
          %v8501 = vunpack.c.h.b16 %v7271
          %v8502 = vunpack.c.l.b16 %v7272
          %v8503 = vunpack.c.h.b16 %v7272
          %v8504 = vunpack.c.l.b16 %v7273
          %v8505 = vunpack.c.h.b16 %v7273
          %v8506 = vunpack.c.l.b16 %v7274
          %v8507 = vunpack.c.h.b16 %v7274
          %v8508 = vunpack.c.l.b16 %v7275
          %v8509 = vunpack.c.h.b16 %v7275
          %v8510 = vunpack.c.l.b16 %v7276
          %v8511 = vunpack.c.h.b16 %v7276
          %v8512 = vunpack.c.l.b16 %v7277
          %v8513 = vunpack.c.h.b16 %v7277
          %v8514 = vunpack.c.l.b16 %v7278
          %v8515 = vunpack.c.h.b16 %v7278
          %v8516 = vunpack.c.l.b16 %v7279
          %v8517 = vunpack.c.h.b16 %v7279
          %v8518 = vunpack.c.l.b16 %v7280
          %v8519 = vunpack.c.h.b16 %v7280
          %v8520 = vunpack.c.l.b16 %v7281
          %v8521 = vunpack.c.h.b16 %v7281
          %v8522 = vunpack.c.l.b16 %v7282
          %v8523 = vunpack.c.h.b16 %v7282
          %v8524 = vunpack.c.l.b16 %v7283
          %v8525 = vunpack.c.h.b16 %v7283
          %v8526 = vunpack.c.l.b16 %v7284
          %v8527 = vunpack.c.h.b16 %v7284
          %v8528 = vunpack.c.l.b16 %v7285
          %v8529 = vunpack.c.h.b16 %v7285
          %v8530 = vunpack.c.l.b16 %v7286
          %v8531 = vunpack.c.h.b16 %v7286
          %v8532 = vunpack.c.l.b16 %v7287
          %v8533 = vunpack.c.h.b16 %v7287
          %v8534 = vunpack.c.l.b16 %v7288
          %v8535 = vunpack.c.h.b16 %v7288
          %v8536 = vunpack.c.l.b16 %v7289
          %v8537 = vunpack.c.h.b16 %v7289
          %v8538 = vunpack.c.l.b16 %v7290
          %v8539 = vunpack.c.h.b16 %v7290
          %v8540 = vunpack.c.l.b16 %v7291
          %v8541 = vunpack.c.h.b16 %v7291
          %v8542 = vunpack.c.l.b16 %v7292
          %v8543 = vunpack.c.h.b16 %v7292
          %v8544 = vunpack.c.l.b16 %v7293
          %v8545 = vunpack.c.h.b16 %v7293
          %v8546 = vunpack.c.l.b16 %v7294
          %v8547 = vunpack.c.h.b16 %v7294
          %v8548 = vunpack.c.l.b16 %v7295
          %v8549 = vunpack.c.h.b16 %v7295
          %v8550 = vunpack.c.l.b16 %v7296
          %v8551 = vunpack.c.h.b16 %v7296
          %v8552 = vunpack.c.l.b16 %v7297
          %v8553 = vunpack.c.h.b16 %v7297
          %v8554 = vunpack.c.l.b16 %v7298
          %v8555 = vunpack.c.h.b16 %v7298
          %v8556 = vunpack.c.l.b16 %v7299
          %v8557 = vunpack.c.h.b16 %v7299
          %v8558 = vunpack.c.l.b16 %v7300
          %v8559 = vunpack.c.h.b16 %v7300
          %v8560 = vunpack.c.l.b16 %v7301
          %v8561 = vunpack.c.h.b16 %v7301
          %v8562 = vunpack.c.l.b16 %v7302
          %v8563 = vunpack.c.h.b16 %v7302
          %v8564 = vunpack.c.l.b16 %v7303
          %v8565 = vunpack.c.h.b16 %v7303
          %v8566 = vunpack.c.l.b16 %v7304
          %v8567 = vunpack.c.h.b16 %v7304
          %v8568 = vunpack.c.l.b16 %v7305
          %v8569 = vunpack.c.h.b16 %v7305
          %v8570 = vunpack.c.l.b16 %v7306
          %v8571 = vunpack.c.h.b16 %v7306
          %v8572 = vunpack.c.l.b16 %v7307
          %v8573 = vunpack.c.h.b16 %v7307
          %v8574 = vunpack.c.l.b16 %v7308
          %v8575 = vunpack.c.h.b16 %v7308
          %v8576 = vunpack.c.l.b16 %v7309
          %v8577 = vunpack.c.h.b16 %v7309
          %v8578 = vunpack.c.l.b16 %v7310
          %v8579 = vunpack.c.h.b16 %v7310
          %v8580 = vunpack.c.l.b16 %v7311
          %v8581 = vunpack.c.h.b16 %v7311
          %v8582 = vunpack.c.l.b16 %v7312
          %v8583 = vunpack.c.h.b16 %v7312
          %v8584 = vunpack.c.l.b16 %v7313
          %v8585 = vunpack.c.h.b16 %v7313
          %v8586 = vunpack.c.l.b16 %v7314
          %v8587 = vunpack.c.h.b16 %v7314
          %v8588 = vunpack.c.l.b16 %v7315
          %v8589 = vunpack.c.h.b16 %v7315
          %v8590 = vunpack.c.l.b16 %v7316
          %v8591 = vunpack.c.h.b16 %v7316
          %v8592 = vunpack.c.l.b16 %v7317
          %v8593 = vunpack.c.h.b16 %v7317
          %v8594 = vunpack.c.l.b16 %v7318
          %v8595 = vunpack.c.h.b16 %v7318
          %v8596 = vunpack.c.l.b16 %v7319
          %v8597 = vunpack.c.h.b16 %v7319
          %v8598 = vunpack.c.l.b16 %v7320
          %v8599 = vunpack.c.h.b16 %v7320
          %v8600 = vunpack.c.l.b16 %v7321
          %v8601 = vunpack.c.h.b16 %v7321
          %v8602 = vunpack.c.l.b16 %v7322
          %v8603 = vunpack.c.h.b16 %v7322
          %v8604 = vunpack.c.l.b16 %v7323
          %v8605 = vunpack.c.h.b16 %v7323
          %v8606 = vunpack.c.l.b16 %v7324
          %v8607 = vunpack.c.h.b16 %v7324
          %v8608 = vunpack.c.l.b16 %v7325
          %v8609 = vunpack.c.h.b16 %v7325
          %v8610 = vunpack.c.l.b16 %v7326
          %v8611 = vunpack.c.h.b16 %v7326
          %v8612 = vunpack.c.l.b16 %v7327
          %v8613 = vunpack.c.h.b16 %v7327
          %v8614 = vunpack.c.l.b16 %v7328
          %v8615 = vunpack.c.h.b16 %v7328
          %v8616 = vunpack.c.l.b16 %v7329
          %v8617 = vunpack.c.h.b16 %v7329
          %v8618 = vunpack.c.l.b16 %v7330
          %v8619 = vunpack.c.h.b16 %v7330
          %v8620 = vunpack.c.l.b16 %v7331
          %v8621 = vunpack.c.h.b16 %v7331
          %v8622 = vunpack.c.l.b16 %v7332
          %v8623 = vunpack.c.h.b16 %v7332
          %v8624 = vunpack.c.l.b16 %v7333
          %v8625 = vunpack.c.h.b16 %v7333
          %v8626 = vunpack.c.l.b16 %v7334
          %v8627 = vunpack.c.h.b16 %v7334
          %v8628 = vunpack.c.l.b16 %v7335
          %v8629 = vunpack.c.h.b16 %v7335
          %v8630 = vunpack.c.l.b16 %v7336
          %v8631 = vunpack.c.h.b16 %v7336
          %v8632 = vunpack.c.l.b16 %v7337
          %v8633 = vunpack.c.h.b16 %v7337
          %v8634 = vunpack.c.l.b16 %v7338
          %v8635 = vunpack.c.h.b16 %v7338
          %v8636 = vunpack.c.l.b16 %v7339
          %v8637 = vunpack.c.h.b16 %v7339
          %v8638 = vunpack.c.l.b16 %v7340
          %v8639 = vunpack.c.h.b16 %v7340
          %v8640 = vunpack.c.l.b16 %v7341
          %v8641 = vunpack.c.h.b16 %v7341
          %v8642 = vunpack.c.l.b16 %v7342
          %v8643 = vunpack.c.h.b16 %v7342
          %v8644 = vunpack.c.l.b16 %v7343
          %v8645 = vunpack.c.h.b16 %v7343
          %v8646 = vunpack.c.l.b16 %v7344
          %v8647 = vunpack.c.h.b16 %v7344
          %v8648 = vunpack.c.l.b16 %v7345
          %v8649 = vunpack.c.h.b16 %v7345
          %v8650 = vunpack.c.l.b16 %v7346
          %v8651 = vunpack.c.h.b16 %v7346
          %v8652 = vunpack.c.l.b16 %v7347
          %v8653 = vunpack.c.h.b16 %v7347
          %v8654 = vunpack.c.l.b16 %v7348
          %v8655 = vunpack.c.h.b16 %v7348
          %v8656 = vunpack.c.l.b16 %v7349
          %v8657 = vunpack.c.h.b16 %v7349
          %v8658 = vunpack.c.l.b16 %v7350
          %v8659 = vunpack.c.h.b16 %v7350
          %v8660 = vunpack.c.l.b16 %v7351
          %v8661 = vunpack.c.h.b16 %v7351
          %v8662 = vunpack.c.l.b16 %v7352
          %v8663 = vunpack.c.h.b16 %v7352
          %v8664 = vunpack.c.l.b16 %v7353
          %v8665 = vunpack.c.h.b16 %v7353
          %v8666 = vunpack.c.l.b16 %v7354
          %v8667 = vunpack.c.h.b16 %v7354
          %v8668 = vunpack.c.l.b16 %v7355
          %v8669 = vunpack.c.h.b16 %v7355
          %v8670 = vunpack.c.l.b16 %v7356
          %v8671 = vunpack.c.h.b16 %v7356
          %v8672 = vunpack.c.l.b16 %v7357
          %v8673 = vunpack.c.h.b16 %v7357
          %v8674 = vunpack.c.l.b16 %v7358
          %v8675 = vunpack.c.h.b16 %v7358
          %v8676 = vunpack.c.l.b16 %v7359
          %v8677 = vunpack.c.h.b16 %v7359
          %v8678 = vunpack.c.l.b16 %v7360
          %v8679 = vunpack.c.h.b16 %v7360
          %v8680 = vunpack.c.l.b16 %v7361
          %v8681 = vunpack.c.h.b16 %v7361
          %v8682 = vunpack.c.l.b16 %v7362
          %v8683 = vunpack.c.h.b16 %v7362
          %v8684 = vunpack.c.l.b16 %v7363
          %v8685 = vunpack.c.h.b16 %v7363
          %v8686 = vunpack.c.l.b16 %v7364
          %v8687 = vunpack.c.h.b16 %v7364
          %v8688 = vunpack.c.l.b16 %v7365
          %v8689 = vunpack.c.h.b16 %v7365
          %v8690 = vunpack.c.l.b16 %v7366
          %v8691 = vunpack.c.h.b16 %v7366
          %v8692 = vunpack.c.l.b16 %v7367
          %v8693 = vunpack.c.h.b16 %v7367
          %v8694 = vunpack.c.l.b16 %v7368
          %v8695 = vunpack.c.h.b16 %v7368
          %v8696 = vunpack.c.l.b16 %v7369
          %v8697 = vunpack.c.h.b16 %v7369
          %v8698 = vunpack.c.l.b16 %v7370
          %v8699 = vunpack.c.h.b16 %v7370
          %v8700 = vunpack.c.l.b16 %v7371
          %v8701 = vunpack.c.h.b16 %v7371
          %v8702 = vunpack.c.l.b16 %v7372
          %v8703 = vunpack.c.h.b16 %v7372
          %v8704 = vunpack.c.l.b16 %v7373
          %v8705 = vunpack.c.h.b16 %v7373
          %v8706 = vunpack.c.l.b16 %v7374
          %v8707 = vunpack.c.h.b16 %v7374
          %v8708 = vunpack.c.l.b16 %v7375
          %v8709 = vunpack.c.h.b16 %v7375
          %v8710 = vunpack.c.l.b16 %v7376
          %v8711 = vunpack.c.h.b16 %v7376
          %v8712 = vunpack.c.l.b16 %v7377
          %v8713 = vunpack.c.h.b16 %v7377
          %v8714 = vunpack.c.l.b16 %v7378
          %v8715 = vunpack.c.h.b16 %v7378
          %v8716 = vunpack.c.l.b16 %v7379
          %v8717 = vunpack.c.h.b16 %v7379
          %v8718 = vunpack.c.l.b16 %v7380
          %v8719 = vunpack.c.h.b16 %v7380
          %v8720 = vunpack.c.l.b16 %v7381
          %v8721 = vunpack.c.h.b16 %v7381
          %v8722 = vunpack.c.l.b16 %v7382
          %v8723 = vunpack.c.h.b16 %v7382
          %v8724 = vunpack.c.l.b16 %v7383
          %v8725 = vunpack.c.h.b16 %v7383
          %v8726 = vunpack.c.l.b16 %v7384
          %v8727 = vunpack.c.h.b16 %v7384
          %v8728 = vunpack.c.l.b16 %v7385
          %v8729 = vunpack.c.h.b16 %v7385
          %v8730 = vunpack.c.l.b16 %v7386
          %v8731 = vunpack.c.h.b16 %v7386
          %v8732 = vunpack.c.l.b16 %v7387
          %v8733 = vunpack.c.h.b16 %v7387
          %v8734 = vunpack.c.l.b16 %v7388
          %v8735 = vunpack.c.h.b16 %v7388
          %v8736 = vunpack.c.l.b16 %v7389
          %v8737 = vunpack.c.h.b16 %v7389
          %v8738 = vunpack.c.l.b16 %v7390
          %v8739 = vunpack.c.h.b16 %v7390
          %v8740 = vunpack.c.l.b16 %v7391
          %v8741 = vunpack.c.h.b16 %v7391
          %v8742 = vunpack.c.l.b16 %v7392
          %v8743 = vunpack.c.h.b16 %v7392
          %v8744 = vunpack.c.l.b16 %v7393
          %v8745 = vunpack.c.h.b16 %v7393
          %v8746 = vunpack.c.l.b16 %v7394
          %v8747 = vunpack.c.h.b16 %v7394
          %v8748 = vunpack.c.l.b16 %v7395
          %v8749 = vunpack.c.h.b16 %v7395
          %v8750 = vunpack.c.l.b16 %v7396
          %v8751 = vunpack.c.h.b16 %v7396
          %v8752 = vunpack.c.l.b16 %v7397
          %v8753 = vunpack.c.h.b16 %v7397
          %v8754 = vunpack.c.l.b16 %v7398
          %v8755 = vunpack.c.h.b16 %v7398
          %v8756 = vunpack.c.l.b16 %v7399
          %v8757 = vunpack.c.h.b16 %v7399
          %v8758 = vunpack.c.l.b16 %v7400
          %v8759 = vunpack.c.h.b16 %v7400
          %v8760 = vunpack.c.l.b16 %v7401
          %v8761 = vunpack.c.h.b16 %v7401
          %v8762 = vunpack.c.l.b16 %v7402
          %v8763 = vunpack.c.h.b16 %v7402
          %v8764 = vunpack.c.l.b16 %v7403
          %v8765 = vunpack.c.h.b16 %v7403
          %v8766 = vunpack.c.l.b16 %v7404
          %v8767 = vunpack.c.h.b16 %v7404
          %v8768 = vunpack.c.l.b16 %v7405
          %v8769 = vunpack.c.h.b16 %v7405
          %v8770 = vunpack.c.l.b16 %v7406
          %v8771 = vunpack.c.h.b16 %v7406
          %v8772 = vunpack.c.l.b16 %v7407
          %v8773 = vunpack.c.h.b16 %v7407
          %v8774 = vunpack.c.l.b16 %v7408
          %v8775 = vunpack.c.h.b16 %v7408
          %v8776 = vunpack.c.l.b16 %v7409
          %v8777 = vunpack.c.h.b16 %v7409
          %v8778 = vunpack.c.l.b16 %v7410
          %v8779 = vunpack.c.h.b16 %v7410
          %v8780 = vunpack.c.l.b16 %v7411
          %v8781 = vunpack.c.h.b16 %v7411
          %v8782 = vunpack.c.l.b16 %v7412
          %v8783 = vunpack.c.h.b16 %v7412
          %v8784 = vunpack.c.l.b16 %v7413
          %v8785 = vunpack.c.h.b16 %v7413
          %v8786 = vunpack.c.l.b16 %v7414
          %v8787 = vunpack.c.h.b16 %v7414
          %v8788 = vunpack.c.l.b16 %v7415
          %v8789 = vunpack.c.h.b16 %v7415
          %v8790 = vunpack.c.l.b16 %v7416
          %v8791 = vunpack.c.h.b16 %v7416
          %v8792 = vunpack.c.l.b16 %v7417
          %v8793 = vunpack.c.h.b16 %v7417
          %v8794 = vunpack.c.l.b16 %v7418
          %v8795 = vunpack.c.h.b16 %v7418
          %v8796 = vunpack.c.l.b16 %v7419
          %v8797 = vunpack.c.h.b16 %v7419
          %v8798 = vunpack.c.l.b16 %v7420
          %v8799 = vunpack.c.h.b16 %v7420
          %v8800 = vunpack.c.l.b16 %v7421
          %v8801 = vunpack.c.h.b16 %v7421
          %v8802 = vunpack.c.l.b16 %v7422
          %v8803 = vunpack.c.h.b16 %v7422
          %v8804 = vunpack.c.l.b16 %v7423
          %v8805 = vunpack.c.h.b16 %v7423
          %v8806 = vunpack.c.l.b16 %v7424
          %v8807 = vunpack.c.h.b16 %v7424
          %v8808 = vunpack.c.l.b16 %v7425
          %v8809 = vunpack.c.h.b16 %v7425
          %v8810 = vunpack.c.l.b16 %v7426
          %v8811 = vunpack.c.h.b16 %v7426
          %v8812 = vunpack.c.l.b16 %v7427
          %v8813 = vunpack.c.h.b16 %v7427
          %v8814 = vunpack.c.l.b16 %v7428
          %v8815 = vunpack.c.h.b16 %v7428
          %v8816 = vunpack.c.l.b16 %v7429
          %v8817 = vunpack.c.h.b16 %v7429
          %v8818 = vunpack.c.l.b16 %v7430
          %v8819 = vunpack.c.h.b16 %v7430
          %v8820 = vunpack.c.l.b16 %v7431
          %v8821 = vunpack.c.h.b16 %v7431
          %v8822 = vunpack.c.l.b16 %v7432
          %v8823 = vunpack.c.h.b16 %v7432
          %v8824 = vunpack.c.l.b16 %v7433
          %v8825 = vunpack.c.h.b16 %v7433
          %v8826 = vunpack.c.l.b16 %v7434
          %v8827 = vunpack.c.h.b16 %v7434
          %v8828 = vunpack.c.l.b16 %v7435
          %v8829 = vunpack.c.h.b16 %v7435
          %v8830 = vunpack.c.l.b16 %v7436
          %v8831 = vunpack.c.h.b16 %v7436
          %v8832 = vunpack.c.l.b16 %v7437
          %v8833 = vunpack.c.h.b16 %v7437
          %v8834 = vunpack.c.l.b16 %v7438
          %v8835 = vunpack.c.h.b16 %v7438
          %v8836 = vunpack.c.l.b16 %v7439
          %v8837 = vunpack.c.h.b16 %v7439
          %v8838 = vunpack.c.l.b16 %v7440
          %v8839 = vunpack.c.h.b16 %v7440
          %v8840 = vunpack.c.l.b16 %v7441
          %v8841 = vunpack.c.h.b16 %v7441
          %v8842 = vunpack.c.l.b16 %v7442
          %v8843 = vunpack.c.h.b16 %v7442
          %v8844 = vunpack.c.l.b16 %v7443
          %v8845 = vunpack.c.h.b16 %v7443
          %v8846 = vunpack.c.l.b16 %v7444
          %v8847 = vunpack.c.h.b16 %v7444
          %v8848 = vunpack.c.l.b16 %v7445
          %v8849 = vunpack.c.h.b16 %v7445
          %v8850 = vunpack.c.l.b16 %v7446
          %v8851 = vunpack.c.h.b16 %v7446
          %v8852 = vunpack.c.l.b16 %v7447
          %v8853 = vunpack.c.h.b16 %v7447
          %v8854 = vunpack.c.l.b16 %v7448
          %v8855 = vunpack.c.h.b16 %v7448
          %v8856 = vunpack.c.l.b16 %v7449
          %v8857 = vunpack.c.h.b16 %v7449
          %v8858 = vunpack.c.l.b16 %v7450
          %v8859 = vunpack.c.h.b16 %v7450
          %v8860 = vunpack.c.l.b16 %v7451
          %v8861 = vunpack.c.h.b16 %v7451
          %v8862 = vunpack.c.l.b16 %v7452
          %v8863 = vunpack.c.h.b16 %v7452
          %v8864 = vunpack.c.l.b16 %v7453
          %v8865 = vunpack.c.h.b16 %v7453
          %v8866 = vunpack.c.l.b16 %v7454
          %v8867 = vunpack.c.h.b16 %v7454
          %v8868 = vunpack.c.l.b16 %v7455
          %v8869 = vunpack.c.h.b16 %v7455
          %v8870 = vunpack.c.l.b16 %v7456
          %v8871 = vunpack.c.h.b16 %v7456
          %v8872 = vunpack.c.l.b16 %v7457
          %v8873 = vunpack.c.h.b16 %v7457
          %v8874 = vunpack.c.l.b16 %v7458
          %v8875 = vunpack.c.h.b16 %v7458
          %v8876 = vunpack.c.l.b16 %v7459
          %v8877 = vunpack.c.h.b16 %v7459
          %v8878 = vunpack.c.l.b16 %v7460
          %v8879 = vunpack.c.h.b16 %v7460
          %v8880 = vunpack.c.l.b16 %v7461
          %v8881 = vunpack.c.h.b16 %v7461
          %v8882 = vunpack.c.l.b16 %v7462
          %v8883 = vunpack.c.h.b16 %v7462
          %v8884 = vunpack.c.l.b16 %v7463
          %v8885 = vunpack.c.h.b16 %v7463
          %v8886 = vunpack.c.l.b16 %v7464
          %v8887 = vunpack.c.h.b16 %v7464
          %v8888 = vunpack.c.l.b16 %v7465
          %v8889 = vunpack.c.h.b16 %v7465
          %v8890 = vunpack.c.l.b16 %v7466
          %v8891 = vunpack.c.h.b16 %v7466
          %v8892 = vunpack.c.l.b16 %v7467
          %v8893 = vunpack.c.h.b16 %v7467
          %v8894 = vunpack.c.l.b16 %v7468
          %v8895 = vunpack.c.h.b16 %v7468
          %v8896 = vunpack.c.l.b16 %v7469
          %v8897 = vunpack.c.h.b16 %v7469
          %v8898 = vunpack.c.l.b16 %v7470
          %v8899 = vunpack.c.h.b16 %v7470
          %v8900 = vunpack.c.l.b16 %v7471
          %v8901 = vunpack.c.h.b16 %v7471
          %v8902 = vunpack.c.l.b16 %v7472
          %v8903 = vunpack.c.h.b16 %v7472
          %v8904 = vunpack.c.l.b16 %v7473
          %v8905 = vunpack.c.h.b16 %v7473
          %v8906 = vunpack.c.l.b16 %v7474
          %v8907 = vunpack.c.h.b16 %v7474
          %v8908 = vunpack.c.l.b16 %v7475
          %v8909 = vunpack.c.h.b16 %v7475
          %v8910 = vunpack.c.l.b16 %v7476
          %v8911 = vunpack.c.h.b16 %v7476
          %v8912 = vunpack.c.l.b16 %v7477
          %v8913 = vunpack.c.h.b16 %v7477
          %v8914 = vunpack.c.l.b16 %v7478
          %v8915 = vunpack.c.h.b16 %v7478
          %v8916 = vunpack.c.l.b16 %v7479
          %v8917 = vunpack.c.h.b16 %v7479
          %v8918 = vunpack.c.l.b16 %v7480
          %v8919 = vunpack.c.h.b16 %v7480
          %v8920 = vunpack.c.l.b16 %v7481
          %v8921 = vunpack.c.h.b16 %v7481
          %v8922 = vunpack.c.l.b16 %v7482
          %v8923 = vunpack.c.h.b16 %v7482
          %v8924 = vunpack.c.l.b16 %v7483
          %v8925 = vunpack.c.h.b16 %v7483
          %v8926 = vunpack.c.l.b16 %v7484
          %v8927 = vunpack.c.h.b16 %v7484
          %v8928 = vunpack.c.l.b16 %v7485
          %v8929 = vunpack.c.h.b16 %v7485
          %v8930 = vunpack.c.l.b16 %v7486
          %v8931 = vunpack.c.h.b16 %v7486
          %v8932 = vunpack.c.l.b16 %v7487
          %v8933 = vunpack.c.h.b16 %v7487
          %v8934 = vunpack.c.l.b16 %v7488
          %v8935 = vunpack.c.h.b16 %v7488
          %v8936 = vunpack.c.l.b16 %v7489
          %v8937 = vunpack.c.h.b16 %v7489
          %v8938 = vunpack.c.l.b16 %v7490
          %v8939 = vunpack.c.h.b16 %v7490
          %v8940 = vunpack.c.l.b16 %v7491
          %v8941 = vunpack.c.h.b16 %v7491
          %v8942 = vunpack.c.l.b16 %v7492
          %v8943 = vunpack.c.h.b16 %v7492
          %v8944 = vunpack.c.l.b16 %v7493
          %v8945 = vunpack.c.h.b16 %v7493
          %v8946 = vunpack.c.l.b16 %v7494
          %v8947 = vunpack.c.h.b16 %v7494
          %v8948 = vunpack.c.l.b16 %v7495
          %v8949 = vunpack.c.h.b16 %v7495
          %v8950 = vunpack.c.l.b16 %v7496
          %v8951 = vunpack.c.h.b16 %v7496
          %v8952 = vunpack.c.l.b16 %v7497
          %v8953 = vunpack.c.h.b16 %v7497
          %v8954 = vunpack.c.l.b16 %v7498
          %v8955 = vunpack.c.h.b16 %v7498
          %v8956 = vunpack.c.l.b16 %v7499
          %v8957 = vunpack.c.h.b16 %v7499
          %v8958 = vunpack.c.l.b16 %v7500
          %v8959 = vunpack.c.h.b16 %v7500
          %v8960 = vunpack.c.l.b16 %v7501
          %v8961 = vunpack.c.h.b16 %v7501
          %v8962 = vunpack.c.l.b16 %v7502
          %v8963 = vunpack.c.h.b16 %v7502
          %v8964 = vunpack.c.l.b16 %v7503
          %v8965 = vunpack.c.h.b16 %v7503
          %v8966 = vunpack.c.l.b16 %v7504
          %v8967 = vunpack.c.h.b16 %v7504
          %v8968 = vunpack.c.l.b16 %v7505
          %v8969 = vunpack.c.h.b16 %v7505
          %v8970 = vunpack.c.l.b16 %v7506
          %v8971 = vunpack.c.h.b16 %v7506
          %v8972 = vunpack.c.l.b16 %v7507
          %v8973 = vunpack.c.h.b16 %v7507
          %v8974 = vunpack.c.l.b16 %v7508
          %v8975 = vunpack.c.h.b16 %v7508
          %v8976 = vunpack.c.l.b16 %v7509
          %v8977 = vunpack.c.h.b16 %v7509
          %v8978 = vunpack.c.l.b16 %v7510
          %v8979 = vunpack.c.h.b16 %v7510
          %v8980 = vunpack.c.l.b16 %v7511
          %v8981 = vunpack.c.h.b16 %v7511
          %v8982 = vunpack.c.l.b16 %v7512
          %v8983 = vunpack.c.h.b16 %v7512
          %v8984 = vunpack.c.l.b16 %v7513
          %v8985 = vunpack.c.h.b16 %v7513
          %v8986 = vunpack.c.l.b16 %v7514
          %v8987 = vunpack.c.h.b16 %v7514
          %v8988 = vunpack.c.l.b16 %v7515
          %v8989 = vunpack.c.h.b16 %v7515
          %v8990 = vunpack.c.l.b16 %v7516
          %v8991 = vunpack.c.h.b16 %v7516
          %v8992 = vunpack.c.l.b16 %v7517
          %v8993 = vunpack.c.h.b16 %v7517
          %v8994 = vunpack.c.l.b16 %v7518
          %v8995 = vunpack.c.h.b16 %v7518
          %v8996 = vunpack.c.l.b16 %v7519
          %v8997 = vunpack.c.h.b16 %v7519
          %v8998 = vunpack.c.l.b16 %v7520
          %v8999 = vunpack.c.h.b16 %v7520
          %v9000 = vunpack.c.l.b16 %v7521
          %v9001 = vunpack.c.h.b16 %v7521
          %v9002 = vunpack.c.l.b16 %v7522
          %v9003 = vunpack.c.h.b16 %v7522
          %v9004 = vunpack.c.l.b16 %v7523
          %v9005 = vunpack.c.h.b16 %v7523
          %v9006 = vunpack.c.l.b16 %v7524
          %v9007 = vunpack.c.h.b16 %v7524
          %v9008 = vunpack.c.l.b16 %v7525
          %v9009 = vunpack.c.h.b16 %v7525
          %v9010 = vunpack.c.l.b16 %v7526
          %v9011 = vunpack.c.h.b16 %v7526
          %v9012 = vunpack.c.l.b16 %v7527
          %v9013 = vunpack.c.h.b16 %v7527
          %v9014 = vunpack.c.l.b16 %v7528
          %v9015 = vunpack.c.h.b16 %v7528
          %v9016 = vunpack.c.l.b16 %v7529
          %v9017 = vunpack.c.h.b16 %v7529
          %v9018 = vunpack.c.l.b16 %v7530
          %v9019 = vunpack.c.h.b16 %v7530
          %v9020 = vunpack.c.l.b16 %v7531
          %v9021 = vunpack.c.h.b16 %v7531
          %v9022 = vunpack.c.l.b16 %v7532
          %v9023 = vunpack.c.h.b16 %v7532
          %v9024 = vunpack.c.l.b16 %v7533
          %v9025 = vunpack.c.h.b16 %v7533
          %v9026 = vunpack.c.l.b16 %v7534
          %v9027 = vunpack.c.h.b16 %v7534
          %v9028 = vunpack.c.l.b16 %v7535
          %v9029 = vunpack.c.h.b16 %v7535
          %v9030 = vunpack.c.l.b16 %v7536
          %v9031 = vunpack.c.h.b16 %v7536
          %v9032 = vunpack.c.l.b16 %v7537
          %v9033 = vunpack.c.h.b16 %v7537
          %v9034 = vunpack.c.l.b16 %v7538
          %v9035 = vunpack.c.h.b16 %v7538
          %v9036 = vunpack.c.l.b16 %v7539
          %v9037 = vunpack.c.h.b16 %v7539
          %v9038 = vunpack.c.l.b16 %v7540
          %v9039 = vunpack.c.h.b16 %v7540
          %v9040 = vunpack.c.l.b16 %v7541
          %v9041 = vunpack.c.h.b16 %v7541
          %v9042 = vunpack.c.l.b16 %v7542
          %v9043 = vunpack.c.h.b16 %v7542
          %v9044 = vunpack.c.l.b16 %v7543
          %v9045 = vunpack.c.h.b16 %v7543
          %v9046 = vunpack.c.l.b16 %v7544
          %v9047 = vunpack.c.h.b16 %v7544
          %v9048 = vunpack.c.l.b16 %v7545
          %v9049 = vunpack.c.h.b16 %v7545
          %v9050 = vunpack.c.l.b16 %v7546
          %v9051 = vunpack.c.h.b16 %v7546
          %v9052 = vunpack.c.l.b16 %v7547
          %v9053 = vunpack.c.h.b16 %v7547
          %v9054 = vunpack.c.l.b16 %v7548
          %v9055 = vunpack.c.h.b16 %v7548
          %v9056 = vunpack.c.l.b16 %v7549
          %v9057 = vunpack.c.h.b16 %v7549
          %v9058 = vunpack.c.l.b16 %v7550
          %v9059 = vunpack.c.h.b16 %v7550
          %v9060 = vunpack.c.l.b16 %v7551
          %v9061 = vunpack.c.h.b16 %v7551
          %v9062 = vunpack.c.l.b16 %v7552
          %v9063 = vunpack.c.h.b16 %v7552
          %v9064 = vunpack.c.l.b16 %v7553
          %v9065 = vunpack.c.h.b16 %v7553
          %v9066 = vunpack.c.l.b16 %v7554
          %v9067 = vunpack.c.h.b16 %v7554
          %v9068 = vunpack.c.l.b16 %v7555
          %v9069 = vunpack.c.h.b16 %v7555
          %v9070 = vunpack.c.l.b16 %v7556
          %v9071 = vunpack.c.h.b16 %v7556
          %v9072 = vunpack.c.l.b16 %v7557
          %v9073 = vunpack.c.h.b16 %v7557
          %v9074 = vunpack.c.l.b16 %v7558
          %v9075 = vunpack.c.h.b16 %v7558
          %v9076 = vunpack.c.l.b16 %v7559
          %v9077 = vunpack.c.h.b16 %v7559
          %v9078 = vunpack.c.l.b16 %v7560
          %v9079 = vunpack.c.h.b16 %v7560
          %v9080 = vunpack.c.l.b16 %v7561
          %v9081 = vunpack.c.h.b16 %v7561
          %v9082 = vunpack.c.l.b16 %v7562
          %v9083 = vunpack.c.h.b16 %v7562
          %v9084 = vunpack.c.l.b16 %v7563
          %v9085 = vunpack.c.h.b16 %v7563
          %v9086 = vunpack.c.l.b16 %v7564
          %v9087 = vunpack.c.h.b16 %v7564
          %v9088 = vunpack.c.l.b16 %v7565
          %v9089 = vunpack.c.h.b16 %v7565
          %v9090 = vunpack.c.l.b16 %v7566
          %v9091 = vunpack.c.h.b16 %v7566
          %v9092 = vunpack.c.l.b16 %v7567
          %v9093 = vunpack.c.h.b16 %v7567
          %v9094 = vunpack.c.l.b16 %v7568
          %v9095 = vunpack.c.h.b16 %v7568
          %v9096 = vunpack.c.l.b16 %v7569
          %v9097 = vunpack.c.h.b16 %v7569
          %v9098 = vunpack.c.l.b16 %v7570
          %v9099 = vunpack.c.h.b16 %v7570
          %v9100 = vunpack.c.l.b16 %v7571
          %v9101 = vunpack.c.h.b16 %v7571
          %v9102 = vunpack.c.l.b16 %v7572
          %v9103 = vunpack.c.h.b16 %v7572
          %v9104 = vunpack.c.l.b16 %v7573
          %v9105 = vunpack.c.h.b16 %v7573
          %v9106 = vunpack.c.l.b16 %v7574
          %v9107 = vunpack.c.h.b16 %v7574
          %v9108 = vunpack.c.l.b16 %v7575
          %v9109 = vunpack.c.h.b16 %v7575
          %v9110 = vunpack.c.l.b16 %v7576
          %v9111 = vunpack.c.h.b16 %v7576
          %v9112 = vunpack.c.l.b16 %v7577
          %v9113 = vunpack.c.h.b16 %v7577
          %v9114 = vunpack.c.l.b16 %v7578
          %v9115 = vunpack.c.h.b16 %v7578
          %v9116 = vunpack.c.l.b16 %v7579
          %v9117 = vunpack.c.h.b16 %v7579
          %v9118 = vunpack.c.l.b16 %v7580
          %v9119 = vunpack.c.h.b16 %v7580
          %v9120 = vunpack.c.l.b16 %v7581
          %v9121 = vunpack.c.h.b16 %v7581
          %v9122 = vunpack.c.l.b16 %v7582
          %v9123 = vunpack.c.h.b16 %v7582
          %v9124 = vunpack.c.l.b16 %v7583
          %v9125 = vunpack.c.h.b16 %v7583
          %v9126 = vunpack.c.l.b16 %v7584
          %v9127 = vunpack.c.h.b16 %v7584
          %v9128 = vunpack.c.l.b16 %v7585
          %v9129 = vunpack.c.h.b16 %v7585
          %v9130 = vunpack.c.l.b16 %v7586
          %v9131 = vunpack.c.h.b16 %v7586
          %v9132 = vunpack.c.l.b16 %v7587
          %v9133 = vunpack.c.h.b16 %v7587
          %v9134 = vunpack.c.l.b16 %v7588
          %v9135 = vunpack.c.h.b16 %v7588
          %v9136 = vunpack.c.l.b16 %v7589
          %v9137 = vunpack.c.h.b16 %v7589
          %v9138 = vunpack.c.l.b16 %v7590
          %v9139 = vunpack.c.h.b16 %v7590
          %v9140 = vunpack.c.l.b16 %v7591
          %v9141 = vunpack.c.h.b16 %v7591
          %v9142 = vunpack.c.l.b16 %v7592
          %v9143 = vunpack.c.h.b16 %v7592
          %v9144 = vunpack.c.l.b16 %v7593
          %v9145 = vunpack.c.h.b16 %v7593
          %v9146 = vunpack.c.l.b16 %v7594
          %v9147 = vunpack.c.h.b16 %v7594
          %v9148 = vunpack.c.l.b16 %v7595
          %v9149 = vunpack.c.h.b16 %v7595
          %v9150 = vunpack.c.l.b16 %v7596
          %v9151 = vunpack.c.h.b16 %v7596
          %v9152 = vunpack.c.l.b16 %v7597
          %v9153 = vunpack.c.h.b16 %v7597
          %v9154 = vunpack.c.l.b16 %v7598
          %v9155 = vunpack.c.h.b16 %v7598
          %v9156 = vunpack.c.l.b16 %v7599
          %v9157 = vunpack.c.h.b16 %v7599
          %v9158 = vunpack.c.l.b16 %v7600
          %v9159 = vunpack.c.h.b16 %v7600
          %v9160 = vunpack.c.l.b16 %v7601
          %v9161 = vunpack.c.h.b16 %v7601
          %v9162 = vunpack.c.l.b16 %v7602
          %v9163 = vunpack.c.h.b16 %v7602
          %v9164 = vunpack.c.l.b16 %v7603
          %v9165 = vunpack.c.h.b16 %v7603
          %v9166 = vunpack.c.l.b16 %v7604
          %v9167 = vunpack.c.h.b16 %v7604
          %v9168 = vunpack.c.l.b16 %v7605
          %v9169 = vunpack.c.h.b16 %v7605
          %v9170 = vunpack.c.l.b16 %v7606
          %v9171 = vunpack.c.h.b16 %v7606
          %v9172 = vunpack.c.l.b16 %v7607
          %v9173 = vunpack.c.h.b16 %v7607
          %v9174 = vunpack.c.l.b16 %v7608
          %v9175 = vunpack.c.h.b16 %v7608
          %v9176 = vunpack.c.l.b16 %v7609
          %v9177 = vunpack.c.h.b16 %v7609
          %v9178 = vunpack.c.l.b16 %v7610
          %v9179 = vunpack.c.h.b16 %v7610
          %v9180 = vunpack.c.l.b16 %v7611
          %v9181 = vunpack.c.h.b16 %v7611
          %v9182 = vunpack.c.l.b16 %v7612
          %v9183 = vunpack.c.h.b16 %v7612
          %v9184 = vunpack.c.l.b16 %v7613
          %v9185 = vunpack.c.h.b16 %v7613
          %v9186 = vunpack.c.l.b16 %v7614
          %v9187 = vunpack.c.h.b16 %v7614
          %v9188 = vunpack.c.l.b16 %v7615
          %v9189 = vunpack.c.h.b16 %v7615
          %v9190 = vunpack.c.l.b16 %v7616
          %v9191 = vunpack.c.h.b16 %v7616
          %v9192 = vunpack.c.l.b16 %v7617
          %v9193 = vunpack.c.h.b16 %v7617
          %v9194 = vunpack.c.l.b16 %v7618
          %v9195 = vunpack.c.h.b16 %v7618
          %v9196 = vunpack.c.l.b16 %v7619
          %v9197 = vunpack.c.h.b16 %v7619
          %v9198 = vpack.c.b16 %v8182, %v8174
          %v9199 = vpack.c.b16 %v8183, %v8175
          %v9200 = vpack.c.b16 %v8184, %v8176
          %v9201 = vpack.c.b16 %v8185, %v8177
          %v9202 = vpack.c.b16 %v8186, %v8178
          %v9203 = vpack.c.b16 %v8187, %v8179
          %v9204 = vpack.c.b16 %v8188, %v8180
          %v9205 = vpack.c.b16 %v8189, %v8181
          %v9206 = vpack.c.b16 %v8198, %v8190
          %v9207 = vpack.c.b16 %v8199, %v8191
          %v9208 = vpack.c.b16 %v8200, %v8192
          %v9209 = vpack.c.b16 %v8201, %v8193
          %v9210 = vpack.c.b16 %v8202, %v8194
          %v9211 = vpack.c.b16 %v8203, %v8195
          %v9212 = vpack.c.b16 %v8204, %v8196
          %v9213 = vpack.c.b16 %v8205, %v8197
          %v9214 = vpack.c.b16 %v8214, %v8206
          %v9215 = vpack.c.b16 %v8215, %v8207
          %v9216 = vpack.c.b16 %v8216, %v8208
          %v9217 = vpack.c.b16 %v8217, %v8209
          %v9218 = vpack.c.b16 %v8218, %v8210
          %v9219 = vpack.c.b16 %v8219, %v8211
          %v9220 = vpack.c.b16 %v8220, %v8212
          %v9221 = vpack.c.b16 %v8221, %v8213
          %v9222 = vpack.c.b16 %v8230, %v8222
          %v9223 = vpack.c.b16 %v8231, %v8223
          %v9224 = vpack.c.b16 %v8232, %v8224
          %v9225 = vpack.c.b16 %v8233, %v8225
          %v9226 = vpack.c.b16 %v8234, %v8226
          %v9227 = vpack.c.b16 %v8235, %v8227
          %v9228 = vpack.c.b16 %v8236, %v8228
          %v9229 = vpack.c.b16 %v8237, %v8229
          %v9230 = vpack.c.b16 %v8246, %v8238
          %v9231 = vpack.c.b16 %v8247, %v8239
          %v9232 = vpack.c.b16 %v8248, %v8240
          %v9233 = vpack.c.b16 %v8249, %v8241
          %v9234 = vpack.c.b16 %v8250, %v8242
          %v9235 = vpack.c.b16 %v8251, %v8243
          %v9236 = vpack.c.b16 %v8252, %v8244
          %v9237 = vpack.c.b16 %v8253, %v8245
          %v9238 = vpack.c.b16 %v8262, %v8254
          %v9239 = vpack.c.b16 %v8263, %v8255
          %v9240 = vpack.c.b16 %v8264, %v8256
          %v9241 = vpack.c.b16 %v8265, %v8257
          %v9242 = vpack.c.b16 %v8266, %v8258
          %v9243 = vpack.c.b16 %v8267, %v8259
          %v9244 = vpack.c.b16 %v8268, %v8260
          %v9245 = vpack.c.b16 %v8269, %v8261
          %v9246 = vpack.c.b16 %v8278, %v8270
          %v9247 = vpack.c.b16 %v8279, %v8271
          %v9248 = vpack.c.b16 %v8280, %v8272
          %v9249 = vpack.c.b16 %v8281, %v8273
          %v9250 = vpack.c.b16 %v8282, %v8274
          %v9251 = vpack.c.b16 %v8283, %v8275
          %v9252 = vpack.c.b16 %v8284, %v8276
          %v9253 = vpack.c.b16 %v8285, %v8277
          %v9254 = vpack.c.b16 %v8294, %v8286
          %v9255 = vpack.c.b16 %v8295, %v8287
          %v9256 = vpack.c.b16 %v8296, %v8288
          %v9257 = vpack.c.b16 %v8297, %v8289
          %v9258 = vpack.c.b16 %v8298, %v8290
          %v9259 = vpack.c.b16 %v8299, %v8291
          %v9260 = vpack.c.b16 %v8300, %v8292
          %v9261 = vpack.c.b16 %v8301, %v8293
          %v9262 = vpack.c.b16 %v8310, %v8302
          %v9263 = vpack.c.b16 %v8311, %v8303
          %v9264 = vpack.c.b16 %v8312, %v8304
          %v9265 = vpack.c.b16 %v8313, %v8305
          %v9266 = vpack.c.b16 %v8314, %v8306
          %v9267 = vpack.c.b16 %v8315, %v8307
          %v9268 = vpack.c.b16 %v8316, %v8308
          %v9269 = vpack.c.b16 %v8317, %v8309
          %v9270 = vpack.c.b16 %v8326, %v8318
          %v9271 = vpack.c.b16 %v8327, %v8319
          %v9272 = vpack.c.b16 %v8328, %v8320
          %v9273 = vpack.c.b16 %v8329, %v8321
          %v9274 = vpack.c.b16 %v8330, %v8322
          %v9275 = vpack.c.b16 %v8331, %v8323
          %v9276 = vpack.c.b16 %v8332, %v8324
          %v9277 = vpack.c.b16 %v8333, %v8325
          %v9278 = vpack.c.b16 %v8342, %v8334
          %v9279 = vpack.c.b16 %v8343, %v8335
          %v9280 = vpack.c.b16 %v8344, %v8336
          %v9281 = vpack.c.b16 %v8345, %v8337
          %v9282 = vpack.c.b16 %v8346, %v8338
          %v9283 = vpack.c.b16 %v8347, %v8339
          %v9284 = vpack.c.b16 %v8348, %v8340
          %v9285 = vpack.c.b16 %v8349, %v8341
          %v9286 = vpack.c.b16 %v8358, %v8350
          %v9287 = vpack.c.b16 %v8359, %v8351
          %v9288 = vpack.c.b16 %v8360, %v8352
          %v9289 = vpack.c.b16 %v8361, %v8353
          %v9290 = vpack.c.b16 %v8362, %v8354
          %v9291 = vpack.c.b16 %v8363, %v8355
          %v9292 = vpack.c.b16 %v8364, %v8356
          %v9293 = vpack.c.b16 %v8365, %v8357
          %v9294 = vpack.c.b16 %v8374, %v8366
          %v9295 = vpack.c.b16 %v8375, %v8367
          %v9296 = vpack.c.b16 %v8376, %v8368
          %v9297 = vpack.c.b16 %v8377, %v8369
          %v9298 = vpack.c.b16 %v8378, %v8370
          %v9299 = vpack.c.b16 %v8379, %v8371
          %v9300 = vpack.c.b16 %v8380, %v8372
          %v9301 = vpack.c.b16 %v8381, %v8373
          %v9302 = vpack.c.b16 %v8390, %v8382
          %v9303 = vpack.c.b16 %v8391, %v8383
          %v9304 = vpack.c.b16 %v8392, %v8384
          %v9305 = vpack.c.b16 %v8393, %v8385
          %v9306 = vpack.c.b16 %v8394, %v8386
          %v9307 = vpack.c.b16 %v8395, %v8387
          %v9308 = vpack.c.b16 %v8396, %v8388
          %v9309 = vpack.c.b16 %v8397, %v8389
          %v9310 = vpack.c.b16 %v8406, %v8398
          %v9311 = vpack.c.b16 %v8407, %v8399
          %v9312 = vpack.c.b16 %v8408, %v8400
          %v9313 = vpack.c.b16 %v8409, %v8401
          %v9314 = vpack.c.b16 %v8410, %v8402
          %v9315 = vpack.c.b16 %v8411, %v8403
          %v9316 = vpack.c.b16 %v8412, %v8404
          %v9317 = vpack.c.b16 %v8413, %v8405
          %v9318 = vpack.c.b16 %v8422, %v8414
          %v9319 = vpack.c.b16 %v8423, %v8415
          %v9320 = vpack.c.b16 %v8424, %v8416
          %v9321 = vpack.c.b16 %v8425, %v8417
          %v9322 = vpack.c.b16 %v8426, %v8418
          %v9323 = vpack.c.b16 %v8427, %v8419
          %v9324 = vpack.c.b16 %v8428, %v8420
          %v9325 = vpack.c.b16 %v8429, %v8421
          %v9326 = vpack.c.b16 %v8438, %v8430
          %v9327 = vpack.c.b16 %v8439, %v8431
          %v9328 = vpack.c.b16 %v8440, %v8432
          %v9329 = vpack.c.b16 %v8441, %v8433
          %v9330 = vpack.c.b16 %v8442, %v8434
          %v9331 = vpack.c.b16 %v8443, %v8435
          %v9332 = vpack.c.b16 %v8444, %v8436
          %v9333 = vpack.c.b16 %v8445, %v8437
          %v9334 = vpack.c.b16 %v8454, %v8446
          %v9335 = vpack.c.b16 %v8455, %v8447
          %v9336 = vpack.c.b16 %v8456, %v8448
          %v9337 = vpack.c.b16 %v8457, %v8449
          %v9338 = vpack.c.b16 %v8458, %v8450
          %v9339 = vpack.c.b16 %v8459, %v8451
          %v9340 = vpack.c.b16 %v8460, %v8452
          %v9341 = vpack.c.b16 %v8461, %v8453
          %v9342 = vpack.c.b16 %v8470, %v8462
          %v9343 = vpack.c.b16 %v8471, %v8463
          %v9344 = vpack.c.b16 %v8472, %v8464
          %v9345 = vpack.c.b16 %v8473, %v8465
          %v9346 = vpack.c.b16 %v8474, %v8466
          %v9347 = vpack.c.b16 %v8475, %v8467
          %v9348 = vpack.c.b16 %v8476, %v8468
          %v9349 = vpack.c.b16 %v8477, %v8469
          %v9350 = vpack.c.b16 %v8486, %v8478
          %v9351 = vpack.c.b16 %v8487, %v8479
          %v9352 = vpack.c.b16 %v8488, %v8480
          %v9353 = vpack.c.b16 %v8489, %v8481
          %v9354 = vpack.c.b16 %v8490, %v8482
          %v9355 = vpack.c.b16 %v8491, %v8483
          %v9356 = vpack.c.b16 %v8492, %v8484
          %v9357 = vpack.c.b16 %v8493, %v8485
          %v9358 = vpack.c.b16 %v8502, %v8494
          %v9359 = vpack.c.b16 %v8503, %v8495
          %v9360 = vpack.c.b16 %v8504, %v8496
          %v9361 = vpack.c.b16 %v8505, %v8497
          %v9362 = vpack.c.b16 %v8506, %v8498
          %v9363 = vpack.c.b16 %v8507, %v8499
          %v9364 = vpack.c.b16 %v8508, %v8500
          %v9365 = vpack.c.b16 %v8509, %v8501
          %v9366 = vpack.c.b16 %v8518, %v8510
          %v9367 = vpack.c.b16 %v8519, %v8511
          %v9368 = vpack.c.b16 %v8520, %v8512
          %v9369 = vpack.c.b16 %v8521, %v8513
          %v9370 = vpack.c.b16 %v8522, %v8514
          %v9371 = vpack.c.b16 %v8523, %v8515
          %v9372 = vpack.c.b16 %v8524, %v8516
          %v9373 = vpack.c.b16 %v8525, %v8517
          %v9374 = vpack.c.b16 %v8534, %v8526
          %v9375 = vpack.c.b16 %v8535, %v8527
          %v9376 = vpack.c.b16 %v8536, %v8528
          %v9377 = vpack.c.b16 %v8537, %v8529
          %v9378 = vpack.c.b16 %v8538, %v8530
          %v9379 = vpack.c.b16 %v8539, %v8531
          %v9380 = vpack.c.b16 %v8540, %v8532
          %v9381 = vpack.c.b16 %v8541, %v8533
          %v9382 = vpack.c.b16 %v8550, %v8542
          %v9383 = vpack.c.b16 %v8551, %v8543
          %v9384 = vpack.c.b16 %v8552, %v8544
          %v9385 = vpack.c.b16 %v8553, %v8545
          %v9386 = vpack.c.b16 %v8554, %v8546
          %v9387 = vpack.c.b16 %v8555, %v8547
          %v9388 = vpack.c.b16 %v8556, %v8548
          %v9389 = vpack.c.b16 %v8557, %v8549
          %v9390 = vpack.c.b16 %v8566, %v8558
          %v9391 = vpack.c.b16 %v8567, %v8559
          %v9392 = vpack.c.b16 %v8568, %v8560
          %v9393 = vpack.c.b16 %v8569, %v8561
          %v9394 = vpack.c.b16 %v8570, %v8562
          %v9395 = vpack.c.b16 %v8571, %v8563
          %v9396 = vpack.c.b16 %v8572, %v8564
          %v9397 = vpack.c.b16 %v8573, %v8565
          %v9398 = vpack.c.b16 %v8582, %v8574
          %v9399 = vpack.c.b16 %v8583, %v8575
          %v9400 = vpack.c.b16 %v8584, %v8576
          %v9401 = vpack.c.b16 %v8585, %v8577
          %v9402 = vpack.c.b16 %v8586, %v8578
          %v9403 = vpack.c.b16 %v8587, %v8579
          %v9404 = vpack.c.b16 %v8588, %v8580
          %v9405 = vpack.c.b16 %v8589, %v8581
          %v9406 = vpack.c.b16 %v8598, %v8590
          %v9407 = vpack.c.b16 %v8599, %v8591
          %v9408 = vpack.c.b16 %v8600, %v8592
          %v9409 = vpack.c.b16 %v8601, %v8593
          %v9410 = vpack.c.b16 %v8602, %v8594
          %v9411 = vpack.c.b16 %v8603, %v8595
          %v9412 = vpack.c.b16 %v8604, %v8596
          %v9413 = vpack.c.b16 %v8605, %v8597
          %v9414 = vpack.c.b16 %v8614, %v8606
          %v9415 = vpack.c.b16 %v8615, %v8607
          %v9416 = vpack.c.b16 %v8616, %v8608
          %v9417 = vpack.c.b16 %v8617, %v8609
          %v9418 = vpack.c.b16 %v8618, %v8610
          %v9419 = vpack.c.b16 %v8619, %v8611
          %v9420 = vpack.c.b16 %v8620, %v8612
          %v9421 = vpack.c.b16 %v8621, %v8613
          %v9422 = vpack.c.b16 %v8630, %v8622
          %v9423 = vpack.c.b16 %v8631, %v8623
          %v9424 = vpack.c.b16 %v8632, %v8624
          %v9425 = vpack.c.b16 %v8633, %v8625
          %v9426 = vpack.c.b16 %v8634, %v8626
          %v9427 = vpack.c.b16 %v8635, %v8627
          %v9428 = vpack.c.b16 %v8636, %v8628
          %v9429 = vpack.c.b16 %v8637, %v8629
          %v9430 = vpack.c.b16 %v8646, %v8638
          %v9431 = vpack.c.b16 %v8647, %v8639
          %v9432 = vpack.c.b16 %v8648, %v8640
          %v9433 = vpack.c.b16 %v8649, %v8641
          %v9434 = vpack.c.b16 %v8650, %v8642
          %v9435 = vpack.c.b16 %v8651, %v8643
          %v9436 = vpack.c.b16 %v8652, %v8644
          %v9437 = vpack.c.b16 %v8653, %v8645
          %v9438 = vpack.c.b16 %v8662, %v8654
          %v9439 = vpack.c.b16 %v8663, %v8655
          %v9440 = vpack.c.b16 %v8664, %v8656
          %v9441 = vpack.c.b16 %v8665, %v8657
          %v9442 = vpack.c.b16 %v8666, %v8658
          %v9443 = vpack.c.b16 %v8667, %v8659
          %v9444 = vpack.c.b16 %v8668, %v8660
          %v9445 = vpack.c.b16 %v8669, %v8661
          %v9446 = vpack.c.b16 %v8678, %v8670
          %v9447 = vpack.c.b16 %v8679, %v8671
          %v9448 = vpack.c.b16 %v8680, %v8672
          %v9449 = vpack.c.b16 %v8681, %v8673
          %v9450 = vpack.c.b16 %v8682, %v8674
          %v9451 = vpack.c.b16 %v8683, %v8675
          %v9452 = vpack.c.b16 %v8684, %v8676
          %v9453 = vpack.c.b16 %v8685, %v8677
          %v9454 = vpack.c.b16 %v8694, %v8686
          %v9455 = vpack.c.b16 %v8695, %v8687
          %v9456 = vpack.c.b16 %v8696, %v8688
          %v9457 = vpack.c.b16 %v8697, %v8689
          %v9458 = vpack.c.b16 %v8698, %v8690
          %v9459 = vpack.c.b16 %v8699, %v8691
          %v9460 = vpack.c.b16 %v8700, %v8692
          %v9461 = vpack.c.b16 %v8701, %v8693
          %v9462 = vpack.c.b16 %v8710, %v8702
          %v9463 = vpack.c.b16 %v8711, %v8703
          %v9464 = vpack.c.b16 %v8712, %v8704
          %v9465 = vpack.c.b16 %v8713, %v8705
          %v9466 = vpack.c.b16 %v8714, %v8706
          %v9467 = vpack.c.b16 %v8715, %v8707
          %v9468 = vpack.c.b16 %v8716, %v8708
          %v9469 = vpack.c.b16 %v8717, %v8709
          %v9470 = vpack.c.b16 %v8726, %v8718
          %v9471 = vpack.c.b16 %v8727, %v8719
          %v9472 = vpack.c.b16 %v8728, %v8720
          %v9473 = vpack.c.b16 %v8729, %v8721
          %v9474 = vpack.c.b16 %v8730, %v8722
          %v9475 = vpack.c.b16 %v8731, %v8723
          %v9476 = vpack.c.b16 %v8732, %v8724
          %v9477 = vpack.c.b16 %v8733, %v8725
          %v9478 = vpack.c.b16 %v8742, %v8734
          %v9479 = vpack.c.b16 %v8743, %v8735
          %v9480 = vpack.c.b16 %v8744, %v8736
          %v9481 = vpack.c.b16 %v8745, %v8737
          %v9482 = vpack.c.b16 %v8746, %v8738
          %v9483 = vpack.c.b16 %v8747, %v8739
          %v9484 = vpack.c.b16 %v8748, %v8740
          %v9485 = vpack.c.b16 %v8749, %v8741
          %v9486 = vpack.c.b16 %v8758, %v8750
          %v9487 = vpack.c.b16 %v8759, %v8751
          %v9488 = vpack.c.b16 %v8760, %v8752
          %v9489 = vpack.c.b16 %v8761, %v8753
          %v9490 = vpack.c.b16 %v8762, %v8754
          %v9491 = vpack.c.b16 %v8763, %v8755
          %v9492 = vpack.c.b16 %v8764, %v8756
          %v9493 = vpack.c.b16 %v8765, %v8757
          %v9494 = vpack.c.b16 %v8774, %v8766
          %v9495 = vpack.c.b16 %v8775, %v8767
          %v9496 = vpack.c.b16 %v8776, %v8768
          %v9497 = vpack.c.b16 %v8777, %v8769
          %v9498 = vpack.c.b16 %v8778, %v8770
          %v9499 = vpack.c.b16 %v8779, %v8771
          %v9500 = vpack.c.b16 %v8780, %v8772
          %v9501 = vpack.c.b16 %v8781, %v8773
          %v9502 = vpack.c.b16 %v8790, %v8782
          %v9503 = vpack.c.b16 %v8791, %v8783
          %v9504 = vpack.c.b16 %v8792, %v8784
          %v9505 = vpack.c.b16 %v8793, %v8785
          %v9506 = vpack.c.b16 %v8794, %v8786
          %v9507 = vpack.c.b16 %v8795, %v8787
          %v9508 = vpack.c.b16 %v8796, %v8788
          %v9509 = vpack.c.b16 %v8797, %v8789
          %v9510 = vpack.c.b16 %v8806, %v8798
          %v9511 = vpack.c.b16 %v8807, %v8799
          %v9512 = vpack.c.b16 %v8808, %v8800
          %v9513 = vpack.c.b16 %v8809, %v8801
          %v9514 = vpack.c.b16 %v8810, %v8802
          %v9515 = vpack.c.b16 %v8811, %v8803
          %v9516 = vpack.c.b16 %v8812, %v8804
          %v9517 = vpack.c.b16 %v8813, %v8805
          %v9518 = vpack.c.b16 %v8822, %v8814
          %v9519 = vpack.c.b16 %v8823, %v8815
          %v9520 = vpack.c.b16 %v8824, %v8816
          %v9521 = vpack.c.b16 %v8825, %v8817
          %v9522 = vpack.c.b16 %v8826, %v8818
          %v9523 = vpack.c.b16 %v8827, %v8819
          %v9524 = vpack.c.b16 %v8828, %v8820
          %v9525 = vpack.c.b16 %v8829, %v8821
          %v9526 = vpack.c.b16 %v8838, %v8830
          %v9527 = vpack.c.b16 %v8839, %v8831
          %v9528 = vpack.c.b16 %v8840, %v8832
          %v9529 = vpack.c.b16 %v8841, %v8833
          %v9530 = vpack.c.b16 %v8842, %v8834
          %v9531 = vpack.c.b16 %v8843, %v8835
          %v9532 = vpack.c.b16 %v8844, %v8836
          %v9533 = vpack.c.b16 %v8845, %v8837
          %v9534 = vpack.c.b16 %v8854, %v8846
          %v9535 = vpack.c.b16 %v8855, %v8847
          %v9536 = vpack.c.b16 %v8856, %v8848
          %v9537 = vpack.c.b16 %v8857, %v8849
          %v9538 = vpack.c.b16 %v8858, %v8850
          %v9539 = vpack.c.b16 %v8859, %v8851
          %v9540 = vpack.c.b16 %v8860, %v8852
          %v9541 = vpack.c.b16 %v8861, %v8853
          %v9542 = vpack.c.b16 %v8870, %v8862
          %v9543 = vpack.c.b16 %v8871, %v8863
          %v9544 = vpack.c.b16 %v8872, %v8864
          %v9545 = vpack.c.b16 %v8873, %v8865
          %v9546 = vpack.c.b16 %v8874, %v8866
          %v9547 = vpack.c.b16 %v8875, %v8867
          %v9548 = vpack.c.b16 %v8876, %v8868
          %v9549 = vpack.c.b16 %v8877, %v8869
          %v9550 = vpack.c.b16 %v8886, %v8878
          %v9551 = vpack.c.b16 %v8887, %v8879
          %v9552 = vpack.c.b16 %v8888, %v8880
          %v9553 = vpack.c.b16 %v8889, %v8881
          %v9554 = vpack.c.b16 %v8890, %v8882
          %v9555 = vpack.c.b16 %v8891, %v8883
          %v9556 = vpack.c.b16 %v8892, %v8884
          %v9557 = vpack.c.b16 %v8893, %v8885
          %v9558 = vpack.c.b16 %v8902, %v8894
          %v9559 = vpack.c.b16 %v8903, %v8895
          %v9560 = vpack.c.b16 %v8904, %v8896
          %v9561 = vpack.c.b16 %v8905, %v8897
          %v9562 = vpack.c.b16 %v8906, %v8898
          %v9563 = vpack.c.b16 %v8907, %v8899
          %v9564 = vpack.c.b16 %v8908, %v8900
          %v9565 = vpack.c.b16 %v8909, %v8901
          %v9566 = vpack.c.b16 %v8918, %v8910
          %v9567 = vpack.c.b16 %v8919, %v8911
          %v9568 = vpack.c.b16 %v8920, %v8912
          %v9569 = vpack.c.b16 %v8921, %v8913
          %v9570 = vpack.c.b16 %v8922, %v8914
          %v9571 = vpack.c.b16 %v8923, %v8915
          %v9572 = vpack.c.b16 %v8924, %v8916
          %v9573 = vpack.c.b16 %v8925, %v8917
          %v9574 = vpack.c.b16 %v8934, %v8926
          %v9575 = vpack.c.b16 %v8935, %v8927
          %v9576 = vpack.c.b16 %v8936, %v8928
          %v9577 = vpack.c.b16 %v8937, %v8929
          %v9578 = vpack.c.b16 %v8938, %v8930
          %v9579 = vpack.c.b16 %v8939, %v8931
          %v9580 = vpack.c.b16 %v8940, %v8932
          %v9581 = vpack.c.b16 %v8941, %v8933
          %v9582 = vpack.c.b16 %v8950, %v8942
          %v9583 = vpack.c.b16 %v8951, %v8943
          %v9584 = vpack.c.b16 %v8952, %v8944
          %v9585 = vpack.c.b16 %v8953, %v8945
          %v9586 = vpack.c.b16 %v8954, %v8946
          %v9587 = vpack.c.b16 %v8955, %v8947
          %v9588 = vpack.c.b16 %v8956, %v8948
          %v9589 = vpack.c.b16 %v8957, %v8949
          %v9590 = vpack.c.b16 %v8966, %v8958
          %v9591 = vpack.c.b16 %v8967, %v8959
          %v9592 = vpack.c.b16 %v8968, %v8960
          %v9593 = vpack.c.b16 %v8969, %v8961
          %v9594 = vpack.c.b16 %v8970, %v8962
          %v9595 = vpack.c.b16 %v8971, %v8963
          %v9596 = vpack.c.b16 %v8972, %v8964
          %v9597 = vpack.c.b16 %v8973, %v8965
          %v9598 = vpack.c.b16 %v8982, %v8974
          %v9599 = vpack.c.b16 %v8983, %v8975
          %v9600 = vpack.c.b16 %v8984, %v8976
          %v9601 = vpack.c.b16 %v8985, %v8977
          %v9602 = vpack.c.b16 %v8986, %v8978
          %v9603 = vpack.c.b16 %v8987, %v8979
          %v9604 = vpack.c.b16 %v8988, %v8980
          %v9605 = vpack.c.b16 %v8989, %v8981
          %v9606 = vpack.c.b16 %v8998, %v8990
          %v9607 = vpack.c.b16 %v8999, %v8991
          %v9608 = vpack.c.b16 %v9000, %v8992
          %v9609 = vpack.c.b16 %v9001, %v8993
          %v9610 = vpack.c.b16 %v9002, %v8994
          %v9611 = vpack.c.b16 %v9003, %v8995
          %v9612 = vpack.c.b16 %v9004, %v8996
          %v9613 = vpack.c.b16 %v9005, %v8997
          %v9614 = vpack.c.b16 %v9014, %v9006
          %v9615 = vpack.c.b16 %v9015, %v9007
          %v9616 = vpack.c.b16 %v9016, %v9008
          %v9617 = vpack.c.b16 %v9017, %v9009
          %v9618 = vpack.c.b16 %v9018, %v9010
          %v9619 = vpack.c.b16 %v9019, %v9011
          %v9620 = vpack.c.b16 %v9020, %v9012
          %v9621 = vpack.c.b16 %v9021, %v9013
          %v9622 = vpack.c.b16 %v9030, %v9022
          %v9623 = vpack.c.b16 %v9031, %v9023
          %v9624 = vpack.c.b16 %v9032, %v9024
          %v9625 = vpack.c.b16 %v9033, %v9025
          %v9626 = vpack.c.b16 %v9034, %v9026
          %v9627 = vpack.c.b16 %v9035, %v9027
          %v9628 = vpack.c.b16 %v9036, %v9028
          %v9629 = vpack.c.b16 %v9037, %v9029
          %v9630 = vpack.c.b16 %v9046, %v9038
          %v9631 = vpack.c.b16 %v9047, %v9039
          %v9632 = vpack.c.b16 %v9048, %v9040
          %v9633 = vpack.c.b16 %v9049, %v9041
          %v9634 = vpack.c.b16 %v9050, %v9042
          %v9635 = vpack.c.b16 %v9051, %v9043
          %v9636 = vpack.c.b16 %v9052, %v9044
          %v9637 = vpack.c.b16 %v9053, %v9045
          %v9638 = vpack.c.b16 %v9062, %v9054
          %v9639 = vpack.c.b16 %v9063, %v9055
          %v9640 = vpack.c.b16 %v9064, %v9056
          %v9641 = vpack.c.b16 %v9065, %v9057
          %v9642 = vpack.c.b16 %v9066, %v9058
          %v9643 = vpack.c.b16 %v9067, %v9059
          %v9644 = vpack.c.b16 %v9068, %v9060
          %v9645 = vpack.c.b16 %v9069, %v9061
          %v9646 = vpack.c.b16 %v9078, %v9070
          %v9647 = vpack.c.b16 %v9079, %v9071
          %v9648 = vpack.c.b16 %v9080, %v9072
          %v9649 = vpack.c.b16 %v9081, %v9073
          %v9650 = vpack.c.b16 %v9082, %v9074
          %v9651 = vpack.c.b16 %v9083, %v9075
          %v9652 = vpack.c.b16 %v9084, %v9076
          %v9653 = vpack.c.b16 %v9085, %v9077
          %v9654 = vpack.c.b16 %v9094, %v9086
          %v9655 = vpack.c.b16 %v9095, %v9087
          %v9656 = vpack.c.b16 %v9096, %v9088
          %v9657 = vpack.c.b16 %v9097, %v9089
          %v9658 = vpack.c.b16 %v9098, %v9090
          %v9659 = vpack.c.b16 %v9099, %v9091
          %v9660 = vpack.c.b16 %v9100, %v9092
          %v9661 = vpack.c.b16 %v9101, %v9093
          %v9662 = vpack.c.b16 %v9110, %v9102
          %v9663 = vpack.c.b16 %v9111, %v9103
          %v9664 = vpack.c.b16 %v9112, %v9104
          %v9665 = vpack.c.b16 %v9113, %v9105
          %v9666 = vpack.c.b16 %v9114, %v9106
          %v9667 = vpack.c.b16 %v9115, %v9107
          %v9668 = vpack.c.b16 %v9116, %v9108
          %v9669 = vpack.c.b16 %v9117, %v9109
          %v9670 = vpack.c.b16 %v9126, %v9118
          %v9671 = vpack.c.b16 %v9127, %v9119
          %v9672 = vpack.c.b16 %v9128, %v9120
          %v9673 = vpack.c.b16 %v9129, %v9121
          %v9674 = vpack.c.b16 %v9130, %v9122
          %v9675 = vpack.c.b16 %v9131, %v9123
          %v9676 = vpack.c.b16 %v9132, %v9124
          %v9677 = vpack.c.b16 %v9133, %v9125
          %v9678 = vpack.c.b16 %v9142, %v9134
          %v9679 = vpack.c.b16 %v9143, %v9135
          %v9680 = vpack.c.b16 %v9144, %v9136
          %v9681 = vpack.c.b16 %v9145, %v9137
          %v9682 = vpack.c.b16 %v9146, %v9138
          %v9683 = vpack.c.b16 %v9147, %v9139
          %v9684 = vpack.c.b16 %v9148, %v9140
          %v9685 = vpack.c.b16 %v9149, %v9141
          %v9686 = vpack.c.b16 %v9158, %v9150
          %v9687 = vpack.c.b16 %v9159, %v9151
          %v9688 = vpack.c.b16 %v9160, %v9152
          %v9689 = vpack.c.b16 %v9161, %v9153
          %v9690 = vpack.c.b16 %v9162, %v9154
          %v9691 = vpack.c.b16 %v9163, %v9155
          %v9692 = vpack.c.b16 %v9164, %v9156
          %v9693 = vpack.c.b16 %v9165, %v9157
          %v9694 = vpack.c.b16 %v9174, %v9166
          %v9695 = vpack.c.b16 %v9175, %v9167
          %v9696 = vpack.c.b16 %v9176, %v9168
          %v9697 = vpack.c.b16 %v9177, %v9169
          %v9698 = vpack.c.b16 %v9178, %v9170
          %v9699 = vpack.c.b16 %v9179, %v9171
          %v9700 = vpack.c.b16 %v9180, %v9172
          %v9701 = vpack.c.b16 %v9181, %v9173
          %v9702 = vpack.c.b16 %v9190, %v9182
          %v9703 = vpack.c.b16 %v9191, %v9183
          %v9704 = vpack.c.b16 %v9192, %v9184
          %v9705 = vpack.c.b16 %v9193, %v9185
          %v9706 = vpack.c.b16 %v9194, %v9186
          %v9707 = vpack.c.b16 %v9195, %v9187
          %v9708 = vpack.c.b16 %v9196, %v9188
          %v9709 = vpack.c.b16 %v9197, %v9189
          %10222 = vmatprep.subr.bf16.mxu0 %v9199
          %10223 = vmatpush1.bf16.msra.mxu0 %v9198
          %10224 = vmatprep.subr.bf16.mxu0 %v9207
          %10225 = vmatpush1.bf16.msra.mxu0 %v9206
          %10226 = vmatprep.subr.bf16.mxu0 %v9215
          %10227 = vmatpush1.bf16.msra.mxu0 %v9214
          %10228 = vmatprep.subr.bf16.mxu0 %v9223
          %10229 = vmatpush1.bf16.msra.mxu0 %v9222
          %10230 = vmatprep.subr.bf16.mxu0 %v9231
          %10231 = vmatpush1.bf16.msra.mxu0 %v9230
          %10232 = vmatprep.subr.bf16.mxu0 %v9239
          %10233 = vmatpush1.bf16.msra.mxu0 %v9238
          %10234 = vmatprep.subr.bf16.mxu0 %v9247
          %10235 = vmatpush1.bf16.msra.mxu0 %v9246
          %10236 = vmatprep.subr.bf16.mxu0 %v9255
          %10237 = vmatpush1.bf16.msra.mxu0 %v9254
          %10238 = vmatprep.subr.bf16.mxu0 %v9263
          %10239 = vmatpush1.bf16.msra.mxu0 %v9262
          %10240 = vmatprep.subr.bf16.mxu0 %v9271
          %10241 = vmatpush1.bf16.msra.mxu0 %v9270
          %10242 = vmatprep.subr.bf16.mxu0 %v9279
          %10243 = vmatpush1.bf16.msra.mxu0 %v9278
          %10244 = vmatprep.subr.bf16.mxu0 %v9287
          %10245 = vmatpush1.bf16.msra.mxu0 %v9286
          %10246 = vmatprep.subr.bf16.mxu0 %v9295
          %10247 = vmatpush1.bf16.msra.mxu0 %v9294
          %10248 = vmatprep.subr.bf16.mxu0 %v9303
          %10249 = vmatpush1.bf16.msra.mxu0 %v9302
          %10250 = vmatprep.subr.bf16.mxu0 %v9311
          %10251 = vmatpush1.bf16.msra.mxu0 %v9310
          %10252 = vmatprep.subr.bf16.mxu0 %v9319
          %10253 = vmatpush1.bf16.msra.mxu0 %v9318
          %10254 = vmatprep.mubr.bf16.mxu0 %v7101
          %10255 = vmatmul.mubr.bf16.gmra.mrb[0].mxu0 %v7100
          %v10256 = vpop.f32.mrb[0].mxu0
          %v10257 = vadd.f32 %v7625, %v10256
          %v10258 = vpop.f32.mrb[0].mxu0
          %v10259 = vadd.f32 %v7629, %v10258
          %v10260 = vpop.f32.mrb[0].mxu0
          %v10261 = vpop.f32.mrb[0].mxu0
          %10262 = vdwg.mxu0
          %10263 = vmatprep.subr.bf16.mxu0 %v9327
          %10264 = vmatpush1.bf16.msra.mxu0 %v9326
          %10265 = vmatprep.subr.bf16.mxu0 %v9335
          %10266 = vmatpush1.bf16.msra.mxu0 %v9334
          %10267 = vmatprep.subr.bf16.mxu0 %v9343
          %10268 = vmatpush1.bf16.msra.mxu0 %v9342
          %10269 = vmatprep.subr.bf16.mxu0 %v9351
          %10270 = vmatpush1.bf16.msra.mxu0 %v9350
          %10271 = vmatprep.subr.bf16.mxu0 %v9359
          %10272 = vmatpush1.bf16.msra.mxu0 %v9358
          %10273 = vmatprep.subr.bf16.mxu0 %v9367
          %10274 = vmatpush1.bf16.msra.mxu0 %v9366
          %10275 = vmatprep.subr.bf16.mxu0 %v9375
          %10276 = vmatpush1.bf16.msra.mxu0 %v9374
          %10277 = vmatprep.subr.bf16.mxu0 %v9383
          %10278 = vmatpush1.bf16.msra.mxu0 %v9382
          %10279 = vmatprep.subr.bf16.mxu0 %v9391
          %10280 = vmatpush1.bf16.msra.mxu0 %v9390
          %10281 = vmatprep.subr.bf16.mxu0 %v9399
          %10282 = vmatpush1.bf16.msra.mxu0 %v9398
          %10283 = vmatprep.subr.bf16.mxu0 %v9407
          %10284 = vmatpush1.bf16.msra.mxu0 %v9406
          %10285 = vmatprep.subr.bf16.mxu0 %v9415
          %10286 = vmatpush1.bf16.msra.mxu0 %v9414
          %10287 = vmatprep.subr.bf16.mxu0 %v9423
          %10288 = vmatpush1.bf16.msra.mxu0 %v9422
          %10289 = vmatprep.subr.bf16.mxu0 %v9431
          %10290 = vmatpush1.bf16.msra.mxu0 %v9430
          %10291 = vmatprep.subr.bf16.mxu0 %v9439
          %10292 = vmatpush1.bf16.msra.mxu0 %v9438
          %10293 = vmatprep.subr.bf16.mxu0 %v9447
          %10294 = vmatpush1.bf16.msra.mxu0 %v9446
          %10295 = vmatprep.mubr.bf16.mxu0 %v7103
          %10296 = vmatmul.mubr.bf16.gmra.mrb[0].mxu0 %v7102
          %v10297 = vpop.f32.mrb[0].mxu0
          %v10298 = vadd.f32 %v10257, %v10297
          %v10299 = vpop.f32.mrb[0].mxu0
          %v10300 = vadd.f32 %v10259, %v10299
          %v10301 = vpop.f32.mrb[0].mxu0
          %v10302 = vpop.f32.mrb[0].mxu0
          %10303 = vdwg.mxu0
          %10304 = vmatprep.subr.bf16.mxu0 %v9455
          %10305 = vmatpush1.bf16.msra.mxu0 %v9454
          %10306 = vmatprep.subr.bf16.mxu0 %v9463
          %10307 = vmatpush1.bf16.msra.mxu0 %v9462
          %10308 = vmatprep.subr.bf16.mxu0 %v9471
          %10309 = vmatpush1.bf16.msra.mxu0 %v9470
          %10310 = vmatprep.subr.bf16.mxu0 %v9479
          %10311 = vmatpush1.bf16.msra.mxu0 %v9478
          %10312 = vmatprep.subr.bf16.mxu0 %v9487
          %10313 = vmatpush1.bf16.msra.mxu0 %v9486
          %10314 = vmatprep.subr.bf16.mxu0 %v9495
          %10315 = vmatpush1.bf16.msra.mxu0 %v9494
          %10316 = vmatprep.subr.bf16.mxu0 %v9503
          %10317 = vmatpush1.bf16.msra.mxu0 %v9502
          %10318 = vmatprep.subr.bf16.mxu0 %v9511
          %10319 = vmatpush1.bf16.msra.mxu0 %v9510
          %10320 = vmatprep.subr.bf16.mxu0 %v9519
          %10321 = vmatpush1.bf16.msra.mxu0 %v9518
          %10322 = vmatprep.subr.bf16.mxu0 %v9527
          %10323 = vmatpush1.bf16.msra.mxu0 %v9526
          %10324 = vmatprep.subr.bf16.mxu0 %v9535
          %10325 = vmatpush1.bf16.msra.mxu0 %v9534
          %10326 = vmatprep.subr.bf16.mxu0 %v9543
          %10327 = vmatpush1.bf16.msra.mxu0 %v9542
          %10328 = vmatprep.subr.bf16.mxu0 %v9551
          %10329 = vmatpush1.bf16.msra.mxu0 %v9550
          %10330 = vmatprep.subr.bf16.mxu0 %v9559
          %10331 = vmatpush1.bf16.msra.mxu0 %v9558
          %10332 = vmatprep.subr.bf16.mxu0 %v9567
          %10333 = vmatpush1.bf16.msra.mxu0 %v9566
          %10334 = vmatprep.subr.bf16.mxu0 %v9575
          %10335 = vmatpush1.bf16.msra.mxu0 %v9574
          %10336 = vmatprep.mubr.bf16.mxu0 %v7105
          %10337 = vmatmul.mubr.bf16.gmra.mrb[0].mxu0 %v7104
          %v10338 = vpop.f32.mrb[0].mxu0
          %v10339 = vadd.f32 %v10298, %v10338
          %v10340 = vpop.f32.mrb[0].mxu0
          %v10341 = vadd.f32 %v10300, %v10340
          %v10342 = vpop.f32.mrb[0].mxu0
          %v10343 = vpop.f32.mrb[0].mxu0
          %10344 = vdwg.mxu0
          %10345 = vmatprep.subr.bf16.mxu0 %v9583
          %10346 = vmatpush1.bf16.msra.mxu0 %v9582
          %10347 = vmatprep.subr.bf16.mxu0 %v9591
          %10348 = vmatpush1.bf16.msra.mxu0 %v9590
          %10349 = vmatprep.subr.bf16.mxu0 %v9599
          %10350 = vmatpush1.bf16.msra.mxu0 %v9598
          %10351 = vmatprep.subr.bf16.mxu0 %v9607
          %10352 = vmatpush1.bf16.msra.mxu0 %v9606
          %10353 = vmatprep.subr.bf16.mxu0 %v9615
          %10354 = vmatpush1.bf16.msra.mxu0 %v9614
          %10355 = vmatprep.subr.bf16.mxu0 %v9623
          %10356 = vmatpush1.bf16.msra.mxu0 %v9622
          %10357 = vmatprep.subr.bf16.mxu0 %v9631
          %10358 = vmatpush1.bf16.msra.mxu0 %v9630
          %10359 = vmatprep.subr.bf16.mxu0 %v9639
          %10360 = vmatpush1.bf16.msra.mxu0 %v9638
          %10361 = vmatprep.subr.bf16.mxu0 %v9647
          %10362 = vmatpush1.bf16.msra.mxu0 %v9646
          %10363 = vmatprep.subr.bf16.mxu0 %v9655
          %10364 = vmatpush1.bf16.msra.mxu0 %v9654
          %10365 = vmatprep.subr.bf16.mxu0 %v9663
          %10366 = vmatpush1.bf16.msra.mxu0 %v9662
          %10367 = vmatprep.subr.bf16.mxu0 %v9671
          %10368 = vmatpush1.bf16.msra.mxu0 %v9670
          %10369 = vmatprep.subr.bf16.mxu0 %v9679
          %10370 = vmatpush1.bf16.msra.mxu0 %v9678
          %10371 = vmatprep.subr.bf16.mxu0 %v9687
          %10372 = vmatpush1.bf16.msra.mxu0 %v9686
          %10373 = vmatprep.subr.bf16.mxu0 %v9695
          %10374 = vmatpush1.bf16.msra.mxu0 %v9694
          %10375 = vmatprep.subr.bf16.mxu0 %v9703
          %10376 = vmatpush1.bf16.msra.mxu0 %v9702
          %10377 = vmatprep.mubr.bf16.mxu0 %v7107
          %10378 = vmatmul.mubr.bf16.gmra.mrb[0].mxu0 %v7106
          %v10379 = vpop.f32.mrb[0].mxu0
          %v10380 = vadd.f32 %v10339, %v10379
          %v10381 = vpop.f32.mrb[0].mxu0
          %v10382 = vadd.f32 %v10341, %v10381
          %v10383 = vpop.f32.mrb[0].mxu0
          %v10384 = vpop.f32.mrb[0].mxu0
          %10385 = vdwg.mxu0
          %10386 = vmatprep.subr.bf16.mxu0 %v9201
          %10387 = vmatpush1.bf16.msra.mxu0 %v9200
          %10388 = vmatprep.subr.bf16.mxu0 %v9209
          %10389 = vmatpush1.bf16.msra.mxu0 %v9208
          %10390 = vmatprep.subr.bf16.mxu0 %v9217
          %10391 = vmatpush1.bf16.msra.mxu0 %v9216
          %10392 = vmatprep.subr.bf16.mxu0 %v9225
          %10393 = vmatpush1.bf16.msra.mxu0 %v9224
          %10394 = vmatprep.subr.bf16.mxu0 %v9233
          %10395 = vmatpush1.bf16.msra.mxu0 %v9232
          %10396 = vmatprep.subr.bf16.mxu0 %v9241
          %10397 = vmatpush1.bf16.msra.mxu0 %v9240
          %10398 = vmatprep.subr.bf16.mxu0 %v9249
          %10399 = vmatpush1.bf16.msra.mxu0 %v9248
          %10400 = vmatprep.subr.bf16.mxu0 %v9257
          %10401 = vmatpush1.bf16.msra.mxu0 %v9256
          %10402 = vmatprep.subr.bf16.mxu0 %v9265
          %10403 = vmatpush1.bf16.msra.mxu0 %v9264
          %10404 = vmatprep.subr.bf16.mxu0 %v9273
          %10405 = vmatpush1.bf16.msra.mxu0 %v9272
          %10406 = vmatprep.subr.bf16.mxu0 %v9281
          %10407 = vmatpush1.bf16.msra.mxu0 %v9280
          %10408 = vmatprep.subr.bf16.mxu0 %v9289
          %10409 = vmatpush1.bf16.msra.mxu0 %v9288
          %10410 = vmatprep.subr.bf16.mxu0 %v9297
          %10411 = vmatpush1.bf16.msra.mxu0 %v9296
          %10412 = vmatprep.subr.bf16.mxu0 %v9305
          %10413 = vmatpush1.bf16.msra.mxu0 %v9304
          %10414 = vmatprep.subr.bf16.mxu0 %v9313
          %10415 = vmatpush1.bf16.msra.mxu0 %v9312
          %10416 = vmatprep.subr.bf16.mxu0 %v9321
          %10417 = vmatpush1.bf16.msra.mxu0 %v9320
          %10418 = vmatprep.mubr.bf16.mxu0 %v7101
          %10419 = vmatmul.mubr.bf16.gmra.mrb[0].mxu0 %v7100
          %v10420 = vpop.f32.mrb[0].mxu0
          %v10421 = vadd.f32 %v7633, %v10420
          %v10422 = vpop.f32.mrb[0].mxu0
          %v10423 = vadd.f32 %v7637, %v10422
          %v10424 = vpop.f32.mrb[0].mxu0
          %v10425 = vpop.f32.mrb[0].mxu0
          %10426 = vdwg.mxu0
          %10427 = vmatprep.subr.bf16.mxu0 %v9329
          %10428 = vmatpush1.bf16.msra.mxu0 %v9328
          %10429 = vmatprep.subr.bf16.mxu0 %v9337
          %10430 = vmatpush1.bf16.msra.mxu0 %v9336
          %10431 = vmatprep.subr.bf16.mxu0 %v9345
          %10432 = vmatpush1.bf16.msra.mxu0 %v9344
          %10433 = vmatprep.subr.bf16.mxu0 %v9353
          %10434 = vmatpush1.bf16.msra.mxu0 %v9352
          %10435 = vmatprep.subr.bf16.mxu0 %v9361
          %10436 = vmatpush1.bf16.msra.mxu0 %v9360
          %10437 = vmatprep.subr.bf16.mxu0 %v9369
          %10438 = vmatpush1.bf16.msra.mxu0 %v9368
          %10439 = vmatprep.subr.bf16.mxu0 %v9377
          %10440 = vmatpush1.bf16.msra.mxu0 %v9376
          %10441 = vmatprep.subr.bf16.mxu0 %v9385
          %10442 = vmatpush1.bf16.msra.mxu0 %v9384
          %10443 = vmatprep.subr.bf16.mxu0 %v9393
          %10444 = vmatpush1.bf16.msra.mxu0 %v9392
          %10445 = vmatprep.subr.bf16.mxu0 %v9401
          %10446 = vmatpush1.bf16.msra.mxu0 %v9400
          %10447 = vmatprep.subr.bf16.mxu0 %v9409
          %10448 = vmatpush1.bf16.msra.mxu0 %v9408
          %10449 = vmatprep.subr.bf16.mxu0 %v9417
          %10450 = vmatpush1.bf16.msra.mxu0 %v9416
          %10451 = vmatprep.subr.bf16.mxu0 %v9425
          %10452 = vmatpush1.bf16.msra.mxu0 %v9424
          %10453 = vmatprep.subr.bf16.mxu0 %v9433
          %10454 = vmatpush1.bf16.msra.mxu0 %v9432
          %10455 = vmatprep.subr.bf16.mxu0 %v9441
          %10456 = vmatpush1.bf16.msra.mxu0 %v9440
          %10457 = vmatprep.subr.bf16.mxu0 %v9449
          %10458 = vmatpush1.bf16.msra.mxu0 %v9448
          %10459 = vmatprep.mubr.bf16.mxu0 %v7103
          %10460 = vmatmul.mubr.bf16.gmra.mrb[0].mxu0 %v7102
          %v10461 = vpop.f32.mrb[0].mxu0
          %v10462 = vadd.f32 %v10421, %v10461
          %v10463 = vpop.f32.mrb[0].mxu0
          %v10464 = vadd.f32 %v10423, %v10463
          %v10465 = vpop.f32.mrb[0].mxu0
          %v10466 = vpop.f32.mrb[0].mxu0
          %10467 = vdwg.mxu0
          %10468 = vmatprep.subr.bf16.mxu0 %v9457
          %10469 = vmatpush1.bf16.msra.mxu0 %v9456
          %10470 = vmatprep.subr.bf16.mxu0 %v9465
          %10471 = vmatpush1.bf16.msra.mxu0 %v9464
          %10472 = vmatprep.subr.bf16.mxu0 %v9473
          %10473 = vmatpush1.bf16.msra.mxu0 %v9472
          %10474 = vmatprep.subr.bf16.mxu0 %v9481
          %10475 = vmatpush1.bf16.msra.mxu0 %v9480
          %10476 = vmatprep.subr.bf16.mxu0 %v9489
          %10477 = vmatpush1.bf16.msra.mxu0 %v9488
          %10478 = vmatprep.subr.bf16.mxu0 %v9497
          %10479 = vmatpush1.bf16.msra.mxu0 %v9496
          %10480 = vmatprep.subr.bf16.mxu0 %v9505
          %10481 = vmatpush1.bf16.msra.mxu0 %v9504
          %10482 = vmatprep.subr.bf16.mxu0 %v9513
          %10483 = vmatpush1.bf16.msra.mxu0 %v9512
          %10484 = vmatprep.subr.bf16.mxu0 %v9521
          %10485 = vmatpush1.bf16.msra.mxu0 %v9520
          %10486 = vmatprep.subr.bf16.mxu0 %v9529
          %10487 = vmatpush1.bf16.msra.mxu0 %v9528
          %10488 = vmatprep.subr.bf16.mxu0 %v9537
          %10489 = vmatpush1.bf16.msra.mxu0 %v9536
          %10490 = vmatprep.subr.bf16.mxu0 %v9545
          %10491 = vmatpush1.bf16.msra.mxu0 %v9544
          %10492 = vmatprep.subr.bf16.mxu0 %v9553
          %10493 = vmatpush1.bf16.msra.mxu0 %v9552
          %10494 = vmatprep.subr.bf16.mxu0 %v9561
          %10495 = vmatpush1.bf16.msra.mxu0 %v9560
          %10496 = vmatprep.subr.bf16.mxu0 %v9569
          %10497 = vmatpush1.bf16.msra.mxu0 %v9568
          %10498 = vmatprep.subr.bf16.mxu0 %v9577
          %10499 = vmatpush1.bf16.msra.mxu0 %v9576
          %10500 = vmatprep.mubr.bf16.mxu0 %v7105
          %10501 = vmatmul.mubr.bf16.gmra.mrb[0].mxu0 %v7104
          %v10502 = vpop.f32.mrb[0].mxu0
          %v10503 = vadd.f32 %v10462, %v10502
          %v10504 = vpop.f32.mrb[0].mxu0
          %v10505 = vadd.f32 %v10464, %v10504
          %v10506 = vpop.f32.mrb[0].mxu0
          %v10507 = vpop.f32.mrb[0].mxu0
          %10508 = vdwg.mxu0
          %10509 = vmatprep.subr.bf16.mxu0 %v9585
          %10510 = vmatpush1.bf16.msra.mxu0 %v9584
          %10511 = vmatprep.subr.bf16.mxu0 %v9593
          %10512 = vmatpush1.bf16.msra.mxu0 %v9592
          %10513 = vmatprep.subr.bf16.mxu0 %v9601
          %10514 = vmatpush1.bf16.msra.mxu0 %v9600
          %10515 = vmatprep.subr.bf16.mxu0 %v9609
          %10516 = vmatpush1.bf16.msra.mxu0 %v9608
          %10517 = vmatprep.subr.bf16.mxu0 %v9617
          %10518 = vmatpush1.bf16.msra.mxu0 %v9616
          %10519 = vmatprep.subr.bf16.mxu0 %v9625
          %10520 = vmatpush1.bf16.msra.mxu0 %v9624
          %10521 = vmatprep.subr.bf16.mxu0 %v9633
          %10522 = vmatpush1.bf16.msra.mxu0 %v9632
          %10523 = vmatprep.subr.bf16.mxu0 %v9641
          %10524 = vmatpush1.bf16.msra.mxu0 %v9640
          %10525 = vmatprep.subr.bf16.mxu0 %v9649
          %10526 = vmatpush1.bf16.msra.mxu0 %v9648
          %10527 = vmatprep.subr.bf16.mxu0 %v9657
          %10528 = vmatpush1.bf16.msra.mxu0 %v9656
          %10529 = vmatprep.subr.bf16.mxu0 %v9665
          %10530 = vmatpush1.bf16.msra.mxu0 %v9664
          %10531 = vmatprep.subr.bf16.mxu0 %v9673
          %10532 = vmatpush1.bf16.msra.mxu0 %v9672
          %10533 = vmatprep.subr.bf16.mxu0 %v9681
          %10534 = vmatpush1.bf16.msra.mxu0 %v9680
          %10535 = vmatprep.subr.bf16.mxu0 %v9689
          %10536 = vmatpush1.bf16.msra.mxu0 %v9688
          %10537 = vmatprep.subr.bf16.mxu0 %v9697
          %10538 = vmatpush1.bf16.msra.mxu0 %v9696
          %10539 = vmatprep.subr.bf16.mxu0 %v9705
          %10540 = vmatpush1.bf16.msra.mxu0 %v9704
          %10541 = vmatprep.mubr.bf16.mxu0 %v7107
          %10542 = vmatmul.mubr.bf16.gmra.mrb[0].mxu0 %v7106
          %v10543 = vpop.f32.mrb[0].mxu0
          %v10544 = vadd.f32 %v10503, %v10543
          %v10545 = vpop.f32.mrb[0].mxu0
          %v10546 = vadd.f32 %v10505, %v10545
          %v10547 = vpop.f32.mrb[0].mxu0
          %v10548 = vpop.f32.mrb[0].mxu0
          %10549 = vdwg.mxu0
          %10550 = vmatprep.subr.bf16.mxu0 %v9203
          %10551 = vmatpush1.bf16.msra.mxu0 %v9202
          %10552 = vmatprep.subr.bf16.mxu0 %v9211
          %10553 = vmatpush1.bf16.msra.mxu0 %v9210
          %10554 = vmatprep.subr.bf16.mxu0 %v9219
          %10555 = vmatpush1.bf16.msra.mxu0 %v9218
          %10556 = vmatprep.subr.bf16.mxu0 %v9227
          %10557 = vmatpush1.bf16.msra.mxu0 %v9226
          %10558 = vmatprep.subr.bf16.mxu0 %v9235
          %10559 = vmatpush1.bf16.msra.mxu0 %v9234
          %10560 = vmatprep.subr.bf16.mxu0 %v9243
          %10561 = vmatpush1.bf16.msra.mxu0 %v9242
          %10562 = vmatprep.subr.bf16.mxu0 %v9251
          %10563 = vmatpush1.bf16.msra.mxu0 %v9250
          %10564 = vmatprep.subr.bf16.mxu0 %v9259
          %10565 = vmatpush1.bf16.msra.mxu0 %v9258
          %10566 = vmatprep.subr.bf16.mxu0 %v9267
          %10567 = vmatpush1.bf16.msra.mxu0 %v9266
          %10568 = vmatprep.subr.bf16.mxu0 %v9275
          %10569 = vmatpush1.bf16.msra.mxu0 %v9274
          %10570 = vmatprep.subr.bf16.mxu0 %v9283
          %10571 = vmatpush1.bf16.msra.mxu0 %v9282
          %10572 = vmatprep.subr.bf16.mxu0 %v9291
          %10573 = vmatpush1.bf16.msra.mxu0 %v9290
          %10574 = vmatprep.subr.bf16.mxu0 %v9299
          %10575 = vmatpush1.bf16.msra.mxu0 %v9298
          %10576 = vmatprep.subr.bf16.mxu0 %v9307
          %10577 = vmatpush1.bf16.msra.mxu0 %v9306
          %10578 = vmatprep.subr.bf16.mxu0 %v9315
          %10579 = vmatpush1.bf16.msra.mxu0 %v9314
          %10580 = vmatprep.subr.bf16.mxu0 %v9323
          %10581 = vmatpush1.bf16.msra.mxu0 %v9322
          %10582 = vmatprep.mubr.bf16.mxu0 %v7101
          %10583 = vmatmul.mubr.bf16.gmra.mrb[0].mxu0 %v7100
          %v10584 = vpop.f32.mrb[0].mxu0
          %v10585 = vadd.f32 %v7641, %v10584
          %v10586 = vpop.f32.mrb[0].mxu0
          %v10587 = vadd.f32 %v7645, %v10586
          %v10588 = vpop.f32.mrb[0].mxu0
          %v10589 = vpop.f32.mrb[0].mxu0
          %10590 = vdwg.mxu0
          %10591 = vmatprep.subr.bf16.mxu0 %v9331
          %10592 = vmatpush1.bf16.msra.mxu0 %v9330
          %10593 = vmatprep.subr.bf16.mxu0 %v9339
          %10594 = vmatpush1.bf16.msra.mxu0 %v9338
          %10595 = vmatprep.subr.bf16.mxu0 %v9347
          %10596 = vmatpush1.bf16.msra.mxu0 %v9346
          %10597 = vmatprep.subr.bf16.mxu0 %v9355
          %10598 = vmatpush1.bf16.msra.mxu0 %v9354
          %10599 = vmatprep.subr.bf16.mxu0 %v9363
          %10600 = vmatpush1.bf16.msra.mxu0 %v9362
          %10601 = vmatprep.subr.bf16.mxu0 %v9371
          %10602 = vmatpush1.bf16.msra.mxu0 %v9370
          %10603 = vmatprep.subr.bf16.mxu0 %v9379
          %10604 = vmatpush1.bf16.msra.mxu0 %v9378
          %10605 = vmatprep.subr.bf16.mxu0 %v9387
          %10606 = vmatpush1.bf16.msra.mxu0 %v9386
          %10607 = vmatprep.subr.bf16.mxu0 %v9395
          %10608 = vmatpush1.bf16.msra.mxu0 %v9394
          %10609 = vmatprep.subr.bf16.mxu0 %v9403
          %10610 = vmatpush1.bf16.msra.mxu0 %v9402
          %10611 = vmatprep.subr.bf16.mxu0 %v9411
          %10612 = vmatpush1.bf16.msra.mxu0 %v9410
          %10613 = vmatprep.subr.bf16.mxu0 %v9419
          %10614 = vmatpush1.bf16.msra.mxu0 %v9418
          %10615 = vmatprep.subr.bf16.mxu0 %v9427
          %10616 = vmatpush1.bf16.msra.mxu0 %v9426
          %10617 = vmatprep.subr.bf16.mxu0 %v9435
          %10618 = vmatpush1.bf16.msra.mxu0 %v9434
          %10619 = vmatprep.subr.bf16.mxu0 %v9443
          %10620 = vmatpush1.bf16.msra.mxu0 %v9442
          %10621 = vmatprep.subr.bf16.mxu0 %v9451
          %10622 = vmatpush1.bf16.msra.mxu0 %v9450
          %10623 = vmatprep.mubr.bf16.mxu0 %v7103
          %10624 = vmatmul.mubr.bf16.gmra.mrb[0].mxu0 %v7102
          %v10625 = vpop.f32.mrb[0].mxu0
          %v10626 = vadd.f32 %v10585, %v10625
          %v10627 = vpop.f32.mrb[0].mxu0
          %v10628 = vadd.f32 %v10587, %v10627
          %v10629 = vpop.f32.mrb[0].mxu0
          %v10630 = vpop.f32.mrb[0].mxu0
          %10631 = vdwg.mxu0
          %10632 = vmatprep.subr.bf16.mxu0 %v9459
          %10633 = vmatpush1.bf16.msra.mxu0 %v9458
          %10634 = vmatprep.subr.bf16.mxu0 %v9467
          %10635 = vmatpush1.bf16.msra.mxu0 %v9466
          %10636 = vmatprep.subr.bf16.mxu0 %v9475
          %10637 = vmatpush1.bf16.msra.mxu0 %v9474
          %10638 = vmatprep.subr.bf16.mxu0 %v9483
          %10639 = vmatpush1.bf16.msra.mxu0 %v9482
          %10640 = vmatprep.subr.bf16.mxu0 %v9491
          %10641 = vmatpush1.bf16.msra.mxu0 %v9490
          %10642 = vmatprep.subr.bf16.mxu0 %v9499
          %10643 = vmatpush1.bf16.msra.mxu0 %v9498
          %10644 = vmatprep.subr.bf16.mxu0 %v9507
          %10645 = vmatpush1.bf16.msra.mxu0 %v9506
          %10646 = vmatprep.subr.bf16.mxu0 %v9515
          %10647 = vmatpush1.bf16.msra.mxu0 %v9514
          %10648 = vmatprep.subr.bf16.mxu0 %v9523
          %10649 = vmatpush1.bf16.msra.mxu0 %v9522
          %10650 = vmatprep.subr.bf16.mxu0 %v9531
          %10651 = vmatpush1.bf16.msra.mxu0 %v9530
          %10652 = vmatprep.subr.bf16.mxu0 %v9539
          %10653 = vmatpush1.bf16.msra.mxu0 %v9538
          %10654 = vmatprep.subr.bf16.mxu0 %v9547
          %10655 = vmatpush1.bf16.msra.mxu0 %v9546
          %10656 = vmatprep.subr.bf16.mxu0 %v9555
          %10657 = vmatpush1.bf16.msra.mxu0 %v9554
          %10658 = vmatprep.subr.bf16.mxu0 %v9563
          %10659 = vmatpush1.bf16.msra.mxu0 %v9562
          %10660 = vmatprep.subr.bf16.mxu0 %v9571
          %10661 = vmatpush1.bf16.msra.mxu0 %v9570
          %10662 = vmatprep.subr.bf16.mxu0 %v9579
          %10663 = vmatpush1.bf16.msra.mxu0 %v9578
          %10664 = vmatprep.mubr.bf16.mxu0 %v7105
          %10665 = vmatmul.mubr.bf16.gmra.mrb[0].mxu0 %v7104
          %v10666 = vpop.f32.mrb[0].mxu0
          %v10667 = vadd.f32 %v10626, %v10666
          %v10668 = vpop.f32.mrb[0].mxu0
          %v10669 = vadd.f32 %v10628, %v10668
          %v10670 = vpop.f32.mrb[0].mxu0
          %v10671 = vpop.f32.mrb[0].mxu0
          %10672 = vdwg.mxu0
          %10673 = vmatprep.subr.bf16.mxu0 %v9587
          %10674 = vmatpush1.bf16.msra.mxu0 %v9586
          %10675 = vmatprep.subr.bf16.mxu0 %v9595
          %10676 = vmatpush1.bf16.msra.mxu0 %v9594
          %10677 = vmatprep.subr.bf16.mxu0 %v9603
          %10678 = vmatpush1.bf16.msra.mxu0 %v9602
          %10679 = vmatprep.subr.bf16.mxu0 %v9611
          %10680 = vmatpush1.bf16.msra.mxu0 %v9610
          %10681 = vmatprep.subr.bf16.mxu0 %v9619
          %10682 = vmatpush1.bf16.msra.mxu0 %v9618
          %10683 = vmatprep.subr.bf16.mxu0 %v9627
          %10684 = vmatpush1.bf16.msra.mxu0 %v9626
          %10685 = vmatprep.subr.bf16.mxu0 %v9635
          %10686 = vmatpush1.bf16.msra.mxu0 %v9634
          %10687 = vmatprep.subr.bf16.mxu0 %v9643
          %10688 = vmatpush1.bf16.msra.mxu0 %v9642
          %10689 = vmatprep.subr.bf16.mxu0 %v9651
          %10690 = vmatpush1.bf16.msra.mxu0 %v9650
          %10691 = vmatprep.subr.bf16.mxu0 %v9659
          %10692 = vmatpush1.bf16.msra.mxu0 %v9658
          %10693 = vmatprep.subr.bf16.mxu0 %v9667
          %10694 = vmatpush1.bf16.msra.mxu0 %v9666
          %10695 = vmatprep.subr.bf16.mxu0 %v9675
          %10696 = vmatpush1.bf16.msra.mxu0 %v9674
          %10697 = vmatprep.subr.bf16.mxu0 %v9683
          %10698 = vmatpush1.bf16.msra.mxu0 %v9682
          %10699 = vmatprep.subr.bf16.mxu0 %v9691
          %10700 = vmatpush1.bf16.msra.mxu0 %v9690
          %10701 = vmatprep.subr.bf16.mxu0 %v9699
          %10702 = vmatpush1.bf16.msra.mxu0 %v9698
          %10703 = vmatprep.subr.bf16.mxu0 %v9707
          %10704 = vmatpush1.bf16.msra.mxu0 %v9706
          %10705 = vmatprep.mubr.bf16.mxu0 %v7107
          %10706 = vmatmul.mubr.bf16.gmra.mrb[0].mxu0 %v7106
          %v10707 = vpop.f32.mrb[0].mxu0
          %v10708 = vadd.f32 %v10667, %v10707
          %v10709 = vpop.f32.mrb[0].mxu0
          %v10710 = vadd.f32 %v10669, %v10709
          %v10711 = vpop.f32.mrb[0].mxu0
          %v10712 = vpop.f32.mrb[0].mxu0
          %10713 = vdwg.mxu0
          %10714 = vmatprep.subr.bf16.mxu0 %v9205
          %10715 = vmatpush1.bf16.msra.mxu0 %v9204
          %10716 = vmatprep.subr.bf16.mxu0 %v9213
          %10717 = vmatpush1.bf16.msra.mxu0 %v9212
          %10718 = vmatprep.subr.bf16.mxu0 %v9221
          %10719 = vmatpush1.bf16.msra.mxu0 %v9220
          %10720 = vmatprep.subr.bf16.mxu0 %v9229
          %10721 = vmatpush1.bf16.msra.mxu0 %v9228
          %10722 = vmatprep.subr.bf16.mxu0 %v9237
          %10723 = vmatpush1.bf16.msra.mxu0 %v9236
          %10724 = vmatprep.subr.bf16.mxu0 %v9245
          %10725 = vmatpush1.bf16.msra.mxu0 %v9244
          %10726 = vmatprep.subr.bf16.mxu0 %v9253
          %10727 = vmatpush1.bf16.msra.mxu0 %v9252
          %10728 = vmatprep.subr.bf16.mxu0 %v9261
          %10729 = vmatpush1.bf16.msra.mxu0 %v9260
          %10730 = vmatprep.subr.bf16.mxu0 %v9269
          %10731 = vmatpush1.bf16.msra.mxu0 %v9268
          %10732 = vmatprep.subr.bf16.mxu0 %v9277
          %10733 = vmatpush1.bf16.msra.mxu0 %v9276
          %10734 = vmatprep.subr.bf16.mxu0 %v9285
          %10735 = vmatpush1.bf16.msra.mxu0 %v9284
          %10736 = vmatprep.subr.bf16.mxu0 %v9293
          %10737 = vmatpush1.bf16.msra.mxu0 %v9292
          %10738 = vmatprep.subr.bf16.mxu0 %v9301
          %10739 = vmatpush1.bf16.msra.mxu0 %v9300
          %10740 = vmatprep.subr.bf16.mxu0 %v9309
          %10741 = vmatpush1.bf16.msra.mxu0 %v9308
          %10742 = vmatprep.subr.bf16.mxu0 %v9317
          %10743 = vmatpush1.bf16.msra.mxu0 %v9316
          %10744 = vmatprep.subr.bf16.mxu0 %v9325
          %10745 = vmatpush1.bf16.msra.mxu0 %v9324
          %10746 = vmatprep.mubr.bf16.mxu0 %v7101
          %10747 = vmatmul.mubr.bf16.gmra.mrb[0].mxu0 %v7100
          %v10748 = vpop.f32.mrb[0].mxu0
          %v10749 = vadd.f32 %v7649, %v10748
          %v10750 = vpop.f32.mrb[0].mxu0
          %v10751 = vadd.f32 %v7653, %v10750
          %v10752 = vpop.f32.mrb[0].mxu0
          %v10753 = vpop.f32.mrb[0].mxu0
          %10754 = vdwg.mxu0
          %10755 = vmatprep.subr.bf16.mxu0 %v9333
          %10756 = vmatpush1.bf16.msra.mxu0 %v9332
          %10757 = vmatprep.subr.bf16.mxu0 %v9341
          %10758 = vmatpush1.bf16.msra.mxu0 %v9340
          %10759 = vmatprep.subr.bf16.mxu0 %v9349
          %10760 = vmatpush1.bf16.msra.mxu0 %v9348
          %10761 = vmatprep.subr.bf16.mxu0 %v9357
          %10762 = vmatpush1.bf16.msra.mxu0 %v9356
          %10763 = vmatprep.subr.bf16.mxu0 %v9365
          %10764 = vmatpush1.bf16.msra.mxu0 %v9364
          %10765 = vmatprep.subr.bf16.mxu0 %v9373
          %10766 = vmatpush1.bf16.msra.mxu0 %v9372
          %10767 = vmatprep.subr.bf16.mxu0 %v9381
          %10768 = vmatpush1.bf16.msra.mxu0 %v9380
          %10769 = vmatprep.subr.bf16.mxu0 %v9389
          %10770 = vmatpush1.bf16.msra.mxu0 %v9388
          %10771 = vmatprep.subr.bf16.mxu0 %v9397
          %10772 = vmatpush1.bf16.msra.mxu0 %v9396
          %10773 = vmatprep.subr.bf16.mxu0 %v9405
          %10774 = vmatpush1.bf16.msra.mxu0 %v9404
          %10775 = vmatprep.subr.bf16.mxu0 %v9413
          %10776 = vmatpush1.bf16.msra.mxu0 %v9412
          %10777 = vmatprep.subr.bf16.mxu0 %v9421
          %10778 = vmatpush1.bf16.msra.mxu0 %v9420
          %10779 = vmatprep.subr.bf16.mxu0 %v9429
          %10780 = vmatpush1.bf16.msra.mxu0 %v9428
          %10781 = vmatprep.subr.bf16.mxu0 %v9437
          %10782 = vmatpush1.bf16.msra.mxu0 %v9436
          %10783 = vmatprep.subr.bf16.mxu0 %v9445
          %10784 = vmatpush1.bf16.msra.mxu0 %v9444
          %10785 = vmatprep.subr.bf16.mxu0 %v9453
          %10786 = vmatpush1.bf16.msra.mxu0 %v9452
          %10787 = vmatprep.mubr.bf16.mxu0 %v7103
          %10788 = vmatmul.mubr.bf16.gmra.mrb[0].mxu0 %v7102
          %v10789 = vpop.f32.mrb[0].mxu0
          %v10790 = vadd.f32 %v10749, %v10789
          %v10791 = vpop.f32.mrb[0].mxu0
          %v10792 = vadd.f32 %v10751, %v10791
          %v10793 = vpop.f32.mrb[0].mxu0
          %v10794 = vpop.f32.mrb[0].mxu0
          %10795 = vdwg.mxu0
          %10796 = vmatprep.subr.bf16.mxu0 %v9461
          %10797 = vmatpush1.bf16.msra.mxu0 %v9460
          %10798 = vmatprep.subr.bf16.mxu0 %v9469
          %10799 = vmatpush1.bf16.msra.mxu0 %v9468
          %10800 = vmatprep.subr.bf16.mxu0 %v9477
          %10801 = vmatpush1.bf16.msra.mxu0 %v9476
          %10802 = vmatprep.subr.bf16.mxu0 %v9485
          %10803 = vmatpush1.bf16.msra.mxu0 %v9484
          %10804 = vmatprep.subr.bf16.mxu0 %v9493
          %10805 = vmatpush1.bf16.msra.mxu0 %v9492
          %10806 = vmatprep.subr.bf16.mxu0 %v9501
          %10807 = vmatpush1.bf16.msra.mxu0 %v9500
          %10808 = vmatprep.subr.bf16.mxu0 %v9509
          %10809 = vmatpush1.bf16.msra.mxu0 %v9508
          %10810 = vmatprep.subr.bf16.mxu0 %v9517
          %10811 = vmatpush1.bf16.msra.mxu0 %v9516
          %10812 = vmatprep.subr.bf16.mxu0 %v9525
          %10813 = vmatpush1.bf16.msra.mxu0 %v9524
          %10814 = vmatprep.subr.bf16.mxu0 %v9533
          %10815 = vmatpush1.bf16.msra.mxu0 %v9532
          %10816 = vmatprep.subr.bf16.mxu0 %v9541
          %10817 = vmatpush1.bf16.msra.mxu0 %v9540
          %10818 = vmatprep.subr.bf16.mxu0 %v9549
          %10819 = vmatpush1.bf16.msra.mxu0 %v9548
          %10820 = vmatprep.subr.bf16.mxu0 %v9557
          %10821 = vmatpush1.bf16.msra.mxu0 %v9556
          %10822 = vmatprep.subr.bf16.mxu0 %v9565
          %10823 = vmatpush1.bf16.msra.mxu0 %v9564
          %10824 = vmatprep.subr.bf16.mxu0 %v9573
          %10825 = vmatpush1.bf16.msra.mxu0 %v9572
          %10826 = vmatprep.subr.bf16.mxu0 %v9581
          %10827 = vmatpush1.bf16.msra.mxu0 %v9580
          %10828 = vmatprep.mubr.bf16.mxu0 %v7105
          %10829 = vmatmul.mubr.bf16.gmra.mrb[0].mxu0 %v7104
          %v10830 = vpop.f32.mrb[0].mxu0
          %v10831 = vadd.f32 %v10790, %v10830
          %v10832 = vpop.f32.mrb[0].mxu0
          %v10833 = vadd.f32 %v10792, %v10832
          %v10834 = vpop.f32.mrb[0].mxu0
          %v10835 = vpop.f32.mrb[0].mxu0
          %10836 = vdwg.mxu0
          %10837 = vmatprep.subr.bf16.mxu0 %v9589
          %10838 = vmatpush1.bf16.msra.mxu0 %v9588
          %10839 = vmatprep.subr.bf16.mxu0 %v9597
          %10840 = vmatpush1.bf16.msra.mxu0 %v9596
          %10841 = vmatprep.subr.bf16.mxu0 %v9605
          %10842 = vmatpush1.bf16.msra.mxu0 %v9604
          %10843 = vmatprep.subr.bf16.mxu0 %v9613
          %10844 = vmatpush1.bf16.msra.mxu0 %v9612
          %10845 = vmatprep.subr.bf16.mxu0 %v9621
          %10846 = vmatpush1.bf16.msra.mxu0 %v9620
          %10847 = vmatprep.subr.bf16.mxu0 %v9629
          %10848 = vmatpush1.bf16.msra.mxu0 %v9628
          %10849 = vmatprep.subr.bf16.mxu0 %v9637
          %10850 = vmatpush1.bf16.msra.mxu0 %v9636
          %10851 = vmatprep.subr.bf16.mxu0 %v9645
          %10852 = vmatpush1.bf16.msra.mxu0 %v9644
          %10853 = vmatprep.subr.bf16.mxu0 %v9653
          %10854 = vmatpush1.bf16.msra.mxu0 %v9652
          %10855 = vmatprep.subr.bf16.mxu0 %v9661
          %10856 = vmatpush1.bf16.msra.mxu0 %v9660
          %10857 = vmatprep.subr.bf16.mxu0 %v9669
          %10858 = vmatpush1.bf16.msra.mxu0 %v9668
          %10859 = vmatprep.subr.bf16.mxu0 %v9677
          %10860 = vmatpush1.bf16.msra.mxu0 %v9676
          %10861 = vmatprep.subr.bf16.mxu0 %v9685
          %10862 = vmatpush1.bf16.msra.mxu0 %v9684
          %10863 = vmatprep.subr.bf16.mxu0 %v9693
          %10864 = vmatpush1.bf16.msra.mxu0 %v9692
          %10865 = vmatprep.subr.bf16.mxu0 %v9701
          %10866 = vmatpush1.bf16.msra.mxu0 %v9700
          %10867 = vmatprep.subr.bf16.mxu0 %v9709
          %10868 = vmatpush1.bf16.msra.mxu0 %v9708
          %10869 = vmatprep.mubr.bf16.mxu0 %v7107
          %10870 = vmatmul.mubr.bf16.gmra.mrb[0].mxu0 %v7106
          %v10871 = vpop.f32.mrb[0].mxu0
          %v10872 = vadd.f32 %v10831, %v10871
          %v10873 = vpop.f32.mrb[0].mxu0
          %v10874 = vadd.f32 %v10833, %v10873
          %v10875 = vpop.f32.mrb[0].mxu0
          %v10876 = vpop.f32.mrb[0].mxu0
          %10877 = vdwg.mxu0
          %v10878 = vmax.f32 %v10380, 0.0
          %v10879 = vmax.f32 %v10382, 0.0
          %v10880 = vmax.f32 %v10544, 0.0
          %v10881 = vmax.f32 %v10546, 0.0
          %v10882 = vmax.f32 %v10708, 0.0
          %v10883 = vmax.f32 %v10710, 0.0
          %v10884 = vmax.f32 %v10872, 0.0
          %v10885 = vmax.f32 %v10874, 0.0
          %v10886 = vpack.c.bf16 %v10878, %v10878
          %v10887 = vpack.c.bf16 %v10879, %v10879
          %v10888 = vpack.c.bf16 %v10880, %v10880
          %v10889 = vpack.c.bf16 %v10881, %v10881
          %v10890 = vpack.c.bf16 %v10882, %v10882
          %v10891 = vpack.c.bf16 %v10883, %v10883
          %v10892 = vpack.c.bf16 %v10884, %v10884
          %v10893 = vpack.c.bf16 %v10885, %v10885
          %v10894 = vld [vmem:[#allocation12] sm:$0xf]
          %v10895 = vld [vmem:[#allocation12 + $0x4] sm:$0xf]
          %v10896 = vld [vmem:[#allocation12 + $0x8] sm:$0xf]
          %v10897 = vld [vmem:[#allocation12 + $0xc] sm:$0xf]
          %v10898 = vld [vmem:[#allocation12 + $0x10] sm:$0xf]
          %v10899 = vld [vmem:[#allocation12 + $0x14] sm:$0xf]
          %v10900 = vld [vmem:[#allocation12 + $0x18] sm:$0xf]
          %v10901 = vld [vmem:[#allocation12 + $0x1c] sm:$0xf]
          %v10902 = vld [vmem:[#allocation12 + $0x20] sm:$0xf]
          %v10903 = vld [vmem:[#allocation12 + $0x24] sm:$0xf]
          %v10904 = vld [vmem:[#allocation12 + $0x28] sm:$0xf]
          %v10905 = vld [vmem:[#allocation12 + $0x2c] sm:$0xf]
          %v10906 = vld [vmem:[#allocation12 + $0x30] sm:$0xf]
          %v10907 = vld [vmem:[#allocation12 + $0x34] sm:$0xf]
          %v10908 = vld [vmem:[#allocation12 + $0x38] sm:$0xf]
          %v10909 = vld [vmem:[#allocation12 + $0x3c] sm:$0xf]
          %v10910 = vld [vmem:[#allocation12 + $0x40] sm:$0xf]
          %v10911 = vld [vmem:[#allocation12 + $0x44] sm:$0xf]
          %v10912 = vld [vmem:[#allocation12 + $0x48] sm:$0xf]
          %v10913 = vld [vmem:[#allocation12 + $0x4c] sm:$0xf]
          %v10914 = vld [vmem:[#allocation12 + $0x50] sm:$0xf]
          %v10915 = vld [vmem:[#allocation12 + $0x54] sm:$0xf]
          %v10916 = vld [vmem:[#allocation12 + $0x58] sm:$0xf]
          %v10917 = vld [vmem:[#allocation12 + $0x5c] sm:$0xf]
          %v10918 = vld [vmem:[#allocation12 + $0x60] sm:$0xf]
          %v10919 = vld [vmem:[#allocation12 + $0x64] sm:$0xf]
          %v10920 = vld [vmem:[#allocation12 + $0x68] sm:$0xf]
          %v10921 = vld [vmem:[#allocation12 + $0x6c] sm:$0xf]
          %v10922 = vld [vmem:[#allocation12 + $0x70] sm:$0xf]
          %v10923 = vld [vmem:[#allocation12 + $0x74] sm:$0xf]
          %v10924 = vld [vmem:[#allocation12 + $0x78] sm:$0xf]
          %v10925 = vld [vmem:[#allocation12 + $0x7c] sm:$0xf]
          %v10926 = vld [vmem:[#allocation12 + $0x80] sm:$0xf]
          %v10927 = vld [vmem:[#allocation12 + $0x84] sm:$0xf]
          %v10928 = vld [vmem:[#allocation12 + $0x88] sm:$0xf]
          %v10929 = vld [vmem:[#allocation12 + $0x8c] sm:$0xf]
          %v10930 = vld [vmem:[#allocation12 + $0x90] sm:$0xf]
          %v10931 = vld [vmem:[#allocation12 + $0x94] sm:$0xf]
          %v10932 = vld [vmem:[#allocation12 + $0x98] sm:$0xf]
          %v10933 = vld [vmem:[#allocation12 + $0x9c] sm:$0xf]
          %v10934 = vld [vmem:[#allocation12 + $0xa0] sm:$0xf]
          %v10935 = vld [vmem:[#allocation12 + $0xa4] sm:$0xf]
          %v10936 = vld [vmem:[#allocation12 + $0xa8] sm:$0xf]
          %v10937 = vld [vmem:[#allocation12 + $0xac] sm:$0xf]
          %v10938 = vld [vmem:[#allocation12 + $0xb0] sm:$0xf]
          %v10939 = vld [vmem:[#allocation12 + $0xb4] sm:$0xf]
          %v10940 = vld [vmem:[#allocation12 + $0xb8] sm:$0xf]
          %v10941 = vld [vmem:[#allocation12 + $0xbc] sm:$0xf]
          %v10942 = vld [vmem:[#allocation12 + $0xc0] sm:$0xf]
          %v10943 = vld [vmem:[#allocation12 + $0xc4] sm:$0xf]
          %v10944 = vld [vmem:[#allocation12 + $0xc8] sm:$0xf]
          %v10945 = vld [vmem:[#allocation12 + $0xcc] sm:$0xf]
          %v10946 = vld [vmem:[#allocation12 + $0xd0] sm:$0xf]
          %v10947 = vld [vmem:[#allocation12 + $0xd4] sm:$0xf]
          %v10948 = vld [vmem:[#allocation12 + $0xd8] sm:$0xf]
          %v10949 = vld [vmem:[#allocation12 + $0xdc] sm:$0xf]
          %v10950 = vld [vmem:[#allocation12 + $0xe0] sm:$0xf]
          %v10951 = vld [vmem:[#allocation12 + $0xe4] sm:$0xf]
          %v10952 = vld [vmem:[#allocation12 + $0xe8] sm:$0xf]
          %v10953 = vld [vmem:[#allocation12 + $0xec] sm:$0xf]
          %v10954 = vld [vmem:[#allocation12 + $0xf0] sm:$0xf]
          %v10955 = vld [vmem:[#allocation12 + $0xf4] sm:$0xf]
          %v10956 = vld [vmem:[#allocation12 + $0xf8] sm:$0xf]
          %v10957 = vld [vmem:[#allocation12 + $0xfc] sm:$0xf]
          %v10958 = vld [vmem:[#allocation12 + $0x100] sm:$0xf]
          %v10959 = vld [vmem:[#allocation12 + $0x104] sm:$0xf]
          %v10960 = vld [vmem:[#allocation12 + $0x108] sm:$0xf]
          %v10961 = vld [vmem:[#allocation12 + $0x10c] sm:$0xf]
          %v10962 = vld [vmem:[#allocation12 + $0x110] sm:$0xf]
          %v10963 = vld [vmem:[#allocation12 + $0x114] sm:$0xf]
          %v10964 = vld [vmem:[#allocation12 + $0x118] sm:$0xf]
          %v10965 = vld [vmem:[#allocation12 + $0x11c] sm:$0xf]
          %v10966 = vld [vmem:[#allocation12 + $0x120] sm:$0xf]
          %v10967 = vld [vmem:[#allocation12 + $0x124] sm:$0xf]
          %v10968 = vld [vmem:[#allocation12 + $0x128] sm:$0xf]
          %v10969 = vld [vmem:[#allocation12 + $0x12c] sm:$0xf]
          %v10970 = vld [vmem:[#allocation12 + $0x130] sm:$0xf]
          %v10971 = vld [vmem:[#allocation12 + $0x134] sm:$0xf]
          %v10972 = vld [vmem:[#allocation12 + $0x138] sm:$0xf]
          %v10973 = vld [vmem:[#allocation12 + $0x13c] sm:$0xf]
          %v10974 = vld [vmem:[#allocation12 + $0x140] sm:$0xf]
          %v10975 = vld [vmem:[#allocation12 + $0x144] sm:$0xf]
          %v10976 = vld [vmem:[#allocation12 + $0x148] sm:$0xf]
          %v10977 = vld [vmem:[#allocation12 + $0x14c] sm:$0xf]
          %v10978 = vld [vmem:[#allocation12 + $0x150] sm:$0xf]
          %v10979 = vld [vmem:[#allocation12 + $0x154] sm:$0xf]
          %v10980 = vld [vmem:[#allocation12 + $0x158] sm:$0xf]
          %v10981 = vld [vmem:[#allocation12 + $0x15c] sm:$0xf]
          %v10982 = vld [vmem:[#allocation12 + $0x160] sm:$0xf]
          %v10983 = vld [vmem:[#allocation12 + $0x164] sm:$0xf]
          %v10984 = vld [vmem:[#allocation12 + $0x168] sm:$0xf]
          %v10985 = vld [vmem:[#allocation12 + $0x16c] sm:$0xf]
          %v10986 = vld [vmem:[#allocation12 + $0x170] sm:$0xf]
          %v10987 = vld [vmem:[#allocation12 + $0x174] sm:$0xf]
          %v10988 = vld [vmem:[#allocation12 + $0x178] sm:$0xf]
          %v10989 = vld [vmem:[#allocation12 + $0x17c] sm:$0xf]
          %v10990 = vld [vmem:[#allocation12 + $0x180] sm:$0xf]
          %v10991 = vld [vmem:[#allocation12 + $0x184] sm:$0xf]
          %v10992 = vld [vmem:[#allocation12 + $0x188] sm:$0xf]
          %v10993 = vld [vmem:[#allocation12 + $0x18c] sm:$0xf]
          %v10994 = vld [vmem:[#allocation12 + $0x190] sm:$0xf]
          %v10995 = vld [vmem:[#allocation12 + $0x194] sm:$0xf]
          %v10996 = vld [vmem:[#allocation12 + $0x198] sm:$0xf]
          %v10997 = vld [vmem:[#allocation12 + $0x19c] sm:$0xf]
          %v10998 = vld [vmem:[#allocation12 + $0x1a0] sm:$0xf]
          %v10999 = vld [vmem:[#allocation12 + $0x1a4] sm:$0xf]
          %v11000 = vld [vmem:[#allocation12 + $0x1a8] sm:$0xf]
          %v11001 = vld [vmem:[#allocation12 + $0x1ac] sm:$0xf]
          %v11002 = vld [vmem:[#allocation12 + $0x1b0] sm:$0xf]
          %v11003 = vld [vmem:[#allocation12 + $0x1b4] sm:$0xf]
          %v11004 = vld [vmem:[#allocation12 + $0x1b8] sm:$0xf]
          %v11005 = vld [vmem:[#allocation12 + $0x1bc] sm:$0xf]
          %v11006 = vld [vmem:[#allocation12 + $0x1c0] sm:$0xf]
          %v11007 = vld [vmem:[#allocation12 + $0x1c4] sm:$0xf]
          %v11008 = vld [vmem:[#allocation12 + $0x1c8] sm:$0xf]
          %v11009 = vld [vmem:[#allocation12 + $0x1cc] sm:$0xf]
          %v11010 = vld [vmem:[#allocation12 + $0x1d0] sm:$0xf]
          %v11011 = vld [vmem:[#allocation12 + $0x1d4] sm:$0xf]
          %v11012 = vld [vmem:[#allocation12 + $0x1d8] sm:$0xf]
          %v11013 = vld [vmem:[#allocation12 + $0x1dc] sm:$0xf]
          %v11014 = vld [vmem:[#allocation12 + $0x1e0] sm:$0xf]
          %v11015 = vld [vmem:[#allocation12 + $0x1e4] sm:$0xf]
          %v11016 = vld [vmem:[#allocation12 + $0x1e8] sm:$0xf]
          %v11017 = vld [vmem:[#allocation12 + $0x1ec] sm:$0xf]
          %v11018 = vld [vmem:[#allocation12 + $0x1f0] sm:$0xf]
          %v11019 = vld [vmem:[#allocation12 + $0x1f4] sm:$0xf]
          %v11020 = vld [vmem:[#allocation12 + $0x1f8] sm:$0xf]
          %v11021 = vld [vmem:[#allocation12 + $0x1fc] sm:$0xf]
          %v11022 = vld [vmem:[#allocation14] sm:$0x1]
          %v11024 = vlaneseq
          %v11025 = vshrl.u32 %v11024, 7
          %v11026 = vsub.s32 0, %v11025
          %v11027 = vrot.slane %v11022, %v11026
          %v11157 = vunpack.c.l.b16 %v10894
          %v11158 = vunpack.c.l.b16 %v10895
          %v11159 = vunpack.c.l.b16 %v10896
          %v11160 = vunpack.c.l.b16 %v10897
          %v11161 = vunpack.c.l.b16 %v10898
          %v11162 = vunpack.c.l.b16 %v10899
          %v11163 = vunpack.c.l.b16 %v10900
          %v11164 = vunpack.c.l.b16 %v10901
          %v11165 = vunpack.c.l.b16 %v10902
          %v11166 = vunpack.c.l.b16 %v10903
          %v11167 = vunpack.c.l.b16 %v10904
          %v11168 = vunpack.c.l.b16 %v10905
          %v11169 = vunpack.c.l.b16 %v10906
          %v11170 = vunpack.c.l.b16 %v10907
          %v11171 = vunpack.c.l.b16 %v10908
          %v11172 = vunpack.c.l.b16 %v10909
          %v11173 = vunpack.c.l.b16 %v10910
          %v11174 = vunpack.c.l.b16 %v10911
          %v11175 = vunpack.c.l.b16 %v10912
          %v11176 = vunpack.c.l.b16 %v10913
          %v11177 = vunpack.c.l.b16 %v10914
          %v11178 = vunpack.c.l.b16 %v10915
          %v11179 = vunpack.c.l.b16 %v10916
          %v11180 = vunpack.c.l.b16 %v10917
          %v11181 = vunpack.c.l.b16 %v10918
          %v11182 = vunpack.c.l.b16 %v10919
          %v11183 = vunpack.c.l.b16 %v10920
          %v11184 = vunpack.c.l.b16 %v10921
          %v11185 = vunpack.c.l.b16 %v10922
          %v11186 = vunpack.c.l.b16 %v10923
          %v11187 = vunpack.c.l.b16 %v10924
          %v11188 = vunpack.c.l.b16 %v10925
          %v11189 = vunpack.c.l.b16 %v10926
          %v11190 = vunpack.c.l.b16 %v10927
          %v11191 = vunpack.c.l.b16 %v10928
          %v11192 = vunpack.c.l.b16 %v10929
          %v11193 = vunpack.c.l.b16 %v10930
          %v11194 = vunpack.c.l.b16 %v10931
          %v11195 = vunpack.c.l.b16 %v10932
          %v11196 = vunpack.c.l.b16 %v10933
          %v11197 = vunpack.c.l.b16 %v10934
          %v11198 = vunpack.c.l.b16 %v10935
          %v11199 = vunpack.c.l.b16 %v10936
          %v11200 = vunpack.c.l.b16 %v10937
          %v11201 = vunpack.c.l.b16 %v10938
          %v11202 = vunpack.c.l.b16 %v10939
          %v11203 = vunpack.c.l.b16 %v10940
          %v11204 = vunpack.c.l.b16 %v10941
          %v11205 = vunpack.c.l.b16 %v10942
          %v11206 = vunpack.c.l.b16 %v10943
          %v11207 = vunpack.c.l.b16 %v10944
          %v11208 = vunpack.c.l.b16 %v10945
          %v11209 = vunpack.c.l.b16 %v10946
          %v11210 = vunpack.c.l.b16 %v10947
          %v11211 = vunpack.c.l.b16 %v10948
          %v11212 = vunpack.c.l.b16 %v10949
          %v11213 = vunpack.c.l.b16 %v10950
          %v11214 = vunpack.c.l.b16 %v10951
          %v11215 = vunpack.c.l.b16 %v10952
          %v11216 = vunpack.c.l.b16 %v10953
          %v11217 = vunpack.c.l.b16 %v10954
          %v11218 = vunpack.c.l.b16 %v10955
          %v11219 = vunpack.c.l.b16 %v10956
          %v11220 = vunpack.c.l.b16 %v10957
          %v11221 = vunpack.c.l.b16 %v10958
          %v11222 = vunpack.c.l.b16 %v10959
          %v11223 = vunpack.c.l.b16 %v10960
          %v11224 = vunpack.c.l.b16 %v10961
          %v11225 = vunpack.c.l.b16 %v10962
          %v11226 = vunpack.c.l.b16 %v10963
          %v11227 = vunpack.c.l.b16 %v10964
          %v11228 = vunpack.c.l.b16 %v10965
          %v11229 = vunpack.c.l.b16 %v10966
          %v11230 = vunpack.c.l.b16 %v10967
          %v11231 = vunpack.c.l.b16 %v10968
          %v11232 = vunpack.c.l.b16 %v10969
          %v11233 = vunpack.c.l.b16 %v10970
          %v11234 = vunpack.c.l.b16 %v10971
          %v11235 = vunpack.c.l.b16 %v10972
          %v11236 = vunpack.c.l.b16 %v10973
          %v11237 = vunpack.c.l.b16 %v10974
          %v11238 = vunpack.c.l.b16 %v10975
          %v11239 = vunpack.c.l.b16 %v10976
          %v11240 = vunpack.c.l.b16 %v10977
          %v11241 = vunpack.c.l.b16 %v10978
          %v11242 = vunpack.c.l.b16 %v10979
          %v11243 = vunpack.c.l.b16 %v10980
          %v11244 = vunpack.c.l.b16 %v10981
          %v11245 = vunpack.c.l.b16 %v10982
          %v11246 = vunpack.c.l.b16 %v10983
          %v11247 = vunpack.c.l.b16 %v10984
          %v11248 = vunpack.c.l.b16 %v10985
          %v11249 = vunpack.c.l.b16 %v10986
          %v11250 = vunpack.c.l.b16 %v10987
          %v11251 = vunpack.c.l.b16 %v10988
          %v11252 = vunpack.c.l.b16 %v10989
          %v11253 = vunpack.c.l.b16 %v10990
          %v11254 = vunpack.c.l.b16 %v10991
          %v11255 = vunpack.c.l.b16 %v10992
          %v11256 = vunpack.c.l.b16 %v10993
          %v11257 = vunpack.c.l.b16 %v10994
          %v11258 = vunpack.c.l.b16 %v10995
          %v11259 = vunpack.c.l.b16 %v10996
          %v11260 = vunpack.c.l.b16 %v10997
          %v11261 = vunpack.c.l.b16 %v10998
          %v11262 = vunpack.c.l.b16 %v10999
          %v11263 = vunpack.c.l.b16 %v11000
          %v11264 = vunpack.c.l.b16 %v11001
          %v11265 = vunpack.c.l.b16 %v11002
          %v11266 = vunpack.c.l.b16 %v11003
          %v11267 = vunpack.c.l.b16 %v11004
          %v11268 = vunpack.c.l.b16 %v11005
          %v11269 = vunpack.c.l.b16 %v11006
          %v11270 = vunpack.c.l.b16 %v11007
          %v11271 = vunpack.c.l.b16 %v11008
          %v11272 = vunpack.c.l.b16 %v11009
          %v11273 = vunpack.c.l.b16 %v11010
          %v11274 = vunpack.c.l.b16 %v11011
          %v11275 = vunpack.c.l.b16 %v11012
          %v11276 = vunpack.c.l.b16 %v11013
          %v11277 = vunpack.c.l.b16 %v11014
          %v11278 = vunpack.c.l.b16 %v11015
          %v11279 = vunpack.c.l.b16 %v11016
          %v11280 = vunpack.c.l.b16 %v11017
          %v11281 = vunpack.c.l.b16 %v11018
          %v11282 = vunpack.c.l.b16 %v11019
          %v11283 = vunpack.c.l.b16 %v11020
          %v11284 = vunpack.c.l.b16 %v11021
          %v11285 = vpack.c.b16 %v11158, %v11157
          %v11286 = vpack.c.b16 %v11160, %v11159
          %v11287 = vpack.c.b16 %v11162, %v11161
          %v11288 = vpack.c.b16 %v11164, %v11163
          %v11289 = vpack.c.b16 %v11166, %v11165
          %v11290 = vpack.c.b16 %v11168, %v11167
          %v11291 = vpack.c.b16 %v11170, %v11169
          %v11292 = vpack.c.b16 %v11172, %v11171
          %v11293 = vpack.c.b16 %v11174, %v11173
          %v11294 = vpack.c.b16 %v11176, %v11175
          %v11295 = vpack.c.b16 %v11178, %v11177
          %v11296 = vpack.c.b16 %v11180, %v11179
          %v11297 = vpack.c.b16 %v11182, %v11181
          %v11298 = vpack.c.b16 %v11184, %v11183
          %v11299 = vpack.c.b16 %v11186, %v11185
          %v11300 = vpack.c.b16 %v11188, %v11187
          %v11301 = vpack.c.b16 %v11190, %v11189
          %v11302 = vpack.c.b16 %v11192, %v11191
          %v11303 = vpack.c.b16 %v11194, %v11193
          %v11304 = vpack.c.b16 %v11196, %v11195
          %v11305 = vpack.c.b16 %v11198, %v11197
          %v11306 = vpack.c.b16 %v11200, %v11199
          %v11307 = vpack.c.b16 %v11202, %v11201
          %v11308 = vpack.c.b16 %v11204, %v11203
          %v11309 = vpack.c.b16 %v11206, %v11205
          %v11310 = vpack.c.b16 %v11208, %v11207
          %v11311 = vpack.c.b16 %v11210, %v11209
          %v11312 = vpack.c.b16 %v11212, %v11211
          %v11313 = vpack.c.b16 %v11214, %v11213
          %v11314 = vpack.c.b16 %v11216, %v11215
          %v11315 = vpack.c.b16 %v11218, %v11217
          %v11316 = vpack.c.b16 %v11220, %v11219
          %v11317 = vpack.c.b16 %v11222, %v11221
          %v11318 = vpack.c.b16 %v11224, %v11223
          %v11319 = vpack.c.b16 %v11226, %v11225
          %v11320 = vpack.c.b16 %v11228, %v11227
          %v11321 = vpack.c.b16 %v11230, %v11229
          %v11322 = vpack.c.b16 %v11232, %v11231
          %v11323 = vpack.c.b16 %v11234, %v11233
          %v11324 = vpack.c.b16 %v11236, %v11235
          %v11325 = vpack.c.b16 %v11238, %v11237
          %v11326 = vpack.c.b16 %v11240, %v11239
          %v11327 = vpack.c.b16 %v11242, %v11241
          %v11328 = vpack.c.b16 %v11244, %v11243
          %v11329 = vpack.c.b16 %v11246, %v11245
          %v11330 = vpack.c.b16 %v11248, %v11247
          %v11331 = vpack.c.b16 %v11250, %v11249
          %v11332 = vpack.c.b16 %v11252, %v11251
          %v11333 = vpack.c.b16 %v11254, %v11253
          %v11334 = vpack.c.b16 %v11256, %v11255
          %v11335 = vpack.c.b16 %v11258, %v11257
          %v11336 = vpack.c.b16 %v11260, %v11259
          %v11337 = vpack.c.b16 %v11262, %v11261
          %v11338 = vpack.c.b16 %v11264, %v11263
          %v11339 = vpack.c.b16 %v11266, %v11265
          %v11340 = vpack.c.b16 %v11268, %v11267
          %v11341 = vpack.c.b16 %v11270, %v11269
          %v11342 = vpack.c.b16 %v11272, %v11271
          %v11343 = vpack.c.b16 %v11274, %v11273
          %v11344 = vpack.c.b16 %v11276, %v11275
          %v11345 = vpack.c.b16 %v11278, %v11277
          %v11346 = vpack.c.b16 %v11280, %v11279
          %v11347 = vpack.c.b16 %v11282, %v11281
          %v11348 = vpack.c.b16 %v11284, %v11283
          %11413 = vmatprep.subr.bf16.mxu0 0
          %11414 = vmatpush1.bf16.msra.mxu0 %v11285
          %11415 = vmatprep.subr.bf16.mxu0 0
          %11416 = vmatpush1.bf16.msra.mxu0 %v11286
          %11417 = vmatprep.subr.bf16.mxu0 0
          %11418 = vmatpush1.bf16.msra.mxu0 %v11287
          %11419 = vmatprep.subr.bf16.mxu0 0
          %11420 = vmatpush1.bf16.msra.mxu0 %v11288
          %11421 = vmatprep.subr.bf16.mxu0 0
          %11422 = vmatpush1.bf16.msra.mxu0 %v11289
          %11423 = vmatprep.subr.bf16.mxu0 0
          %11424 = vmatpush1.bf16.msra.mxu0 %v11290
          %11425 = vmatprep.subr.bf16.mxu0 0
          %11426 = vmatpush1.bf16.msra.mxu0 %v11291
          %11427 = vmatprep.subr.bf16.mxu0 0
          %11428 = vmatpush1.bf16.msra.mxu0 %v11292
          %11429 = vmatprep.subr.bf16.mxu0 0
          %11430 = vmatpush1.bf16.msra.mxu0 %v11293
          %11431 = vmatprep.subr.bf16.mxu0 0
          %11432 = vmatpush1.bf16.msra.mxu0 %v11294
          %11433 = vmatprep.subr.bf16.mxu0 0
          %11434 = vmatpush1.bf16.msra.mxu0 %v11295
          %11435 = vmatprep.subr.bf16.mxu0 0
          %11436 = vmatpush1.bf16.msra.mxu0 %v11296
          %11437 = vmatprep.subr.bf16.mxu0 0
          %11438 = vmatpush1.bf16.msra.mxu0 %v11297
          %11439 = vmatprep.subr.bf16.mxu0 0
          %11440 = vmatpush1.bf16.msra.mxu0 %v11298
          %11441 = vmatprep.subr.bf16.mxu0 0
          %11442 = vmatpush1.bf16.msra.mxu0 %v11299
          %11443 = vmatprep.subr.bf16.mxu0 0
          %11444 = vmatpush1.bf16.msra.mxu0 %v11300
          %11445 = vmatprep.mubr.bf16.mxu0 %v10887
          %11446 = vmatmul.mubr.bf16.gmra.mrb[0].mxu0 %v10886
          %v11447 = vpop.f32.mrb[0].mxu0
          %v11448 = vadd.f32 %v11027, %v11447
          %v11449 = vpop.f32.mrb[0].mxu0
          %v11450 = vpop.f32.mrb[0].mxu0
          %v11451 = vpop.f32.mrb[0].mxu0
          %11452 = vdwg.mxu0
          %11453 = vmatprep.subr.bf16.mxu0 0
          %11454 = vmatpush1.bf16.msra.mxu0 %v11301
          %11455 = vmatprep.subr.bf16.mxu0 0
          %11456 = vmatpush1.bf16.msra.mxu0 %v11302
          %11457 = vmatprep.subr.bf16.mxu0 0
          %11458 = vmatpush1.bf16.msra.mxu0 %v11303
          %11459 = vmatprep.subr.bf16.mxu0 0
          %11460 = vmatpush1.bf16.msra.mxu0 %v11304
          %11461 = vmatprep.subr.bf16.mxu0 0
          %11462 = vmatpush1.bf16.msra.mxu0 %v11305
          %11463 = vmatprep.subr.bf16.mxu0 0
          %11464 = vmatpush1.bf16.msra.mxu0 %v11306
          %11465 = vmatprep.subr.bf16.mxu0 0
          %11466 = vmatpush1.bf16.msra.mxu0 %v11307
          %11467 = vmatprep.subr.bf16.mxu0 0
          %11468 = vmatpush1.bf16.msra.mxu0 %v11308
          %11469 = vmatprep.subr.bf16.mxu0 0
          %11470 = vmatpush1.bf16.msra.mxu0 %v11309
          %11471 = vmatprep.subr.bf16.mxu0 0
          %11472 = vmatpush1.bf16.msra.mxu0 %v11310
          %11473 = vmatprep.subr.bf16.mxu0 0
          %11474 = vmatpush1.bf16.msra.mxu0 %v11311
          %11475 = vmatprep.subr.bf16.mxu0 0
          %11476 = vmatpush1.bf16.msra.mxu0 %v11312
          %11477 = vmatprep.subr.bf16.mxu0 0
          %11478 = vmatpush1.bf16.msra.mxu0 %v11313
          %11479 = vmatprep.subr.bf16.mxu0 0
          %11480 = vmatpush1.bf16.msra.mxu0 %v11314
          %11481 = vmatprep.subr.bf16.mxu0 0
          %11482 = vmatpush1.bf16.msra.mxu0 %v11315
          %11483 = vmatprep.subr.bf16.mxu0 0
          %11484 = vmatpush1.bf16.msra.mxu0 %v11316
          %11485 = vmatprep.mubr.bf16.mxu0 %v10889
          %11486 = vmatmul.mubr.bf16.gmra.mrb[0].mxu0 %v10888
          %v11487 = vpop.f32.mrb[0].mxu0
          %v11488 = vadd.f32 %v11448, %v11487
          %v11489 = vpop.f32.mrb[0].mxu0
          %v11490 = vpop.f32.mrb[0].mxu0
          %v11491 = vpop.f32.mrb[0].mxu0
          %11492 = vdwg.mxu0
          %11493 = vmatprep.subr.bf16.mxu0 0
          %11494 = vmatpush1.bf16.msra.mxu0 %v11317
          %11495 = vmatprep.subr.bf16.mxu0 0
          %11496 = vmatpush1.bf16.msra.mxu0 %v11318
          %11497 = vmatprep.subr.bf16.mxu0 0
          %11498 = vmatpush1.bf16.msra.mxu0 %v11319
          %11499 = vmatprep.subr.bf16.mxu0 0
          %11500 = vmatpush1.bf16.msra.mxu0 %v11320
          %11501 = vmatprep.subr.bf16.mxu0 0
          %11502 = vmatpush1.bf16.msra.mxu0 %v11321
          %11503 = vmatprep.subr.bf16.mxu0 0
          %11504 = vmatpush1.bf16.msra.mxu0 %v11322
          %11505 = vmatprep.subr.bf16.mxu0 0
          %11506 = vmatpush1.bf16.msra.mxu0 %v11323
          %11507 = vmatprep.subr.bf16.mxu0 0
          %11508 = vmatpush1.bf16.msra.mxu0 %v11324
          %11509 = vmatprep.subr.bf16.mxu0 0
          %11510 = vmatpush1.bf16.msra.mxu0 %v11325
          %11511 = vmatprep.subr.bf16.mxu0 0
          %11512 = vmatpush1.bf16.msra.mxu0 %v11326
          %11513 = vmatprep.subr.bf16.mxu0 0
          %11514 = vmatpush1.bf16.msra.mxu0 %v11327
          %11515 = vmatprep.subr.bf16.mxu0 0
          %11516 = vmatpush1.bf16.msra.mxu0 %v11328
          %11517 = vmatprep.subr.bf16.mxu0 0
          %11518 = vmatpush1.bf16.msra.mxu0 %v11329
          %11519 = vmatprep.subr.bf16.mxu0 0
          %11520 = vmatpush1.bf16.msra.mxu0 %v11330
          %11521 = vmatprep.subr.bf16.mxu0 0
          %11522 = vmatpush1.bf16.msra.mxu0 %v11331
          %11523 = vmatprep.subr.bf16.mxu0 0
          %11524 = vmatpush1.bf16.msra.mxu0 %v11332
          %11525 = vmatprep.mubr.bf16.mxu0 %v10891
          %11526 = vmatmul.mubr.bf16.gmra.mrb[0].mxu0 %v10890
          %v11527 = vpop.f32.mrb[0].mxu0
          %v11528 = vadd.f32 %v11488, %v11527
          %v11529 = vpop.f32.mrb[0].mxu0
          %v11530 = vpop.f32.mrb[0].mxu0
          %v11531 = vpop.f32.mrb[0].mxu0
          %11532 = vdwg.mxu0
          %11533 = vmatprep.subr.bf16.mxu0 0
          %11534 = vmatpush1.bf16.msra.mxu0 %v11333
          %11535 = vmatprep.subr.bf16.mxu0 0
          %11536 = vmatpush1.bf16.msra.mxu0 %v11334
          %11537 = vmatprep.subr.bf16.mxu0 0
          %11538 = vmatpush1.bf16.msra.mxu0 %v11335
          %11539 = vmatprep.subr.bf16.mxu0 0
          %11540 = vmatpush1.bf16.msra.mxu0 %v11336
          %11541 = vmatprep.subr.bf16.mxu0 0
          %11542 = vmatpush1.bf16.msra.mxu0 %v11337
          %11543 = vmatprep.subr.bf16.mxu0 0
          %11544 = vmatpush1.bf16.msra.mxu0 %v11338
          %11545 = vmatprep.subr.bf16.mxu0 0
          %11546 = vmatpush1.bf16.msra.mxu0 %v11339
          %11547 = vmatprep.subr.bf16.mxu0 0
          %11548 = vmatpush1.bf16.msra.mxu0 %v11340
          %11549 = vmatprep.subr.bf16.mxu0 0
          %11550 = vmatpush1.bf16.msra.mxu0 %v11341
          %11551 = vmatprep.subr.bf16.mxu0 0
          %11552 = vmatpush1.bf16.msra.mxu0 %v11342
          %11553 = vmatprep.subr.bf16.mxu0 0
          %11554 = vmatpush1.bf16.msra.mxu0 %v11343
          %11555 = vmatprep.subr.bf16.mxu0 0
          %11556 = vmatpush1.bf16.msra.mxu0 %v11344
          %11557 = vmatprep.subr.bf16.mxu0 0
          %11558 = vmatpush1.bf16.msra.mxu0 %v11345
          %11559 = vmatprep.subr.bf16.mxu0 0
          %11560 = vmatpush1.bf16.msra.mxu0 %v11346
          %11561 = vmatprep.subr.bf16.mxu0 0
          %11562 = vmatpush1.bf16.msra.mxu0 %v11347
          %11563 = vmatprep.subr.bf16.mxu0 0
          %11564 = vmatpush1.bf16.msra.mxu0 %v11348
          %11565 = vmatprep.mubr.bf16.mxu0 %v10893
          %11566 = vmatmul.mubr.bf16.gmra.mrb[0].mxu0 %v10892
          %v11567 = vpop.f32.mrb[0].mxu0
          %v11568 = vadd.f32 %v11528, %v11567
          %v11569 = vpop.f32.mrb[0].mxu0
          %v11570 = vpop.f32.mrb[0].mxu0
          %v11571 = vpop.f32.mrb[0].mxu0
          %11572 = vdwg.mxu0
          %11573 = vst [vmem:[#allocation15] sm:$0xff] %v11568
        $region84: #{tpu_custom_call.1} parent=47 // pred_fallthru
          _
        // Predicated region
        $region85: #{tpu_custom_call.1} parent=47 // pred_check
          %p11574 = pneg %p216
        $region86: #{tpu_custom_call.1} parent=47 // pred_check_branch
          %11576 = sbr.rel (%p11574) target = $region88
        $region87: #{tpu_custom_call.1} parent=47 // pred_region
          %s11578 = ssub.s32 128, 128
          %11579 = vsyncadd [#allocation5], %s11578
          %s11580 = smul.addr %s31, 128
          %s11581 = scalar_lea.hbm %s7, %s11580
          %s11583 = sshll.u32 [#allocation15], 4
          %s11584 = int_to_ptr.vmem [resolvable:$true] %s11583
          %11586 = dma.vmem_to_hbm [thread:$0]  %s11584, 128, %s11581, [#allocation5]
        $region88: #{tpu_custom_call.1} parent=47 // pred_fallthru
          _
        // Predicated region
        $region89: #{tpu_custom_call.1} parent=47 // pred_check
          %p11587 = pneg %p216
        $region90: #{tpu_custom_call.1} parent=47 // pred_check_branch
          %11589 = sbr.rel (%p11587) target = $region92
        $region91: #{tpu_custom_call.1} parent=47 // pred_region
          %11590 = dma.done [#allocation5], 128
        $region92: #{tpu_custom_call.1} parent=47 // pred_fallthru
          _
      $region48: #{tpu_custom_call.1} parent=5 // pred_fallthru
        _
      %p11591 = scmp.le.s32.totalorder 2, %s22
      // Predicated region
      $region93: #{tpu_custom_call.1} parent=5 // pred_check
        %p11592 = pneg %p11591
      $region94: #{tpu_custom_call.1} parent=5 // pred_check_branch
        %11594 = sbr.rel (%p11592) target = $region96
      $region95: #{tpu_custom_call.1} parent=5 // pred_region
        %s11595 = ssub.s32 %s22, 2
      $region96: #{tpu_custom_call.1} parent=5 // pred_fallthru
        _
    $region6: #{tpu_custom_call.1} parent=1 // loop_footer
      %s26 = sadd.s32 1, %s22
    $region7: #{tpu_custom_call.1} parent=1 // loop_footer_branch
      %21 = sbr.rel target = $region3
    $region8: #{tpu_custom_call.1} parent=1 // loop_exit
      _
    %11596 = vsyncpa [#allocation4], 1
    %s11597 = scalar_lea.sflag [#allocation4], 1
    %11598 = vsyncpa %s11597, 1
    %11599 = vsyncpa [#allocation7], 1
    %s11600 = scalar_lea.sflag [#allocation7], 1
    %11601 = vsyncpa %s11600, 1
    %11602 = vsyncpa [#allocation10], 1
    %11603 = vsyncpa [#allocation13], 1
    %11604 = vsyncpa [#allocation5], 1
    %s11605 = scalar_lea.sflag [#allocation5], 1
    %11606 = vsyncpa %s11605, 1

</llo_original>
